<compile_context>
chip_gen: v7x
topology: tpu7x:2x2x1
jax: 0.10.0
libtpu: 0.0.40
codegen_flags: <defaults>
</compile_context>

<pallas_src>
import functools

import jax
import jax.numpy as jnp
from jax.experimental import pallas as pl
from jax.experimental.pallas import tpu as pltpu


def _reflect_pad_hw(x, pad):
    """ReflectionPad2d(pad) on an (H, W, C) array via row/col slice concat."""
    if pad == 0:
        return x
    h, w = x.shape[0], x.shape[1]
    rows = ([x[pad - i:pad - i + 1] for i in range(pad)]          # rows pad..1
            + [x]
            + [x[h - 2 - i:h - 1 - i] for i in range(pad)])       # rows h-2..h-1-pad
    x = jnp.concatenate(rows, axis=0)
    cols = ([x[:, pad - i:pad - i + 1, :] for i in range(pad)]
            + [x]
            + [x[:, w - 2 - i:w - 1 - i, :] for i in range(pad)])
    return jnp.concatenate(cols, axis=1)


def _conv_tanh(act, w_flat, b, *, K, H, W):
    """ReflectionPad((K-1)//2) -> valid KxK conv -> bias -> tanh.

    act:    (H, W, Cin)        float32 (or bf16)
    w_flat: (K*K*Cin, Cout)    bfloat16, rows ordered (ky, kx, cin)  [HWIO flat]
    b:      (1, Cout)          float32
    returns (H, W, Cout)       float32
    """
    pad = (K - 1) // 2
    cin = act.shape[-1]
    # Cast once, before the pad / im2col copies: halves the bytes moved while
    # building patches; same bf16 values feed the MXU either way.
    xp = _reflect_pad_hw(act.astype(jnp.bfloat16), pad)    # (H+2p, W+2p, Cin) bf16

    # im2col: one wide contraction per layer instead of K*K narrow ones.
    slabs = []
    for ky in range(K):
        rows = xp[ky:ky + H]                               # (H, W+2p, Cin)
        pieces = [rows[:, kx:kx + W, :].reshape(H * W, cin) for kx in range(K)]
        slabs.append(jnp.concatenate(pieces, axis=-1))     # (H*W, K*Cin)
    patches = jnp.concatenate(slabs, axis=-1)              # (H*W, K*K*Cin) bf16

    acc = jnp.dot(patches, w_flat,
                  preferred_element_type=jnp.float32)      # (H*W, Cout) f32
    y = jnp.tanh(acc + b)                                  # bias + tanh in f32
    return y.reshape(H, W, -1)


def _espcn_kernel(x_ref, w1_ref, b1_ref, w2_ref, b2_ref, w3_ref, b3_ref,
                  o_ref, *, H, W):
    """One batch element: 3 fused reflect-pad + conv + tanh layers.

    x_ref: (1, H, W, Cin) f32
    w*_ref: (K*K*Cin, Cout) bf16 ; b*_ref: (1, Cout) f32
    o_ref: (1, Cout3, H*W) f32   -- conv-3 activations, channels-major (NCHW).
    """
    a = _conv_tanh(x_ref[0], w1_ref[...], b1_ref[...], K=9, H=H, W=W)
    a = _conv_tanh(a, w2_ref[...], b2_ref[...], K=5, H=H, W=W)
    a = _conv_tanh(a, w3_ref[...], b3_ref[...], K=5, H=H, W=W)   # (H, W, c*r*r)
    c3 = a.shape[-1]
    # Channels-major, spatially flattened: lane-dense (H*W = 256 lanes) store
    # and directly the NCHW layout the PixelShuffle wrapper expects.
    o_ref[0] = a.reshape(H * W, c3).T.astype(o_ref.dtype)


def pixel_shuffle_nchw(x, r):
    """PyTorch nn.PixelShuffle(r) semantics on NCHW."""
    N, C, H, W = x.shape
    c = C // (r * r)
    x = x.reshape(N, c, r, r, H, W)
    x = x.transpose(0, 1, 4, 2, 5, 3)
    return x.reshape(N, c, H * r, W * r)


def espcn_forward(x_nchw, params, r):
    N, Cin, H, W = x_nchw.shape
    x_nhwc = jnp.transpose(x_nchw, (0, 2, 3, 1)).astype(jnp.float32)

    def flat_w(w):
        k, _, cin, cout = w.shape
        return w.reshape(k * k * cin, cout).astype(jnp.bfloat16)

    w1, w2, w3 = flat_w(params["w1"]), flat_w(params["w2"]), flat_w(params["w3"])
    b1 = params["b1"].reshape(1, -1).astype(jnp.float32)
    b2 = params["b2"].reshape(1, -1).astype(jnp.float32)
    b3 = params["b3"].reshape(1, -1).astype(jnp.float32)
    c3 = w3.shape[-1]

    def full_spec(arr):
        zeros = (0,) * arr.ndim
        return pl.BlockSpec(arr.shape, lambda n: zeros)

    y = pl.pallas_call(
        functools.partial(_espcn_kernel, H=H, W=W),
        out_shape=jax.ShapeDtypeStruct((N, c3, H * W), jnp.float32),
        grid_spec=pltpu.PrefetchScalarGridSpec(
            num_scalar_prefetch=0,
            grid=(N,),
            in_specs=[
                pl.BlockSpec((1, H, W, Cin), lambda n: (n, 0, 0, 0)),
                full_spec(w1), full_spec(b1),
                full_spec(w2), full_spec(b2),
                full_spec(w3), full_spec(b3),
            ],
            out_specs=pl.BlockSpec((1, c3, H * W), lambda n: (n, 0, 0)),
        ),
        compiler_params=pltpu.CompilerParams(
            dimension_semantics=("parallel",),
            vmem_limit_bytes=32 * 1024 * 1024),
    )(x_nhwc, w1, b1, w2, b2, w3, b3)

    y = y.reshape(N, c3, H, W)          # kernel already wrote NCHW; free reshape
    return pixel_shuffle_nchw(y, r)     # tiny index shuffle, fused under jit


def espcn_reference(x_nchw, params, r):
    """Pure-JAX f32 reference (lax.conv) used to validate the Pallas kernel."""
    x = jnp.transpose(x_nchw, (0, 2, 3, 1))
    for wk, bk, pad in (("w1", "b1", 4), ("w2", "b2", 2), ("w3", "b3", 2)):
        xp = jnp.pad(x, ((0, 0), (pad, pad), (pad, pad), (0, 0)),
                     mode="reflect")
        x = jax.lax.conv_general_dilated(
            xp, params[wk], window_strides=(1, 1), padding="VALID",
            dimension_numbers=("NHWC", "HWIO", "NHWC"))
        x = jnp.tanh(x + params[bk])
    x = jnp.transpose(x, (0, 3, 1, 2))
    return pixel_shuffle_nchw(x, r)


def init_params(key, input_c, r):
    """Deterministic synthetic params; shapes match nn.Conv2d, stored as HWIO."""
    ks = jax.random.split(key, 6)

    def conv_init(kw, kb, K, cin, cout):
        fan_in = cin * K * K
        bound = 1.0 / (fan_in ** 0.5)
        w = jax.random.uniform(kw, (K, K, cin, cout), jnp.float32,
                               minval=-bound, maxval=bound)
        b = jax.random.uniform(kb, (cout,), jnp.float32,
                               minval=-bound, maxval=bound)
        return w, b

    w1, b1 = conv_init(ks[0], ks[1], 9, input_c, 64)
    w2, b2 = conv_init(ks[2], ks[3], 5, 64, 32)
    w3, b3 = conv_init(ks[4], ks[5], 5, 32, input_c * r * r)
    return {"w1": w1, "b1": b1, "w2": w2, "b2": b2, "w3": w3, "b3": b3}


if __name__ == "__main__":
    input_c, r = 4, 2
    N, H, W = 2, 16, 16

    key = jax.random.PRNGKey(0)
    k_x, k_p = jax.random.split(key)
    x = jax.random.normal(k_x, (N, input_c, H, W), jnp.float32)
    params = init_params(k_p, input_c, r)

    fwd = jax.jit(functools.partial(espcn_forward, r=r))
    out = jax.block_until_ready(fwd(x, params))
    assert out.shape == (N, input_c, H * r, W * r), out.shape

    ref = jax.block_until_ready(espcn_reference(x, params, r))
    max_err = float(jnp.max(jnp.abs(out - ref)))
    # bf16 MXU inputs with f32 accumulation -> relaxed tolerance vs f32 ref.
    assert max_err < 3e-2, max_err

    print("KERNEL_OK")
</pallas_src>

<mosaic_0001>
module attributes {stable_mosaic.version = 11 : i64} {
  func.func @_espcn_kernel(%arg0: i32, %arg1: memref<1x16x16x4xf32, #tpu.memory_space<vmem>>, %arg2: memref<324x64xbf16, #tpu.memory_space<vmem>>, %arg3: memref<1x64xf32, #tpu.memory_space<vmem>>, %arg4: memref<1600x32xbf16, #tpu.memory_space<vmem>>, %arg5: memref<1x32xf32, #tpu.memory_space<vmem>>, %arg6: memref<800x16xbf16, #tpu.memory_space<vmem>>, %arg7: memref<1x16xf32, #tpu.memory_space<vmem>>, %arg8: memref<1x16x256xf32, #tpu.memory_space<vmem>>) attributes {dimension_semantics = [#tpu.dimension_semantics<parallel>], iteration_bounds = array<i64: 2>, scalar_prefetch = 0 : i64, scratch_operands = 0 : i64, tpu.core_type = #tpu.core_type<tc>, window_params = [{transform_indices = @transform_0, window_bounds = array<i64: 1, 16, 16, 4>}, {pipeline_mode = #tpu.pipeline_mode<synchronous>, transform_indices = @transform_1, window_bounds = array<i64: 324, 64>}, {pipeline_mode = #tpu.pipeline_mode<synchronous>, transform_indices = @transform_2, window_bounds = array<i64: 1, 64>}, {pipeline_mode = #tpu.pipeline_mode<synchronous>, transform_indices = @transform_3, window_bounds = array<i64: 1600, 32>}, {pipeline_mode = #tpu.pipeline_mode<synchronous>, transform_indices = @transform_4, window_bounds = array<i64: 1, 32>}, {pipeline_mode = #tpu.pipeline_mode<synchronous>, transform_indices = @transform_5, window_bounds = array<i64: 800, 16>}, {pipeline_mode = #tpu.pipeline_mode<synchronous>, transform_indices = @transform_6, window_bounds = array<i64: 1, 16>}, {transform_indices = @transform_7, window_bounds = array<i64: 1, 16, 256>}]} {
    %c0 = arith.constant 0 : index
    %c0_0 = arith.constant 0 : index
    %c0_1 = arith.constant 0 : index
    %c0_2 = arith.constant 0 : index
    %0 = vector.load %arg1[%c0, %c0_0, %c0_1, %c0_2] : memref<1x16x16x4xf32, #tpu.memory_space<vmem>>, vector<1x16x16x4xf32>
    %1 = vector.shape_cast %0 : vector<1x16x16x4xf32> to vector<16x16x4xf32>
    %c0_3 = arith.constant 0 : index
    %c0_4 = arith.constant 0 : index
    %2 = vector.load %arg2[%c0_3, %c0_4] : memref<324x64xbf16, #tpu.memory_space<vmem>>, vector<324x64xbf16>
    %c0_5 = arith.constant 0 : index
    %c0_6 = arith.constant 0 : index
    %3 = vector.load %arg3[%c0_5, %c0_6] : memref<1x64xf32, #tpu.memory_space<vmem>>, vector<1x64xf32>
    %4 = arith.truncf %1 : vector<16x16x4xf32> to vector<16x16x4xbf16>
    %5 = vector.extract_strided_slice %4 {offsets = [4, 0, 0], sizes = [1, 16, 4], strides = [1, 1, 1]} : vector<16x16x4xbf16> to vector<1x16x4xbf16>
    %6 = vector.extract_strided_slice %4 {offsets = [3, 0, 0], sizes = [1, 16, 4], strides = [1, 1, 1]} : vector<16x16x4xbf16> to vector<1x16x4xbf16>
    %7 = vector.extract_strided_slice %4 {offsets = [2, 0, 0], sizes = [1, 16, 4], strides = [1, 1, 1]} : vector<16x16x4xbf16> to vector<1x16x4xbf16>
    %8 = vector.extract_strided_slice %4 {offsets = [1, 0, 0], sizes = [1, 16, 4], strides = [1, 1, 1]} : vector<16x16x4xbf16> to vector<1x16x4xbf16>
    %9 = vector.extract_strided_slice %4 {offsets = [14, 0, 0], sizes = [1, 16, 4], strides = [1, 1, 1]} : vector<16x16x4xbf16> to vector<1x16x4xbf16>
    %10 = vector.extract_strided_slice %4 {offsets = [13, 0, 0], sizes = [1, 16, 4], strides = [1, 1, 1]} : vector<16x16x4xbf16> to vector<1x16x4xbf16>
    %11 = vector.extract_strided_slice %4 {offsets = [12, 0, 0], sizes = [1, 16, 4], strides = [1, 1, 1]} : vector<16x16x4xbf16> to vector<1x16x4xbf16>
    %12 = vector.extract_strided_slice %4 {offsets = [11, 0, 0], sizes = [1, 16, 4], strides = [1, 1, 1]} : vector<16x16x4xbf16> to vector<1x16x4xbf16>
    %13 = tpu.concatenate %5, %6, %7, %8, %4, %9, %10, %11, %12 in 0 : vector<1x16x4xbf16>, vector<1x16x4xbf16>, vector<1x16x4xbf16>, vector<1x16x4xbf16>, vector<16x16x4xbf16>, vector<1x16x4xbf16>, vector<1x16x4xbf16>, vector<1x16x4xbf16>, vector<1x16x4xbf16> -> vector<24x16x4xbf16>
    %14 = vector.extract_strided_slice %13 {offsets = [0, 4, 0], sizes = [24, 1, 4], strides = [1, 1, 1]} : vector<24x16x4xbf16> to vector<24x1x4xbf16>
    %15 = vector.extract_strided_slice %13 {offsets = [0, 3, 0], sizes = [24, 1, 4], strides = [1, 1, 1]} : vector<24x16x4xbf16> to vector<24x1x4xbf16>
    %16 = vector.extract_strided_slice %13 {offsets = [0, 2, 0], sizes = [24, 1, 4], strides = [1, 1, 1]} : vector<24x16x4xbf16> to vector<24x1x4xbf16>
    %17 = vector.extract_strided_slice %13 {offsets = [0, 1, 0], sizes = [24, 1, 4], strides = [1, 1, 1]} : vector<24x16x4xbf16> to vector<24x1x4xbf16>
    %18 = vector.extract_strided_slice %13 {offsets = [0, 14, 0], sizes = [24, 1, 4], strides = [1, 1, 1]} : vector<24x16x4xbf16> to vector<24x1x4xbf16>
    %19 = vector.extract_strided_slice %13 {offsets = [0, 13, 0], sizes = [24, 1, 4], strides = [1, 1, 1]} : vector<24x16x4xbf16> to vector<24x1x4xbf16>
    %20 = vector.extract_strided_slice %13 {offsets = [0, 12, 0], sizes = [24, 1, 4], strides = [1, 1, 1]} : vector<24x16x4xbf16> to vector<24x1x4xbf16>
    %21 = vector.extract_strided_slice %13 {offsets = [0, 11, 0], sizes = [24, 1, 4], strides = [1, 1, 1]} : vector<24x16x4xbf16> to vector<24x1x4xbf16>
    %22 = tpu.concatenate %14, %15, %16, %17, %13, %18, %19, %20, %21 in 1 : vector<24x1x4xbf16>, vector<24x1x4xbf16>, vector<24x1x4xbf16>, vector<24x1x4xbf16>, vector<24x16x4xbf16>, vector<24x1x4xbf16>, vector<24x1x4xbf16>, vector<24x1x4xbf16>, vector<24x1x4xbf16> -> vector<24x24x4xbf16>
    %23 = vector.extract_strided_slice %22 {offsets = [0, 0, 0], sizes = [16, 24, 4], strides = [1, 1, 1]} : vector<24x24x4xbf16> to vector<16x24x4xbf16>
    %24 = vector.extract_strided_slice %23 {offsets = [0, 0, 0], sizes = [16, 16, 4], strides = [1, 1, 1]} : vector<16x24x4xbf16> to vector<16x16x4xbf16>
    %25 = vector.shape_cast %24 : vector<16x16x4xbf16> to vector<256x4xbf16>
    %26 = vector.extract_strided_slice %23 {offsets = [0, 1, 0], sizes = [16, 16, 4], strides = [1, 1, 1]} : vector<16x24x4xbf16> to vector<16x16x4xbf16>
    %27 = vector.shape_cast %26 : vector<16x16x4xbf16> to vector<256x4xbf16>
    %28 = vector.extract_strided_slice %23 {offsets = [0, 2, 0], sizes = [16, 16, 4], strides = [1, 1, 1]} : vector<16x24x4xbf16> to vector<16x16x4xbf16>
    %29 = vector.shape_cast %28 : vector<16x16x4xbf16> to vector<256x4xbf16>
    %30 = vector.extract_strided_slice %23 {offsets = [0, 3, 0], sizes = [16, 16, 4], strides = [1, 1, 1]} : vector<16x24x4xbf16> to vector<16x16x4xbf16>
    %31 = vector.shape_cast %30 : vector<16x16x4xbf16> to vector<256x4xbf16>
    %32 = vector.extract_strided_slice %23 {offsets = [0, 4, 0], sizes = [16, 16, 4], strides = [1, 1, 1]} : vector<16x24x4xbf16> to vector<16x16x4xbf16>
    %33 = vector.shape_cast %32 : vector<16x16x4xbf16> to vector<256x4xbf16>
    %34 = vector.extract_strided_slice %23 {offsets = [0, 5, 0], sizes = [16, 16, 4], strides = [1, 1, 1]} : vector<16x24x4xbf16> to vector<16x16x4xbf16>
    %35 = vector.shape_cast %34 : vector<16x16x4xbf16> to vector<256x4xbf16>
    %36 = vector.extract_strided_slice %23 {offsets = [0, 6, 0], sizes = [16, 16, 4], strides = [1, 1, 1]} : vector<16x24x4xbf16> to vector<16x16x4xbf16>
    %37 = vector.shape_cast %36 : vector<16x16x4xbf16> to vector<256x4xbf16>
    %38 = vector.extract_strided_slice %23 {offsets = [0, 7, 0], sizes = [16, 16, 4], strides = [1, 1, 1]} : vector<16x24x4xbf16> to vector<16x16x4xbf16>
    %39 = vector.shape_cast %38 : vector<16x16x4xbf16> to vector<256x4xbf16>
    %40 = vector.extract_strided_slice %23 {offsets = [0, 8, 0], sizes = [16, 16, 4], strides = [1, 1, 1]} : vector<16x24x4xbf16> to vector<16x16x4xbf16>
    %41 = vector.shape_cast %40 : vector<16x16x4xbf16> to vector<256x4xbf16>
    %42 = tpu.concatenate %25, %27, %29, %31, %33, %35, %37, %39, %41 in 1 : vector<256x4xbf16>, vector<256x4xbf16>, vector<256x4xbf16>, vector<256x4xbf16>, vector<256x4xbf16>, vector<256x4xbf16>, vector<256x4xbf16>, vector<256x4xbf16>, vector<256x4xbf16> -> vector<256x36xbf16>
    %43 = vector.extract_strided_slice %22 {offsets = [1, 0, 0], sizes = [16, 24, 4], strides = [1, 1, 1]} : vector<24x24x4xbf16> to vector<16x24x4xbf16>
    %44 = vector.extract_strided_slice %43 {offsets = [0, 0, 0], sizes = [16, 16, 4], strides = [1, 1, 1]} : vector<16x24x4xbf16> to vector<16x16x4xbf16>
    %45 = vector.shape_cast %44 : vector<16x16x4xbf16> to vector<256x4xbf16>
    %46 = vector.extract_strided_slice %43 {offsets = [0, 1, 0], sizes = [16, 16, 4], strides = [1, 1, 1]} : vector<16x24x4xbf16> to vector<16x16x4xbf16>
    %47 = vector.shape_cast %46 : vector<16x16x4xbf16> to vector<256x4xbf16>
    %48 = vector.extract_strided_slice %43 {offsets = [0, 2, 0], sizes = [16, 16, 4], strides = [1, 1, 1]} : vector<16x24x4xbf16> to vector<16x16x4xbf16>
    %49 = vector.shape_cast %48 : vector<16x16x4xbf16> to vector<256x4xbf16>
    %50 = vector.extract_strided_slice %43 {offsets = [0, 3, 0], sizes = [16, 16, 4], strides = [1, 1, 1]} : vector<16x24x4xbf16> to vector<16x16x4xbf16>
    %51 = vector.shape_cast %50 : vector<16x16x4xbf16> to vector<256x4xbf16>
    %52 = vector.extract_strided_slice %43 {offsets = [0, 4, 0], sizes = [16, 16, 4], strides = [1, 1, 1]} : vector<16x24x4xbf16> to vector<16x16x4xbf16>
    %53 = vector.shape_cast %52 : vector<16x16x4xbf16> to vector<256x4xbf16>
    %54 = vector.extract_strided_slice %43 {offsets = [0, 5, 0], sizes = [16, 16, 4], strides = [1, 1, 1]} : vector<16x24x4xbf16> to vector<16x16x4xbf16>
    %55 = vector.shape_cast %54 : vector<16x16x4xbf16> to vector<256x4xbf16>
    %56 = vector.extract_strided_slice %43 {offsets = [0, 6, 0], sizes = [16, 16, 4], strides = [1, 1, 1]} : vector<16x24x4xbf16> to vector<16x16x4xbf16>
    %57 = vector.shape_cast %56 : vector<16x16x4xbf16> to vector<256x4xbf16>
    %58 = vector.extract_strided_slice %43 {offsets = [0, 7, 0], sizes = [16, 16, 4], strides = [1, 1, 1]} : vector<16x24x4xbf16> to vector<16x16x4xbf16>
    %59 = vector.shape_cast %58 : vector<16x16x4xbf16> to vector<256x4xbf16>
    %60 = vector.extract_strided_slice %43 {offsets = [0, 8, 0], sizes = [16, 16, 4], strides = [1, 1, 1]} : vector<16x24x4xbf16> to vector<16x16x4xbf16>
    %61 = vector.shape_cast %60 : vector<16x16x4xbf16> to vector<256x4xbf16>
    %62 = tpu.concatenate %45, %47, %49, %51, %53, %55, %57, %59, %61 in 1 : vector<256x4xbf16>, vector<256x4xbf16>, vector<256x4xbf16>, vector<256x4xbf16>, vector<256x4xbf16>, vector<256x4xbf16>, vector<256x4xbf16>, vector<256x4xbf16>, vector<256x4xbf16> -> vector<256x36xbf16>
    %63 = vector.extract_strided_slice %22 {offsets = [2, 0, 0], sizes = [16, 24, 4], strides = [1, 1, 1]} : vector<24x24x4xbf16> to vector<16x24x4xbf16>
    %64 = vector.extract_strided_slice %63 {offsets = [0, 0, 0], sizes = [16, 16, 4], strides = [1, 1, 1]} : vector<16x24x4xbf16> to vector<16x16x4xbf16>
    %65 = vector.shape_cast %64 : vector<16x16x4xbf16> to vector<256x4xbf16>
    %66 = vector.extract_strided_slice %63 {offsets = [0, 1, 0], sizes = [16, 16, 4], strides = [1, 1, 1]} : vector<16x24x4xbf16> to vector<16x16x4xbf16>
    %67 = vector.shape_cast %66 : vector<16x16x4xbf16> to vector<256x4xbf16>
    %68 = vector.extract_strided_slice %63 {offsets = [0, 2, 0], sizes = [16, 16, 4], strides = [1, 1, 1]} : vector<16x24x4xbf16> to vector<16x16x4xbf16>
    %69 = vector.shape_cast %68 : vector<16x16x4xbf16> to vector<256x4xbf16>
    %70 = vector.extract_strided_slice %63 {offsets = [0, 3, 0], sizes = [16, 16, 4], strides = [1, 1, 1]} : vector<16x24x4xbf16> to vector<16x16x4xbf16>
    %71 = vector.shape_cast %70 : vector<16x16x4xbf16> to vector<256x4xbf16>
    %72 = vector.extract_strided_slice %63 {offsets = [0, 4, 0], sizes = [16, 16, 4], strides = [1, 1, 1]} : vector<16x24x4xbf16> to vector<16x16x4xbf16>
    %73 = vector.shape_cast %72 : vector<16x16x4xbf16> to vector<256x4xbf16>
    %74 = vector.extract_strided_slice %63 {offsets = [0, 5, 0], sizes = [16, 16, 4], strides = [1, 1, 1]} : vector<16x24x4xbf16> to vector<16x16x4xbf16>
    %75 = vector.shape_cast %74 : vector<16x16x4xbf16> to vector<256x4xbf16>
    %76 = vector.extract_strided_slice %63 {offsets = [0, 6, 0], sizes = [16, 16, 4], strides = [1, 1, 1]} : vector<16x24x4xbf16> to vector<16x16x4xbf16>
    %77 = vector.shape_cast %76 : vector<16x16x4xbf16> to vector<256x4xbf16>
    %78 = vector.extract_strided_slice %63 {offsets = [0, 7, 0], sizes = [16, 16, 4], strides = [1, 1, 1]} : vector<16x24x4xbf16> to vector<16x16x4xbf16>
    %79 = vector.shape_cast %78 : vector<16x16x4xbf16> to vector<256x4xbf16>
    %80 = vector.extract_strided_slice %63 {offsets = [0, 8, 0], sizes = [16, 16, 4], strides = [1, 1, 1]} : vector<16x24x4xbf16> to vector<16x16x4xbf16>
    %81 = vector.shape_cast %80 : vector<16x16x4xbf16> to vector<256x4xbf16>
    %82 = tpu.concatenate %65, %67, %69, %71, %73, %75, %77, %79, %81 in 1 : vector<256x4xbf16>, vector<256x4xbf16>, vector<256x4xbf16>, vector<256x4xbf16>, vector<256x4xbf16>, vector<256x4xbf16>, vector<256x4xbf16>, vector<256x4xbf16>, vector<256x4xbf16> -> vector<256x36xbf16>
    %83 = vector.extract_strided_slice %22 {offsets = [3, 0, 0], sizes = [16, 24, 4], strides = [1, 1, 1]} : vector<24x24x4xbf16> to vector<16x24x4xbf16>
    %84 = vector.extract_strided_slice %83 {offsets = [0, 0, 0], sizes = [16, 16, 4], strides = [1, 1, 1]} : vector<16x24x4xbf16> to vector<16x16x4xbf16>
    %85 = vector.shape_cast %84 : vector<16x16x4xbf16> to vector<256x4xbf16>
    %86 = vector.extract_strided_slice %83 {offsets = [0, 1, 0], sizes = [16, 16, 4], strides = [1, 1, 1]} : vector<16x24x4xbf16> to vector<16x16x4xbf16>
    %87 = vector.shape_cast %86 : vector<16x16x4xbf16> to vector<256x4xbf16>
    %88 = vector.extract_strided_slice %83 {offsets = [0, 2, 0], sizes = [16, 16, 4], strides = [1, 1, 1]} : vector<16x24x4xbf16> to vector<16x16x4xbf16>
    %89 = vector.shape_cast %88 : vector<16x16x4xbf16> to vector<256x4xbf16>
    %90 = vector.extract_strided_slice %83 {offsets = [0, 3, 0], sizes = [16, 16, 4], strides = [1, 1, 1]} : vector<16x24x4xbf16> to vector<16x16x4xbf16>
    %91 = vector.shape_cast %90 : vector<16x16x4xbf16> to vector<256x4xbf16>
    %92 = vector.extract_strided_slice %83 {offsets = [0, 4, 0], sizes = [16, 16, 4], strides = [1, 1, 1]} : vector<16x24x4xbf16> to vector<16x16x4xbf16>
    %93 = vector.shape_cast %92 : vector<16x16x4xbf16> to vector<256x4xbf16>
    %94 = vector.extract_strided_slice %83 {offsets = [0, 5, 0], sizes = [16, 16, 4], strides = [1, 1, 1]} : vector<16x24x4xbf16> to vector<16x16x4xbf16>
    %95 = vector.shape_cast %94 : vector<16x16x4xbf16> to vector<256x4xbf16>
    %96 = vector.extract_strided_slice %83 {offsets = [0, 6, 0], sizes = [16, 16, 4], strides = [1, 1, 1]} : vector<16x24x4xbf16> to vector<16x16x4xbf16>
    %97 = vector.shape_cast %96 : vector<16x16x4xbf16> to vector<256x4xbf16>
    %98 = vector.extract_strided_slice %83 {offsets = [0, 7, 0], sizes = [16, 16, 4], strides = [1, 1, 1]} : vector<16x24x4xbf16> to vector<16x16x4xbf16>
    %99 = vector.shape_cast %98 : vector<16x16x4xbf16> to vector<256x4xbf16>
    %100 = vector.extract_strided_slice %83 {offsets = [0, 8, 0], sizes = [16, 16, 4], strides = [1, 1, 1]} : vector<16x24x4xbf16> to vector<16x16x4xbf16>
    %101 = vector.shape_cast %100 : vector<16x16x4xbf16> to vector<256x4xbf16>
    %102 = tpu.concatenate %85, %87, %89, %91, %93, %95, %97, %99, %101 in 1 : vector<256x4xbf16>, vector<256x4xbf16>, vector<256x4xbf16>, vector<256x4xbf16>, vector<256x4xbf16>, vector<256x4xbf16>, vector<256x4xbf16>, vector<256x4xbf16>, vector<256x4xbf16> -> vector<256x36xbf16>
    %103 = vector.extract_strided_slice %22 {offsets = [4, 0, 0], sizes = [16, 24, 4], strides = [1, 1, 1]} : vector<24x24x4xbf16> to vector<16x24x4xbf16>
    %104 = vector.extract_strided_slice %103 {offsets = [0, 0, 0], sizes = [16, 16, 4], strides = [1, 1, 1]} : vector<16x24x4xbf16> to vector<16x16x4xbf16>
    %105 = vector.shape_cast %104 : vector<16x16x4xbf16> to vector<256x4xbf16>
    %106 = vector.extract_strided_slice %103 {offsets = [0, 1, 0], sizes = [16, 16, 4], strides = [1, 1, 1]} : vector<16x24x4xbf16> to vector<16x16x4xbf16>
    %107 = vector.shape_cast %106 : vector<16x16x4xbf16> to vector<256x4xbf16>
    %108 = vector.extract_strided_slice %103 {offsets = [0, 2, 0], sizes = [16, 16, 4], strides = [1, 1, 1]} : vector<16x24x4xbf16> to vector<16x16x4xbf16>
    %109 = vector.shape_cast %108 : vector<16x16x4xbf16> to vector<256x4xbf16>
    %110 = vector.extract_strided_slice %103 {offsets = [0, 3, 0], sizes = [16, 16, 4], strides = [1, 1, 1]} : vector<16x24x4xbf16> to vector<16x16x4xbf16>
    %111 = vector.shape_cast %110 : vector<16x16x4xbf16> to vector<256x4xbf16>
    %112 = vector.extract_strided_slice %103 {offsets = [0, 4, 0], sizes = [16, 16, 4], strides = [1, 1, 1]} : vector<16x24x4xbf16> to vector<16x16x4xbf16>
    %113 = vector.shape_cast %112 : vector<16x16x4xbf16> to vector<256x4xbf16>
    %114 = vector.extract_strided_slice %103 {offsets = [0, 5, 0], sizes = [16, 16, 4], strides = [1, 1, 1]} : vector<16x24x4xbf16> to vector<16x16x4xbf16>
    %115 = vector.shape_cast %114 : vector<16x16x4xbf16> to vector<256x4xbf16>
    %116 = vector.extract_strided_slice %103 {offsets = [0, 6, 0], sizes = [16, 16, 4], strides = [1, 1, 1]} : vector<16x24x4xbf16> to vector<16x16x4xbf16>
    %117 = vector.shape_cast %116 : vector<16x16x4xbf16> to vector<256x4xbf16>
    %118 = vector.extract_strided_slice %103 {offsets = [0, 7, 0], sizes = [16, 16, 4], strides = [1, 1, 1]} : vector<16x24x4xbf16> to vector<16x16x4xbf16>
    %119 = vector.shape_cast %118 : vector<16x16x4xbf16> to vector<256x4xbf16>
    %120 = vector.extract_strided_slice %103 {offsets = [0, 8, 0], sizes = [16, 16, 4], strides = [1, 1, 1]} : vector<16x24x4xbf16> to vector<16x16x4xbf16>
    %121 = vector.shape_cast %120 : vector<16x16x4xbf16> to vector<256x4xbf16>
    %122 = tpu.concatenate %105, %107, %109, %111, %113, %115, %117, %119, %121 in 1 : vector<256x4xbf16>, vector<256x4xbf16>, vector<256x4xbf16>, vector<256x4xbf16>, vector<256x4xbf16>, vector<256x4xbf16>, vector<256x4xbf16>, vector<256x4xbf16>, vector<256x4xbf16> -> vector<256x36xbf16>
    %123 = vector.extract_strided_slice %22 {offsets = [5, 0, 0], sizes = [16, 24, 4], strides = [1, 1, 1]} : vector<24x24x4xbf16> to vector<16x24x4xbf16>
    %124 = vector.extract_strided_slice %123 {offsets = [0, 0, 0], sizes = [16, 16, 4], strides = [1, 1, 1]} : vector<16x24x4xbf16> to vector<16x16x4xbf16>
    %125 = vector.shape_cast %124 : vector<16x16x4xbf16> to vector<256x4xbf16>
    %126 = vector.extract_strided_slice %123 {offsets = [0, 1, 0], sizes = [16, 16, 4], strides = [1, 1, 1]} : vector<16x24x4xbf16> to vector<16x16x4xbf16>
    %127 = vector.shape_cast %126 : vector<16x16x4xbf16> to vector<256x4xbf16>
    %128 = vector.extract_strided_slice %123 {offsets = [0, 2, 0], sizes = [16, 16, 4], strides = [1, 1, 1]} : vector<16x24x4xbf16> to vector<16x16x4xbf16>
    %129 = vector.shape_cast %128 : vector<16x16x4xbf16> to vector<256x4xbf16>
    %130 = vector.extract_strided_slice %123 {offsets = [0, 3, 0], sizes = [16, 16, 4], strides = [1, 1, 1]} : vector<16x24x4xbf16> to vector<16x16x4xbf16>
    %131 = vector.shape_cast %130 : vector<16x16x4xbf16> to vector<256x4xbf16>
    %132 = vector.extract_strided_slice %123 {offsets = [0, 4, 0], sizes = [16, 16, 4], strides = [1, 1, 1]} : vector<16x24x4xbf16> to vector<16x16x4xbf16>
    %133 = vector.shape_cast %132 : vector<16x16x4xbf16> to vector<256x4xbf16>
    %134 = vector.extract_strided_slice %123 {offsets = [0, 5, 0], sizes = [16, 16, 4], strides = [1, 1, 1]} : vector<16x24x4xbf16> to vector<16x16x4xbf16>
    %135 = vector.shape_cast %134 : vector<16x16x4xbf16> to vector<256x4xbf16>
    %136 = vector.extract_strided_slice %123 {offsets = [0, 6, 0], sizes = [16, 16, 4], strides = [1, 1, 1]} : vector<16x24x4xbf16> to vector<16x16x4xbf16>
    %137 = vector.shape_cast %136 : vector<16x16x4xbf16> to vector<256x4xbf16>
    %138 = vector.extract_strided_slice %123 {offsets = [0, 7, 0], sizes = [16, 16, 4], strides = [1, 1, 1]} : vector<16x24x4xbf16> to vector<16x16x4xbf16>
    %139 = vector.shape_cast %138 : vector<16x16x4xbf16> to vector<256x4xbf16>
    %140 = vector.extract_strided_slice %123 {offsets = [0, 8, 0], sizes = [16, 16, 4], strides = [1, 1, 1]} : vector<16x24x4xbf16> to vector<16x16x4xbf16>
    %141 = vector.shape_cast %140 : vector<16x16x4xbf16> to vector<256x4xbf16>
    %142 = tpu.concatenate %125, %127, %129, %131, %133, %135, %137, %139, %141 in 1 : vector<256x4xbf16>, vector<256x4xbf16>, vector<256x4xbf16>, vector<256x4xbf16>, vector<256x4xbf16>, vector<256x4xbf16>, vector<256x4xbf16>, vector<256x4xbf16>, vector<256x4xbf16> -> vector<256x36xbf16>
    %143 = vector.extract_strided_slice %22 {offsets = [6, 0, 0], sizes = [16, 24, 4], strides = [1, 1, 1]} : vector<24x24x4xbf16> to vector<16x24x4xbf16>
    %144 = vector.extract_strided_slice %143 {offsets = [0, 0, 0], sizes = [16, 16, 4], strides = [1, 1, 1]} : vector<16x24x4xbf16> to vector<16x16x4xbf16>
    %145 = vector.shape_cast %144 : vector<16x16x4xbf16> to vector<256x4xbf16>
    %146 = vector.extract_strided_slice %143 {offsets = [0, 1, 0], sizes = [16, 16, 4], strides = [1, 1, 1]} : vector<16x24x4xbf16> to vector<16x16x4xbf16>
    %147 = vector.shape_cast %146 : vector<16x16x4xbf16> to vector<256x4xbf16>
    %148 = vector.extract_strided_slice %143 {offsets = [0, 2, 0], sizes = [16, 16, 4], strides = [1, 1, 1]} : vector<16x24x4xbf16> to vector<16x16x4xbf16>
    %149 = vector.shape_cast %148 : vector<16x16x4xbf16> to vector<256x4xbf16>
    %150 = vector.extract_strided_slice %143 {offsets = [0, 3, 0], sizes = [16, 16, 4], strides = [1, 1, 1]} : vector<16x24x4xbf16> to vector<16x16x4xbf16>
    %151 = vector.shape_cast %150 : vector<16x16x4xbf16> to vector<256x4xbf16>
    %152 = vector.extract_strided_slice %143 {offsets = [0, 4, 0], sizes = [16, 16, 4], strides = [1, 1, 1]} : vector<16x24x4xbf16> to vector<16x16x4xbf16>
    %153 = vector.shape_cast %152 : vector<16x16x4xbf16> to vector<256x4xbf16>
    %154 = vector.extract_strided_slice %143 {offsets = [0, 5, 0], sizes = [16, 16, 4], strides = [1, 1, 1]} : vector<16x24x4xbf16> to vector<16x16x4xbf16>
    %155 = vector.shape_cast %154 : vector<16x16x4xbf16> to vector<256x4xbf16>
    %156 = vector.extract_strided_slice %143 {offsets = [0, 6, 0], sizes = [16, 16, 4], strides = [1, 1, 1]} : vector<16x24x4xbf16> to vector<16x16x4xbf16>
    %157 = vector.shape_cast %156 : vector<16x16x4xbf16> to vector<256x4xbf16>
    %158 = vector.extract_strided_slice %143 {offsets = [0, 7, 0], sizes = [16, 16, 4], strides = [1, 1, 1]} : vector<16x24x4xbf16> to vector<16x16x4xbf16>
    %159 = vector.shape_cast %158 : vector<16x16x4xbf16> to vector<256x4xbf16>
    %160 = vector.extract_strided_slice %143 {offsets = [0, 8, 0], sizes = [16, 16, 4], strides = [1, 1, 1]} : vector<16x24x4xbf16> to vector<16x16x4xbf16>
    %161 = vector.shape_cast %160 : vector<16x16x4xbf16> to vector<256x4xbf16>
    %162 = tpu.concatenate %145, %147, %149, %151, %153, %155, %157, %159, %161 in 1 : vector<256x4xbf16>, vector<256x4xbf16>, vector<256x4xbf16>, vector<256x4xbf16>, vector<256x4xbf16>, vector<256x4xbf16>, vector<256x4xbf16>, vector<256x4xbf16>, vector<256x4xbf16> -> vector<256x36xbf16>
    %163 = vector.extract_strided_slice %22 {offsets = [7, 0, 0], sizes = [16, 24, 4], strides = [1, 1, 1]} : vector<24x24x4xbf16> to vector<16x24x4xbf16>
    %164 = vector.extract_strided_slice %163 {offsets = [0, 0, 0], sizes = [16, 16, 4], strides = [1, 1, 1]} : vector<16x24x4xbf16> to vector<16x16x4xbf16>
    %165 = vector.shape_cast %164 : vector<16x16x4xbf16> to vector<256x4xbf16>
    %166 = vector.extract_strided_slice %163 {offsets = [0, 1, 0], sizes = [16, 16, 4], strides = [1, 1, 1]} : vector<16x24x4xbf16> to vector<16x16x4xbf16>
    %167 = vector.shape_cast %166 : vector<16x16x4xbf16> to vector<256x4xbf16>
    %168 = vector.extract_strided_slice %163 {offsets = [0, 2, 0], sizes = [16, 16, 4], strides = [1, 1, 1]} : vector<16x24x4xbf16> to vector<16x16x4xbf16>
    %169 = vector.shape_cast %168 : vector<16x16x4xbf16> to vector<256x4xbf16>
    %170 = vector.extract_strided_slice %163 {offsets = [0, 3, 0], sizes = [16, 16, 4], strides = [1, 1, 1]} : vector<16x24x4xbf16> to vector<16x16x4xbf16>
    %171 = vector.shape_cast %170 : vector<16x16x4xbf16> to vector<256x4xbf16>
    %172 = vector.extract_strided_slice %163 {offsets = [0, 4, 0], sizes = [16, 16, 4], strides = [1, 1, 1]} : vector<16x24x4xbf16> to vector<16x16x4xbf16>
    %173 = vector.shape_cast %172 : vector<16x16x4xbf16> to vector<256x4xbf16>
    %174 = vector.extract_strided_slice %163 {offsets = [0, 5, 0], sizes = [16, 16, 4], strides = [1, 1, 1]} : vector<16x24x4xbf16> to vector<16x16x4xbf16>
    %175 = vector.shape_cast %174 : vector<16x16x4xbf16> to vector<256x4xbf16>
    %176 = vector.extract_strided_slice %163 {offsets = [0, 6, 0], sizes = [16, 16, 4], strides = [1, 1, 1]} : vector<16x24x4xbf16> to vector<16x16x4xbf16>
    %177 = vector.shape_cast %176 : vector<16x16x4xbf16> to vector<256x4xbf16>
    %178 = vector.extract_strided_slice %163 {offsets = [0, 7, 0], sizes = [16, 16, 4], strides = [1, 1, 1]} : vector<16x24x4xbf16> to vector<16x16x4xbf16>
    %179 = vector.shape_cast %178 : vector<16x16x4xbf16> to vector<256x4xbf16>
    %180 = vector.extract_strided_slice %163 {offsets = [0, 8, 0], sizes = [16, 16, 4], strides = [1, 1, 1]} : vector<16x24x4xbf16> to vector<16x16x4xbf16>
    %181 = vector.shape_cast %180 : vector<16x16x4xbf16> to vector<256x4xbf16>
    %182 = tpu.concatenate %165, %167, %169, %171, %173, %175, %177, %179, %181 in 1 : vector<256x4xbf16>, vector<256x4xbf16>, vector<256x4xbf16>, vector<256x4xbf16>, vector<256x4xbf16>, vector<256x4xbf16>, vector<256x4xbf16>, vector<256x4xbf16>, vector<256x4xbf16> -> vector<256x36xbf16>
    %183 = vector.extract_strided_slice %22 {offsets = [8, 0, 0], sizes = [16, 24, 4], strides = [1, 1, 1]} : vector<24x24x4xbf16> to vector<16x24x4xbf16>
    %184 = vector.extract_strided_slice %183 {offsets = [0, 0, 0], sizes = [16, 16, 4], strides = [1, 1, 1]} : vector<16x24x4xbf16> to vector<16x16x4xbf16>
    %185 = vector.shape_cast %184 : vector<16x16x4xbf16> to vector<256x4xbf16>
    %186 = vector.extract_strided_slice %183 {offsets = [0, 1, 0], sizes = [16, 16, 4], strides = [1, 1, 1]} : vector<16x24x4xbf16> to vector<16x16x4xbf16>
    %187 = vector.shape_cast %186 : vector<16x16x4xbf16> to vector<256x4xbf16>
    %188 = vector.extract_strided_slice %183 {offsets = [0, 2, 0], sizes = [16, 16, 4], strides = [1, 1, 1]} : vector<16x24x4xbf16> to vector<16x16x4xbf16>
    %189 = vector.shape_cast %188 : vector<16x16x4xbf16> to vector<256x4xbf16>
    %190 = vector.extract_strided_slice %183 {offsets = [0, 3, 0], sizes = [16, 16, 4], strides = [1, 1, 1]} : vector<16x24x4xbf16> to vector<16x16x4xbf16>
    %191 = vector.shape_cast %190 : vector<16x16x4xbf16> to vector<256x4xbf16>
    %192 = vector.extract_strided_slice %183 {offsets = [0, 4, 0], sizes = [16, 16, 4], strides = [1, 1, 1]} : vector<16x24x4xbf16> to vector<16x16x4xbf16>
    %193 = vector.shape_cast %192 : vector<16x16x4xbf16> to vector<256x4xbf16>
    %194 = vector.extract_strided_slice %183 {offsets = [0, 5, 0], sizes = [16, 16, 4], strides = [1, 1, 1]} : vector<16x24x4xbf16> to vector<16x16x4xbf16>
    %195 = vector.shape_cast %194 : vector<16x16x4xbf16> to vector<256x4xbf16>
    %196 = vector.extract_strided_slice %183 {offsets = [0, 6, 0], sizes = [16, 16, 4], strides = [1, 1, 1]} : vector<16x24x4xbf16> to vector<16x16x4xbf16>
    %197 = vector.shape_cast %196 : vector<16x16x4xbf16> to vector<256x4xbf16>
    %198 = vector.extract_strided_slice %183 {offsets = [0, 7, 0], sizes = [16, 16, 4], strides = [1, 1, 1]} : vector<16x24x4xbf16> to vector<16x16x4xbf16>
    %199 = vector.shape_cast %198 : vector<16x16x4xbf16> to vector<256x4xbf16>
    %200 = vector.extract_strided_slice %183 {offsets = [0, 8, 0], sizes = [16, 16, 4], strides = [1, 1, 1]} : vector<16x24x4xbf16> to vector<16x16x4xbf16>
    %201 = vector.shape_cast %200 : vector<16x16x4xbf16> to vector<256x4xbf16>
    %202 = tpu.concatenate %185, %187, %189, %191, %193, %195, %197, %199, %201 in 1 : vector<256x4xbf16>, vector<256x4xbf16>, vector<256x4xbf16>, vector<256x4xbf16>, vector<256x4xbf16>, vector<256x4xbf16>, vector<256x4xbf16>, vector<256x4xbf16>, vector<256x4xbf16> -> vector<256x36xbf16>
    %203 = tpu.concatenate %42, %62, %82, %102, %122, %142, %162, %182, %202 in 1 : vector<256x36xbf16>, vector<256x36xbf16>, vector<256x36xbf16>, vector<256x36xbf16>, vector<256x36xbf16>, vector<256x36xbf16>, vector<256x36xbf16>, vector<256x36xbf16>, vector<256x36xbf16> -> vector<256x324xbf16>
    %cst = arith.constant dense<0.000000e+00> : vector<256x64xf32>
    %204 = tpu.matmul %203, %2, %cst {dimension_numbers = #tpu.dot_dimension_numbers<[1], [0], [0], [1], [0, 0, 1, 1], [], []>} : vector<256x324xbf16>, vector<324x64xbf16>, vector<256x64xf32> -> vector<256x64xf32>
    %205 = vector.broadcast %3 : vector<1x64xf32> to vector<256x64xf32>
    %206 = arith.addf %204, %205 : vector<256x64xf32>
    %207 = math.tanh %206 : vector<256x64xf32>
    %208 = vector.shape_cast %207 : vector<256x64xf32> to vector<16x16x64xf32>
    %c0_7 = arith.constant 0 : index
    %c0_8 = arith.constant 0 : index
    %209 = vector.load %arg4[%c0_7, %c0_8] : memref<1600x32xbf16, #tpu.memory_space<vmem>>, vector<1600x32xbf16>
    %c0_9 = arith.constant 0 : index
    %c0_10 = arith.constant 0 : index
    %210 = vector.load %arg5[%c0_9, %c0_10] : memref<1x32xf32, #tpu.memory_space<vmem>>, vector<1x32xf32>
    %211 = arith.truncf %208 : vector<16x16x64xf32> to vector<16x16x64xbf16>
    %212 = vector.extract_strided_slice %211 {offsets = [2, 0, 0], sizes = [1, 16, 64], strides = [1, 1, 1]} : vector<16x16x64xbf16> to vector<1x16x64xbf16>
    %213 = vector.extract_strided_slice %211 {offsets = [1, 0, 0], sizes = [1, 16, 64], strides = [1, 1, 1]} : vector<16x16x64xbf16> to vector<1x16x64xbf16>
    %214 = vector.extract_strided_slice %211 {offsets = [14, 0, 0], sizes = [1, 16, 64], strides = [1, 1, 1]} : vector<16x16x64xbf16> to vector<1x16x64xbf16>
    %215 = vector.extract_strided_slice %211 {offsets = [13, 0, 0], sizes = [1, 16, 64], strides = [1, 1, 1]} : vector<16x16x64xbf16> to vector<1x16x64xbf16>
    %216 = tpu.concatenate %212, %213, %211, %214, %215 in 0 : vector<1x16x64xbf16>, vector<1x16x64xbf16>, vector<16x16x64xbf16>, vector<1x16x64xbf16>, vector<1x16x64xbf16> -> vector<20x16x64xbf16>
    %217 = vector.extract_strided_slice %216 {offsets = [0, 2, 0], sizes = [20, 1, 64], strides = [1, 1, 1]} : vector<20x16x64xbf16> to vector<20x1x64xbf16>
    %218 = vector.extract_strided_slice %216 {offsets = [0, 1, 0], sizes = [20, 1, 64], strides = [1, 1, 1]} : vector<20x16x64xbf16> to vector<20x1x64xbf16>
    %219 = vector.extract_strided_slice %216 {offsets = [0, 14, 0], sizes = [20, 1, 64], strides = [1, 1, 1]} : vector<20x16x64xbf16> to vector<20x1x64xbf16>
    %220 = vector.extract_strided_slice %216 {offsets = [0, 13, 0], sizes = [20, 1, 64], strides = [1, 1, 1]} : vector<20x16x64xbf16> to vector<20x1x64xbf16>
    %221 = tpu.concatenate %217, %218, %216, %219, %220 in 1 : vector<20x1x64xbf16>, vector<20x1x64xbf16>, vector<20x16x64xbf16>, vector<20x1x64xbf16>, vector<20x1x64xbf16> -> vector<20x20x64xbf16>
    %222 = vector.extract_strided_slice %221 {offsets = [0, 0, 0], sizes = [16, 20, 64], strides = [1, 1, 1]} : vector<20x20x64xbf16> to vector<16x20x64xbf16>
    %223 = vector.extract_strided_slice %222 {offsets = [0, 0, 0], sizes = [16, 16, 64], strides = [1, 1, 1]} : vector<16x20x64xbf16> to vector<16x16x64xbf16>
    %224 = vector.shape_cast %223 : vector<16x16x64xbf16> to vector<256x64xbf16>
    %225 = vector.extract_strided_slice %222 {offsets = [0, 1, 0], sizes = [16, 16, 64], strides = [1, 1, 1]} : vector<16x20x64xbf16> to vector<16x16x64xbf16>
    %226 = vector.shape_cast %225 : vector<16x16x64xbf16> to vector<256x64xbf16>
    %227 = vector.extract_strided_slice %222 {offsets = [0, 2, 0], sizes = [16, 16, 64], strides = [1, 1, 1]} : vector<16x20x64xbf16> to vector<16x16x64xbf16>
    %228 = vector.shape_cast %227 : vector<16x16x64xbf16> to vector<256x64xbf16>
    %229 = vector.extract_strided_slice %222 {offsets = [0, 3, 0], sizes = [16, 16, 64], strides = [1, 1, 1]} : vector<16x20x64xbf16> to vector<16x16x64xbf16>
    %230 = vector.shape_cast %229 : vector<16x16x64xbf16> to vector<256x64xbf16>
    %231 = vector.extract_strided_slice %222 {offsets = [0, 4, 0], sizes = [16, 16, 64], strides = [1, 1, 1]} : vector<16x20x64xbf16> to vector<16x16x64xbf16>
    %232 = vector.shape_cast %231 : vector<16x16x64xbf16> to vector<256x64xbf16>
    %233 = tpu.concatenate %224, %226, %228, %230, %232 in 1 : vector<256x64xbf16>, vector<256x64xbf16>, vector<256x64xbf16>, vector<256x64xbf16>, vector<256x64xbf16> -> vector<256x320xbf16>
    %234 = vector.extract_strided_slice %221 {offsets = [1, 0, 0], sizes = [16, 20, 64], strides = [1, 1, 1]} : vector<20x20x64xbf16> to vector<16x20x64xbf16>
    %235 = vector.extract_strided_slice %234 {offsets = [0, 0, 0], sizes = [16, 16, 64], strides = [1, 1, 1]} : vector<16x20x64xbf16> to vector<16x16x64xbf16>
    %236 = vector.shape_cast %235 : vector<16x16x64xbf16> to vector<256x64xbf16>
    %237 = vector.extract_strided_slice %234 {offsets = [0, 1, 0], sizes = [16, 16, 64], strides = [1, 1, 1]} : vector<16x20x64xbf16> to vector<16x16x64xbf16>
    %238 = vector.shape_cast %237 : vector<16x16x64xbf16> to vector<256x64xbf16>
    %239 = vector.extract_strided_slice %234 {offsets = [0, 2, 0], sizes = [16, 16, 64], strides = [1, 1, 1]} : vector<16x20x64xbf16> to vector<16x16x64xbf16>
    %240 = vector.shape_cast %239 : vector<16x16x64xbf16> to vector<256x64xbf16>
    %241 = vector.extract_strided_slice %234 {offsets = [0, 3, 0], sizes = [16, 16, 64], strides = [1, 1, 1]} : vector<16x20x64xbf16> to vector<16x16x64xbf16>
    %242 = vector.shape_cast %241 : vector<16x16x64xbf16> to vector<256x64xbf16>
    %243 = vector.extract_strided_slice %234 {offsets = [0, 4, 0], sizes = [16, 16, 64], strides = [1, 1, 1]} : vector<16x20x64xbf16> to vector<16x16x64xbf16>
    %244 = vector.shape_cast %243 : vector<16x16x64xbf16> to vector<256x64xbf16>
    %245 = tpu.concatenate %236, %238, %240, %242, %244 in 1 : vector<256x64xbf16>, vector<256x64xbf16>, vector<256x64xbf16>, vector<256x64xbf16>, vector<256x64xbf16> -> vector<256x320xbf16>
    %246 = vector.extract_strided_slice %221 {offsets = [2, 0, 0], sizes = [16, 20, 64], strides = [1, 1, 1]} : vector<20x20x64xbf16> to vector<16x20x64xbf16>
    %247 = vector.extract_strided_slice %246 {offsets = [0, 0, 0], sizes = [16, 16, 64], strides = [1, 1, 1]} : vector<16x20x64xbf16> to vector<16x16x64xbf16>
    %248 = vector.shape_cast %247 : vector<16x16x64xbf16> to vector<256x64xbf16>
    %249 = vector.extract_strided_slice %246 {offsets = [0, 1, 0], sizes = [16, 16, 64], strides = [1, 1, 1]} : vector<16x20x64xbf16> to vector<16x16x64xbf16>
    %250 = vector.shape_cast %249 : vector<16x16x64xbf16> to vector<256x64xbf16>
    %251 = vector.extract_strided_slice %246 {offsets = [0, 2, 0], sizes = [16, 16, 64], strides = [1, 1, 1]} : vector<16x20x64xbf16> to vector<16x16x64xbf16>
    %252 = vector.shape_cast %251 : vector<16x16x64xbf16> to vector<256x64xbf16>
    %253 = vector.extract_strided_slice %246 {offsets = [0, 3, 0], sizes = [16, 16, 64], strides = [1, 1, 1]} : vector<16x20x64xbf16> to vector<16x16x64xbf16>
    %254 = vector.shape_cast %253 : vector<16x16x64xbf16> to vector<256x64xbf16>
    %255 = vector.extract_strided_slice %246 {offsets = [0, 4, 0], sizes = [16, 16, 64], strides = [1, 1, 1]} : vector<16x20x64xbf16> to vector<16x16x64xbf16>
    %256 = vector.shape_cast %255 : vector<16x16x64xbf16> to vector<256x64xbf16>
    %257 = tpu.concatenate %248, %250, %252, %254, %256 in 1 : vector<256x64xbf16>, vector<256x64xbf16>, vector<256x64xbf16>, vector<256x64xbf16>, vector<256x64xbf16> -> vector<256x320xbf16>
    %258 = vector.extract_strided_slice %221 {offsets = [3, 0, 0], sizes = [16, 20, 64], strides = [1, 1, 1]} : vector<20x20x64xbf16> to vector<16x20x64xbf16>
    %259 = vector.extract_strided_slice %258 {offsets = [0, 0, 0], sizes = [16, 16, 64], strides = [1, 1, 1]} : vector<16x20x64xbf16> to vector<16x16x64xbf16>
    %260 = vector.shape_cast %259 : vector<16x16x64xbf16> to vector<256x64xbf16>
    %261 = vector.extract_strided_slice %258 {offsets = [0, 1, 0], sizes = [16, 16, 64], strides = [1, 1, 1]} : vector<16x20x64xbf16> to vector<16x16x64xbf16>
    %262 = vector.shape_cast %261 : vector<16x16x64xbf16> to vector<256x64xbf16>
    %263 = vector.extract_strided_slice %258 {offsets = [0, 2, 0], sizes = [16, 16, 64], strides = [1, 1, 1]} : vector<16x20x64xbf16> to vector<16x16x64xbf16>
    %264 = vector.shape_cast %263 : vector<16x16x64xbf16> to vector<256x64xbf16>
    %265 = vector.extract_strided_slice %258 {offsets = [0, 3, 0], sizes = [16, 16, 64], strides = [1, 1, 1]} : vector<16x20x64xbf16> to vector<16x16x64xbf16>
    %266 = vector.shape_cast %265 : vector<16x16x64xbf16> to vector<256x64xbf16>
    %267 = vector.extract_strided_slice %258 {offsets = [0, 4, 0], sizes = [16, 16, 64], strides = [1, 1, 1]} : vector<16x20x64xbf16> to vector<16x16x64xbf16>
    %268 = vector.shape_cast %267 : vector<16x16x64xbf16> to vector<256x64xbf16>
    %269 = tpu.concatenate %260, %262, %264, %266, %268 in 1 : vector<256x64xbf16>, vector<256x64xbf16>, vector<256x64xbf16>, vector<256x64xbf16>, vector<256x64xbf16> -> vector<256x320xbf16>
    %270 = vector.extract_strided_slice %221 {offsets = [4, 0, 0], sizes = [16, 20, 64], strides = [1, 1, 1]} : vector<20x20x64xbf16> to vector<16x20x64xbf16>
    %271 = vector.extract_strided_slice %270 {offsets = [0, 0, 0], sizes = [16, 16, 64], strides = [1, 1, 1]} : vector<16x20x64xbf16> to vector<16x16x64xbf16>
    %272 = vector.shape_cast %271 : vector<16x16x64xbf16> to vector<256x64xbf16>
    %273 = vector.extract_strided_slice %270 {offsets = [0, 1, 0], sizes = [16, 16, 64], strides = [1, 1, 1]} : vector<16x20x64xbf16> to vector<16x16x64xbf16>
    %274 = vector.shape_cast %273 : vector<16x16x64xbf16> to vector<256x64xbf16>
    %275 = vector.extract_strided_slice %270 {offsets = [0, 2, 0], sizes = [16, 16, 64], strides = [1, 1, 1]} : vector<16x20x64xbf16> to vector<16x16x64xbf16>
    %276 = vector.shape_cast %275 : vector<16x16x64xbf16> to vector<256x64xbf16>
    %277 = vector.extract_strided_slice %270 {offsets = [0, 3, 0], sizes = [16, 16, 64], strides = [1, 1, 1]} : vector<16x20x64xbf16> to vector<16x16x64xbf16>
    %278 = vector.shape_cast %277 : vector<16x16x64xbf16> to vector<256x64xbf16>
    %279 = vector.extract_strided_slice %270 {offsets = [0, 4, 0], sizes = [16, 16, 64], strides = [1, 1, 1]} : vector<16x20x64xbf16> to vector<16x16x64xbf16>
    %280 = vector.shape_cast %279 : vector<16x16x64xbf16> to vector<256x64xbf16>
    %281 = tpu.concatenate %272, %274, %276, %278, %280 in 1 : vector<256x64xbf16>, vector<256x64xbf16>, vector<256x64xbf16>, vector<256x64xbf16>, vector<256x64xbf16> -> vector<256x320xbf16>
    %282 = tpu.concatenate %233, %245, %257, %269, %281 in 1 : vector<256x320xbf16>, vector<256x320xbf16>, vector<256x320xbf16>, vector<256x320xbf16>, vector<256x320xbf16> -> vector<256x1600xbf16>
    %cst_11 = arith.constant dense<0.000000e+00> : vector<256x32xf32>
    %283 = tpu.matmul %282, %209, %cst_11 {dimension_numbers = #tpu.dot_dimension_numbers<[1], [0], [0], [1], [0, 0, 1, 1], [], []>} : vector<256x1600xbf16>, vector<1600x32xbf16>, vector<256x32xf32> -> vector<256x32xf32>
    %284 = vector.broadcast %210 : vector<1x32xf32> to vector<256x32xf32>
    %285 = arith.addf %283, %284 : vector<256x32xf32>
    %286 = math.tanh %285 : vector<256x32xf32>
    %287 = vector.shape_cast %286 : vector<256x32xf32> to vector<16x16x32xf32>
    %c0_12 = arith.constant 0 : index
    %c0_13 = arith.constant 0 : index
    %288 = vector.load %arg6[%c0_12, %c0_13] : memref<800x16xbf16, #tpu.memory_space<vmem>>, vector<800x16xbf16>
    %c0_14 = arith.constant 0 : index
    %c0_15 = arith.constant 0 : index
    %289 = vector.load %arg7[%c0_14, %c0_15] : memref<1x16xf32, #tpu.memory_space<vmem>>, vector<1x16xf32>
    %290 = arith.truncf %287 : vector<16x16x32xf32> to vector<16x16x32xbf16>
    %291 = vector.extract_strided_slice %290 {offsets = [2, 0, 0], sizes = [1, 16, 32], strides = [1, 1, 1]} : vector<16x16x32xbf16> to vector<1x16x32xbf16>
    %292 = vector.extract_strided_slice %290 {offsets = [1, 0, 0], sizes = [1, 16, 32], strides = [1, 1, 1]} : vector<16x16x32xbf16> to vector<1x16x32xbf16>
    %293 = vector.extract_strided_slice %290 {offsets = [14, 0, 0], sizes = [1, 16, 32], strides = [1, 1, 1]} : vector<16x16x32xbf16> to vector<1x16x32xbf16>
    %294 = vector.extract_strided_slice %290 {offsets = [13, 0, 0], sizes = [1, 16, 32], strides = [1, 1, 1]} : vector<16x16x32xbf16> to vector<1x16x32xbf16>
    %295 = tpu.concatenate %291, %292, %290, %293, %294 in 0 : vector<1x16x32xbf16>, vector<1x16x32xbf16>, vector<16x16x32xbf16>, vector<1x16x32xbf16>, vector<1x16x32xbf16> -> vector<20x16x32xbf16>
    %296 = vector.extract_strided_slice %295 {offsets = [0, 2, 0], sizes = [20, 1, 32], strides = [1, 1, 1]} : vector<20x16x32xbf16> to vector<20x1x32xbf16>
    %297 = vector.extract_strided_slice %295 {offsets = [0, 1, 0], sizes = [20, 1, 32], strides = [1, 1, 1]} : vector<20x16x32xbf16> to vector<20x1x32xbf16>
    %298 = vector.extract_strided_slice %295 {offsets = [0, 14, 0], sizes = [20, 1, 32], strides = [1, 1, 1]} : vector<20x16x32xbf16> to vector<20x1x32xbf16>
    %299 = vector.extract_strided_slice %295 {offsets = [0, 13, 0], sizes = [20, 1, 32], strides = [1, 1, 1]} : vector<20x16x32xbf16> to vector<20x1x32xbf16>
    %300 = tpu.concatenate %296, %297, %295, %298, %299 in 1 : vector<20x1x32xbf16>, vector<20x1x32xbf16>, vector<20x16x32xbf16>, vector<20x1x32xbf16>, vector<20x1x32xbf16> -> vector<20x20x32xbf16>
    %301 = vector.extract_strided_slice %300 {offsets = [0, 0, 0], sizes = [16, 20, 32], strides = [1, 1, 1]} : vector<20x20x32xbf16> to vector<16x20x32xbf16>
    %302 = vector.extract_strided_slice %301 {offsets = [0, 0, 0], sizes = [16, 16, 32], strides = [1, 1, 1]} : vector<16x20x32xbf16> to vector<16x16x32xbf16>
    %303 = vector.shape_cast %302 : vector<16x16x32xbf16> to vector<256x32xbf16>
    %304 = vector.extract_strided_slice %301 {offsets = [0, 1, 0], sizes = [16, 16, 32], strides = [1, 1, 1]} : vector<16x20x32xbf16> to vector<16x16x32xbf16>
    %305 = vector.shape_cast %304 : vector<16x16x32xbf16> to vector<256x32xbf16>
    %306 = vector.extract_strided_slice %301 {offsets = [0, 2, 0], sizes = [16, 16, 32], strides = [1, 1, 1]} : vector<16x20x32xbf16> to vector<16x16x32xbf16>
    %307 = vector.shape_cast %306 : vector<16x16x32xbf16> to vector<256x32xbf16>
    %308 = vector.extract_strided_slice %301 {offsets = [0, 3, 0], sizes = [16, 16, 32], strides = [1, 1, 1]} : vector<16x20x32xbf16> to vector<16x16x32xbf16>
    %309 = vector.shape_cast %308 : vector<16x16x32xbf16> to vector<256x32xbf16>
    %310 = vector.extract_strided_slice %301 {offsets = [0, 4, 0], sizes = [16, 16, 32], strides = [1, 1, 1]} : vector<16x20x32xbf16> to vector<16x16x32xbf16>
    %311 = vector.shape_cast %310 : vector<16x16x32xbf16> to vector<256x32xbf16>
    %312 = tpu.concatenate %303, %305, %307, %309, %311 in 1 : vector<256x32xbf16>, vector<256x32xbf16>, vector<256x32xbf16>, vector<256x32xbf16>, vector<256x32xbf16> -> vector<256x160xbf16>
    %313 = vector.extract_strided_slice %300 {offsets = [1, 0, 0], sizes = [16, 20, 32], strides = [1, 1, 1]} : vector<20x20x32xbf16> to vector<16x20x32xbf16>
    %314 = vector.extract_strided_slice %313 {offsets = [0, 0, 0], sizes = [16, 16, 32], strides = [1, 1, 1]} : vector<16x20x32xbf16> to vector<16x16x32xbf16>
    %315 = vector.shape_cast %314 : vector<16x16x32xbf16> to vector<256x32xbf16>
    %316 = vector.extract_strided_slice %313 {offsets = [0, 1, 0], sizes = [16, 16, 32], strides = [1, 1, 1]} : vector<16x20x32xbf16> to vector<16x16x32xbf16>
    %317 = vector.shape_cast %316 : vector<16x16x32xbf16> to vector<256x32xbf16>
    %318 = vector.extract_strided_slice %313 {offsets = [0, 2, 0], sizes = [16, 16, 32], strides = [1, 1, 1]} : vector<16x20x32xbf16> to vector<16x16x32xbf16>
    %319 = vector.shape_cast %318 : vector<16x16x32xbf16> to vector<256x32xbf16>
    %320 = vector.extract_strided_slice %313 {offsets = [0, 3, 0], sizes = [16, 16, 32], strides = [1, 1, 1]} : vector<16x20x32xbf16> to vector<16x16x32xbf16>
    %321 = vector.shape_cast %320 : vector<16x16x32xbf16> to vector<256x32xbf16>
    %322 = vector.extract_strided_slice %313 {offsets = [0, 4, 0], sizes = [16, 16, 32], strides = [1, 1, 1]} : vector<16x20x32xbf16> to vector<16x16x32xbf16>
    %323 = vector.shape_cast %322 : vector<16x16x32xbf16> to vector<256x32xbf16>
    %324 = tpu.concatenate %315, %317, %319, %321, %323 in 1 : vector<256x32xbf16>, vector<256x32xbf16>, vector<256x32xbf16>, vector<256x32xbf16>, vector<256x32xbf16> -> vector<256x160xbf16>
    %325 = vector.extract_strided_slice %300 {offsets = [2, 0, 0], sizes = [16, 20, 32], strides = [1, 1, 1]} : vector<20x20x32xbf16> to vector<16x20x32xbf16>
    %326 = vector.extract_strided_slice %325 {offsets = [0, 0, 0], sizes = [16, 16, 32], strides = [1, 1, 1]} : vector<16x20x32xbf16> to vector<16x16x32xbf16>
    %327 = vector.shape_cast %326 : vector<16x16x32xbf16> to vector<256x32xbf16>
    %328 = vector.extract_strided_slice %325 {offsets = [0, 1, 0], sizes = [16, 16, 32], strides = [1, 1, 1]} : vector<16x20x32xbf16> to vector<16x16x32xbf16>
    %329 = vector.shape_cast %328 : vector<16x16x32xbf16> to vector<256x32xbf16>
    %330 = vector.extract_strided_slice %325 {offsets = [0, 2, 0], sizes = [16, 16, 32], strides = [1, 1, 1]} : vector<16x20x32xbf16> to vector<16x16x32xbf16>
    %331 = vector.shape_cast %330 : vector<16x16x32xbf16> to vector<256x32xbf16>
    %332 = vector.extract_strided_slice %325 {offsets = [0, 3, 0], sizes = [16, 16, 32], strides = [1, 1, 1]} : vector<16x20x32xbf16> to vector<16x16x32xbf16>
    %333 = vector.shape_cast %332 : vector<16x16x32xbf16> to vector<256x32xbf16>
    %334 = vector.extract_strided_slice %325 {offsets = [0, 4, 0], sizes = [16, 16, 32], strides = [1, 1, 1]} : vector<16x20x32xbf16> to vector<16x16x32xbf16>
    %335 = vector.shape_cast %334 : vector<16x16x32xbf16> to vector<256x32xbf16>
    %336 = tpu.concatenate %327, %329, %331, %333, %335 in 1 : vector<256x32xbf16>, vector<256x32xbf16>, vector<256x32xbf16>, vector<256x32xbf16>, vector<256x32xbf16> -> vector<256x160xbf16>
    %337 = vector.extract_strided_slice %300 {offsets = [3, 0, 0], sizes = [16, 20, 32], strides = [1, 1, 1]} : vector<20x20x32xbf16> to vector<16x20x32xbf16>
    %338 = vector.extract_strided_slice %337 {offsets = [0, 0, 0], sizes = [16, 16, 32], strides = [1, 1, 1]} : vector<16x20x32xbf16> to vector<16x16x32xbf16>
    %339 = vector.shape_cast %338 : vector<16x16x32xbf16> to vector<256x32xbf16>
    %340 = vector.extract_strided_slice %337 {offsets = [0, 1, 0], sizes = [16, 16, 32], strides = [1, 1, 1]} : vector<16x20x32xbf16> to vector<16x16x32xbf16>
    %341 = vector.shape_cast %340 : vector<16x16x32xbf16> to vector<256x32xbf16>
    %342 = vector.extract_strided_slice %337 {offsets = [0, 2, 0], sizes = [16, 16, 32], strides = [1, 1, 1]} : vector<16x20x32xbf16> to vector<16x16x32xbf16>
    %343 = vector.shape_cast %342 : vector<16x16x32xbf16> to vector<256x32xbf16>
    %344 = vector.extract_strided_slice %337 {offsets = [0, 3, 0], sizes = [16, 16, 32], strides = [1, 1, 1]} : vector<16x20x32xbf16> to vector<16x16x32xbf16>
    %345 = vector.shape_cast %344 : vector<16x16x32xbf16> to vector<256x32xbf16>
    %346 = vector.extract_strided_slice %337 {offsets = [0, 4, 0], sizes = [16, 16, 32], strides = [1, 1, 1]} : vector<16x20x32xbf16> to vector<16x16x32xbf16>
    %347 = vector.shape_cast %346 : vector<16x16x32xbf16> to vector<256x32xbf16>
    %348 = tpu.concatenate %339, %341, %343, %345, %347 in 1 : vector<256x32xbf16>, vector<256x32xbf16>, vector<256x32xbf16>, vector<256x32xbf16>, vector<256x32xbf16> -> vector<256x160xbf16>
    %349 = vector.extract_strided_slice %300 {offsets = [4, 0, 0], sizes = [16, 20, 32], strides = [1, 1, 1]} : vector<20x20x32xbf16> to vector<16x20x32xbf16>
    %350 = vector.extract_strided_slice %349 {offsets = [0, 0, 0], sizes = [16, 16, 32], strides = [1, 1, 1]} : vector<16x20x32xbf16> to vector<16x16x32xbf16>
    %351 = vector.shape_cast %350 : vector<16x16x32xbf16> to vector<256x32xbf16>
    %352 = vector.extract_strided_slice %349 {offsets = [0, 1, 0], sizes = [16, 16, 32], strides = [1, 1, 1]} : vector<16x20x32xbf16> to vector<16x16x32xbf16>
    %353 = vector.shape_cast %352 : vector<16x16x32xbf16> to vector<256x32xbf16>
    %354 = vector.extract_strided_slice %349 {offsets = [0, 2, 0], sizes = [16, 16, 32], strides = [1, 1, 1]} : vector<16x20x32xbf16> to vector<16x16x32xbf16>
    %355 = vector.shape_cast %354 : vector<16x16x32xbf16> to vector<256x32xbf16>
    %356 = vector.extract_strided_slice %349 {offsets = [0, 3, 0], sizes = [16, 16, 32], strides = [1, 1, 1]} : vector<16x20x32xbf16> to vector<16x16x32xbf16>
    %357 = vector.shape_cast %356 : vector<16x16x32xbf16> to vector<256x32xbf16>
    %358 = vector.extract_strided_slice %349 {offsets = [0, 4, 0], sizes = [16, 16, 32], strides = [1, 1, 1]} : vector<16x20x32xbf16> to vector<16x16x32xbf16>
    %359 = vector.shape_cast %358 : vector<16x16x32xbf16> to vector<256x32xbf16>
    %360 = tpu.concatenate %351, %353, %355, %357, %359 in 1 : vector<256x32xbf16>, vector<256x32xbf16>, vector<256x32xbf16>, vector<256x32xbf16>, vector<256x32xbf16> -> vector<256x160xbf16>
    %361 = tpu.concatenate %312, %324, %336, %348, %360 in 1 : vector<256x160xbf16>, vector<256x160xbf16>, vector<256x160xbf16>, vector<256x160xbf16>, vector<256x160xbf16> -> vector<256x800xbf16>
    %cst_16 = arith.constant dense<0.000000e+00> : vector<256x16xf32>
    %362 = tpu.matmul %361, %288, %cst_16 {dimension_numbers = #tpu.dot_dimension_numbers<[1], [0], [0], [1], [0, 0, 1, 1], [], []>} : vector<256x800xbf16>, vector<800x16xbf16>, vector<256x16xf32> -> vector<256x16xf32>
    %363 = vector.broadcast %289 : vector<1x16xf32> to vector<256x16xf32>
    %364 = arith.addf %362, %363 : vector<256x16xf32>
    %365 = math.tanh %364 : vector<256x16xf32>
    %366 = vector.shape_cast %365 : vector<256x16xf32> to vector<16x16x16xf32>
    %367 = vector.shape_cast %366 : vector<16x16x16xf32> to vector<256x16xf32>
    %368 = tpu.transpose %367, [1, 0] : vector<256x16xf32> -> vector<16x256xf32>
    %c0_17 = arith.constant 0 : index
    %c0_18 = arith.constant 0 : index
    %c0_19 = arith.constant 0 : index
    %369 = vector.load %arg8[%c0_17, %c0_18, %c0_19] : memref<1x16x256xf32, #tpu.memory_space<vmem>>, vector<1x16x256xf32>
    %370 = vector.shape_cast %369 : vector<1x16x256xf32> to vector<16x256xf32>
    %371 = vector.shape_cast %368 : vector<16x256xf32> to vector<1x16x256xf32>
    tpu.vector_store %arg8[%c0_17, %c0_18, %c0_19], %371 {strides = array<i32>} : memref<1x16x256xf32, #tpu.memory_space<vmem>>, vector<1x16x256xf32>,
    return
  }
  func.func @transform_0(%arg0: i32) -> (i32, i32, i32, i32) {
    %c0_i32 = arith.constant 0 : i32
    %c0_i32_0 = arith.constant 0 : i32
    %c0_i32_1 = arith.constant 0 : i32
    %c0_i32_2 = arith.constant 0 : i32
    return %arg0, %c0_i32, %c0_i32_0, %c0_i32_1 : i32, i32, i32, i32
  }
  func.func @transform_1(%arg0: i32) -> (i32, i32) {
    %c0_i32 = arith.constant 0 : i32
    %c0_i32_0 = arith.constant 0 : i32
    %c0_i32_1 = arith.constant 0 : i32
    return %c0_i32, %c0_i32_0 : i32, i32
  }
  func.func @transform_2(%arg0: i32) -> (i32, i32) {
    %c0_i32 = arith.constant 0 : i32
    %c0_i32_0 = arith.constant 0 : i32
    %c0_i32_1 = arith.constant 0 : i32
    return %c0_i32, %c0_i32_0 : i32, i32
  }
  func.func @transform_3(%arg0: i32) -> (i32, i32) {
    %c0_i32 = arith.constant 0 : i32
    %c0_i32_0 = arith.constant 0 : i32
    %c0_i32_1 = arith.constant 0 : i32
    return %c0_i32, %c0_i32_0 : i32, i32
  }
  func.func @transform_4(%arg0: i32) -> (i32, i32) {
    %c0_i32 = arith.constant 0 : i32
    %c0_i32_0 = arith.constant 0 : i32
    %c0_i32_1 = arith.constant 0 : i32
    return %c0_i32, %c0_i32_0 : i32, i32
  }
  func.func @transform_5(%arg0: i32) -> (i32, i32) {
    %c0_i32 = arith.constant 0 : i32
    %c0_i32_0 = arith.constant 0 : i32
    %c0_i32_1 = arith.constant 0 : i32
    return %c0_i32, %c0_i32_0 : i32, i32
  }
  func.func @transform_6(%arg0: i32) -> (i32, i32) {
    %c0_i32 = arith.constant 0 : i32
    %c0_i32_0 = arith.constant 0 : i32
    %c0_i32_1 = arith.constant 0 : i32
    return %c0_i32, %c0_i32_0 : i32, i32
  }
  func.func @transform_7(%arg0: i32) -> (i32, i32, i32) {
    %c0_i32 = arith.constant 0 : i32
    %c0_i32_0 = arith.constant 0 : i32
    %c0_i32_1 = arith.constant 0 : i32
    return %arg0, %c0_i32, %c0_i32_0 : i32, i32, i32
  }
}

</mosaic_0001>

<llo_original>
// kernel: espcn_forward.1
$region0: #{espcn_forward.1}
  #allocation0 [shape = 'u32[]', space=smem, size = 0x4, offset = 0x4, fixed_abs, tag = 'smem constant byte address 0x4 - core index']
  #allocation1 [shape = 'u32[144,128]{1,0:T(1,128)}', space=vmem, size = 0x12000, scoped, tag = 'internal scratch']
  %s0 = inlined_call_operand.vmem [shape: f32[2,16,16,4], index: 0, kind: input, shape index: {}]
  %s1 = inlined_call_operand.vmem [shape: bf16[324,64], index: 1, kind: input, shape index: {}]
  %s2 = inlined_call_operand.vmem [shape: f32[1,64], index: 2, kind: input, shape index: {}]
  %s3 = inlined_call_operand.vmem [shape: bf16[1600,32], index: 3, kind: input, shape index: {}]
  %s4 = inlined_call_operand.vmem [shape: f32[1,32], index: 4, kind: input, shape index: {}]
  %s5 = inlined_call_operand.vmem [shape: bf16[800,16], index: 5, kind: input, shape index: {}]
  %s6 = inlined_call_operand.vmem [shape: f32[1,16], index: 6, kind: input, shape index: {}]
  %s7 = inlined_call_operand.vmem [shape: f32[2,16,256], index: 7, kind: output, shape index: {}]
  %s8 = sld [smem:[#allocation0]]
  $region61: #{espcn_forward.1} parent=0
    _
  %s10 = ssub.s32 1, %s8
  %s11 = scalar_select 0, %s10, %s8
  loop: start=0, step=1, limit=4
  $region2: #{espcn_forward.1} parent=0 // loop_pre_header
    _
  $region3: #{espcn_forward.1} parent=0 // loop_header
    %s13 = sphi 0, %s17
    %p14 = scmp.ge.s32.totalorder %s13, 4
    %s23 = sphi 0, %s25
    %s26 = sphi 0, %s23
    %s27 = sphi 0, %s26
    %s43 = sphi 0, %s27
    %s47 = sphi 0, %s47
    %s49 = sphi 0, %s47
    %s50 = sphi 0, %s49
    %s64 = sphi 0, %s50
    %s68 = sphi 0, %s68
    %s70 = sphi 0, %s68
    %s71 = sphi 0, %s70
    %s85 = sphi 0, %s71
    %s89 = sphi 0, %s89
    %s91 = sphi 0, %s89
    %s92 = sphi 0, %s91
    %s106 = sphi 0, %s92
    %s110 = sphi 0, %s110
    %s112 = sphi 0, %s110
    %s113 = sphi 0, %s112
    %s127 = sphi 0, %s113
    %s131 = sphi 0, %s131
    %s133 = sphi 0, %s131
    %s134 = sphi 0, %s133
    %s148 = sphi 0, %s134
    %s152 = sphi 0, %s152
    %s154 = sphi 0, %s152
    %s155 = sphi 0, %s154
    %s169 = sphi 0, %s155
    %s175 = sphi 0, %s177
    %s178 = sphi 0, %s175
    %s179 = sphi 0, %s178
    %s195 = sphi 0, %s179
  $region4: #{espcn_forward.1} parent=0 // loop_header_branch
    %16 = sbr.rel (%p14) target = $region8
  $region5: #{espcn_forward.1} parent=0 // loop_body
    %s18 = ssub.s32 %s13, 1
    %s19 = ssub.s32 %s13, 2
    %s20 = sadd.s32 %s13, 1
    %s21 = ssub.s32 %s13, %s20
    %p22 = scmp.eq.s32.totalorder %s21, 0
    %s24 = sadd.s32 %s23, 1
    %s25 = scalar_select %p22, %s23, %s24
    %p28 = pneg %p22
    %p29 = scmp.eq.s32.totalorder %s13, 1
    %p30 = por %p28, %p29
    %p31 = scmp.ne.s32.totalorder %s23, %s26
    %p32 = scmp.eq.s32.totalorder %s13, 0
    %p33 = por %p31, %p32
    %p34 = scmp.ne.s32.totalorder %s23, %s26
    %p35 = scmp.eq.s32.totalorder %s18, 1
    %p36 = por %p34, %p35
    %p37 = scmp.ne.s32.totalorder %s26, %s27
    %p38 = scmp.eq.s32.totalorder %s18, 0
    %p39 = por %p37, %p38
    %p40 = scmp.ne.s32.totalorder %s26, %s27
    %p41 = scmp.eq.s32.totalorder %s19, 1
    %p42 = por %p40, %p41
    %p44 = scmp.ne.s32.totalorder %s27, %s43
    %p45 = scmp.eq.s32.totalorder %s19, 0
    %p46 = por %p44, %p45
    %s48 = sadd.s32 %s47, 1
    %p51 = scmp.eq.s32.totalorder %s13, 1
    %p52 = scmp.ne.s32.totalorder %s47, %s49
    %p53 = scmp.eq.s32.totalorder %s13, 0
    %p54 = por %p52, %p53
    %p55 = scmp.ne.s32.totalorder %s47, %s49
    %p56 = scmp.eq.s32.totalorder %s18, 1
    %p57 = por %p55, %p56
    %p58 = scmp.ne.s32.totalorder %s49, %s50
    %p59 = scmp.eq.s32.totalorder %s18, 0
    %p60 = por %p58, %p59
    %p61 = scmp.ne.s32.totalorder %s49, %s50
    %p62 = scmp.eq.s32.totalorder %s19, 1
    %p63 = por %p61, %p62
    %p65 = scmp.ne.s32.totalorder %s50, %s64
    %p66 = scmp.eq.s32.totalorder %s19, 0
    %p67 = por %p65, %p66
    %s69 = sadd.s32 %s68, 1
    %p72 = scmp.eq.s32.totalorder %s13, 1
    %p73 = scmp.ne.s32.totalorder %s68, %s70
    %p74 = scmp.eq.s32.totalorder %s13, 0
    %p75 = por %p73, %p74
    %p76 = scmp.ne.s32.totalorder %s68, %s70
    %p77 = scmp.eq.s32.totalorder %s18, 1
    %p78 = por %p76, %p77
    %p79 = scmp.ne.s32.totalorder %s70, %s71
    %p80 = scmp.eq.s32.totalorder %s18, 0
    %p81 = por %p79, %p80
    %p82 = scmp.ne.s32.totalorder %s70, %s71
    %p83 = scmp.eq.s32.totalorder %s19, 1
    %p84 = por %p82, %p83
    %p86 = scmp.ne.s32.totalorder %s71, %s85
    %p87 = scmp.eq.s32.totalorder %s19, 0
    %p88 = por %p86, %p87
    %s90 = sadd.s32 %s89, 1
    %p93 = scmp.eq.s32.totalorder %s13, 1
    %p94 = scmp.ne.s32.totalorder %s89, %s91
    %p95 = scmp.eq.s32.totalorder %s13, 0
    %p96 = por %p94, %p95
    %p97 = scmp.ne.s32.totalorder %s89, %s91
    %p98 = scmp.eq.s32.totalorder %s18, 1
    %p99 = por %p97, %p98
    %p100 = scmp.ne.s32.totalorder %s91, %s92
    %p101 = scmp.eq.s32.totalorder %s18, 0
    %p102 = por %p100, %p101
    %p103 = scmp.ne.s32.totalorder %s91, %s92
    %p104 = scmp.eq.s32.totalorder %s19, 1
    %p105 = por %p103, %p104
    %p107 = scmp.ne.s32.totalorder %s92, %s106
    %p108 = scmp.eq.s32.totalorder %s19, 0
    %p109 = por %p107, %p108
    %s111 = sadd.s32 %s110, 1
    %p114 = scmp.eq.s32.totalorder %s13, 1
    %p115 = scmp.ne.s32.totalorder %s110, %s112
    %p116 = scmp.eq.s32.totalorder %s13, 0
    %p117 = por %p115, %p116
    %p118 = scmp.ne.s32.totalorder %s110, %s112
    %p119 = scmp.eq.s32.totalorder %s18, 1
    %p120 = por %p118, %p119
    %p121 = scmp.ne.s32.totalorder %s112, %s113
    %p122 = scmp.eq.s32.totalorder %s18, 0
    %p123 = por %p121, %p122
    %p124 = scmp.ne.s32.totalorder %s112, %s113
    %p125 = scmp.eq.s32.totalorder %s19, 1
    %p126 = por %p124, %p125
    %p128 = scmp.ne.s32.totalorder %s113, %s127
    %p129 = scmp.eq.s32.totalorder %s19, 0
    %p130 = por %p128, %p129
    %s132 = sadd.s32 %s131, 1
    %p135 = scmp.eq.s32.totalorder %s13, 1
    %p136 = scmp.ne.s32.totalorder %s131, %s133
    %p137 = scmp.eq.s32.totalorder %s13, 0
    %p138 = por %p136, %p137
    %p139 = scmp.ne.s32.totalorder %s131, %s133
    %p140 = scmp.eq.s32.totalorder %s18, 1
    %p141 = por %p139, %p140
    %p142 = scmp.ne.s32.totalorder %s133, %s134
    %p143 = scmp.eq.s32.totalorder %s18, 0
    %p144 = por %p142, %p143
    %p145 = scmp.ne.s32.totalorder %s133, %s134
    %p146 = scmp.eq.s32.totalorder %s19, 1
    %p147 = por %p145, %p146
    %p149 = scmp.ne.s32.totalorder %s134, %s148
    %p150 = scmp.eq.s32.totalorder %s19, 0
    %p151 = por %p149, %p150
    %s153 = sadd.s32 %s152, 1
    %p156 = scmp.eq.s32.totalorder %s13, 1
    %p157 = scmp.ne.s32.totalorder %s152, %s154
    %p158 = scmp.eq.s32.totalorder %s13, 0
    %p159 = por %p157, %p158
    %p160 = scmp.ne.s32.totalorder %s152, %s154
    %p161 = scmp.eq.s32.totalorder %s18, 1
    %p162 = por %p160, %p161
    %p163 = scmp.ne.s32.totalorder %s154, %s155
    %p164 = scmp.eq.s32.totalorder %s18, 0
    %p165 = por %p163, %p164
    %p166 = scmp.ne.s32.totalorder %s154, %s155
    %p167 = scmp.eq.s32.totalorder %s19, 1
    %p168 = por %p166, %p167
    %p170 = scmp.ne.s32.totalorder %s155, %s169
    %p171 = scmp.eq.s32.totalorder %s19, 0
    %p172 = por %p170, %p171
    %s173 = ssub.s32 %s13, %s20
    %p174 = scmp.eq.s32.totalorder %s173, 0
    %s176 = sadd.s32 %s175, 1
    %s177 = scalar_select %p174, %s175, %s176
    %p180 = pneg %p174
    %p181 = scmp.eq.s32.totalorder %s13, 1
    %p182 = por %p180, %p181
    %p183 = scmp.ne.s32.totalorder %s175, %s178
    %p184 = scmp.eq.s32.totalorder %s13, 0
    %p185 = por %p183, %p184
    %p186 = scmp.ne.s32.totalorder %s175, %s178
    %p187 = scmp.eq.s32.totalorder %s18, 1
    %p188 = por %p186, %p187
    %p189 = scmp.ne.s32.totalorder %s178, %s179
    %p190 = scmp.eq.s32.totalorder %s18, 0
    %p191 = por %p189, %p190
    %p192 = scmp.ne.s32.totalorder %s178, %s179
    %p193 = scmp.eq.s32.totalorder %s19, 1
    %p194 = por %p192, %p193
    %p196 = scmp.ne.s32.totalorder %s179, %s195
    %p197 = scmp.eq.s32.totalorder %s19, 0
    %p198 = por %p196, %p197
    %p199 = scmp.le.s32.totalorder 1, %s13
    %p200 = scmp.lt.s32.totalorder %s13, 3
    %p201 = pnand %p199, %p200
    %p202 = pneg %p201
    // Predicated region
    $region9: #{espcn_forward.1} parent=5 // pred_check
      _
    $region10: #{espcn_forward.1} parent=5 // pred_check_branch
      %204 = sbr.rel (%p201) target = $region12
    $region11: #{espcn_forward.1} parent=5 // pred_region
      %s205 = ssub.s32 %s13, 1
      // Predicated region
      $region13: #{espcn_forward.1} parent=11 // pred_check
        %p206 = pneg %p60
      $region14: #{espcn_forward.1} parent=11 // pred_check_branch
        %208 = sbr.rel (%p206) target = $region16
      $region15: #{espcn_forward.1} parent=11 // pred_region
        _
      $region16: #{espcn_forward.1} parent=11 // pred_fallthru
        _
      // Predicated region
      $region17: #{espcn_forward.1} parent=11 // pred_check
        %p209 = pneg %p81
      $region18: #{espcn_forward.1} parent=11 // pred_check_branch
        %211 = sbr.rel (%p209) target = $region20
      $region19: #{espcn_forward.1} parent=11 // pred_region
        _
      $region20: #{espcn_forward.1} parent=11 // pred_fallthru
        _
      // Predicated region
      $region21: #{espcn_forward.1} parent=11 // pred_check
        %p212 = pneg %p102
      $region22: #{espcn_forward.1} parent=11 // pred_check_branch
        %214 = sbr.rel (%p212) target = $region24
      $region23: #{espcn_forward.1} parent=11 // pred_region
        _
      $region24: #{espcn_forward.1} parent=11 // pred_fallthru
        _
      // Predicated region
      $region25: #{espcn_forward.1} parent=11 // pred_check
        %p215 = pneg %p123
      $region26: #{espcn_forward.1} parent=11 // pred_check_branch
        %217 = sbr.rel (%p215) target = $region28
      $region27: #{espcn_forward.1} parent=11 // pred_region
        _
      $region28: #{espcn_forward.1} parent=11 // pred_fallthru
        _
      // Predicated region
      $region29: #{espcn_forward.1} parent=11 // pred_check
        %p218 = pneg %p144
      $region30: #{espcn_forward.1} parent=11 // pred_check_branch
        %220 = sbr.rel (%p218) target = $region32
      $region31: #{espcn_forward.1} parent=11 // pred_region
        _
      $region32: #{espcn_forward.1} parent=11 // pred_fallthru
        _
      // Predicated region
      $region33: #{espcn_forward.1} parent=11 // pred_check
        %p221 = pneg %p165
      $region34: #{espcn_forward.1} parent=11 // pred_check_branch
        %223 = sbr.rel (%p221) target = $region36
      $region35: #{espcn_forward.1} parent=11 // pred_region
        _
      $region36: #{espcn_forward.1} parent=11 // pred_fallthru
        _
    $region12: #{espcn_forward.1} parent=5 // pred_fallthru
      _
    %p224 = scmp.lt.s32.totalorder %s13, 2
    // Predicated region
    $region37: #{espcn_forward.1} parent=5 // pred_check
      %p225 = pneg %p224
    $region38: #{espcn_forward.1} parent=5 // pred_check_branch
      %227 = sbr.rel (%p225) target = $region40
    $region39: #{espcn_forward.1} parent=5 // pred_region
      // Predicated region
      $region41: #{espcn_forward.1} parent=39 // pred_check
        %p228 = pneg %p33
      $region42: #{espcn_forward.1} parent=39 // pred_check_branch
        %230 = sbr.rel (%p228) target = $region44
      $region43: #{espcn_forward.1} parent=39 // pred_region
        %p231 = scmp.lt.s32.totalorder %s13, 1
        %s232 = scalar_select %p231, %s13, 1
        %s233 = smul.addr %s232, 32
        %s234 = smul.addr %s233, 8
        %s235 = scalar_lea.vmem %s0, %s234
      $region44: #{espcn_forward.1} parent=39 // pred_fallthru
        _
    $region40: #{espcn_forward.1} parent=5 // pred_fallthru
      _
    %p236 = scmp.le.s32.totalorder 1, %s13
    %p237 = scmp.lt.s32.totalorder %s13, 3
    %p238 = pnand %p236, %p237
    %p239 = pneg %p238
    // Predicated region
    $region45: #{espcn_forward.1} parent=5 // pred_check
      _
    $region46: #{espcn_forward.1} parent=5 // pred_check_branch
      %241 = sbr.rel (%p238) target = $region48
    $region47: #{espcn_forward.1} parent=5 // pred_region
      %s242 = ssub.s32 %s13, 1
      %p243 = scmp.lt.s32.totalorder %s18, 1
      %s244 = scalar_select %p243, %s18, 1
      %s245 = smul.addr %s244, 32
      %s246 = smul.addr %s245, 8
      %s247 = scalar_lea.vmem %s0, %s246
      %p248 = pneg %p39
      %p249 = pneg %p36
      %p250 = pneg %p60
      %p251 = pneg %p57
      %p252 = pneg %p81
      %p253 = pneg %p78
      %p254 = pneg %p102
      %p255 = pneg %p99
      %p256 = pneg %p123
      %p257 = pneg %p120
      %p258 = pneg %p144
      %p259 = pneg %p141
      %p260 = pneg %p165
      %p261 = pneg %p162
      %p262 = pneg %p191
      %p263 = pneg %p188
      %p264 = scmp.lt.s32.totalorder %s18, 1
      %s265 = scalar_select %p264, %s18, 1
      %s266 = smul.addr %s265, 4
      %s267 = smul.addr %s266, 8
      %s268 = scalar_lea.vmem %s7, %s267
      %p269 = scmp.lt.s32.totalorder %s18, 1
      %s270 = scalar_select %p269, %s18, 1
      %s271 = smul.addr %s270, 32
      %s272 = smul.addr %s271, 8
      %s273 = scalar_lea.vmem %s0, %s272
      %p274 = scmp.lt.s32.totalorder %s18, 1
      %s275 = scalar_select %p274, %s18, 1
      %s276 = smul.addr %s275, 4
      %s277 = smul.addr %s276, 8
      %s278 = scalar_lea.vmem %s7, %s277
      %v280 = vld [vmem:[%s273] sm:$0xff]
      %v281 = vld [vmem:[%s273 + $0x8] sm:$0xff]
      %v282 = vld [vmem:[%s273 + $0x10] sm:$0xff]
      %v283 = vld [vmem:[%s273 + $0x18] sm:$0xff]
      %v284 = vld [vmem:[%s273 + $0x20] sm:$0xff]
      %v285 = vld [vmem:[%s273 + $0x28] sm:$0xff]
      %v286 = vld [vmem:[%s273 + $0x30] sm:$0xff]
      %v287 = vld [vmem:[%s273 + $0x38] sm:$0xff]
      %v288 = vld [vmem:[%s273 + $0x40] sm:$0xff]
      %v289 = vld [vmem:[%s273 + $0x48] sm:$0xff]
      %v290 = vld [vmem:[%s273 + $0x50] sm:$0xff]
      %v291 = vld [vmem:[%s273 + $0x58] sm:$0xff]
      %v292 = vld [vmem:[%s273 + $0x60] sm:$0xff]
      %v293 = vld [vmem:[%s273 + $0x68] sm:$0xff]
      %v294 = vld [vmem:[%s273 + $0x70] sm:$0xff]
      %v295 = vld [vmem:[%s273 + $0x78] sm:$0xff]
      %v296 = vld [vmem:[%s273 + $0x80] sm:$0xff]
      %v297 = vld [vmem:[%s273 + $0x88] sm:$0xff]
      %v298 = vld [vmem:[%s273 + $0x90] sm:$0xff]
      %v299 = vld [vmem:[%s273 + $0x98] sm:$0xff]
      %v300 = vld [vmem:[%s273 + $0xa0] sm:$0xff]
      %v301 = vld [vmem:[%s273 + $0xa8] sm:$0xff]
      %v302 = vld [vmem:[%s273 + $0xb0] sm:$0xff]
      %v303 = vld [vmem:[%s273 + $0xb8] sm:$0xff]
      %v304 = vld [vmem:[%s273 + $0xc0] sm:$0xff]
      %v305 = vld [vmem:[%s273 + $0xc8] sm:$0xff]
      %v306 = vld [vmem:[%s273 + $0xd0] sm:$0xff]
      %v307 = vld [vmem:[%s273 + $0xd8] sm:$0xff]
      %v308 = vld [vmem:[%s273 + $0xe0] sm:$0xff]
      %v309 = vld [vmem:[%s273 + $0xe8] sm:$0xff]
      %v310 = vld [vmem:[%s273 + $0xf0] sm:$0xff]
      %v311 = vld [vmem:[%s273 + $0xf8] sm:$0xff]
      %v312 = vld [vmem:[%s1] sm:$0xf]
      %v313 = vld [vmem:[%s1 + $0x4] sm:$0xf]
      %v314 = vld [vmem:[%s1 + $0x8] sm:$0xf]
      %v315 = vld [vmem:[%s1 + $0xc] sm:$0xf]
      %v316 = vld [vmem:[%s1 + $0x10] sm:$0xf]
      %v317 = vld [vmem:[%s1 + $0x14] sm:$0xf]
      %v318 = vld [vmem:[%s1 + $0x18] sm:$0xf]
      %v319 = vld [vmem:[%s1 + $0x1c] sm:$0xf]
      %v320 = vld [vmem:[%s1 + $0x20] sm:$0xf]
      %v321 = vld [vmem:[%s1 + $0x24] sm:$0xf]
      %v322 = vld [vmem:[%s1 + $0x28] sm:$0xf]
      %v323 = vld [vmem:[%s1 + $0x2c] sm:$0xf]
      %v324 = vld [vmem:[%s1 + $0x30] sm:$0xf]
      %v325 = vld [vmem:[%s1 + $0x34] sm:$0xf]
      %v326 = vld [vmem:[%s1 + $0x38] sm:$0xf]
      %v327 = vld [vmem:[%s1 + $0x3c] sm:$0xf]
      %v328 = vld [vmem:[%s1 + $0x40] sm:$0xf]
      %v329 = vld [vmem:[%s1 + $0x44] sm:$0xf]
      %v330 = vld [vmem:[%s1 + $0x48] sm:$0xf]
      %v331 = vld [vmem:[%s1 + $0x4c] sm:$0xf]
      %v332 = vld [vmem:[%s1 + $0x50] sm:$0xf]
      %v333 = vld [vmem:[%s1 + $0x54] sm:$0xf]
      %v334 = vld [vmem:[%s1 + $0x58] sm:$0xf]
      %v335 = vld [vmem:[%s1 + $0x5c] sm:$0xf]
      %v336 = vld [vmem:[%s1 + $0x60] sm:$0xf]
      %v337 = vld [vmem:[%s1 + $0x64] sm:$0xf]
      %v338 = vld [vmem:[%s1 + $0x68] sm:$0xf]
      %v339 = vld [vmem:[%s1 + $0x6c] sm:$0xf]
      %v340 = vld [vmem:[%s1 + $0x70] sm:$0xf]
      %v341 = vld [vmem:[%s1 + $0x74] sm:$0xf]
      %v342 = vld [vmem:[%s1 + $0x78] sm:$0xf]
      %v343 = vld [vmem:[%s1 + $0x7c] sm:$0xf]
      %v344 = vld [vmem:[%s1 + $0x80] sm:$0xf]
      %v345 = vld [vmem:[%s1 + $0x84] sm:$0xf]
      %v346 = vld [vmem:[%s1 + $0x88] sm:$0xf]
      %v347 = vld [vmem:[%s1 + $0x8c] sm:$0xf]
      %v348 = vld [vmem:[%s1 + $0x90] sm:$0xf]
      %v349 = vld [vmem:[%s1 + $0x94] sm:$0xf]
      %v350 = vld [vmem:[%s1 + $0x98] sm:$0xf]
      %v351 = vld [vmem:[%s1 + $0x9c] sm:$0xf]
      %v352 = vld [vmem:[%s1 + $0xa0] sm:$0x3]
      %v353 = vld [vmem:[%s2] sm:$0x1]
      %v354 = vpack.c.bf16 %v281, %v280
      %v355 = vpack.c.bf16 %v283, %v282
      %v356 = vpack.c.bf16 %v285, %v284
      %v357 = vpack.c.bf16 %v287, %v286
      %v358 = vpack.c.bf16 %v289, %v288
      %v359 = vpack.c.bf16 %v291, %v290
      %v360 = vpack.c.bf16 %v293, %v292
      %v361 = vpack.c.bf16 %v295, %v294
      %v362 = vpack.c.bf16 %v297, %v296
      %v363 = vpack.c.bf16 %v299, %v298
      %v364 = vpack.c.bf16 %v301, %v300
      %v365 = vpack.c.bf16 %v303, %v302
      %v366 = vpack.c.bf16 %v305, %v304
      %v367 = vpack.c.bf16 %v307, %v306
      %v368 = vpack.c.bf16 %v309, %v308
      %v369 = vpack.c.bf16 %v311, %v310
      %v386 = vrot.slane %v358, 2
      %v387 = vrot.slane %v357, 2
      %v388 = vrot.slane %v356, 2
      %v389 = vrot.slane %v355, 2
      %v390 = vrot.slane %v354, 2
      %v391 = vrot.slane %v359, 2
      %v392 = vrot.slane %v360, 2
      %v393 = vrot.slane %v361, 2
      %v394 = vrot.slane %v362, 2
      %v395 = vrot.slane %v363, 2
      %v396 = vrot.slane %v364, 2
      %v397 = vrot.slane %v365, 2
      %v398 = vrot.slane %v366, 2
      %v399 = vrot.slane %v367, 2
      %v400 = vrot.slane %v368, 2
      %v401 = vrot.slane %v369, 2
      %v418 = vrot.slane %v358, 1
      %v419 = vrot.slane %v357, 1
      %v420 = vrot.slane %v356, 1
      %v421 = vrot.slane %v355, 1
      %v422 = vrot.slane %v354, 1
      %v423 = vrot.slane %v359, 1
      %v424 = vrot.slane %v360, 1
      %v425 = vrot.slane %v361, 1
      %v426 = vrot.slane %v362, 1
      %v427 = vrot.slane %v363, 1
      %v428 = vrot.slane %v364, 1
      %v429 = vrot.slane %v365, 1
      %v430 = vrot.slane %v366, 1
      %v431 = vrot.slane %v367, 1
      %v432 = vrot.slane %v368, 1
      %v433 = vrot.slane %v369, 1
      %v450 = vrot.slane %v358, 7
      %v451 = vrot.slane %v357, 7
      %v452 = vrot.slane %v356, 7
      %v453 = vrot.slane %v355, 7
      %v454 = vrot.slane %v354, 7
      %v455 = vrot.slane %v359, 7
      %v456 = vrot.slane %v360, 7
      %v457 = vrot.slane %v361, 7
      %v458 = vrot.slane %v362, 7
      %v459 = vrot.slane %v363, 7
      %v460 = vrot.slane %v364, 7
      %v461 = vrot.slane %v365, 7
      %v462 = vrot.slane %v366, 7
      %v463 = vrot.slane %v367, 7
      %v464 = vrot.slane %v368, 7
      %v465 = vrot.slane %v369, 7
      %v482 = vrot.slane %v358, 6
      %v483 = vrot.slane %v357, 6
      %v484 = vrot.slane %v356, 6
      %v485 = vrot.slane %v355, 6
      %v486 = vrot.slane %v354, 6
      %v487 = vrot.slane %v359, 6
      %v488 = vrot.slane %v360, 6
      %v489 = vrot.slane %v361, 6
      %v490 = vrot.slane %v362, 6
      %v491 = vrot.slane %v363, 6
      %v492 = vrot.slane %v364, 6
      %v493 = vrot.slane %v365, 6
      %v494 = vrot.slane %v366, 6
      %v495 = vrot.slane %v367, 6
      %v496 = vrot.slane %v368, 6
      %v497 = vrot.slane %v369, 6
      %v498 = vrot.slane %v358, 5
      %v499 = vrot.slane %v357, 5
      %v500 = vrot.slane %v356, 5
      %v501 = vrot.slane %v355, 5
      %v502 = vrot.slane %v354, 5
      %v503 = vrot.slane %v359, 5
      %v504 = vrot.slane %v360, 5
      %v505 = vrot.slane %v361, 5
      %v506 = vrot.slane %v362, 5
      %v507 = vrot.slane %v363, 5
      %v508 = vrot.slane %v364, 5
      %v509 = vrot.slane %v365, 5
      %v510 = vrot.slane %v366, 5
      %v511 = vrot.slane %v367, 5
      %v512 = vrot.slane %v368, 5
      %v513 = vrot.slane %v369, 5
      %v514 = vrot.slane %v358, 4
      %v515 = vrot.slane %v357, 4
      %v516 = vrot.slane %v356, 4
      %v517 = vrot.slane %v355, 4
      %v518 = vrot.slane %v354, 4
      %v519 = vrot.slane %v359, 4
      %v520 = vrot.slane %v360, 4
      %v521 = vrot.slane %v361, 4
      %v522 = vrot.slane %v362, 4
      %v523 = vrot.slane %v363, 4
      %v524 = vrot.slane %v364, 4
      %v525 = vrot.slane %v365, 4
      %v526 = vrot.slane %v366, 4
      %v527 = vrot.slane %v367, 4
      %v528 = vrot.slane %v368, 4
      %v529 = vrot.slane %v369, 4
      %v546 = vrot.slane %v358, 3
      %v547 = vrot.slane %v357, 3
      %v548 = vrot.slane %v356, 3
      %v549 = vrot.slane %v355, 3
      %v550 = vrot.slane %v354, 3
      %v551 = vrot.slane %v359, 3
      %v552 = vrot.slane %v360, 3
      %v553 = vrot.slane %v361, 3
      %v554 = vrot.slane %v362, 3
      %v555 = vrot.slane %v363, 3
      %v556 = vrot.slane %v364, 3
      %v557 = vrot.slane %v365, 3
      %v558 = vrot.slane %v366, 3
      %v559 = vrot.slane %v367, 3
      %v560 = vrot.slane %v368, 3
      %v561 = vrot.slane %v369, 3
      %vm562 = vcmask 1040384
      %vm563 = vsmask.f32 256
      %vm564 = vmand %vm562, %vm563
      %v565 = vsel %vm564, %v386, %v418
      %v566 = vsel %vm564, %v387, %v419
      %v567 = vsel %vm564, %v388, %v420
      %v568 = vsel %vm564, %v389, %v421
      %v569 = vsel %vm564, %v390, %v422
      %v570 = vsel %vm564, %v391, %v423
      %v571 = vsel %vm564, %v392, %v424
      %v572 = vsel %vm564, %v393, %v425
      %v573 = vsel %vm564, %v394, %v426
      %v574 = vsel %vm564, %v395, %v427
      %v575 = vsel %vm564, %v396, %v428
      %v576 = vsel %vm564, %v397, %v429
      %v577 = vsel %vm564, %v398, %v430
      %v578 = vsel %vm564, %v399, %v431
      %v579 = vsel %vm564, %v400, %v432
      %v580 = vsel %vm564, %v401, %v433
      %vm581 = vcmask 1040384
      %v584 = vsel %vm581, %v565, %v358
      %v588 = vsel %vm581, %v566, %v357
      %v592 = vsel %vm581, %v567, %v356
      %v596 = vsel %vm581, %v568, %v355
      %v600 = vsel %vm581, %v569, %v354
      %v604 = vsel %vm581, %v570, %v359
      %v608 = vsel %vm581, %v571, %v360
      %v612 = vsel %vm581, %v572, %v361
      %v616 = vsel %vm581, %v573, %v362
      %v620 = vsel %vm581, %v574, %v363
      %v624 = vsel %vm581, %v575, %v364
      %v628 = vsel %vm581, %v576, %v365
      %v632 = vsel %vm581, %v577, %v366
      %v636 = vsel %vm581, %v578, %v367
      %v640 = vsel %vm581, %v579, %v368
      %v644 = vsel %vm581, %v580, %v369
      %vm646 = vcmask 1041408
      %vm647 = vsmask.f32 1280
      %vm648 = vmand %vm646, %vm647
      %v649 = vsel %vm648, %v584, %v450
      %v650 = vsel %vm648, %v588, %v451
      %v651 = vsel %vm648, %v592, %v452
      %v652 = vsel %vm648, %v596, %v453
      %v653 = vsel %vm648, %v600, %v454
      %v654 = vsel %vm648, %v604, %v455
      %v655 = vsel %vm648, %v608, %v456
      %v656 = vsel %vm648, %v612, %v457
      %v657 = vsel %vm648, %v616, %v458
      %v658 = vsel %vm648, %v620, %v459
      %v659 = vsel %vm648, %v624, %v460
      %v660 = vsel %vm648, %v628, %v461
      %v661 = vsel %vm648, %v632, %v462
      %v662 = vsel %vm648, %v636, %v463
      %v663 = vsel %vm648, %v640, %v464
      %v664 = vsel %vm648, %v644, %v465
      %vm665 = vcmask 1041408
      %v668 = vsel %vm665, %v649, %v482
      %v671 = vsel %vm665, %v650, %v483
      %v674 = vsel %vm665, %v651, %v484
      %v677 = vsel %vm665, %v652, %v485
      %v680 = vsel %vm665, %v653, %v486
      %v683 = vsel %vm665, %v654, %v487
      %v686 = vsel %vm665, %v655, %v488
      %v689 = vsel %vm665, %v656, %v489
      %v692 = vsel %vm665, %v657, %v490
      %v695 = vsel %vm665, %v658, %v491
      %v698 = vsel %vm665, %v659, %v492
      %v701 = vsel %vm665, %v660, %v493
      %v704 = vsel %vm665, %v661, %v494
      %v707 = vsel %vm665, %v662, %v495
      %v710 = vsel %vm665, %v663, %v496
      %v713 = vsel %vm665, %v664, %v497
      %v715 = vsel %vm665, %v482, %v498
      %v718 = vsel %vm665, %v483, %v499
      %v721 = vsel %vm665, %v484, %v500
      %v724 = vsel %vm665, %v485, %v501
      %v727 = vsel %vm665, %v486, %v502
      %v730 = vsel %vm665, %v487, %v503
      %v733 = vsel %vm665, %v488, %v504
      %v736 = vsel %vm665, %v489, %v505
      %v739 = vsel %vm665, %v490, %v506
      %v742 = vsel %vm665, %v491, %v507
      %v745 = vsel %vm665, %v492, %v508
      %v748 = vsel %vm665, %v493, %v509
      %v751 = vsel %vm665, %v494, %v510
      %v754 = vsel %vm665, %v495, %v511
      %v757 = vsel %vm665, %v496, %v512
      %v760 = vsel %vm665, %v497, %v513
      %vm762 = vcmask 1042432
      %vm763 = vsmask.f32 2304
      %vm764 = vmand %vm762, %vm763
      %v765 = vsel %vm764, %v715, %v514
      %v766 = vsel %vm764, %v718, %v515
      %v767 = vsel %vm764, %v721, %v516
      %v768 = vsel %vm764, %v724, %v517
      %v769 = vsel %vm764, %v727, %v518
      %v770 = vsel %vm764, %v730, %v519
      %v771 = vsel %vm764, %v733, %v520
      %v772 = vsel %vm764, %v736, %v521
      %v773 = vsel %vm764, %v739, %v522
      %v774 = vsel %vm764, %v742, %v523
      %v775 = vsel %vm764, %v745, %v524
      %v776 = vsel %vm764, %v748, %v525
      %v777 = vsel %vm764, %v751, %v526
      %v778 = vsel %vm764, %v754, %v527
      %v779 = vsel %vm764, %v757, %v528
      %v780 = vsel %vm764, %v760, %v529
      %vm781 = vcmask 1042432
      %v784 = vsel %vm781, %v765, %v546
      %v788 = vsel %vm781, %v766, %v547
      %v792 = vsel %vm781, %v767, %v548
      %v796 = vsel %vm781, %v768, %v549
      %v800 = vsel %vm781, %v769, %v550
      %v804 = vsel %vm781, %v770, %v551
      %v808 = vsel %vm781, %v771, %v552
      %v812 = vsel %vm781, %v772, %v553
      %v816 = vsel %vm781, %v773, %v554
      %v820 = vsel %vm781, %v774, %v555
      %v824 = vsel %vm781, %v775, %v556
      %v828 = vsel %vm781, %v776, %v557
      %v832 = vsel %vm781, %v777, %v558
      %v836 = vsel %vm781, %v778, %v559
      %v840 = vsel %vm781, %v779, %v560
      %v844 = vsel %vm781, %v780, %v561
      %vm846 = vcmask 1043456
      %vm847 = vsmask.f32 3328
      %vm848 = vmand %vm846, %vm847
      %v849 = vsel %vm848, %v784, %v386
      %v850 = vsel %vm848, %v788, %v387
      %v851 = vsel %vm848, %v792, %v388
      %v852 = vsel %vm848, %v796, %v389
      %v853 = vsel %vm848, %v800, %v390
      %v854 = vsel %vm848, %v804, %v391
      %v855 = vsel %vm848, %v808, %v392
      %v856 = vsel %vm848, %v812, %v393
      %v857 = vsel %vm848, %v816, %v394
      %v858 = vsel %vm848, %v820, %v395
      %v859 = vsel %vm848, %v824, %v396
      %v860 = vsel %vm848, %v828, %v397
      %v861 = vsel %vm848, %v832, %v398
      %v862 = vsel %vm848, %v836, %v399
      %v863 = vsel %vm848, %v840, %v400
      %v864 = vsel %vm848, %v844, %v401
      %vm865 = vsmask.f32 7424
      %v866 = vshrl.u32 %v668, 16
      %v868 = vshll.u32 %v668, 16
      %v870 = vrot.slane %v868, 1
      %v871 = vor.u32 %v866, %v870
      %v873 = vshll.u32 %v849, 16
      %v875 = vrot.slane %v873, 1
      %v876 = vsel %vm865, %v871, %v875
      %v877 = vshrl.u32 %v671, 16
      %v879 = vshll.u32 %v671, 16
      %v881 = vrot.slane %v879, 1
      %v882 = vor.u32 %v877, %v881
      %v884 = vshll.u32 %v850, 16
      %v886 = vrot.slane %v884, 1
      %v887 = vsel %vm865, %v882, %v886
      %v888 = vshrl.u32 %v674, 16
      %v890 = vshll.u32 %v674, 16
      %v892 = vrot.slane %v890, 1
      %v893 = vor.u32 %v888, %v892
      %v895 = vshll.u32 %v851, 16
      %v897 = vrot.slane %v895, 1
      %v898 = vsel %vm865, %v893, %v897
      %v899 = vshrl.u32 %v677, 16
      %v901 = vshll.u32 %v677, 16
      %v903 = vrot.slane %v901, 1
      %v904 = vor.u32 %v899, %v903
      %v906 = vshll.u32 %v852, 16
      %v908 = vrot.slane %v906, 1
      %v909 = vsel %vm865, %v904, %v908
      %v910 = vshrl.u32 %v680, 16
      %v912 = vshll.u32 %v680, 16
      %v914 = vrot.slane %v912, 1
      %v915 = vor.u32 %v910, %v914
      %v917 = vshll.u32 %v853, 16
      %v919 = vrot.slane %v917, 1
      %v920 = vsel %vm865, %v915, %v919
      %v921 = vshrl.u32 %v683, 16
      %v923 = vshll.u32 %v683, 16
      %v925 = vrot.slane %v923, 1
      %v926 = vor.u32 %v921, %v925
      %v928 = vshll.u32 %v854, 16
      %v930 = vrot.slane %v928, 1
      %v931 = vsel %vm865, %v926, %v930
      %v932 = vshrl.u32 %v686, 16
      %v934 = vshll.u32 %v686, 16
      %v936 = vrot.slane %v934, 1
      %v937 = vor.u32 %v932, %v936
      %v939 = vshll.u32 %v855, 16
      %v941 = vrot.slane %v939, 1
      %v942 = vsel %vm865, %v937, %v941
      %v943 = vshrl.u32 %v689, 16
      %v945 = vshll.u32 %v689, 16
      %v947 = vrot.slane %v945, 1
      %v948 = vor.u32 %v943, %v947
      %v950 = vshll.u32 %v856, 16
      %v952 = vrot.slane %v950, 1
      %v953 = vsel %vm865, %v948, %v952
      %v954 = vshrl.u32 %v692, 16
      %v956 = vshll.u32 %v692, 16
      %v958 = vrot.slane %v956, 1
      %v959 = vor.u32 %v954, %v958
      %v961 = vshll.u32 %v857, 16
      %v963 = vrot.slane %v961, 1
      %v964 = vsel %vm865, %v959, %v963
      %v965 = vshrl.u32 %v695, 16
      %v967 = vshll.u32 %v695, 16
      %v969 = vrot.slane %v967, 1
      %v970 = vor.u32 %v965, %v969
      %v972 = vshll.u32 %v858, 16
      %v974 = vrot.slane %v972, 1
      %v975 = vsel %vm865, %v970, %v974
      %v976 = vshrl.u32 %v698, 16
      %v978 = vshll.u32 %v698, 16
      %v980 = vrot.slane %v978, 1
      %v981 = vor.u32 %v976, %v980
      %v983 = vshll.u32 %v859, 16
      %v985 = vrot.slane %v983, 1
      %v986 = vsel %vm865, %v981, %v985
      %v987 = vshrl.u32 %v701, 16
      %v989 = vshll.u32 %v701, 16
      %v991 = vrot.slane %v989, 1
      %v992 = vor.u32 %v987, %v991
      %v994 = vshll.u32 %v860, 16
      %v996 = vrot.slane %v994, 1
      %v997 = vsel %vm865, %v992, %v996
      %vm1022 = vcmask 1046528
      %v1023 = vrot.slane %v668, 1
      %v1024 = vrot.slane %v849, 1
      %v1025 = vsel %vm1022, %v1023, %v1024
      %v1026 = vrot.slane %v671, 1
      %v1027 = vrot.slane %v850, 1
      %v1028 = vsel %vm1022, %v1026, %v1027
      %v1029 = vrot.slane %v674, 1
      %v1030 = vrot.slane %v851, 1
      %v1031 = vsel %vm1022, %v1029, %v1030
      %v1032 = vrot.slane %v677, 1
      %v1033 = vrot.slane %v852, 1
      %v1034 = vsel %vm1022, %v1032, %v1033
      %v1035 = vrot.slane %v680, 1
      %v1036 = vrot.slane %v853, 1
      %v1037 = vsel %vm1022, %v1035, %v1036
      %v1038 = vrot.slane %v683, 1
      %v1039 = vrot.slane %v854, 1
      %v1040 = vsel %vm1022, %v1038, %v1039
      %v1041 = vrot.slane %v686, 1
      %v1042 = vrot.slane %v855, 1
      %v1043 = vsel %vm1022, %v1041, %v1042
      %v1044 = vrot.slane %v689, 1
      %v1045 = vrot.slane %v856, 1
      %v1046 = vsel %vm1022, %v1044, %v1045
      %v1047 = vrot.slane %v692, 1
      %v1048 = vrot.slane %v857, 1
      %v1049 = vsel %vm1022, %v1047, %v1048
      %v1050 = vrot.slane %v695, 1
      %v1051 = vrot.slane %v858, 1
      %v1052 = vsel %vm1022, %v1050, %v1051
      %v1053 = vrot.slane %v698, 1
      %v1054 = vrot.slane %v859, 1
      %v1055 = vsel %vm1022, %v1053, %v1054
      %v1056 = vrot.slane %v701, 1
      %v1057 = vrot.slane %v860, 1
      %v1058 = vsel %vm1022, %v1056, %v1057
      %vm1059 = vsmask.f32 6400
      %v1060 = vrot.slane %v866, 1
      %v1061 = vrot.slane %v868, 2
      %v1062 = vor.u32 %v1060, %v1061
      %v1063 = vshrl.u32 %v849, 16
      %v1065 = vrot.slane %v1063, 1
      %v1066 = vrot.slane %v873, 2
      %v1067 = vor.u32 %v1065, %v1066
      %v1068 = vsel %vm1059, %v1062, %v1067
      %v1069 = vrot.slane %v877, 1
      %v1070 = vrot.slane %v879, 2
      %v1071 = vor.u32 %v1069, %v1070
      %v1072 = vshrl.u32 %v850, 16
      %v1074 = vrot.slane %v1072, 1
      %v1075 = vrot.slane %v884, 2
      %v1076 = vor.u32 %v1074, %v1075
      %v1077 = vsel %vm1059, %v1071, %v1076
      %v1078 = vrot.slane %v888, 1
      %v1079 = vrot.slane %v890, 2
      %v1080 = vor.u32 %v1078, %v1079
      %v1081 = vshrl.u32 %v851, 16
      %v1083 = vrot.slane %v1081, 1
      %v1084 = vrot.slane %v895, 2
      %v1085 = vor.u32 %v1083, %v1084
      %v1086 = vsel %vm1059, %v1080, %v1085
      %v1087 = vrot.slane %v899, 1
      %v1088 = vrot.slane %v901, 2
      %v1089 = vor.u32 %v1087, %v1088
      %v1090 = vshrl.u32 %v852, 16
      %v1092 = vrot.slane %v1090, 1
      %v1093 = vrot.slane %v906, 2
      %v1094 = vor.u32 %v1092, %v1093
      %v1095 = vsel %vm1059, %v1089, %v1094
      %v1096 = vrot.slane %v910, 1
      %v1097 = vrot.slane %v912, 2
      %v1098 = vor.u32 %v1096, %v1097
      %v1099 = vshrl.u32 %v853, 16
      %v1101 = vrot.slane %v1099, 1
      %v1102 = vrot.slane %v917, 2
      %v1103 = vor.u32 %v1101, %v1102
      %v1104 = vsel %vm1059, %v1098, %v1103
      %v1105 = vrot.slane %v921, 1
      %v1106 = vrot.slane %v923, 2
      %v1107 = vor.u32 %v1105, %v1106
      %v1108 = vshrl.u32 %v854, 16
      %v1110 = vrot.slane %v1108, 1
      %v1111 = vrot.slane %v928, 2
      %v1112 = vor.u32 %v1110, %v1111
      %v1113 = vsel %vm1059, %v1107, %v1112
      %v1114 = vrot.slane %v932, 1
      %v1115 = vrot.slane %v934, 2
      %v1116 = vor.u32 %v1114, %v1115
      %v1117 = vshrl.u32 %v855, 16
      %v1119 = vrot.slane %v1117, 1
      %v1120 = vrot.slane %v939, 2
      %v1121 = vor.u32 %v1119, %v1120
      %v1122 = vsel %vm1059, %v1116, %v1121
      %v1123 = vrot.slane %v943, 1
      %v1124 = vrot.slane %v945, 2
      %v1125 = vor.u32 %v1123, %v1124
      %v1126 = vshrl.u32 %v856, 16
      %v1128 = vrot.slane %v1126, 1
      %v1129 = vrot.slane %v950, 2
      %v1130 = vor.u32 %v1128, %v1129
      %v1131 = vsel %vm1059, %v1125, %v1130
      %v1132 = vrot.slane %v954, 1
      %v1133 = vrot.slane %v956, 2
      %v1134 = vor.u32 %v1132, %v1133
      %v1135 = vshrl.u32 %v857, 16
      %v1137 = vrot.slane %v1135, 1
      %v1138 = vrot.slane %v961, 2
      %v1139 = vor.u32 %v1137, %v1138
      %v1140 = vsel %vm1059, %v1134, %v1139
      %v1141 = vrot.slane %v965, 1
      %v1142 = vrot.slane %v967, 2
      %v1143 = vor.u32 %v1141, %v1142
      %v1144 = vshrl.u32 %v858, 16
      %v1146 = vrot.slane %v1144, 1
      %v1147 = vrot.slane %v972, 2
      %v1148 = vor.u32 %v1146, %v1147
      %v1149 = vsel %vm1059, %v1143, %v1148
      %v1150 = vrot.slane %v976, 1
      %v1151 = vrot.slane %v978, 2
      %v1152 = vor.u32 %v1150, %v1151
      %v1153 = vshrl.u32 %v859, 16
      %v1155 = vrot.slane %v1153, 1
      %v1156 = vrot.slane %v983, 2
      %v1157 = vor.u32 %v1155, %v1156
      %v1158 = vsel %vm1059, %v1152, %v1157
      %v1159 = vrot.slane %v987, 1
      %v1160 = vrot.slane %v989, 2
      %v1161 = vor.u32 %v1159, %v1160
      %v1162 = vshrl.u32 %v860, 16
      %v1164 = vrot.slane %v1162, 1
      %v1165 = vrot.slane %v994, 2
      %v1166 = vor.u32 %v1164, %v1165
      %v1167 = vsel %vm1059, %v1161, %v1166
      %vm1168 = vcmask 1045504
      %v1169 = vrot.slane %v668, 2
      %v1170 = vrot.slane %v849, 2
      %v1171 = vsel %vm1168, %v1169, %v1170
      %v1172 = vrot.slane %v671, 2
      %v1173 = vrot.slane %v850, 2
      %v1174 = vsel %vm1168, %v1172, %v1173
      %v1175 = vrot.slane %v674, 2
      %v1176 = vrot.slane %v851, 2
      %v1177 = vsel %vm1168, %v1175, %v1176
      %v1178 = vrot.slane %v677, 2
      %v1179 = vrot.slane %v852, 2
      %v1180 = vsel %vm1168, %v1178, %v1179
      %v1181 = vrot.slane %v680, 2
      %v1182 = vrot.slane %v853, 2
      %v1183 = vsel %vm1168, %v1181, %v1182
      %v1184 = vrot.slane %v683, 2
      %v1185 = vrot.slane %v854, 2
      %v1186 = vsel %vm1168, %v1184, %v1185
      %v1187 = vrot.slane %v686, 2
      %v1188 = vrot.slane %v855, 2
      %v1189 = vsel %vm1168, %v1187, %v1188
      %v1190 = vrot.slane %v689, 2
      %v1191 = vrot.slane %v856, 2
      %v1192 = vsel %vm1168, %v1190, %v1191
      %v1193 = vrot.slane %v692, 2
      %v1194 = vrot.slane %v857, 2
      %v1195 = vsel %vm1168, %v1193, %v1194
      %v1196 = vrot.slane %v695, 2
      %v1197 = vrot.slane %v858, 2
      %v1198 = vsel %vm1168, %v1196, %v1197
      %v1199 = vrot.slane %v698, 2
      %v1200 = vrot.slane %v859, 2
      %v1201 = vsel %vm1168, %v1199, %v1200
      %v1202 = vrot.slane %v701, 2
      %v1203 = vrot.slane %v860, 2
      %v1204 = vsel %vm1168, %v1202, %v1203
      %vm1205 = vsmask.f32 5376
      %v1206 = vrot.slane %v866, 2
      %v1207 = vrot.slane %v868, 3
      %v1208 = vor.u32 %v1206, %v1207
      %v1209 = vrot.slane %v1063, 2
      %v1210 = vrot.slane %v873, 3
      %v1211 = vor.u32 %v1209, %v1210
      %v1212 = vsel %vm1205, %v1208, %v1211
      %v1213 = vrot.slane %v877, 2
      %v1214 = vrot.slane %v879, 3
      %v1215 = vor.u32 %v1213, %v1214
      %v1216 = vrot.slane %v1072, 2
      %v1217 = vrot.slane %v884, 3
      %v1218 = vor.u32 %v1216, %v1217
      %v1219 = vsel %vm1205, %v1215, %v1218
      %v1220 = vrot.slane %v888, 2
      %v1221 = vrot.slane %v890, 3
      %v1222 = vor.u32 %v1220, %v1221
      %v1223 = vrot.slane %v1081, 2
      %v1224 = vrot.slane %v895, 3
      %v1225 = vor.u32 %v1223, %v1224
      %v1226 = vsel %vm1205, %v1222, %v1225
      %v1227 = vrot.slane %v899, 2
      %v1228 = vrot.slane %v901, 3
      %v1229 = vor.u32 %v1227, %v1228
      %v1230 = vrot.slane %v1090, 2
      %v1231 = vrot.slane %v906, 3
      %v1232 = vor.u32 %v1230, %v1231
      %v1233 = vsel %vm1205, %v1229, %v1232
      %v1234 = vrot.slane %v910, 2
      %v1235 = vrot.slane %v912, 3
      %v1236 = vor.u32 %v1234, %v1235
      %v1237 = vrot.slane %v1099, 2
      %v1238 = vrot.slane %v917, 3
      %v1239 = vor.u32 %v1237, %v1238
      %v1240 = vsel %vm1205, %v1236, %v1239
      %v1241 = vrot.slane %v921, 2
      %v1242 = vrot.slane %v923, 3
      %v1243 = vor.u32 %v1241, %v1242
      %v1244 = vrot.slane %v1108, 2
      %v1245 = vrot.slane %v928, 3
      %v1246 = vor.u32 %v1244, %v1245
      %v1247 = vsel %vm1205, %v1243, %v1246
      %v1248 = vrot.slane %v932, 2
      %v1249 = vrot.slane %v934, 3
      %v1250 = vor.u32 %v1248, %v1249
      %v1251 = vrot.slane %v1117, 2
      %v1252 = vrot.slane %v939, 3
      %v1253 = vor.u32 %v1251, %v1252
      %v1254 = vsel %vm1205, %v1250, %v1253
      %v1255 = vrot.slane %v943, 2
      %v1256 = vrot.slane %v945, 3
      %v1257 = vor.u32 %v1255, %v1256
      %v1258 = vrot.slane %v1126, 2
      %v1259 = vrot.slane %v950, 3
      %v1260 = vor.u32 %v1258, %v1259
      %v1261 = vsel %vm1205, %v1257, %v1260
      %v1262 = vrot.slane %v954, 2
      %v1263 = vrot.slane %v956, 3
      %v1264 = vor.u32 %v1262, %v1263
      %v1265 = vrot.slane %v1135, 2
      %v1266 = vrot.slane %v961, 3
      %v1267 = vor.u32 %v1265, %v1266
      %v1268 = vsel %vm1205, %v1264, %v1267
      %v1269 = vrot.slane %v965, 2
      %v1270 = vrot.slane %v967, 3
      %v1271 = vor.u32 %v1269, %v1270
      %v1272 = vrot.slane %v1144, 2
      %v1273 = vrot.slane %v972, 3
      %v1274 = vor.u32 %v1272, %v1273
      %v1275 = vsel %vm1205, %v1271, %v1274
      %v1276 = vrot.slane %v976, 2
      %v1277 = vrot.slane %v978, 3
      %v1278 = vor.u32 %v1276, %v1277
      %v1279 = vrot.slane %v1153, 2
      %v1280 = vrot.slane %v983, 3
      %v1281 = vor.u32 %v1279, %v1280
      %v1282 = vsel %vm1205, %v1278, %v1281
      %v1283 = vrot.slane %v987, 2
      %v1284 = vrot.slane %v989, 3
      %v1285 = vor.u32 %v1283, %v1284
      %v1286 = vrot.slane %v1162, 2
      %v1287 = vrot.slane %v994, 3
      %v1288 = vor.u32 %v1286, %v1287
      %v1289 = vsel %vm1205, %v1285, %v1288
      %vm1290 = vcmask 1044480
      %v1291 = vrot.slane %v668, 3
      %v1292 = vrot.slane %v849, 3
      %v1293 = vsel %vm1290, %v1291, %v1292
      %v1294 = vrot.slane %v671, 3
      %v1295 = vrot.slane %v850, 3
      %v1296 = vsel %vm1290, %v1294, %v1295
      %v1297 = vrot.slane %v674, 3
      %v1298 = vrot.slane %v851, 3
      %v1299 = vsel %vm1290, %v1297, %v1298
      %v1300 = vrot.slane %v677, 3
      %v1301 = vrot.slane %v852, 3
      %v1302 = vsel %vm1290, %v1300, %v1301
      %v1303 = vrot.slane %v680, 3
      %v1304 = vrot.slane %v853, 3
      %v1305 = vsel %vm1290, %v1303, %v1304
      %v1306 = vrot.slane %v683, 3
      %v1307 = vrot.slane %v854, 3
      %v1308 = vsel %vm1290, %v1306, %v1307
      %v1309 = vrot.slane %v686, 3
      %v1310 = vrot.slane %v855, 3
      %v1311 = vsel %vm1290, %v1309, %v1310
      %v1312 = vrot.slane %v689, 3
      %v1313 = vrot.slane %v856, 3
      %v1314 = vsel %vm1290, %v1312, %v1313
      %v1315 = vrot.slane %v692, 3
      %v1316 = vrot.slane %v857, 3
      %v1317 = vsel %vm1290, %v1315, %v1316
      %v1318 = vrot.slane %v695, 3
      %v1319 = vrot.slane %v858, 3
      %v1320 = vsel %vm1290, %v1318, %v1319
      %v1321 = vrot.slane %v698, 3
      %v1322 = vrot.slane %v859, 3
      %v1323 = vsel %vm1290, %v1321, %v1322
      %v1324 = vrot.slane %v701, 3
      %v1325 = vrot.slane %v860, 3
      %v1326 = vsel %vm1290, %v1324, %v1325
      %vm1327 = vsmask.f32 4352
      %v1328 = vrot.slane %v866, 3
      %v1329 = vrot.slane %v868, 4
      %v1330 = vor.u32 %v1328, %v1329
      %v1331 = vrot.slane %v1063, 3
      %v1332 = vrot.slane %v873, 4
      %v1333 = vor.u32 %v1331, %v1332
      %v1334 = vsel %vm1327, %v1330, %v1333
      %v1335 = vrot.slane %v877, 3
      %v1336 = vrot.slane %v879, 4
      %v1337 = vor.u32 %v1335, %v1336
      %v1338 = vrot.slane %v1072, 3
      %v1339 = vrot.slane %v884, 4
      %v1340 = vor.u32 %v1338, %v1339
      %v1341 = vsel %vm1327, %v1337, %v1340
      %v1342 = vrot.slane %v888, 3
      %v1343 = vrot.slane %v890, 4
      %v1344 = vor.u32 %v1342, %v1343
      %v1345 = vrot.slane %v1081, 3
      %v1346 = vrot.slane %v895, 4
      %v1347 = vor.u32 %v1345, %v1346
      %v1348 = vsel %vm1327, %v1344, %v1347
      %v1349 = vrot.slane %v899, 3
      %v1350 = vrot.slane %v901, 4
      %v1351 = vor.u32 %v1349, %v1350
      %v1352 = vrot.slane %v1090, 3
      %v1353 = vrot.slane %v906, 4
      %v1354 = vor.u32 %v1352, %v1353
      %v1355 = vsel %vm1327, %v1351, %v1354
      %v1356 = vrot.slane %v910, 3
      %v1357 = vrot.slane %v912, 4
      %v1358 = vor.u32 %v1356, %v1357
      %v1359 = vrot.slane %v1099, 3
      %v1360 = vrot.slane %v917, 4
      %v1361 = vor.u32 %v1359, %v1360
      %v1362 = vsel %vm1327, %v1358, %v1361
      %v1363 = vrot.slane %v921, 3
      %v1364 = vrot.slane %v923, 4
      %v1365 = vor.u32 %v1363, %v1364
      %v1366 = vrot.slane %v1108, 3
      %v1367 = vrot.slane %v928, 4
      %v1368 = vor.u32 %v1366, %v1367
      %v1369 = vsel %vm1327, %v1365, %v1368
      %v1370 = vrot.slane %v932, 3
      %v1371 = vrot.slane %v934, 4
      %v1372 = vor.u32 %v1370, %v1371
      %v1373 = vrot.slane %v1117, 3
      %v1374 = vrot.slane %v939, 4
      %v1375 = vor.u32 %v1373, %v1374
      %v1376 = vsel %vm1327, %v1372, %v1375
      %v1377 = vrot.slane %v943, 3
      %v1378 = vrot.slane %v945, 4
      %v1379 = vor.u32 %v1377, %v1378
      %v1380 = vrot.slane %v1126, 3
      %v1381 = vrot.slane %v950, 4
      %v1382 = vor.u32 %v1380, %v1381
      %v1383 = vsel %vm1327, %v1379, %v1382
      %v1384 = vrot.slane %v954, 3
      %v1385 = vrot.slane %v956, 4
      %v1386 = vor.u32 %v1384, %v1385
      %v1387 = vrot.slane %v1135, 3
      %v1388 = vrot.slane %v961, 4
      %v1389 = vor.u32 %v1387, %v1388
      %v1390 = vsel %vm1327, %v1386, %v1389
      %v1391 = vrot.slane %v965, 3
      %v1392 = vrot.slane %v967, 4
      %v1393 = vor.u32 %v1391, %v1392
      %v1394 = vrot.slane %v1144, 3
      %v1395 = vrot.slane %v972, 4
      %v1396 = vor.u32 %v1394, %v1395
      %v1397 = vsel %vm1327, %v1393, %v1396
      %v1398 = vrot.slane %v976, 3
      %v1399 = vrot.slane %v978, 4
      %v1400 = vor.u32 %v1398, %v1399
      %v1401 = vrot.slane %v1153, 3
      %v1402 = vrot.slane %v983, 4
      %v1403 = vor.u32 %v1401, %v1402
      %v1404 = vsel %vm1327, %v1400, %v1403
      %v1405 = vrot.slane %v987, 3
      %v1406 = vrot.slane %v989, 4
      %v1407 = vor.u32 %v1405, %v1406
      %v1408 = vrot.slane %v1162, 3
      %v1409 = vrot.slane %v994, 4
      %v1410 = vor.u32 %v1408, %v1409
      %v1411 = vsel %vm1327, %v1407, %v1410
      %v1412 = vrot.slane %v668, 4
      %v1413 = vrot.slane %v849, 4
      %v1414 = vsel %vm846, %v1412, %v1413
      %v1415 = vrot.slane %v671, 4
      %v1416 = vrot.slane %v850, 4
      %v1417 = vsel %vm846, %v1415, %v1416
      %v1418 = vrot.slane %v674, 4
      %v1419 = vrot.slane %v851, 4
      %v1420 = vsel %vm846, %v1418, %v1419
      %v1421 = vrot.slane %v677, 4
      %v1422 = vrot.slane %v852, 4
      %v1423 = vsel %vm846, %v1421, %v1422
      %v1424 = vrot.slane %v680, 4
      %v1425 = vrot.slane %v853, 4
      %v1426 = vsel %vm846, %v1424, %v1425
      %v1427 = vrot.slane %v683, 4
      %v1428 = vrot.slane %v854, 4
      %v1429 = vsel %vm846, %v1427, %v1428
      %v1430 = vrot.slane %v686, 4
      %v1431 = vrot.slane %v855, 4
      %v1432 = vsel %vm846, %v1430, %v1431
      %v1433 = vrot.slane %v689, 4
      %v1434 = vrot.slane %v856, 4
      %v1435 = vsel %vm846, %v1433, %v1434
      %v1436 = vrot.slane %v692, 4
      %v1437 = vrot.slane %v857, 4
      %v1438 = vsel %vm846, %v1436, %v1437
      %v1439 = vrot.slane %v695, 4
      %v1440 = vrot.slane %v858, 4
      %v1441 = vsel %vm846, %v1439, %v1440
      %v1442 = vrot.slane %v698, 4
      %v1443 = vrot.slane %v859, 4
      %v1444 = vsel %vm846, %v1442, %v1443
      %v1445 = vrot.slane %v701, 4
      %v1446 = vrot.slane %v860, 4
      %v1447 = vsel %vm846, %v1445, %v1446
      %1448 = vrot.lane.b32.xlu0 %v876, 4
      %v1449 = vpop.permute.xlu0 %1448
      %1450 = vrot.lane.b32.xlu0 %v887, 4
      %v1451 = vpop.permute.xlu0 %1450
      %1452 = vrot.lane.b32.xlu0 %v898, 4
      %v1453 = vpop.permute.xlu0 %1452
      %1454 = vrot.lane.b32.xlu0 %v909, 4
      %v1455 = vpop.permute.xlu0 %1454
      %1456 = vrot.lane.b32.xlu0 %v920, 4
      %v1457 = vpop.permute.xlu0 %1456
      %1458 = vrot.lane.b32.xlu0 %v931, 4
      %v1459 = vpop.permute.xlu0 %1458
      %1460 = vrot.lane.b32.xlu0 %v942, 4
      %v1461 = vpop.permute.xlu0 %1460
      %1462 = vrot.lane.b32.xlu0 %v953, 4
      %v1463 = vpop.permute.xlu0 %1462
      %1464 = vrot.lane.b32.xlu0 %v964, 4
      %v1465 = vpop.permute.xlu0 %1464
      %1466 = vrot.lane.b32.xlu0 %v975, 4
      %v1467 = vpop.permute.xlu0 %1466
      %1468 = vrot.lane.b32.xlu0 %v986, 4
      %v1469 = vpop.permute.xlu0 %1468
      %1470 = vrot.lane.b32.xlu0 %v997, 4
      %v1471 = vpop.permute.xlu0 %1470
      %1472 = vrot.lane.b32.xlu0 %v1025, 8
      %v1473 = vpop.permute.xlu0 %1472
      %1474 = vrot.lane.b32.xlu0 %v1028, 8
      %v1475 = vpop.permute.xlu0 %1474
      %1476 = vrot.lane.b32.xlu0 %v1031, 8
      %v1477 = vpop.permute.xlu0 %1476
      %1478 = vrot.lane.b32.xlu0 %v1034, 8
      %v1479 = vpop.permute.xlu0 %1478
      %1480 = vrot.lane.b32.xlu0 %v1037, 8
      %v1481 = vpop.permute.xlu0 %1480
      %1482 = vrot.lane.b32.xlu0 %v1040, 8
      %v1483 = vpop.permute.xlu0 %1482
      %1484 = vrot.lane.b32.xlu0 %v1043, 8
      %v1485 = vpop.permute.xlu0 %1484
      %1486 = vrot.lane.b32.xlu0 %v1046, 8
      %v1487 = vpop.permute.xlu0 %1486
      %1488 = vrot.lane.b32.xlu0 %v1049, 8
      %v1489 = vpop.permute.xlu0 %1488
      %1490 = vrot.lane.b32.xlu0 %v1052, 8
      %v1491 = vpop.permute.xlu0 %1490
      %1492 = vrot.lane.b32.xlu0 %v1055, 8
      %v1493 = vpop.permute.xlu0 %1492
      %1494 = vrot.lane.b32.xlu0 %v1058, 8
      %v1495 = vpop.permute.xlu0 %1494
      %1496 = vrot.lane.b32.xlu0 %v1068, 12
      %v1497 = vpop.permute.xlu0 %1496
      %1498 = vrot.lane.b32.xlu0 %v1077, 12
      %v1499 = vpop.permute.xlu0 %1498
      %1500 = vrot.lane.b32.xlu0 %v1086, 12
      %v1501 = vpop.permute.xlu0 %1500
      %1502 = vrot.lane.b32.xlu0 %v1095, 12
      %v1503 = vpop.permute.xlu0 %1502
      %1504 = vrot.lane.b32.xlu0 %v1104, 12
      %v1505 = vpop.permute.xlu0 %1504
      %1506 = vrot.lane.b32.xlu0 %v1113, 12
      %v1507 = vpop.permute.xlu0 %1506
      %1508 = vrot.lane.b32.xlu0 %v1122, 12
      %v1509 = vpop.permute.xlu0 %1508
      %1510 = vrot.lane.b32.xlu0 %v1131, 12
      %v1511 = vpop.permute.xlu0 %1510
      %1512 = vrot.lane.b32.xlu0 %v1140, 12
      %v1513 = vpop.permute.xlu0 %1512
      %1514 = vrot.lane.b32.xlu0 %v1149, 12
      %v1515 = vpop.permute.xlu0 %1514
      %1516 = vrot.lane.b32.xlu0 %v1158, 12
      %v1517 = vpop.permute.xlu0 %1516
      %1518 = vrot.lane.b32.xlu0 %v1167, 12
      %v1519 = vpop.permute.xlu0 %1518
      %1520 = vrot.lane.b32.xlu0 %v1171, 16
      %v1521 = vpop.permute.xlu0 %1520
      %1522 = vrot.lane.b32.xlu0 %v1174, 16
      %v1523 = vpop.permute.xlu0 %1522
      %1524 = vrot.lane.b32.xlu0 %v1177, 16
      %v1525 = vpop.permute.xlu0 %1524
      %1526 = vrot.lane.b32.xlu0 %v1180, 16
      %v1527 = vpop.permute.xlu0 %1526
      %1528 = vrot.lane.b32.xlu0 %v1183, 16
      %v1529 = vpop.permute.xlu0 %1528
      %1530 = vrot.lane.b32.xlu0 %v1186, 16
      %v1531 = vpop.permute.xlu0 %1530
      %1532 = vrot.lane.b32.xlu0 %v1189, 16
      %v1533 = vpop.permute.xlu0 %1532
      %1534 = vrot.lane.b32.xlu0 %v1192, 16
      %v1535 = vpop.permute.xlu0 %1534
      %1536 = vrot.lane.b32.xlu0 %v1195, 16
      %v1537 = vpop.permute.xlu0 %1536
      %1538 = vrot.lane.b32.xlu0 %v1198, 16
      %v1539 = vpop.permute.xlu0 %1538
      %1540 = vrot.lane.b32.xlu0 %v1201, 16
      %v1541 = vpop.permute.xlu0 %1540
      %1542 = vrot.lane.b32.xlu0 %v1204, 16
      %v1543 = vpop.permute.xlu0 %1542
      %1544 = vrot.lane.b32.xlu0 %v1212, 20
      %v1545 = vpop.permute.xlu0 %1544
      %1546 = vrot.lane.b32.xlu0 %v1219, 20
      %v1547 = vpop.permute.xlu0 %1546
      %1548 = vrot.lane.b32.xlu0 %v1226, 20
      %v1549 = vpop.permute.xlu0 %1548
      %1550 = vrot.lane.b32.xlu0 %v1233, 20
      %v1551 = vpop.permute.xlu0 %1550
      %1552 = vrot.lane.b32.xlu0 %v1240, 20
      %v1553 = vpop.permute.xlu0 %1552
      %1554 = vrot.lane.b32.xlu0 %v1247, 20
      %v1555 = vpop.permute.xlu0 %1554
      %1556 = vrot.lane.b32.xlu0 %v1254, 20
      %v1557 = vpop.permute.xlu0 %1556
      %1558 = vrot.lane.b32.xlu0 %v1261, 20
      %v1559 = vpop.permute.xlu0 %1558
      %1560 = vrot.lane.b32.xlu0 %v1268, 20
      %v1561 = vpop.permute.xlu0 %1560
      %1562 = vrot.lane.b32.xlu0 %v1275, 20
      %v1563 = vpop.permute.xlu0 %1562
      %1564 = vrot.lane.b32.xlu0 %v1282, 20
      %v1565 = vpop.permute.xlu0 %1564
      %1566 = vrot.lane.b32.xlu0 %v1289, 20
      %v1567 = vpop.permute.xlu0 %1566
      %1568 = vrot.lane.b32.xlu0 %v1293, 24
      %v1569 = vpop.permute.xlu0 %1568
      %1570 = vrot.lane.b32.xlu0 %v1296, 24
      %v1571 = vpop.permute.xlu0 %1570
      %1572 = vrot.lane.b32.xlu0 %v1299, 24
      %v1573 = vpop.permute.xlu0 %1572
      %1574 = vrot.lane.b32.xlu0 %v1302, 24
      %v1575 = vpop.permute.xlu0 %1574
      %1576 = vrot.lane.b32.xlu0 %v1305, 24
      %v1577 = vpop.permute.xlu0 %1576
      %1578 = vrot.lane.b32.xlu0 %v1308, 24
      %v1579 = vpop.permute.xlu0 %1578
      %1580 = vrot.lane.b32.xlu0 %v1311, 24
      %v1581 = vpop.permute.xlu0 %1580
      %1582 = vrot.lane.b32.xlu0 %v1314, 24
      %v1583 = vpop.permute.xlu0 %1582
      %1584 = vrot.lane.b32.xlu0 %v1317, 24
      %v1585 = vpop.permute.xlu0 %1584
      %1586 = vrot.lane.b32.xlu0 %v1320, 24
      %v1587 = vpop.permute.xlu0 %1586
      %1588 = vrot.lane.b32.xlu0 %v1323, 24
      %v1589 = vpop.permute.xlu0 %1588
      %1590 = vrot.lane.b32.xlu0 %v1326, 24
      %v1591 = vpop.permute.xlu0 %1590
      %1592 = vrot.lane.b32.xlu0 %v1334, 28
      %v1593 = vpop.permute.xlu0 %1592
      %1594 = vrot.lane.b32.xlu0 %v1341, 28
      %v1595 = vpop.permute.xlu0 %1594
      %1596 = vrot.lane.b32.xlu0 %v1348, 28
      %v1597 = vpop.permute.xlu0 %1596
      %1598 = vrot.lane.b32.xlu0 %v1355, 28
      %v1599 = vpop.permute.xlu0 %1598
      %1600 = vrot.lane.b32.xlu0 %v1362, 28
      %v1601 = vpop.permute.xlu0 %1600
      %1602 = vrot.lane.b32.xlu0 %v1369, 28
      %v1603 = vpop.permute.xlu0 %1602
      %1604 = vrot.lane.b32.xlu0 %v1376, 28
      %v1605 = vpop.permute.xlu0 %1604
      %1606 = vrot.lane.b32.xlu0 %v1383, 28
      %v1607 = vpop.permute.xlu0 %1606
      %1608 = vrot.lane.b32.xlu0 %v1390, 28
      %v1609 = vpop.permute.xlu0 %1608
      %1610 = vrot.lane.b32.xlu0 %v1397, 28
      %v1611 = vpop.permute.xlu0 %1610
      %1612 = vrot.lane.b32.xlu0 %v1404, 28
      %v1613 = vpop.permute.xlu0 %1612
      %1614 = vrot.lane.b32.xlu0 %v1411, 28
      %v1615 = vpop.permute.xlu0 %1614
      %1616 = vrot.lane.b32.xlu0 %v1414, 32
      %v1617 = vpop.permute.xlu0 %1616
      %1618 = vrot.lane.b32.xlu0 %v1417, 32
      %v1619 = vpop.permute.xlu0 %1618
      %1620 = vrot.lane.b32.xlu0 %v1420, 32
      %v1621 = vpop.permute.xlu0 %1620
      %1622 = vrot.lane.b32.xlu0 %v1423, 32
      %v1623 = vpop.permute.xlu0 %1622
      %1624 = vrot.lane.b32.xlu0 %v1426, 32
      %v1625 = vpop.permute.xlu0 %1624
      %1626 = vrot.lane.b32.xlu0 %v1429, 32
      %v1627 = vpop.permute.xlu0 %1626
      %1628 = vrot.lane.b32.xlu0 %v1432, 32
      %v1629 = vpop.permute.xlu0 %1628
      %1630 = vrot.lane.b32.xlu0 %v1435, 32
      %v1631 = vpop.permute.xlu0 %1630
      %1632 = vrot.lane.b32.xlu0 %v1438, 32
      %v1633 = vpop.permute.xlu0 %1632
      %1634 = vrot.lane.b32.xlu0 %v1441, 32
      %v1635 = vpop.permute.xlu0 %1634
      %1636 = vrot.lane.b32.xlu0 %v1444, 32
      %v1637 = vpop.permute.xlu0 %1636
      %1638 = vrot.lane.b32.xlu0 %v1447, 32
      %v1639 = vpop.permute.xlu0 %1638
      %vm1640 = vcmask 31744
      %v1642 = vsel %vm1640, %v668, %v1449
      %v1644 = vsel %vm1640, %v671, %v1451
      %v1646 = vsel %vm1640, %v674, %v1453
      %v1648 = vsel %vm1640, %v677, %v1455
      %v1650 = vsel %vm1640, %v680, %v1457
      %v1652 = vsel %vm1640, %v683, %v1459
      %v1654 = vsel %vm1640, %v686, %v1461
      %v1656 = vsel %vm1640, %v689, %v1463
      %v1658 = vsel %vm1640, %v692, %v1465
      %v1660 = vsel %vm1640, %v695, %v1467
      %v1662 = vsel %vm1640, %v698, %v1469
      %v1664 = vsel %vm1640, %v701, %v1471
      %vm1665 = vcmask 64512
      %v1667 = vsel %vm1665, %v1642, %v1473
      %v1669 = vsel %vm1665, %v1644, %v1475
      %v1671 = vsel %vm1665, %v1646, %v1477
      %v1673 = vsel %vm1665, %v1648, %v1479
      %v1675 = vsel %vm1665, %v1650, %v1481
      %v1677 = vsel %vm1665, %v1652, %v1483
      %v1679 = vsel %vm1665, %v1654, %v1485
      %v1681 = vsel %vm1665, %v1656, %v1487
      %v1683 = vsel %vm1665, %v1658, %v1489
      %v1685 = vsel %vm1665, %v1660, %v1491
      %v1687 = vsel %vm1665, %v1662, %v1493
      %v1689 = vsel %vm1665, %v1664, %v1495
      %vm1690 = vcmask 97280
      %v1692 = vsel %vm1690, %v1667, %v1497
      %v1694 = vsel %vm1690, %v1669, %v1499
      %v1696 = vsel %vm1690, %v1671, %v1501
      %v1698 = vsel %vm1690, %v1673, %v1503
      %v1700 = vsel %vm1690, %v1675, %v1505
      %v1702 = vsel %vm1690, %v1677, %v1507
      %v1704 = vsel %vm1690, %v1679, %v1509
      %v1706 = vsel %vm1690, %v1681, %v1511
      %v1708 = vsel %vm1690, %v1683, %v1513
      %v1710 = vsel %vm1690, %v1685, %v1515
      %v1712 = vsel %vm1690, %v1687, %v1517
      %v1714 = vsel %vm1690, %v1689, %v1519
      %vm1715 = vcmask 130048
      %v1717 = vsel %vm1715, %v1692, %v1521
      %v1719 = vsel %vm1715, %v1694, %v1523
      %v1721 = vsel %vm1715, %v1696, %v1525
      %v1723 = vsel %vm1715, %v1698, %v1527
      %v1725 = vsel %vm1715, %v1700, %v1529
      %v1727 = vsel %vm1715, %v1702, %v1531
      %v1729 = vsel %vm1715, %v1704, %v1533
      %v1731 = vsel %vm1715, %v1706, %v1535
      %v1733 = vsel %vm1715, %v1708, %v1537
      %v1735 = vsel %vm1715, %v1710, %v1539
      %v1737 = vsel %vm1715, %v1712, %v1541
      %v1739 = vsel %vm1715, %v1714, %v1543
      %vm1740 = vcmask 162816
      %v1742 = vsel %vm1740, %v1717, %v1545
      %v1744 = vsel %vm1740, %v1719, %v1547
      %v1746 = vsel %vm1740, %v1721, %v1549
      %v1748 = vsel %vm1740, %v1723, %v1551
      %v1750 = vsel %vm1740, %v1725, %v1553
      %v1752 = vsel %vm1740, %v1727, %v1555
      %v1754 = vsel %vm1740, %v1729, %v1557
      %v1756 = vsel %vm1740, %v1731, %v1559
      %v1758 = vsel %vm1740, %v1733, %v1561
      %v1760 = vsel %vm1740, %v1735, %v1563
      %v1762 = vsel %vm1740, %v1737, %v1565
      %v1764 = vsel %vm1740, %v1739, %v1567
      %vm1765 = vcmask 195584
      %v1767 = vsel %vm1765, %v1742, %v1569
      %v1769 = vsel %vm1765, %v1744, %v1571
      %v1771 = vsel %vm1765, %v1746, %v1573
      %v1773 = vsel %vm1765, %v1748, %v1575
      %v1775 = vsel %vm1765, %v1750, %v1577
      %v1777 = vsel %vm1765, %v1752, %v1579
      %v1779 = vsel %vm1765, %v1754, %v1581
      %v1781 = vsel %vm1765, %v1756, %v1583
      %v1783 = vsel %vm1765, %v1758, %v1585
      %v1785 = vsel %vm1765, %v1760, %v1587
      %v1787 = vsel %vm1765, %v1762, %v1589
      %v1789 = vsel %vm1765, %v1764, %v1591
      %vm1790 = vcmask 228352
      %v1792 = vsel %vm1790, %v1767, %v1593
      %v1794 = vsel %vm1790, %v1769, %v1595
      %v1796 = vsel %vm1790, %v1771, %v1597
      %v1798 = vsel %vm1790, %v1773, %v1599
      %v1800 = vsel %vm1790, %v1775, %v1601
      %v1802 = vsel %vm1790, %v1777, %v1603
      %v1804 = vsel %vm1790, %v1779, %v1605
      %v1806 = vsel %vm1790, %v1781, %v1607
      %v1808 = vsel %vm1790, %v1783, %v1609
      %v1810 = vsel %vm1790, %v1785, %v1611
      %v1812 = vsel %vm1790, %v1787, %v1613
      %v1814 = vsel %vm1790, %v1789, %v1615
      %vm1815 = vcmask 261120
      %v1817 = vsel %vm1815, %v1792, %v1617
      %v1819 = vsel %vm1815, %v1794, %v1619
      %v1821 = vsel %vm1815, %v1796, %v1621
      %v1823 = vsel %vm1815, %v1798, %v1623
      %v1825 = vsel %vm1815, %v1800, %v1625
      %v1827 = vsel %vm1815, %v1802, %v1627
      %v1829 = vsel %vm1815, %v1804, %v1629
      %v1831 = vsel %vm1815, %v1806, %v1631
      %v1833 = vsel %vm1815, %v1808, %v1633
      %v1835 = vsel %vm1815, %v1810, %v1635
      %v1837 = vsel %vm1815, %v1812, %v1637
      %v1839 = vsel %vm1815, %v1814, %v1639
      %v1840 = vshrl.u32 %v704, 16
      %v1842 = vshll.u32 %v704, 16
      %v1844 = vrot.slane %v1842, 1
      %v1845 = vor.u32 %v1840, %v1844
      %v1847 = vshll.u32 %v861, 16
      %v1849 = vrot.slane %v1847, 1
      %v1850 = vsel %vm865, %v1845, %v1849
      %v1853 = vrot.slane %v704, 1
      %v1854 = vrot.slane %v861, 1
      %v1855 = vsel %vm1022, %v1853, %v1854
      %v1856 = vrot.slane %v1840, 1
      %v1857 = vrot.slane %v1842, 2
      %v1858 = vor.u32 %v1856, %v1857
      %v1859 = vshrl.u32 %v861, 16
      %v1861 = vrot.slane %v1859, 1
      %v1862 = vrot.slane %v1847, 2
      %v1863 = vor.u32 %v1861, %v1862
      %v1864 = vsel %vm1059, %v1858, %v1863
      %v1865 = vrot.slane %v704, 2
      %v1866 = vrot.slane %v861, 2
      %v1867 = vsel %vm1168, %v1865, %v1866
      %v1868 = vrot.slane %v1840, 2
      %v1869 = vrot.slane %v1842, 3
      %v1870 = vor.u32 %v1868, %v1869
      %v1871 = vrot.slane %v1859, 2
      %v1872 = vrot.slane %v1847, 3
      %v1873 = vor.u32 %v1871, %v1872
      %v1874 = vsel %vm1205, %v1870, %v1873
      %v1875 = vrot.slane %v704, 3
      %v1876 = vrot.slane %v861, 3
      %v1877 = vsel %vm1290, %v1875, %v1876
      %v1878 = vrot.slane %v1840, 3
      %v1879 = vrot.slane %v1842, 4
      %v1880 = vor.u32 %v1878, %v1879
      %v1881 = vrot.slane %v1859, 3
      %v1882 = vrot.slane %v1847, 4
      %v1883 = vor.u32 %v1881, %v1882
      %v1884 = vsel %vm1327, %v1880, %v1883
      %v1885 = vrot.slane %v704, 4
      %v1886 = vrot.slane %v861, 4
      %v1887 = vsel %vm846, %v1885, %v1886
      %1888 = vrot.lane.b32.xlu0 %v1850, 4
      %v1889 = vpop.permute.xlu0 %1888
      %1890 = vrot.lane.b32.xlu0 %v1855, 8
      %v1891 = vpop.permute.xlu0 %1890
      %1892 = vrot.lane.b32.xlu0 %v1864, 12
      %v1893 = vpop.permute.xlu0 %1892
      %1894 = vrot.lane.b32.xlu0 %v1867, 16
      %v1895 = vpop.permute.xlu0 %1894
      %1896 = vrot.lane.b32.xlu0 %v1874, 20
      %v1897 = vpop.permute.xlu0 %1896
      %1898 = vrot.lane.b32.xlu0 %v1877, 24
      %v1899 = vpop.permute.xlu0 %1898
      %1900 = vrot.lane.b32.xlu0 %v1884, 28
      %v1901 = vpop.permute.xlu0 %1900
      %1902 = vrot.lane.b32.xlu0 %v1887, 32
      %v1903 = vpop.permute.xlu0 %1902
      %v1905 = vsel %vm1640, %v704, %v1889
      %v1907 = vsel %vm1665, %v1905, %v1891
      %v1909 = vsel %vm1690, %v1907, %v1893
      %v1911 = vsel %vm1715, %v1909, %v1895
      %v1913 = vsel %vm1740, %v1911, %v1897
      %v1915 = vsel %vm1765, %v1913, %v1899
      %v1917 = vsel %vm1790, %v1915, %v1901
      %v1919 = vsel %vm1815, %v1917, %v1903
      %v1920 = vshrl.u32 %v707, 16
      %v1922 = vshll.u32 %v707, 16
      %v1924 = vrot.slane %v1922, 1
      %v1925 = vor.u32 %v1920, %v1924
      %v1927 = vshll.u32 %v862, 16
      %v1929 = vrot.slane %v1927, 1
      %v1930 = vsel %vm865, %v1925, %v1929
      %v1933 = vrot.slane %v707, 1
      %v1934 = vrot.slane %v862, 1
      %v1935 = vsel %vm1022, %v1933, %v1934
      %v1936 = vrot.slane %v1920, 1
      %v1937 = vrot.slane %v1922, 2
      %v1938 = vor.u32 %v1936, %v1937
      %v1939 = vshrl.u32 %v862, 16
      %v1941 = vrot.slane %v1939, 1
      %v1942 = vrot.slane %v1927, 2
      %v1943 = vor.u32 %v1941, %v1942
      %v1944 = vsel %vm1059, %v1938, %v1943
      %v1945 = vrot.slane %v707, 2
      %v1946 = vrot.slane %v862, 2
      %v1947 = vsel %vm1168, %v1945, %v1946
      %v1948 = vrot.slane %v1920, 2
      %v1949 = vrot.slane %v1922, 3
      %v1950 = vor.u32 %v1948, %v1949
      %v1951 = vrot.slane %v1939, 2
      %v1952 = vrot.slane %v1927, 3
      %v1953 = vor.u32 %v1951, %v1952
      %v1954 = vsel %vm1205, %v1950, %v1953
      %v1955 = vrot.slane %v707, 3
      %v1956 = vrot.slane %v862, 3
      %v1957 = vsel %vm1290, %v1955, %v1956
      %v1958 = vrot.slane %v1920, 3
      %v1959 = vrot.slane %v1922, 4
      %v1960 = vor.u32 %v1958, %v1959
      %v1961 = vrot.slane %v1939, 3
      %v1962 = vrot.slane %v1927, 4
      %v1963 = vor.u32 %v1961, %v1962
      %v1964 = vsel %vm1327, %v1960, %v1963
      %v1965 = vrot.slane %v707, 4
      %v1966 = vrot.slane %v862, 4
      %v1967 = vsel %vm846, %v1965, %v1966
      %1968 = vrot.lane.b32.xlu0 %v1930, 4
      %v1969 = vpop.permute.xlu0 %1968
      %1970 = vrot.lane.b32.xlu0 %v1935, 8
      %v1971 = vpop.permute.xlu0 %1970
      %1972 = vrot.lane.b32.xlu0 %v1944, 12
      %v1973 = vpop.permute.xlu0 %1972
      %1974 = vrot.lane.b32.xlu0 %v1947, 16
      %v1975 = vpop.permute.xlu0 %1974
      %1976 = vrot.lane.b32.xlu0 %v1954, 20
      %v1977 = vpop.permute.xlu0 %1976
      %1978 = vrot.lane.b32.xlu0 %v1957, 24
      %v1979 = vpop.permute.xlu0 %1978
      %1980 = vrot.lane.b32.xlu0 %v1964, 28
      %v1981 = vpop.permute.xlu0 %1980
      %1982 = vrot.lane.b32.xlu0 %v1967, 32
      %v1983 = vpop.permute.xlu0 %1982
      %v1985 = vsel %vm1640, %v707, %v1969
      %v1987 = vsel %vm1665, %v1985, %v1971
      %v1989 = vsel %vm1690, %v1987, %v1973
      %v1991 = vsel %vm1715, %v1989, %v1975
      %v1993 = vsel %vm1740, %v1991, %v1977
      %v1995 = vsel %vm1765, %v1993, %v1979
      %v1997 = vsel %vm1790, %v1995, %v1981
      %v1999 = vsel %vm1815, %v1997, %v1983
      %v2000 = vshrl.u32 %v710, 16
      %v2002 = vshll.u32 %v710, 16
      %v2004 = vrot.slane %v2002, 1
      %v2005 = vor.u32 %v2000, %v2004
      %v2007 = vshll.u32 %v863, 16
      %v2009 = vrot.slane %v2007, 1
      %v2010 = vsel %vm865, %v2005, %v2009
      %v2013 = vrot.slane %v710, 1
      %v2014 = vrot.slane %v863, 1
      %v2015 = vsel %vm1022, %v2013, %v2014
      %v2016 = vrot.slane %v2000, 1
      %v2017 = vrot.slane %v2002, 2
      %v2018 = vor.u32 %v2016, %v2017
      %v2019 = vshrl.u32 %v863, 16
      %v2021 = vrot.slane %v2019, 1
      %v2022 = vrot.slane %v2007, 2
      %v2023 = vor.u32 %v2021, %v2022
      %v2024 = vsel %vm1059, %v2018, %v2023
      %v2025 = vrot.slane %v710, 2
      %v2026 = vrot.slane %v863, 2
      %v2027 = vsel %vm1168, %v2025, %v2026
      %v2028 = vrot.slane %v2000, 2
      %v2029 = vrot.slane %v2002, 3
      %v2030 = vor.u32 %v2028, %v2029
      %v2031 = vrot.slane %v2019, 2
      %v2032 = vrot.slane %v2007, 3
      %v2033 = vor.u32 %v2031, %v2032
      %v2034 = vsel %vm1205, %v2030, %v2033
      %v2035 = vrot.slane %v710, 3
      %v2036 = vrot.slane %v863, 3
      %v2037 = vsel %vm1290, %v2035, %v2036
      %v2038 = vrot.slane %v2000, 3
      %v2039 = vrot.slane %v2002, 4
      %v2040 = vor.u32 %v2038, %v2039
      %v2041 = vrot.slane %v2019, 3
      %v2042 = vrot.slane %v2007, 4
      %v2043 = vor.u32 %v2041, %v2042
      %v2044 = vsel %vm1327, %v2040, %v2043
      %v2045 = vrot.slane %v710, 4
      %v2046 = vrot.slane %v863, 4
      %v2047 = vsel %vm846, %v2045, %v2046
      %2048 = vrot.lane.b32.xlu0 %v2010, 4
      %v2049 = vpop.permute.xlu0 %2048
      %2050 = vrot.lane.b32.xlu0 %v2015, 8
      %v2051 = vpop.permute.xlu0 %2050
      %2052 = vrot.lane.b32.xlu0 %v2024, 12
      %v2053 = vpop.permute.xlu0 %2052
      %2054 = vrot.lane.b32.xlu0 %v2027, 16
      %v2055 = vpop.permute.xlu0 %2054
      %2056 = vrot.lane.b32.xlu0 %v2034, 20
      %v2057 = vpop.permute.xlu0 %2056
      %2058 = vrot.lane.b32.xlu0 %v2037, 24
      %v2059 = vpop.permute.xlu0 %2058
      %2060 = vrot.lane.b32.xlu0 %v2044, 28
      %v2061 = vpop.permute.xlu0 %2060
      %2062 = vrot.lane.b32.xlu0 %v2047, 32
      %v2063 = vpop.permute.xlu0 %2062
      %v2065 = vsel %vm1640, %v710, %v2049
      %v2067 = vsel %vm1665, %v2065, %v2051
      %v2069 = vsel %vm1690, %v2067, %v2053
      %v2071 = vsel %vm1715, %v2069, %v2055
      %v2073 = vsel %vm1740, %v2071, %v2057
      %v2075 = vsel %vm1765, %v2073, %v2059
      %v2077 = vsel %vm1790, %v2075, %v2061
      %v2079 = vsel %vm1815, %v2077, %v2063
      %v2080 = vshrl.u32 %v713, 16
      %v2082 = vshll.u32 %v713, 16
      %v2084 = vrot.slane %v2082, 1
      %v2085 = vor.u32 %v2080, %v2084
      %v2087 = vshll.u32 %v864, 16
      %v2089 = vrot.slane %v2087, 1
      %v2090 = vsel %vm865, %v2085, %v2089
      %v2093 = vrot.slane %v713, 1
      %v2094 = vrot.slane %v864, 1
      %v2095 = vsel %vm1022, %v2093, %v2094
      %v2096 = vrot.slane %v2080, 1
      %v2097 = vrot.slane %v2082, 2
      %v2098 = vor.u32 %v2096, %v2097
      %v2099 = vshrl.u32 %v864, 16
      %v2101 = vrot.slane %v2099, 1
      %v2102 = vrot.slane %v2087, 2
      %v2103 = vor.u32 %v2101, %v2102
      %v2104 = vsel %vm1059, %v2098, %v2103
      %v2105 = vrot.slane %v713, 2
      %v2106 = vrot.slane %v864, 2
      %v2107 = vsel %vm1168, %v2105, %v2106
      %v2108 = vrot.slane %v2080, 2
      %v2109 = vrot.slane %v2082, 3
      %v2110 = vor.u32 %v2108, %v2109
      %v2111 = vrot.slane %v2099, 2
      %v2112 = vrot.slane %v2087, 3
      %v2113 = vor.u32 %v2111, %v2112
      %v2114 = vsel %vm1205, %v2110, %v2113
      %v2115 = vrot.slane %v713, 3
      %v2116 = vrot.slane %v864, 3
      %v2117 = vsel %vm1290, %v2115, %v2116
      %v2118 = vrot.slane %v2080, 3
      %v2119 = vrot.slane %v2082, 4
      %v2120 = vor.u32 %v2118, %v2119
      %v2121 = vrot.slane %v2099, 3
      %v2122 = vrot.slane %v2087, 4
      %v2123 = vor.u32 %v2121, %v2122
      %v2124 = vsel %vm1327, %v2120, %v2123
      %v2125 = vrot.slane %v713, 4
      %v2126 = vrot.slane %v864, 4
      %v2127 = vsel %vm846, %v2125, %v2126
      %2128 = vrot.lane.b32.xlu0 %v2090, 4
      %v2129 = vpop.permute.xlu0 %2128
      %2130 = vrot.lane.b32.xlu0 %v2095, 8
      %v2131 = vpop.permute.xlu0 %2130
      %2132 = vrot.lane.b32.xlu0 %v2104, 12
      %v2133 = vpop.permute.xlu0 %2132
      %2134 = vrot.lane.b32.xlu0 %v2107, 16
      %v2135 = vpop.permute.xlu0 %2134
      %2136 = vrot.lane.b32.xlu0 %v2114, 20
      %v2137 = vpop.permute.xlu0 %2136
      %2138 = vrot.lane.b32.xlu0 %v2117, 24
      %v2139 = vpop.permute.xlu0 %2138
      %2140 = vrot.lane.b32.xlu0 %v2124, 28
      %v2141 = vpop.permute.xlu0 %2140
      %2142 = vrot.lane.b32.xlu0 %v2127, 32
      %v2143 = vpop.permute.xlu0 %2142
      %v2145 = vsel %vm1640, %v713, %v2129
      %v2147 = vsel %vm1665, %v2145, %v2131
      %v2149 = vsel %vm1690, %v2147, %v2133
      %v2151 = vsel %vm1715, %v2149, %v2135
      %v2153 = vsel %vm1740, %v2151, %v2137
      %v2155 = vsel %vm1765, %v2153, %v2139
      %v2157 = vsel %vm1790, %v2155, %v2141
      %v2159 = vsel %vm1815, %v2157, %v2143
      %2173 = vrot.lane.b32.xlu0 %v1819, 36
      %v2174 = vpop.permute.xlu0 %2173
      %2175 = vrot.lane.b32.xlu0 %v1821, 36
      %v2176 = vpop.permute.xlu0 %2175
      %2177 = vrot.lane.b32.xlu0 %v1823, 36
      %v2178 = vpop.permute.xlu0 %2177
      %2179 = vrot.lane.b32.xlu0 %v1825, 36
      %v2180 = vpop.permute.xlu0 %2179
      %2181 = vrot.lane.b32.xlu0 %v1817, 36
      %v2182 = vpop.permute.xlu0 %2181
      %2183 = vrot.lane.b32.xlu0 %v1827, 36
      %v2184 = vpop.permute.xlu0 %2183
      %2185 = vrot.lane.b32.xlu0 %v1829, 36
      %v2186 = vpop.permute.xlu0 %2185
      %2187 = vrot.lane.b32.xlu0 %v1831, 36
      %v2188 = vpop.permute.xlu0 %2187
      %2189 = vrot.lane.b32.xlu0 %v1833, 36
      %v2190 = vpop.permute.xlu0 %2189
      %2191 = vrot.lane.b32.xlu0 %v1835, 36
      %v2192 = vpop.permute.xlu0 %2191
      %2193 = vrot.lane.b32.xlu0 %v1837, 36
      %v2194 = vpop.permute.xlu0 %2193
      %2195 = vrot.lane.b32.xlu0 %v1839, 36
      %v2196 = vpop.permute.xlu0 %2195
      %2197 = vrot.lane.b32.xlu0 %v1919, 36
      %v2198 = vpop.permute.xlu0 %2197
      %2200 = vrot.lane.b32.xlu0 %v1821, 72
      %v2201 = vpop.permute.xlu0 %2200
      %2202 = vrot.lane.b32.xlu0 %v1823, 72
      %v2203 = vpop.permute.xlu0 %2202
      %2204 = vrot.lane.b32.xlu0 %v1825, 72
      %v2205 = vpop.permute.xlu0 %2204
      %2206 = vrot.lane.b32.xlu0 %v1819, 72
      %v2207 = vpop.permute.xlu0 %2206
      %2208 = vrot.lane.b32.xlu0 %v1817, 72
      %v2209 = vpop.permute.xlu0 %2208
      %2210 = vrot.lane.b32.xlu0 %v1827, 72
      %v2211 = vpop.permute.xlu0 %2210
      %2212 = vrot.lane.b32.xlu0 %v1829, 72
      %v2213 = vpop.permute.xlu0 %2212
      %2214 = vrot.lane.b32.xlu0 %v1831, 72
      %v2215 = vpop.permute.xlu0 %2214
      %2216 = vrot.lane.b32.xlu0 %v1833, 72
      %v2217 = vpop.permute.xlu0 %2216
      %2218 = vrot.lane.b32.xlu0 %v1835, 72
      %v2219 = vpop.permute.xlu0 %2218
      %2220 = vrot.lane.b32.xlu0 %v1837, 72
      %v2221 = vpop.permute.xlu0 %2220
      %2222 = vrot.lane.b32.xlu0 %v1839, 72
      %v2223 = vpop.permute.xlu0 %2222
      %2224 = vrot.lane.b32.xlu0 %v1919, 72
      %v2225 = vpop.permute.xlu0 %2224
      %2226 = vrot.lane.b32.xlu0 %v1999, 72
      %v2227 = vpop.permute.xlu0 %2226
      %2229 = vrot.lane.b32.xlu0 %v1823, 108
      %v2230 = vpop.permute.xlu0 %2229
      %2231 = vrot.lane.b32.xlu0 %v1825, 108
      %v2232 = vpop.permute.xlu0 %2231
      %2233 = vrot.lane.b32.xlu0 %v1821, 108
      %v2234 = vpop.permute.xlu0 %2233
      %2235 = vrot.lane.b32.xlu0 %v1819, 108
      %v2236 = vpop.permute.xlu0 %2235
      %2237 = vrot.lane.b32.xlu0 %v1817, 108
      %v2238 = vpop.permute.xlu0 %2237
      %2239 = vrot.lane.b32.xlu0 %v1827, 108
      %v2240 = vpop.permute.xlu0 %2239
      %2241 = vrot.lane.b32.xlu0 %v1829, 108
      %v2242 = vpop.permute.xlu0 %2241
      %2243 = vrot.lane.b32.xlu0 %v1831, 108
      %v2244 = vpop.permute.xlu0 %2243
      %2245 = vrot.lane.b32.xlu0 %v1833, 108
      %v2246 = vpop.permute.xlu0 %2245
      %2247 = vrot.lane.b32.xlu0 %v1835, 108
      %v2248 = vpop.permute.xlu0 %2247
      %2249 = vrot.lane.b32.xlu0 %v1837, 108
      %v2250 = vpop.permute.xlu0 %2249
      %2251 = vrot.lane.b32.xlu0 %v1839, 108
      %v2252 = vpop.permute.xlu0 %2251
      %2253 = vrot.lane.b32.xlu0 %v1919, 108
      %v2254 = vpop.permute.xlu0 %2253
      %2255 = vrot.lane.b32.xlu0 %v1999, 108
      %v2256 = vpop.permute.xlu0 %2255
      %2257 = vrot.lane.b32.xlu0 %v2079, 108
      %v2258 = vpop.permute.xlu0 %2257
      %2260 = vrot.lane.b32.xlu0 %v1825, 16
      %v2261 = vpop.permute.xlu0 %2260
      %2262 = vrot.lane.b32.xlu0 %v1823, 16
      %v2263 = vpop.permute.xlu0 %2262
      %2264 = vrot.lane.b32.xlu0 %v1821, 16
      %v2265 = vpop.permute.xlu0 %2264
      %2266 = vrot.lane.b32.xlu0 %v1819, 16
      %v2267 = vpop.permute.xlu0 %2266
      %2268 = vrot.lane.b32.xlu0 %v1817, 16
      %v2269 = vpop.permute.xlu0 %2268
      %2270 = vrot.lane.b32.xlu0 %v1827, 16
      %v2271 = vpop.permute.xlu0 %2270
      %2272 = vrot.lane.b32.xlu0 %v1829, 16
      %v2273 = vpop.permute.xlu0 %2272
      %2274 = vrot.lane.b32.xlu0 %v1831, 16
      %v2275 = vpop.permute.xlu0 %2274
      %2276 = vrot.lane.b32.xlu0 %v1833, 16
      %v2277 = vpop.permute.xlu0 %2276
      %2278 = vrot.lane.b32.xlu0 %v1835, 16
      %v2279 = vpop.permute.xlu0 %2278
      %2280 = vrot.lane.b32.xlu0 %v1837, 16
      %v2281 = vpop.permute.xlu0 %2280
      %2282 = vrot.lane.b32.xlu0 %v1839, 16
      %v2283 = vpop.permute.xlu0 %2282
      %2284 = vrot.lane.b32.xlu0 %v1919, 16
      %v2285 = vpop.permute.xlu0 %2284
      %2286 = vrot.lane.b32.xlu0 %v1999, 16
      %v2287 = vpop.permute.xlu0 %2286
      %2288 = vrot.lane.b32.xlu0 %v2079, 16
      %v2289 = vpop.permute.xlu0 %2288
      %2290 = vrot.lane.b32.xlu0 %v2159, 16
      %v2291 = vpop.permute.xlu0 %2290
      %2292 = vrot.lane.b32.xlu0 %v1823, 52
      %v2293 = vpop.permute.xlu0 %2292
      %2294 = vrot.lane.b32.xlu0 %v1821, 52
      %v2295 = vpop.permute.xlu0 %2294
      %2296 = vrot.lane.b32.xlu0 %v1819, 52
      %v2297 = vpop.permute.xlu0 %2296
      %2298 = vrot.lane.b32.xlu0 %v1817, 52
      %v2299 = vpop.permute.xlu0 %2298
      %2300 = vrot.lane.b32.xlu0 %v1827, 52
      %v2301 = vpop.permute.xlu0 %2300
      %2302 = vrot.lane.b32.xlu0 %v1829, 52
      %v2303 = vpop.permute.xlu0 %2302
      %2304 = vrot.lane.b32.xlu0 %v1831, 52
      %v2305 = vpop.permute.xlu0 %2304
      %2306 = vrot.lane.b32.xlu0 %v1833, 52
      %v2307 = vpop.permute.xlu0 %2306
      %2308 = vrot.lane.b32.xlu0 %v1835, 52
      %v2309 = vpop.permute.xlu0 %2308
      %2310 = vrot.lane.b32.xlu0 %v1837, 52
      %v2311 = vpop.permute.xlu0 %2310
      %2312 = vrot.lane.b32.xlu0 %v1839, 52
      %v2313 = vpop.permute.xlu0 %2312
      %2314 = vrot.lane.b32.xlu0 %v1919, 52
      %v2315 = vpop.permute.xlu0 %2314
      %2316 = vrot.lane.b32.xlu0 %v1999, 52
      %v2317 = vpop.permute.xlu0 %2316
      %2318 = vrot.lane.b32.xlu0 %v2079, 52
      %v2319 = vpop.permute.xlu0 %2318
      %2320 = vrot.lane.b32.xlu0 %v2159, 52
      %v2321 = vpop.permute.xlu0 %2320
      %2322 = vrot.lane.b32.xlu0 %v1821, 88
      %v2323 = vpop.permute.xlu0 %2322
      %2324 = vrot.lane.b32.xlu0 %v1819, 88
      %v2325 = vpop.permute.xlu0 %2324
      %2326 = vrot.lane.b32.xlu0 %v1817, 88
      %v2327 = vpop.permute.xlu0 %2326
      %2328 = vrot.lane.b32.xlu0 %v1827, 88
      %v2329 = vpop.permute.xlu0 %2328
      %2330 = vrot.lane.b32.xlu0 %v1829, 88
      %v2331 = vpop.permute.xlu0 %2330
      %2332 = vrot.lane.b32.xlu0 %v1831, 88
      %v2333 = vpop.permute.xlu0 %2332
      %2334 = vrot.lane.b32.xlu0 %v1833, 88
      %v2335 = vpop.permute.xlu0 %2334
      %2336 = vrot.lane.b32.xlu0 %v1835, 88
      %v2337 = vpop.permute.xlu0 %2336
      %2338 = vrot.lane.b32.xlu0 %v1837, 88
      %v2339 = vpop.permute.xlu0 %2338
      %2340 = vrot.lane.b32.xlu0 %v1839, 88
      %v2341 = vpop.permute.xlu0 %2340
      %2342 = vrot.lane.b32.xlu0 %v1919, 88
      %v2343 = vpop.permute.xlu0 %2342
      %2344 = vrot.lane.b32.xlu0 %v1999, 88
      %v2345 = vpop.permute.xlu0 %2344
      %2346 = vrot.lane.b32.xlu0 %v2079, 88
      %v2347 = vpop.permute.xlu0 %2346
      %2348 = vrot.lane.b32.xlu0 %v2159, 88
      %v2349 = vpop.permute.xlu0 %2348
      %2350 = vrot.lane.b32.xlu0 %v1819, 124
      %v2351 = vpop.permute.xlu0 %2350
      %2352 = vrot.lane.b32.xlu0 %v1817, 124
      %v2353 = vpop.permute.xlu0 %2352
      %2354 = vrot.lane.b32.xlu0 %v1827, 124
      %v2355 = vpop.permute.xlu0 %2354
      %2356 = vrot.lane.b32.xlu0 %v1829, 124
      %v2357 = vpop.permute.xlu0 %2356
      %2358 = vrot.lane.b32.xlu0 %v1831, 124
      %v2359 = vpop.permute.xlu0 %2358
      %2360 = vrot.lane.b32.xlu0 %v1833, 124
      %v2361 = vpop.permute.xlu0 %2360
      %2362 = vrot.lane.b32.xlu0 %v1835, 124
      %v2363 = vpop.permute.xlu0 %2362
      %2364 = vrot.lane.b32.xlu0 %v1837, 124
      %v2365 = vpop.permute.xlu0 %2364
      %2366 = vrot.lane.b32.xlu0 %v1839, 124
      %v2367 = vpop.permute.xlu0 %2366
      %2368 = vrot.lane.b32.xlu0 %v1919, 124
      %v2369 = vpop.permute.xlu0 %2368
      %2370 = vrot.lane.b32.xlu0 %v1999, 124
      %v2371 = vpop.permute.xlu0 %2370
      %2372 = vrot.lane.b32.xlu0 %v2079, 124
      %v2373 = vpop.permute.xlu0 %2372
      %2374 = vrot.lane.b32.xlu0 %v2159, 124
      %v2375 = vpop.permute.xlu0 %2374
      %2376 = vrot.lane.b32.xlu0 %v1817, 32
      %v2377 = vpop.permute.xlu0 %2376
      %2378 = vrot.lane.b32.xlu0 %v1827, 32
      %v2379 = vpop.permute.xlu0 %2378
      %2380 = vrot.lane.b32.xlu0 %v1829, 32
      %v2381 = vpop.permute.xlu0 %2380
      %2382 = vrot.lane.b32.xlu0 %v1831, 32
      %v2383 = vpop.permute.xlu0 %2382
      %2384 = vrot.lane.b32.xlu0 %v1833, 32
      %v2385 = vpop.permute.xlu0 %2384
      %2386 = vrot.lane.b32.xlu0 %v1835, 32
      %v2387 = vpop.permute.xlu0 %2386
      %2388 = vrot.lane.b32.xlu0 %v1837, 32
      %v2389 = vpop.permute.xlu0 %2388
      %2390 = vrot.lane.b32.xlu0 %v1839, 32
      %v2391 = vpop.permute.xlu0 %2390
      %2392 = vrot.lane.b32.xlu0 %v1919, 32
      %v2393 = vpop.permute.xlu0 %2392
      %2394 = vrot.lane.b32.xlu0 %v1999, 32
      %v2395 = vpop.permute.xlu0 %2394
      %2396 = vrot.lane.b32.xlu0 %v2079, 32
      %v2397 = vpop.permute.xlu0 %2396
      %2398 = vrot.lane.b32.xlu0 %v2159, 32
      %v2399 = vpop.permute.xlu0 %2398
      %vm2400 = vcmask 293888
      %v2402 = vsel %vm2400, %v1817, %v2174
      %v2404 = vsel %vm2400, %v1819, %v2176
      %v2406 = vsel %vm2400, %v1821, %v2178
      %v2408 = vsel %vm2400, %v1823, %v2180
      %v2409 = vsel %vm2400, %v1825, %v2178
      %v2410 = vsel %vm2400, %v1823, %v2176
      %v2411 = vsel %vm2400, %v1821, %v2174
      %v2413 = vsel %vm2400, %v1819, %v2182
      %v2415 = vsel %vm2400, %v1817, %v2184
      %v2417 = vsel %vm2400, %v1827, %v2186
      %v2419 = vsel %vm2400, %v1829, %v2188
      %v2421 = vsel %vm2400, %v1831, %v2190
      %v2423 = vsel %vm2400, %v1833, %v2192
      %v2425 = vsel %vm2400, %v1835, %v2194
      %v2427 = vsel %vm2400, %v1837, %v2196
      %v2429 = vsel %vm2400, %v1839, %v2198
      %vm2430 = vcmask 588800
      %v2432 = vsel %vm2430, %v2402, %v2201
      %v2434 = vsel %vm2430, %v2404, %v2203
      %v2436 = vsel %vm2430, %v2406, %v2205
      %v2437 = vsel %vm2430, %v2408, %v2203
      %v2438 = vsel %vm2430, %v2409, %v2201
      %v2440 = vsel %vm2430, %v2410, %v2207
      %v2442 = vsel %vm2430, %v2411, %v2209
      %v2444 = vsel %vm2430, %v2413, %v2211
      %v2446 = vsel %vm2430, %v2415, %v2213
      %v2448 = vsel %vm2430, %v2417, %v2215
      %v2450 = vsel %vm2430, %v2419, %v2217
      %v2452 = vsel %vm2430, %v2421, %v2219
      %v2454 = vsel %vm2430, %v2423, %v2221
      %v2456 = vsel %vm2430, %v2425, %v2223
      %v2458 = vsel %vm2430, %v2427, %v2225
      %v2460 = vsel %vm2430, %v2429, %v2227
      %vm2461 = vcmask 883712
      %v2463 = vsel %vm2461, %v2432, %v2230
      %v2466 = vsel %vm2461, %v2434, %v2232
      %v2468 = vsel %vm2461, %v2436, %v2230
      %v2471 = vsel %vm2461, %v2437, %v2234
      %v2474 = vsel %vm2461, %v2438, %v2236
      %v2477 = vsel %vm2461, %v2440, %v2238
      %v2480 = vsel %vm2461, %v2442, %v2240
      %v2483 = vsel %vm2461, %v2444, %v2242
      %v2486 = vsel %vm2461, %v2446, %v2244
      %v2489 = vsel %vm2461, %v2448, %v2246
      %v2492 = vsel %vm2461, %v2450, %v2248
      %v2495 = vsel %vm2461, %v2452, %v2250
      %v2498 = vsel %vm2461, %v2454, %v2252
      %v2501 = vsel %vm2461, %v2456, %v2254
      %v2504 = vsel %vm2461, %v2458, %v2256
      %v2507 = vsel %vm2461, %v2460, %v2258
      %v2510 = vsel %vm1715, %v2230, %v2261
      %v2512 = vsel %vm1715, %v2232, %v2263
      %v2514 = vsel %vm1715, %v2230, %v2265
      %v2516 = vsel %vm1715, %v2234, %v2267
      %v2518 = vsel %vm1715, %v2236, %v2269
      %v2520 = vsel %vm1715, %v2238, %v2271
      %v2522 = vsel %vm1715, %v2240, %v2273
      %v2524 = vsel %vm1715, %v2242, %v2275
      %v2526 = vsel %vm1715, %v2244, %v2277
      %v2528 = vsel %vm1715, %v2246, %v2279
      %v2530 = vsel %vm1715, %v2248, %v2281
      %v2532 = vsel %vm1715, %v2250, %v2283
      %v2534 = vsel %vm1715, %v2252, %v2285
      %v2536 = vsel %vm1715, %v2254, %v2287
      %v2538 = vsel %vm1715, %v2256, %v2289
      %v2540 = vsel %vm1715, %v2258, %v2291
      %vm2541 = vcmask 424960
      %v2543 = vsel %vm2541, %v2510, %v2293
      %v2545 = vsel %vm2541, %v2512, %v2295
      %v2547 = vsel %vm2541, %v2514, %v2297
      %v2549 = vsel %vm2541, %v2516, %v2299
      %v2551 = vsel %vm2541, %v2518, %v2301
      %v2553 = vsel %vm2541, %v2520, %v2303
      %v2555 = vsel %vm2541, %v2522, %v2305
      %v2557 = vsel %vm2541, %v2524, %v2307
      %v2559 = vsel %vm2541, %v2526, %v2309
      %v2561 = vsel %vm2541, %v2528, %v2311
      %v2563 = vsel %vm2541, %v2530, %v2313
      %v2565 = vsel %vm2541, %v2532, %v2315
      %v2567 = vsel %vm2541, %v2534, %v2317
      %v2569 = vsel %vm2541, %v2536, %v2319
      %v2571 = vsel %vm2541, %v2538, %v2321
      %v2572 = vsel %vm2541, %v2540, %v2319
      %vm2573 = vcmask 719872
      %v2575 = vsel %vm2573, %v2543, %v2323
      %v2577 = vsel %vm2573, %v2545, %v2325
      %v2579 = vsel %vm2573, %v2547, %v2327
      %v2581 = vsel %vm2573, %v2549, %v2329
      %v2583 = vsel %vm2573, %v2551, %v2331
      %v2585 = vsel %vm2573, %v2553, %v2333
      %v2587 = vsel %vm2573, %v2555, %v2335
      %v2589 = vsel %vm2573, %v2557, %v2337
      %v2591 = vsel %vm2573, %v2559, %v2339
      %v2593 = vsel %vm2573, %v2561, %v2341
      %v2595 = vsel %vm2573, %v2563, %v2343
      %v2597 = vsel %vm2573, %v2565, %v2345
      %v2599 = vsel %vm2573, %v2567, %v2347
      %v2601 = vsel %vm2573, %v2569, %v2349
      %v2602 = vsel %vm2573, %v2571, %v2347
      %v2603 = vsel %vm2573, %v2572, %v2345
      %vm2604 = vcmask 1014784
      %v2606 = vsel %vm2604, %v2575, %v2351
      %v2609 = vsel %vm2604, %v2577, %v2353
      %v2612 = vsel %vm2604, %v2579, %v2355
      %v2615 = vsel %vm2604, %v2581, %v2357
      %v2618 = vsel %vm2604, %v2583, %v2359
      %v2621 = vsel %vm2604, %v2585, %v2361
      %v2624 = vsel %vm2604, %v2587, %v2363
      %v2627 = vsel %vm2604, %v2589, %v2365
      %v2630 = vsel %vm2604, %v2591, %v2367
      %v2633 = vsel %vm2604, %v2593, %v2369
      %v2636 = vsel %vm2604, %v2595, %v2371
      %v2639 = vsel %vm2604, %v2597, %v2373
      %v2642 = vsel %vm2604, %v2599, %v2375
      %v2644 = vsel %vm2604, %v2601, %v2373
      %v2646 = vsel %vm2604, %v2602, %v2371
      %v2648 = vsel %vm2604, %v2603, %v2369
      %v2651 = vsel %vm1815, %v2351, %v2377
      %v2653 = vsel %vm1815, %v2353, %v2379
      %v2655 = vsel %vm1815, %v2355, %v2381
      %v2657 = vsel %vm1815, %v2357, %v2383
      %v2659 = vsel %vm1815, %v2359, %v2385
      %v2661 = vsel %vm1815, %v2361, %v2387
      %v2663 = vsel %vm1815, %v2363, %v2389
      %v2665 = vsel %vm1815, %v2365, %v2391
      %v2667 = vsel %vm1815, %v2367, %v2393
      %v2669 = vsel %vm1815, %v2369, %v2395
      %v2671 = vsel %vm1815, %v2371, %v2397
      %v2673 = vsel %vm1815, %v2373, %v2399
      %v2674 = vsel %vm1815, %v2375, %v2397
      %v2675 = vsel %vm1815, %v2373, %v2395
      %v2676 = vsel %vm1815, %v2371, %v2393
      %v2677 = vsel %vm1815, %v2369, %v2391
      %v2679 = vlaneseq
      %v2680 = vshrl.u32 %v2679, 7
      %v2681 = vsub.s32 0, %v2680
      %v2682 = vrot.slane %v353, %v2681
      %v2725 = vunpack.c.l.b16 %v312
      %v2726 = vunpack.c.l.b16 %v313
      %v2727 = vunpack.c.l.b16 %v314
      %v2728 = vunpack.c.l.b16 %v315
      %v2729 = vunpack.c.l.b16 %v316
      %v2730 = vunpack.c.l.b16 %v317
      %v2731 = vunpack.c.l.b16 %v318
      %v2732 = vunpack.c.l.b16 %v319
      %v2733 = vunpack.c.l.b16 %v320
      %v2734 = vunpack.c.l.b16 %v321
      %v2735 = vunpack.c.l.b16 %v322
      %v2736 = vunpack.c.l.b16 %v323
      %v2737 = vunpack.c.l.b16 %v324
      %v2738 = vunpack.c.l.b16 %v325
      %v2739 = vunpack.c.l.b16 %v326
      %v2740 = vunpack.c.l.b16 %v327
      %v2741 = vunpack.c.l.b16 %v328
      %v2742 = vunpack.c.l.b16 %v329
      %v2743 = vunpack.c.l.b16 %v330
      %v2744 = vunpack.c.l.b16 %v331
      %v2745 = vunpack.c.l.b16 %v332
      %v2746 = vunpack.c.l.b16 %v333
      %v2747 = vunpack.c.l.b16 %v334
      %v2748 = vunpack.c.l.b16 %v335
      %v2749 = vunpack.c.l.b16 %v336
      %v2750 = vunpack.c.l.b16 %v337
      %v2751 = vunpack.c.l.b16 %v338
      %v2752 = vunpack.c.l.b16 %v339
      %v2753 = vunpack.c.l.b16 %v340
      %v2754 = vunpack.c.l.b16 %v341
      %v2755 = vunpack.c.l.b16 %v342
      %v2756 = vunpack.c.l.b16 %v343
      %v2757 = vunpack.c.l.b16 %v344
      %v2758 = vunpack.c.l.b16 %v345
      %v2759 = vunpack.c.l.b16 %v346
      %v2760 = vunpack.c.l.b16 %v347
      %v2761 = vunpack.c.l.b16 %v348
      %v2762 = vunpack.c.l.b16 %v349
      %v2763 = vunpack.c.l.b16 %v350
      %v2764 = vunpack.c.l.b16 %v351
      %v2765 = vunpack.c.l.b16 %v352
      %v2766 = vpack.c.b16 %v2726, %v2725
      %v2767 = vpack.c.b16 %v2728, %v2727
      %v2768 = vpack.c.b16 %v2730, %v2729
      %v2769 = vpack.c.b16 %v2732, %v2731
      %v2770 = vpack.c.b16 %v2734, %v2733
      %v2771 = vpack.c.b16 %v2736, %v2735
      %v2772 = vpack.c.b16 %v2738, %v2737
      %v2773 = vpack.c.b16 %v2740, %v2739
      %v2774 = vpack.c.b16 %v2742, %v2741
      %v2775 = vpack.c.b16 %v2744, %v2743
      %v2776 = vpack.c.b16 %v2746, %v2745
      %v2777 = vpack.c.b16 %v2748, %v2747
      %v2778 = vpack.c.b16 %v2750, %v2749
      %v2779 = vpack.c.b16 %v2752, %v2751
      %v2780 = vpack.c.b16 %v2754, %v2753
      %v2781 = vpack.c.b16 %v2756, %v2755
      %v2782 = vpack.c.b16 %v2758, %v2757
      %v2783 = vpack.c.b16 %v2760, %v2759
      %v2784 = vpack.c.b16 %v2762, %v2761
      %v2785 = vpack.c.b16 %v2764, %v2763
      %v2786 = vpack.c.b16 %v2765, %v2765
      %vm2807 = vcmask 556032
      %v2808 = vsel %vm2807, %v2651, 0
      %v2810 = vsel %vm2807, %v2653, 0
      %v2812 = vsel %vm2807, %v2655, 0
      %v2814 = vsel %vm2807, %v2657, 0
      %v2816 = vsel %vm2807, %v2659, 0
      %v2818 = vsel %vm2807, %v2661, 0
      %v2820 = vsel %vm2807, %v2663, 0
      %v2822 = vsel %vm2807, %v2665, 0
      %v2824 = vsel %vm2807, %v2667, 0
      %v2826 = vsel %vm2807, %v2669, 0
      %v2828 = vsel %vm2807, %v2671, 0
      %v2830 = vsel %vm2807, %v2673, 0
      %v2832 = vsel %vm2807, %v2674, 0
      %v2834 = vsel %vm2807, %v2675, 0
      %v2836 = vsel %vm2807, %v2676, 0
      %v2838 = vsel %vm2807, %v2677, 0
      %v2841 = vsel %vm665, %v2786, 0
      %2843 = vmatprep.subr.bf16.mxu0 0
      %2844 = vmatpush1.bf16.msra.mxu0 %v2766
      %2845 = vmatprep.subr.bf16.mxu0 0
      %2846 = vmatpush1.bf16.msra.mxu0 %v2767
      %2847 = vmatprep.subr.bf16.mxu0 0
      %2848 = vmatpush1.bf16.msra.mxu0 %v2768
      %2849 = vmatprep.subr.bf16.mxu0 0
      %2850 = vmatpush1.bf16.msra.mxu0 %v2769
      %2851 = vmatprep.subr.bf16.mxu0 0
      %2852 = vmatpush1.bf16.msra.mxu0 %v2770
      %2853 = vmatprep.subr.bf16.mxu0 0
      %2854 = vmatpush1.bf16.msra.mxu0 %v2771
      %2855 = vmatprep.subr.bf16.mxu0 0
      %2856 = vmatpush1.bf16.msra.mxu0 %v2772
      %2857 = vmatprep.subr.bf16.mxu0 0
      %2858 = vmatpush1.bf16.msra.mxu0 %v2773
      %2859 = vmatprep.subr.bf16.mxu0 0
      %2860 = vmatpush1.bf16.msra.mxu0 %v2774
      %2861 = vmatprep.subr.bf16.mxu0 0
      %2862 = vmatpush1.bf16.msra.mxu0 %v2775
      %2863 = vmatprep.subr.bf16.mxu0 0
      %2864 = vmatpush1.bf16.msra.mxu0 %v2776
      %2865 = vmatprep.subr.bf16.mxu0 0
      %2866 = vmatpush1.bf16.msra.mxu0 %v2777
      %2867 = vmatprep.subr.bf16.mxu0 0
      %2868 = vmatpush1.bf16.msra.mxu0 %v2778
      %2869 = vmatprep.subr.bf16.mxu0 0
      %2870 = vmatpush1.bf16.msra.mxu0 %v2779
      %2871 = vmatprep.subr.bf16.mxu0 0
      %2872 = vmatpush1.bf16.msra.mxu0 %v2780
      %2873 = vmatprep.subr.bf16.mxu0 0
      %2874 = vmatpush1.bf16.msra.mxu0 %v2781
      %2875 = vmatprep.mubr.bf16.mxu0 %v2606
      %2876 = vmatmul.mubr.bf16.gmra.mrb[0].mxu0 %v2463
      %v2877 = vpop.f32.mrb[0].mxu0
      %v2878 = vadd.f32 %v2682, %v2877
      %v2879 = vpop.f32.mrb[0].mxu0
      %v2880 = vpop.f32.mrb[0].mxu0
      %v2881 = vadd.f32 %v2682, %v2880
      %v2882 = vpop.f32.mrb[0].mxu0
      %2883 = vmatprep.mubr.bf16.mxu0 %v2609
      %2884 = vmatmul.mubr.bf16.gmra.mrb[0].mxu0 %v2466
      %v2885 = vpop.f32.mrb[0].mxu0
      %v2886 = vadd.f32 %v2682, %v2885
      %v2887 = vpop.f32.mrb[0].mxu0
      %v2888 = vpop.f32.mrb[0].mxu0
      %v2889 = vadd.f32 %v2682, %v2888
      %v2890 = vpop.f32.mrb[0].mxu0
      %2891 = vmatprep.mubr.bf16.mxu0 %v2612
      %2892 = vmatmul.mubr.bf16.gmra.mrb[0].mxu0 %v2468
      %v2893 = vpop.f32.mrb[0].mxu0
      %v2894 = vadd.f32 %v2682, %v2893
      %v2895 = vpop.f32.mrb[0].mxu0
      %v2896 = vpop.f32.mrb[0].mxu0
      %v2897 = vadd.f32 %v2682, %v2896
      %v2898 = vpop.f32.mrb[0].mxu0
      %2899 = vmatprep.mubr.bf16.mxu0 %v2615
      %2900 = vmatmul.mubr.bf16.gmra.mrb[0].mxu0 %v2471
      %v2901 = vpop.f32.mrb[0].mxu0
      %v2902 = vadd.f32 %v2682, %v2901
      %v2903 = vpop.f32.mrb[0].mxu0
      %v2904 = vpop.f32.mrb[0].mxu0
      %v2905 = vadd.f32 %v2682, %v2904
      %v2906 = vpop.f32.mrb[0].mxu0
      %2907 = vmatprep.mubr.bf16.mxu0 %v2618
      %2908 = vmatmul.mubr.bf16.gmra.mrb[0].mxu0 %v2474
      %v2909 = vpop.f32.mrb[0].mxu0
      %v2910 = vadd.f32 %v2682, %v2909
      %v2911 = vpop.f32.mrb[0].mxu0
      %v2912 = vpop.f32.mrb[0].mxu0
      %v2913 = vadd.f32 %v2682, %v2912
      %v2914 = vpop.f32.mrb[0].mxu0
      %2915 = vmatprep.mubr.bf16.mxu0 %v2621
      %2916 = vmatmul.mubr.bf16.gmra.mrb[0].mxu0 %v2477
      %v2917 = vpop.f32.mrb[0].mxu0
      %v2918 = vadd.f32 %v2682, %v2917
      %v2919 = vpop.f32.mrb[0].mxu0
      %v2920 = vpop.f32.mrb[0].mxu0
      %v2921 = vadd.f32 %v2682, %v2920
      %v2922 = vpop.f32.mrb[0].mxu0
      %2923 = vmatprep.mubr.bf16.mxu0 %v2624
      %2924 = vmatmul.mubr.bf16.gmra.mrb[0].mxu0 %v2480
      %v2925 = vpop.f32.mrb[0].mxu0
      %v2926 = vadd.f32 %v2682, %v2925
      %v2927 = vpop.f32.mrb[0].mxu0
      %v2928 = vpop.f32.mrb[0].mxu0
      %v2929 = vadd.f32 %v2682, %v2928
      %v2930 = vpop.f32.mrb[0].mxu0
      %2931 = vmatprep.mubr.bf16.mxu0 %v2627
      %2932 = vmatmul.mubr.bf16.gmra.mrb[0].mxu0 %v2483
      %v2933 = vpop.f32.mrb[0].mxu0
      %v2934 = vadd.f32 %v2682, %v2933
      %v2935 = vpop.f32.mrb[0].mxu0
      %v2936 = vpop.f32.mrb[0].mxu0
      %v2937 = vadd.f32 %v2682, %v2936
      %v2938 = vpop.f32.mrb[0].mxu0
      %2939 = vmatprep.mubr.bf16.mxu0 %v2630
      %2940 = vmatmul.mubr.bf16.gmra.mrb[0].mxu0 %v2486
      %v2941 = vpop.f32.mrb[0].mxu0
      %v2942 = vadd.f32 %v2682, %v2941
      %v2943 = vpop.f32.mrb[0].mxu0
      %v2944 = vpop.f32.mrb[0].mxu0
      %v2945 = vadd.f32 %v2682, %v2944
      %v2946 = vpop.f32.mrb[0].mxu0
      %2947 = vmatprep.mubr.bf16.mxu0 %v2633
      %2948 = vmatmul.mubr.bf16.gmra.mrb[0].mxu0 %v2489
      %v2949 = vpop.f32.mrb[0].mxu0
      %v2950 = vadd.f32 %v2682, %v2949
      %v2951 = vpop.f32.mrb[0].mxu0
      %v2952 = vpop.f32.mrb[0].mxu0
      %v2953 = vadd.f32 %v2682, %v2952
      %v2954 = vpop.f32.mrb[0].mxu0
      %2955 = vmatprep.mubr.bf16.mxu0 %v2636
      %2956 = vmatmul.mubr.bf16.gmra.mrb[0].mxu0 %v2492
      %v2957 = vpop.f32.mrb[0].mxu0
      %v2958 = vadd.f32 %v2682, %v2957
      %v2959 = vpop.f32.mrb[0].mxu0
      %v2960 = vpop.f32.mrb[0].mxu0
      %v2961 = vadd.f32 %v2682, %v2960
      %v2962 = vpop.f32.mrb[0].mxu0
      %2963 = vmatprep.mubr.bf16.mxu0 %v2639
      %2964 = vmatmul.mubr.bf16.gmra.mrb[0].mxu0 %v2495
      %v2965 = vpop.f32.mrb[0].mxu0
      %v2966 = vadd.f32 %v2682, %v2965
      %v2967 = vpop.f32.mrb[0].mxu0
      %v2968 = vpop.f32.mrb[0].mxu0
      %v2969 = vadd.f32 %v2682, %v2968
      %v2970 = vpop.f32.mrb[0].mxu0
      %2971 = vmatprep.mubr.bf16.mxu0 %v2642
      %2972 = vmatmul.mubr.bf16.gmra.mrb[0].mxu0 %v2498
      %v2973 = vpop.f32.mrb[0].mxu0
      %v2974 = vadd.f32 %v2682, %v2973
      %v2975 = vpop.f32.mrb[0].mxu0
      %v2976 = vpop.f32.mrb[0].mxu0
      %v2977 = vadd.f32 %v2682, %v2976
      %v2978 = vpop.f32.mrb[0].mxu0
      %2979 = vmatprep.mubr.bf16.mxu0 %v2644
      %2980 = vmatmul.mubr.bf16.gmra.mrb[0].mxu0 %v2501
      %v2981 = vpop.f32.mrb[0].mxu0
      %v2982 = vadd.f32 %v2682, %v2981
      %v2983 = vpop.f32.mrb[0].mxu0
      %v2984 = vpop.f32.mrb[0].mxu0
      %v2985 = vadd.f32 %v2682, %v2984
      %v2986 = vpop.f32.mrb[0].mxu0
      %2987 = vmatprep.mubr.bf16.mxu0 %v2646
      %2988 = vmatmul.mubr.bf16.gmra.mrb[0].mxu0 %v2504
      %v2989 = vpop.f32.mrb[0].mxu0
      %v2990 = vadd.f32 %v2682, %v2989
      %v2991 = vpop.f32.mrb[0].mxu0
      %v2992 = vpop.f32.mrb[0].mxu0
      %v2993 = vadd.f32 %v2682, %v2992
      %v2994 = vpop.f32.mrb[0].mxu0
      %2995 = vmatprep.mubr.bf16.mxu0 %v2648
      %2996 = vmatmul.mubr.bf16.gmra.mrb[0].mxu0 %v2507
      %v2997 = vpop.f32.mrb[0].mxu0
      %v2998 = vadd.f32 %v2682, %v2997
      %v2999 = vpop.f32.mrb[0].mxu0
      %v3000 = vpop.f32.mrb[0].mxu0
      %v3001 = vadd.f32 %v2682, %v3000
      %v3002 = vpop.f32.mrb[0].mxu0
      %3003 = vdwg.mxu0
      %3004 = vmatprep.subr.bf16.mxu0 0
      %3005 = vmatpush1.bf16.msra.mxu0 %v2782
      %3006 = vmatprep.subr.bf16.mxu0 0
      %3007 = vmatpush1.bf16.msra.mxu0 %v2783
      %3008 = vmatprep.subr.bf16.mxu0 0
      %3009 = vmatpush1.bf16.msra.mxu0 %v2784
      %3010 = vmatprep.subr.bf16.mxu0 0
      %3011 = vmatpush1.bf16.msra.mxu0 %v2785
      %3012 = vmatprep.subr.bf16.mxu0 0
      %3013 = vmatpush1.bf16.msra.mxu0 %v2841
      %3014 = vmatprep.subr.bf16.mxu0 0
      %3015 = vmatpush1.bf16.msra.mxu0 0
      %3016 = vmatprep.subr.bf16.mxu0 0
      %3017 = vmatpush1.bf16.msra.mxu0 0
      %3018 = vmatprep.subr.bf16.mxu0 0
      %3019 = vmatpush1.bf16.msra.mxu0 0
      %3020 = vmatprep.subr.bf16.mxu0 0
      %3021 = vmatpush1.bf16.msra.mxu0 0
      %3022 = vmatprep.subr.bf16.mxu0 0
      %3023 = vmatpush1.bf16.msra.mxu0 0
      %3024 = vmatprep.subr.bf16.mxu0 0
      %3025 = vmatpush1.bf16.msra.mxu0 0
      %3026 = vmatprep.subr.bf16.mxu0 0
      %3027 = vmatpush1.bf16.msra.mxu0 0
      %3028 = vmatprep.subr.bf16.mxu0 0
      %3029 = vmatpush1.bf16.msra.mxu0 0
      %3030 = vmatprep.subr.bf16.mxu0 0
      %3031 = vmatpush1.bf16.msra.mxu0 0
      %3032 = vmatprep.subr.bf16.mxu0 0
      %3033 = vmatpush1.bf16.msra.mxu0 0
      %3034 = vmatprep.subr.bf16.mxu0 0
      %3035 = vmatpush1.bf16.msra.mxu0 0
      %3036 = vmatprep.mubr.bf16.mxu0 0
      %3037 = vmatmul.mubr.bf16.gmra.mrb[0].mxu0 %v2808
      %v3038 = vpop.f32.mrb[0].mxu0
      %v3039 = vadd.f32 %v2878, %v3038
      %v3040 = vpop.f32.mrb[0].mxu0
      %v3041 = vpop.f32.mrb[0].mxu0
      %v3042 = vadd.f32 %v2881, %v3041
      %v3043 = vpop.f32.mrb[0].mxu0
      %3044 = vmatprep.mubr.bf16.mxu0 0
      %3045 = vmatmul.mubr.bf16.gmra.mrb[0].mxu0 %v2810
      %v3046 = vpop.f32.mrb[0].mxu0
      %v3047 = vadd.f32 %v2886, %v3046
      %v3048 = vpop.f32.mrb[0].mxu0
      %v3049 = vpop.f32.mrb[0].mxu0
      %v3050 = vadd.f32 %v2889, %v3049
      %v3051 = vpop.f32.mrb[0].mxu0
      %3052 = vmatprep.mubr.bf16.mxu0 0
      %3053 = vmatmul.mubr.bf16.gmra.mrb[0].mxu0 %v2812
      %v3054 = vpop.f32.mrb[0].mxu0
      %v3055 = vadd.f32 %v2894, %v3054
      %v3056 = vpop.f32.mrb[0].mxu0
      %v3057 = vpop.f32.mrb[0].mxu0
      %v3058 = vadd.f32 %v2897, %v3057
      %v3059 = vpop.f32.mrb[0].mxu0
      %3060 = vmatprep.mubr.bf16.mxu0 0
      %3061 = vmatmul.mubr.bf16.gmra.mrb[0].mxu0 %v2814
      %v3062 = vpop.f32.mrb[0].mxu0
      %v3063 = vadd.f32 %v2902, %v3062
      %v3064 = vpop.f32.mrb[0].mxu0
      %v3065 = vpop.f32.mrb[0].mxu0
      %v3066 = vadd.f32 %v2905, %v3065
      %v3067 = vpop.f32.mrb[0].mxu0
      %3068 = vmatprep.mubr.bf16.mxu0 0
      %3069 = vmatmul.mubr.bf16.gmra.mrb[0].mxu0 %v2816
      %v3070 = vpop.f32.mrb[0].mxu0
      %v3071 = vadd.f32 %v2910, %v3070
      %v3072 = vpop.f32.mrb[0].mxu0
      %v3073 = vpop.f32.mrb[0].mxu0
      %v3074 = vadd.f32 %v2913, %v3073
      %v3075 = vpop.f32.mrb[0].mxu0
      %3076 = vmatprep.mubr.bf16.mxu0 0
      %3077 = vmatmul.mubr.bf16.gmra.mrb[0].mxu0 %v2818
      %v3078 = vpop.f32.mrb[0].mxu0
      %v3079 = vadd.f32 %v2918, %v3078
      %v3080 = vpop.f32.mrb[0].mxu0
      %v3081 = vpop.f32.mrb[0].mxu0
      %v3082 = vadd.f32 %v2921, %v3081
      %v3083 = vpop.f32.mrb[0].mxu0
      %3084 = vmatprep.mubr.bf16.mxu0 0
      %3085 = vmatmul.mubr.bf16.gmra.mrb[0].mxu0 %v2820
      %v3086 = vpop.f32.mrb[0].mxu0
      %v3087 = vadd.f32 %v2926, %v3086
      %v3088 = vpop.f32.mrb[0].mxu0
      %v3089 = vpop.f32.mrb[0].mxu0
      %v3090 = vadd.f32 %v2929, %v3089
      %v3091 = vpop.f32.mrb[0].mxu0
      %3092 = vmatprep.mubr.bf16.mxu0 0
      %3093 = vmatmul.mubr.bf16.gmra.mrb[0].mxu0 %v2822
      %v3094 = vpop.f32.mrb[0].mxu0
      %v3095 = vadd.f32 %v2934, %v3094
      %v3096 = vpop.f32.mrb[0].mxu0
      %v3097 = vpop.f32.mrb[0].mxu0
      %v3098 = vadd.f32 %v2937, %v3097
      %v3099 = vpop.f32.mrb[0].mxu0
      %3100 = vmatprep.mubr.bf16.mxu0 0
      %3101 = vmatmul.mubr.bf16.gmra.mrb[0].mxu0 %v2824
      %v3102 = vpop.f32.mrb[0].mxu0
      %v3103 = vadd.f32 %v2942, %v3102
      %v3104 = vpop.f32.mrb[0].mxu0
      %v3105 = vpop.f32.mrb[0].mxu0
      %v3106 = vadd.f32 %v2945, %v3105
      %v3107 = vpop.f32.mrb[0].mxu0
      %3108 = vmatprep.mubr.bf16.mxu0 0
      %3109 = vmatmul.mubr.bf16.gmra.mrb[0].mxu0 %v2826
      %v3110 = vpop.f32.mrb[0].mxu0
      %v3111 = vadd.f32 %v2950, %v3110
      %v3112 = vpop.f32.mrb[0].mxu0
      %v3113 = vpop.f32.mrb[0].mxu0
      %v3114 = vadd.f32 %v2953, %v3113
      %v3115 = vpop.f32.mrb[0].mxu0
      %3116 = vmatprep.mubr.bf16.mxu0 0
      %3117 = vmatmul.mubr.bf16.gmra.mrb[0].mxu0 %v2828
      %v3118 = vpop.f32.mrb[0].mxu0
      %v3119 = vadd.f32 %v2958, %v3118
      %v3120 = vpop.f32.mrb[0].mxu0
      %v3121 = vpop.f32.mrb[0].mxu0
      %v3122 = vadd.f32 %v2961, %v3121
      %v3123 = vpop.f32.mrb[0].mxu0
      %3124 = vmatprep.mubr.bf16.mxu0 0
      %3125 = vmatmul.mubr.bf16.gmra.mrb[0].mxu0 %v2830
      %v3126 = vpop.f32.mrb[0].mxu0
      %v3127 = vadd.f32 %v2966, %v3126
      %v3128 = vpop.f32.mrb[0].mxu0
      %v3129 = vpop.f32.mrb[0].mxu0
      %v3130 = vadd.f32 %v2969, %v3129
      %v3131 = vpop.f32.mrb[0].mxu0
      %3132 = vmatprep.mubr.bf16.mxu0 0
      %3133 = vmatmul.mubr.bf16.gmra.mrb[0].mxu0 %v2832
      %v3134 = vpop.f32.mrb[0].mxu0
      %v3135 = vadd.f32 %v2974, %v3134
      %v3136 = vpop.f32.mrb[0].mxu0
      %v3137 = vpop.f32.mrb[0].mxu0
      %v3138 = vadd.f32 %v2977, %v3137
      %v3139 = vpop.f32.mrb[0].mxu0
      %3140 = vmatprep.mubr.bf16.mxu0 0
      %3141 = vmatmul.mubr.bf16.gmra.mrb[0].mxu0 %v2834
      %v3142 = vpop.f32.mrb[0].mxu0
      %v3143 = vadd.f32 %v2982, %v3142
      %v3144 = vpop.f32.mrb[0].mxu0
      %v3145 = vpop.f32.mrb[0].mxu0
      %v3146 = vadd.f32 %v2985, %v3145
      %v3147 = vpop.f32.mrb[0].mxu0
      %3148 = vmatprep.mubr.bf16.mxu0 0
      %3149 = vmatmul.mubr.bf16.gmra.mrb[0].mxu0 %v2836
      %v3150 = vpop.f32.mrb[0].mxu0
      %v3151 = vadd.f32 %v2990, %v3150
      %v3152 = vpop.f32.mrb[0].mxu0
      %v3153 = vpop.f32.mrb[0].mxu0
      %v3154 = vadd.f32 %v2993, %v3153
      %v3155 = vpop.f32.mrb[0].mxu0
      %3156 = vmatprep.mubr.bf16.mxu0 0
      %3157 = vmatmul.mubr.bf16.gmra.mrb[0].mxu0 %v2838
      %v3158 = vpop.f32.mrb[0].mxu0
      %v3159 = vadd.f32 %v2998, %v3158
      %v3160 = vpop.f32.mrb[0].mxu0
      %v3161 = vpop.f32.mrb[0].mxu0
      %v3162 = vadd.f32 %v3001, %v3161
      %v3163 = vpop.f32.mrb[0].mxu0
      %3164 = vdwg.mxu0
      %v3165 = vtanh.pop %v3039
      %v3166 = vtanh.pop %v3042
      %v3167 = vtanh.pop %v3047
      %v3168 = vtanh.pop %v3050
      %v3169 = vtanh.pop %v3055
      %v3170 = vtanh.pop %v3058
      %v3171 = vtanh.pop %v3063
      %v3172 = vtanh.pop %v3066
      %v3173 = vtanh.pop %v3071
      %v3174 = vtanh.pop %v3074
      %v3175 = vtanh.pop %v3079
      %v3176 = vtanh.pop %v3082
      %v3177 = vtanh.pop %v3087
      %v3178 = vtanh.pop %v3090
      %v3179 = vtanh.pop %v3095
      %v3180 = vtanh.pop %v3098
      %v3181 = vtanh.pop %v3103
      %v3182 = vtanh.pop %v3106
      %v3183 = vtanh.pop %v3111
      %v3184 = vtanh.pop %v3114
      %v3185 = vtanh.pop %v3119
      %v3186 = vtanh.pop %v3122
      %v3187 = vtanh.pop %v3127
      %v3188 = vtanh.pop %v3130
      %v3189 = vtanh.pop %v3135
      %v3190 = vtanh.pop %v3138
      %v3191 = vtanh.pop %v3143
      %v3192 = vtanh.pop %v3146
      %v3193 = vtanh.pop %v3151
      %v3194 = vtanh.pop %v3154
      %v3195 = vtanh.pop %v3159
      %v3196 = vtanh.pop %v3162
      %v3197 = vld [vmem:[%s3] sm:$0xf]
      %v3198 = vld [vmem:[%s3 + $0x4] sm:$0xf]
      %v3199 = vld [vmem:[%s3 + $0x8] sm:$0xf]
      %v3200 = vld [vmem:[%s3 + $0xc] sm:$0xf]
      %v3201 = vld [vmem:[%s3 + $0x10] sm:$0xf]
      %v3202 = vld [vmem:[%s3 + $0x14] sm:$0xf]
      %v3203 = vld [vmem:[%s3 + $0x18] sm:$0xf]
      %v3204 = vld [vmem:[%s3 + $0x1c] sm:$0xf]
      %v3205 = vld [vmem:[%s3 + $0x20] sm:$0xf]
      %v3206 = vld [vmem:[%s3 + $0x24] sm:$0xf]
      %v3207 = vld [vmem:[%s3 + $0x28] sm:$0xf]
      %v3208 = vld [vmem:[%s3 + $0x2c] sm:$0xf]
      %v3209 = vld [vmem:[%s3 + $0x30] sm:$0xf]
      %v3210 = vld [vmem:[%s3 + $0x34] sm:$0xf]
      %v3211 = vld [vmem:[%s3 + $0x38] sm:$0xf]
      %v3212 = vld [vmem:[%s3 + $0x3c] sm:$0xf]
      %v3213 = vld [vmem:[%s3 + $0x40] sm:$0xf]
      %v3214 = vld [vmem:[%s3 + $0x44] sm:$0xf]
      %v3215 = vld [vmem:[%s3 + $0x48] sm:$0xf]
      %v3216 = vld [vmem:[%s3 + $0x4c] sm:$0xf]
      %v3217 = vld [vmem:[%s3 + $0x50] sm:$0xf]
      %v3218 = vld [vmem:[%s3 + $0x54] sm:$0xf]
      %v3219 = vld [vmem:[%s3 + $0x58] sm:$0xf]
      %v3220 = vld [vmem:[%s3 + $0x5c] sm:$0xf]
      %v3221 = vld [vmem:[%s3 + $0x60] sm:$0xf]
      %v3222 = vld [vmem:[%s3 + $0x64] sm:$0xf]
      %v3223 = vld [vmem:[%s3 + $0x68] sm:$0xf]
      %v3224 = vld [vmem:[%s3 + $0x6c] sm:$0xf]
      %v3225 = vld [vmem:[%s3 + $0x70] sm:$0xf]
      %v3226 = vld [vmem:[%s3 + $0x74] sm:$0xf]
      %v3227 = vld [vmem:[%s3 + $0x78] sm:$0xf]
      %v3228 = vld [vmem:[%s3 + $0x7c] sm:$0xf]
      %v3229 = vld [vmem:[%s3 + $0x80] sm:$0xf]
      %v3230 = vld [vmem:[%s3 + $0x84] sm:$0xf]
      %v3231 = vld [vmem:[%s3 + $0x88] sm:$0xf]
      %v3232 = vld [vmem:[%s3 + $0x8c] sm:$0xf]
      %v3233 = vld [vmem:[%s3 + $0x90] sm:$0xf]
      %v3234 = vld [vmem:[%s3 + $0x94] sm:$0xf]
      %v3235 = vld [vmem:[%s3 + $0x98] sm:$0xf]
      %v3236 = vld [vmem:[%s3 + $0x9c] sm:$0xf]
      %v3237 = vld [vmem:[%s3 + $0xa0] sm:$0xf]
      %v3238 = vld [vmem:[%s3 + $0xa4] sm:$0xf]
      %v3239 = vld [vmem:[%s3 + $0xa8] sm:$0xf]
      %v3240 = vld [vmem:[%s3 + $0xac] sm:$0xf]
      %v3241 = vld [vmem:[%s3 + $0xb0] sm:$0xf]
      %v3242 = vld [vmem:[%s3 + $0xb4] sm:$0xf]
      %v3243 = vld [vmem:[%s3 + $0xb8] sm:$0xf]
      %v3244 = vld [vmem:[%s3 + $0xbc] sm:$0xf]
      %v3245 = vld [vmem:[%s3 + $0xc0] sm:$0xf]
      %v3246 = vld [vmem:[%s3 + $0xc4] sm:$0xf]
      %v3247 = vld [vmem:[%s3 + $0xc8] sm:$0xf]
      %v3248 = vld [vmem:[%s3 + $0xcc] sm:$0xf]
      %v3249 = vld [vmem:[%s3 + $0xd0] sm:$0xf]
      %v3250 = vld [vmem:[%s3 + $0xd4] sm:$0xf]
      %v3251 = vld [vmem:[%s3 + $0xd8] sm:$0xf]
      %v3252 = vld [vmem:[%s3 + $0xdc] sm:$0xf]
      %v3253 = vld [vmem:[%s3 + $0xe0] sm:$0xf]
      %v3254 = vld [vmem:[%s3 + $0xe4] sm:$0xf]
      %v3255 = vld [vmem:[%s3 + $0xe8] sm:$0xf]
      %v3256 = vld [vmem:[%s3 + $0xec] sm:$0xf]
      %v3257 = vld [vmem:[%s3 + $0xf0] sm:$0xf]
      %v3258 = vld [vmem:[%s3 + $0xf4] sm:$0xf]
      %v3259 = vld [vmem:[%s3 + $0xf8] sm:$0xf]
      %v3260 = vld [vmem:[%s3 + $0xfc] sm:$0xf]
      %v3261 = vld [vmem:[%s3 + $0x100] sm:$0xf]
      %v3262 = vld [vmem:[%s3 + $0x104] sm:$0xf]
      %v3263 = vld [vmem:[%s3 + $0x108] sm:$0xf]
      %v3264 = vld [vmem:[%s3 + $0x10c] sm:$0xf]
      %v3265 = vld [vmem:[%s3 + $0x110] sm:$0xf]
      %v3266 = vld [vmem:[%s3 + $0x114] sm:$0xf]
      %v3267 = vld [vmem:[%s3 + $0x118] sm:$0xf]
      %v3268 = vld [vmem:[%s3 + $0x11c] sm:$0xf]
      %v3269 = vld [vmem:[%s3 + $0x120] sm:$0xf]
      %v3270 = vld [vmem:[%s3 + $0x124] sm:$0xf]
      %v3271 = vld [vmem:[%s3 + $0x128] sm:$0xf]
      %v3272 = vld [vmem:[%s3 + $0x12c] sm:$0xf]
      %v3273 = vld [vmem:[%s3 + $0x130] sm:$0xf]
      %v3274 = vld [vmem:[%s3 + $0x134] sm:$0xf]
      %v3275 = vld [vmem:[%s3 + $0x138] sm:$0xf]
      %v3276 = vld [vmem:[%s3 + $0x13c] sm:$0xf]
      %v3277 = vld [vmem:[%s3 + $0x140] sm:$0xf]
      %v3278 = vld [vmem:[%s3 + $0x144] sm:$0xf]
      %v3279 = vld [vmem:[%s3 + $0x148] sm:$0xf]
      %v3280 = vld [vmem:[%s3 + $0x14c] sm:$0xf]
      %v3281 = vld [vmem:[%s3 + $0x150] sm:$0xf]
      %v3282 = vld [vmem:[%s3 + $0x154] sm:$0xf]
      %v3283 = vld [vmem:[%s3 + $0x158] sm:$0xf]
      %v3284 = vld [vmem:[%s3 + $0x15c] sm:$0xf]
      %v3285 = vld [vmem:[%s3 + $0x160] sm:$0xf]
      %v3286 = vld [vmem:[%s3 + $0x164] sm:$0xf]
      %v3287 = vld [vmem:[%s3 + $0x168] sm:$0xf]
      %v3288 = vld [vmem:[%s3 + $0x16c] sm:$0xf]
      %v3289 = vld [vmem:[%s3 + $0x170] sm:$0xf]
      %v3290 = vld [vmem:[%s3 + $0x174] sm:$0xf]
      %v3291 = vld [vmem:[%s3 + $0x178] sm:$0xf]
      %v3292 = vld [vmem:[%s3 + $0x17c] sm:$0xf]
      %v3293 = vld [vmem:[%s3 + $0x180] sm:$0xf]
      %v3294 = vld [vmem:[%s3 + $0x184] sm:$0xf]
      %v3295 = vld [vmem:[%s3 + $0x188] sm:$0xf]
      %v3296 = vld [vmem:[%s3 + $0x18c] sm:$0xf]
      %v3297 = vld [vmem:[%s3 + $0x190] sm:$0xf]
      %v3298 = vld [vmem:[%s3 + $0x194] sm:$0xf]
      %v3299 = vld [vmem:[%s3 + $0x198] sm:$0xf]
      %v3300 = vld [vmem:[%s3 + $0x19c] sm:$0xf]
      %v3301 = vld [vmem:[%s3 + $0x1a0] sm:$0xf]
      %v3302 = vld [vmem:[%s3 + $0x1a4] sm:$0xf]
      %v3303 = vld [vmem:[%s3 + $0x1a8] sm:$0xf]
      %v3304 = vld [vmem:[%s3 + $0x1ac] sm:$0xf]
      %v3305 = vld [vmem:[%s3 + $0x1b0] sm:$0xf]
      %v3306 = vld [vmem:[%s3 + $0x1b4] sm:$0xf]
      %v3307 = vld [vmem:[%s3 + $0x1b8] sm:$0xf]
      %v3308 = vld [vmem:[%s3 + $0x1bc] sm:$0xf]
      %v3309 = vld [vmem:[%s3 + $0x1c0] sm:$0xf]
      %v3310 = vld [vmem:[%s3 + $0x1c4] sm:$0xf]
      %v3311 = vld [vmem:[%s3 + $0x1c8] sm:$0xf]
      %v3312 = vld [vmem:[%s3 + $0x1cc] sm:$0xf]
      %v3313 = vld [vmem:[%s3 + $0x1d0] sm:$0xf]
      %v3314 = vld [vmem:[%s3 + $0x1d4] sm:$0xf]
      %v3315 = vld [vmem:[%s3 + $0x1d8] sm:$0xf]
      %v3316 = vld [vmem:[%s3 + $0x1dc] sm:$0xf]
      %v3317 = vld [vmem:[%s3 + $0x1e0] sm:$0xf]
      %v3318 = vld [vmem:[%s3 + $0x1e4] sm:$0xf]
      %v3319 = vld [vmem:[%s3 + $0x1e8] sm:$0xf]
      %v3320 = vld [vmem:[%s3 + $0x1ec] sm:$0xf]
      %v3321 = vld [vmem:[%s3 + $0x1f0] sm:$0xf]
      %v3322 = vld [vmem:[%s3 + $0x1f4] sm:$0xf]
      %v3323 = vld [vmem:[%s3 + $0x1f8] sm:$0xf]
      %v3324 = vld [vmem:[%s3 + $0x1fc] sm:$0xf]
      %v3325 = vld [vmem:[%s3 + $0x200] sm:$0xf]
      %v3326 = vld [vmem:[%s3 + $0x204] sm:$0xf]
      %v3327 = vld [vmem:[%s3 + $0x208] sm:$0xf]
      %v3328 = vld [vmem:[%s3 + $0x20c] sm:$0xf]
      %v3329 = vld [vmem:[%s3 + $0x210] sm:$0xf]
      %v3330 = vld [vmem:[%s3 + $0x214] sm:$0xf]
      %v3331 = vld [vmem:[%s3 + $0x218] sm:$0xf]
      %v3332 = vld [vmem:[%s3 + $0x21c] sm:$0xf]
      %v3333 = vld [vmem:[%s3 + $0x220] sm:$0xf]
      %v3334 = vld [vmem:[%s3 + $0x224] sm:$0xf]
      %v3335 = vld [vmem:[%s3 + $0x228] sm:$0xf]
      %v3336 = vld [vmem:[%s3 + $0x22c] sm:$0xf]
      %v3337 = vld [vmem:[%s3 + $0x230] sm:$0xf]
      %v3338 = vld [vmem:[%s3 + $0x234] sm:$0xf]
      %v3339 = vld [vmem:[%s3 + $0x238] sm:$0xf]
      %v3340 = vld [vmem:[%s3 + $0x23c] sm:$0xf]
      %v3341 = vld [vmem:[%s3 + $0x240] sm:$0xf]
      %v3342 = vld [vmem:[%s3 + $0x244] sm:$0xf]
      %v3343 = vld [vmem:[%s3 + $0x248] sm:$0xf]
      %v3344 = vld [vmem:[%s3 + $0x24c] sm:$0xf]
      %v3345 = vld [vmem:[%s3 + $0x250] sm:$0xf]
      %v3346 = vld [vmem:[%s3 + $0x254] sm:$0xf]
      %v3347 = vld [vmem:[%s3 + $0x258] sm:$0xf]
      %v3348 = vld [vmem:[%s3 + $0x25c] sm:$0xf]
      %v3349 = vld [vmem:[%s3 + $0x260] sm:$0xf]
      %v3350 = vld [vmem:[%s3 + $0x264] sm:$0xf]
      %v3351 = vld [vmem:[%s3 + $0x268] sm:$0xf]
      %v3352 = vld [vmem:[%s3 + $0x26c] sm:$0xf]
      %v3353 = vld [vmem:[%s3 + $0x270] sm:$0xf]
      %v3354 = vld [vmem:[%s3 + $0x274] sm:$0xf]
      %v3355 = vld [vmem:[%s3 + $0x278] sm:$0xf]
      %v3356 = vld [vmem:[%s3 + $0x27c] sm:$0xf]
      %v3357 = vld [vmem:[%s3 + $0x280] sm:$0xf]
      %v3358 = vld [vmem:[%s3 + $0x284] sm:$0xf]
      %v3359 = vld [vmem:[%s3 + $0x288] sm:$0xf]
      %v3360 = vld [vmem:[%s3 + $0x28c] sm:$0xf]
      %v3361 = vld [vmem:[%s3 + $0x290] sm:$0xf]
      %v3362 = vld [vmem:[%s3 + $0x294] sm:$0xf]
      %v3363 = vld [vmem:[%s3 + $0x298] sm:$0xf]
      %v3364 = vld [vmem:[%s3 + $0x29c] sm:$0xf]
      %v3365 = vld [vmem:[%s3 + $0x2a0] sm:$0xf]
      %v3366 = vld [vmem:[%s3 + $0x2a4] sm:$0xf]
      %v3367 = vld [vmem:[%s3 + $0x2a8] sm:$0xf]
      %v3368 = vld [vmem:[%s3 + $0x2ac] sm:$0xf]
      %v3369 = vld [vmem:[%s3 + $0x2b0] sm:$0xf]
      %v3370 = vld [vmem:[%s3 + $0x2b4] sm:$0xf]
      %v3371 = vld [vmem:[%s3 + $0x2b8] sm:$0xf]
      %v3372 = vld [vmem:[%s3 + $0x2bc] sm:$0xf]
      %v3373 = vld [vmem:[%s3 + $0x2c0] sm:$0xf]
      %v3374 = vld [vmem:[%s3 + $0x2c4] sm:$0xf]
      %v3375 = vld [vmem:[%s3 + $0x2c8] sm:$0xf]
      %v3376 = vld [vmem:[%s3 + $0x2cc] sm:$0xf]
      %v3377 = vld [vmem:[%s3 + $0x2d0] sm:$0xf]
      %v3378 = vld [vmem:[%s3 + $0x2d4] sm:$0xf]
      %v3379 = vld [vmem:[%s3 + $0x2d8] sm:$0xf]
      %v3380 = vld [vmem:[%s3 + $0x2dc] sm:$0xf]
      %v3381 = vld [vmem:[%s3 + $0x2e0] sm:$0xf]
      %v3382 = vld [vmem:[%s3 + $0x2e4] sm:$0xf]
      %v3383 = vld [vmem:[%s3 + $0x2e8] sm:$0xf]
      %v3384 = vld [vmem:[%s3 + $0x2ec] sm:$0xf]
      %v3385 = vld [vmem:[%s3 + $0x2f0] sm:$0xf]
      %v3386 = vld [vmem:[%s3 + $0x2f4] sm:$0xf]
      %v3387 = vld [vmem:[%s3 + $0x2f8] sm:$0xf]
      %v3388 = vld [vmem:[%s3 + $0x2fc] sm:$0xf]
      %v3389 = vld [vmem:[%s3 + $0x300] sm:$0xf]
      %v3390 = vld [vmem:[%s3 + $0x304] sm:$0xf]
      %v3391 = vld [vmem:[%s3 + $0x308] sm:$0xf]
      %v3392 = vld [vmem:[%s3 + $0x30c] sm:$0xf]
      %v3393 = vld [vmem:[%s3 + $0x310] sm:$0xf]
      %v3394 = vld [vmem:[%s3 + $0x314] sm:$0xf]
      %v3395 = vld [vmem:[%s3 + $0x318] sm:$0xf]
      %v3396 = vld [vmem:[%s3 + $0x31c] sm:$0xf]
      %v3397 = vld [vmem:[%s4] sm:$0x1]
      %v3398 = vpack.c.bf16 %v3166, %v3165
      %v3399 = vpack.c.bf16 %v3168, %v3167
      %v3400 = vpack.c.bf16 %v3170, %v3169
      %v3401 = vpack.c.bf16 %v3172, %v3171
      %v3402 = vpack.c.bf16 %v3174, %v3173
      %v3403 = vpack.c.bf16 %v3176, %v3175
      %v3404 = vpack.c.bf16 %v3178, %v3177
      %v3405 = vpack.c.bf16 %v3180, %v3179
      %v3406 = vpack.c.bf16 %v3182, %v3181
      %v3407 = vpack.c.bf16 %v3184, %v3183
      %v3408 = vpack.c.bf16 %v3186, %v3185
      %v3409 = vpack.c.bf16 %v3188, %v3187
      %v3410 = vpack.c.bf16 %v3190, %v3189
      %v3411 = vpack.c.bf16 %v3192, %v3191
      %v3412 = vpack.c.bf16 %v3194, %v3193
      %v3413 = vpack.c.bf16 %v3196, %v3195
      %v3430 = vrot.slane %v3400, 1
      %v3431 = vrot.slane %v3399, 1
      %v3432 = vrot.slane %v3398, 1
      %v3433 = vrot.slane %v3401, 1
      %v3434 = vrot.slane %v3402, 1
      %v3435 = vrot.slane %v3403, 1
      %v3436 = vrot.slane %v3404, 1
      %v3437 = vrot.slane %v3405, 1
      %v3438 = vrot.slane %v3406, 1
      %v3439 = vrot.slane %v3407, 1
      %v3440 = vrot.slane %v3408, 1
      %v3441 = vrot.slane %v3409, 1
      %v3442 = vrot.slane %v3410, 1
      %v3443 = vrot.slane %v3411, 1
      %v3444 = vrot.slane %v3412, 1
      %v3445 = vrot.slane %v3413, 1
      %v3462 = vrot.slane %v3400, 7
      %v3463 = vrot.slane %v3399, 7
      %v3464 = vrot.slane %v3398, 7
      %v3465 = vrot.slane %v3401, 7
      %v3466 = vrot.slane %v3402, 7
      %v3467 = vrot.slane %v3403, 7
      %v3468 = vrot.slane %v3404, 7
      %v3469 = vrot.slane %v3405, 7
      %v3470 = vrot.slane %v3406, 7
      %v3471 = vrot.slane %v3407, 7
      %v3472 = vrot.slane %v3408, 7
      %v3473 = vrot.slane %v3409, 7
      %v3474 = vrot.slane %v3410, 7
      %v3475 = vrot.slane %v3411, 7
      %v3476 = vrot.slane %v3412, 7
      %v3477 = vrot.slane %v3413, 7
      %v3478 = vrot.slane %v3400, 6
      %v3479 = vrot.slane %v3399, 6
      %v3480 = vrot.slane %v3398, 6
      %v3481 = vrot.slane %v3401, 6
      %v3482 = vrot.slane %v3402, 6
      %v3483 = vrot.slane %v3403, 6
      %v3484 = vrot.slane %v3404, 6
      %v3485 = vrot.slane %v3405, 6
      %v3486 = vrot.slane %v3406, 6
      %v3487 = vrot.slane %v3407, 6
      %v3488 = vrot.slane %v3408, 6
      %v3489 = vrot.slane %v3409, 6
      %v3490 = vrot.slane %v3410, 6
      %v3491 = vrot.slane %v3411, 6
      %v3492 = vrot.slane %v3412, 6
      %v3493 = vrot.slane %v3413, 6
      %v3494 = vrot.slane %v3400, 5
      %v3495 = vrot.slane %v3399, 5
      %v3496 = vrot.slane %v3398, 5
      %v3497 = vrot.slane %v3401, 5
      %v3498 = vrot.slane %v3402, 5
      %v3499 = vrot.slane %v3403, 5
      %v3500 = vrot.slane %v3404, 5
      %v3501 = vrot.slane %v3405, 5
      %v3502 = vrot.slane %v3406, 5
      %v3503 = vrot.slane %v3407, 5
      %v3504 = vrot.slane %v3408, 5
      %v3505 = vrot.slane %v3409, 5
      %v3506 = vrot.slane %v3410, 5
      %v3507 = vrot.slane %v3411, 5
      %v3508 = vrot.slane %v3412, 5
      %v3509 = vrot.slane %v3413, 5
      %v3526 = vsel %vm564, %v3430, %v3400
      %v3527 = vsel %vm564, %v3431, %v3399
      %v3528 = vsel %vm564, %v3432, %v3398
      %v3529 = vsel %vm564, %v3433, %v3401
      %v3530 = vsel %vm564, %v3434, %v3402
      %v3531 = vsel %vm564, %v3435, %v3403
      %v3532 = vsel %vm564, %v3436, %v3404
      %v3533 = vsel %vm564, %v3437, %v3405
      %v3534 = vsel %vm564, %v3438, %v3406
      %v3535 = vsel %vm564, %v3439, %v3407
      %v3536 = vsel %vm564, %v3440, %v3408
      %v3537 = vsel %vm564, %v3441, %v3409
      %v3538 = vsel %vm564, %v3442, %v3410
      %v3539 = vsel %vm564, %v3443, %v3411
      %v3540 = vsel %vm564, %v3444, %v3412
      %v3541 = vsel %vm564, %v3445, %v3413
      %v3544 = vsel %vm581, %v3526, %v3462
      %v3547 = vsel %vm581, %v3527, %v3463
      %v3550 = vsel %vm581, %v3528, %v3464
      %v3553 = vsel %vm581, %v3529, %v3465
      %v3556 = vsel %vm581, %v3530, %v3466
      %v3559 = vsel %vm581, %v3531, %v3467
      %v3562 = vsel %vm581, %v3532, %v3468
      %v3565 = vsel %vm581, %v3533, %v3469
      %v3568 = vsel %vm581, %v3534, %v3470
      %v3571 = vsel %vm581, %v3535, %v3471
      %v3574 = vsel %vm581, %v3536, %v3472
      %v3577 = vsel %vm581, %v3537, %v3473
      %v3580 = vsel %vm581, %v3538, %v3474
      %v3583 = vsel %vm581, %v3539, %v3475
      %v3586 = vsel %vm581, %v3540, %v3476
      %v3589 = vsel %vm581, %v3541, %v3477
      %v3591 = vsel %vm581, %v3462, %v3478
      %v3594 = vsel %vm581, %v3463, %v3479
      %v3597 = vsel %vm581, %v3464, %v3480
      %v3600 = vsel %vm581, %v3465, %v3481
      %v3603 = vsel %vm581, %v3466, %v3482
      %v3606 = vsel %vm581, %v3467, %v3483
      %v3609 = vsel %vm581, %v3468, %v3484
      %v3612 = vsel %vm581, %v3469, %v3485
      %v3615 = vsel %vm581, %v3470, %v3486
      %v3618 = vsel %vm581, %v3471, %v3487
      %v3621 = vsel %vm581, %v3472, %v3488
      %v3624 = vsel %vm581, %v3473, %v3489
      %v3627 = vsel %vm581, %v3474, %v3490
      %v3630 = vsel %vm581, %v3475, %v3491
      %v3633 = vsel %vm581, %v3476, %v3492
      %v3636 = vsel %vm581, %v3477, %v3493
      %v3638 = vsel %vm648, %v3591, %v3494
      %v3639 = vsel %vm648, %v3594, %v3495
      %v3640 = vsel %vm648, %v3597, %v3496
      %v3641 = vsel %vm648, %v3600, %v3497
      %v3642 = vsel %vm648, %v3603, %v3498
      %v3643 = vsel %vm648, %v3606, %v3499
      %v3644 = vsel %vm648, %v3609, %v3500
      %v3645 = vsel %vm648, %v3612, %v3501
      %v3646 = vsel %vm648, %v3615, %v3502
      %v3647 = vsel %vm648, %v3618, %v3503
      %v3648 = vsel %vm648, %v3621, %v3504
      %v3649 = vsel %vm648, %v3624, %v3505
      %v3650 = vsel %vm648, %v3627, %v3506
      %v3651 = vsel %vm648, %v3630, %v3507
      %v3652 = vsel %vm648, %v3633, %v3508
      %v3653 = vsel %vm648, %v3636, %v3509
      %v3654 = vshrl.u32 %v3544, 16
      %v3656 = vshll.u32 %v3544, 16
      %v3658 = vrot.slane %v3656, 1
      %v3659 = vor.u32 %v3654, %v3658
      %v3661 = vshll.u32 %v3638, 16
      %v3663 = vrot.slane %v3661, 1
      %v3664 = vsel %vm865, %v3659, %v3663
      %v3665 = vshrl.u32 %v3547, 16
      %v3667 = vshll.u32 %v3547, 16
      %v3669 = vrot.slane %v3667, 1
      %v3670 = vor.u32 %v3665, %v3669
      %v3672 = vshll.u32 %v3639, 16
      %v3674 = vrot.slane %v3672, 1
      %v3675 = vsel %vm865, %v3670, %v3674
      %v3676 = vshrl.u32 %v3550, 16
      %v3678 = vshll.u32 %v3550, 16
      %v3680 = vrot.slane %v3678, 1
      %v3681 = vor.u32 %v3676, %v3680
      %v3683 = vshll.u32 %v3640, 16
      %v3685 = vrot.slane %v3683, 1
      %v3686 = vsel %vm865, %v3681, %v3685
      %v3687 = vshrl.u32 %v3553, 16
      %v3689 = vshll.u32 %v3553, 16
      %v3691 = vrot.slane %v3689, 1
      %v3692 = vor.u32 %v3687, %v3691
      %v3694 = vshll.u32 %v3641, 16
      %v3696 = vrot.slane %v3694, 1
      %v3697 = vsel %vm865, %v3692, %v3696
      %v3698 = vshrl.u32 %v3556, 16
      %v3700 = vshll.u32 %v3556, 16
      %v3702 = vrot.slane %v3700, 1
      %v3703 = vor.u32 %v3698, %v3702
      %v3705 = vshll.u32 %v3642, 16
      %v3707 = vrot.slane %v3705, 1
      %v3708 = vsel %vm865, %v3703, %v3707
      %v3709 = vshrl.u32 %v3559, 16
      %v3711 = vshll.u32 %v3559, 16
      %v3713 = vrot.slane %v3711, 1
      %v3714 = vor.u32 %v3709, %v3713
      %v3716 = vshll.u32 %v3643, 16
      %v3718 = vrot.slane %v3716, 1
      %v3719 = vsel %vm865, %v3714, %v3718
      %v3720 = vshrl.u32 %v3562, 16
      %v3722 = vshll.u32 %v3562, 16
      %v3724 = vrot.slane %v3722, 1
      %v3725 = vor.u32 %v3720, %v3724
      %v3727 = vshll.u32 %v3644, 16
      %v3729 = vrot.slane %v3727, 1
      %v3730 = vsel %vm865, %v3725, %v3729
      %v3731 = vshrl.u32 %v3565, 16
      %v3733 = vshll.u32 %v3565, 16
      %v3735 = vrot.slane %v3733, 1
      %v3736 = vor.u32 %v3731, %v3735
      %v3738 = vshll.u32 %v3645, 16
      %v3740 = vrot.slane %v3738, 1
      %v3741 = vsel %vm865, %v3736, %v3740
      %v3742 = vshrl.u32 %v3568, 16
      %v3744 = vshll.u32 %v3568, 16
      %v3746 = vrot.slane %v3744, 1
      %v3747 = vor.u32 %v3742, %v3746
      %v3749 = vshll.u32 %v3646, 16
      %v3751 = vrot.slane %v3749, 1
      %v3752 = vsel %vm865, %v3747, %v3751
      %v3753 = vshrl.u32 %v3571, 16
      %v3755 = vshll.u32 %v3571, 16
      %v3757 = vrot.slane %v3755, 1
      %v3758 = vor.u32 %v3753, %v3757
      %v3760 = vshll.u32 %v3647, 16
      %v3762 = vrot.slane %v3760, 1
      %v3763 = vsel %vm865, %v3758, %v3762
      %v3764 = vshrl.u32 %v3574, 16
      %v3766 = vshll.u32 %v3574, 16
      %v3768 = vrot.slane %v3766, 1
      %v3769 = vor.u32 %v3764, %v3768
      %v3771 = vshll.u32 %v3648, 16
      %v3773 = vrot.slane %v3771, 1
      %v3774 = vsel %vm865, %v3769, %v3773
      %v3775 = vshrl.u32 %v3577, 16
      %v3777 = vshll.u32 %v3577, 16
      %v3779 = vrot.slane %v3777, 1
      %v3780 = vor.u32 %v3775, %v3779
      %v3782 = vshll.u32 %v3649, 16
      %v3784 = vrot.slane %v3782, 1
      %v3785 = vsel %vm865, %v3780, %v3784
      %v3786 = vshrl.u32 %v3580, 16
      %v3788 = vshll.u32 %v3580, 16
      %v3790 = vrot.slane %v3788, 1
      %v3791 = vor.u32 %v3786, %v3790
      %v3793 = vshll.u32 %v3650, 16
      %v3795 = vrot.slane %v3793, 1
      %v3796 = vsel %vm865, %v3791, %v3795
      %v3797 = vshrl.u32 %v3583, 16
      %v3799 = vshll.u32 %v3583, 16
      %v3801 = vrot.slane %v3799, 1
      %v3802 = vor.u32 %v3797, %v3801
      %v3804 = vshll.u32 %v3651, 16
      %v3806 = vrot.slane %v3804, 1
      %v3807 = vsel %vm865, %v3802, %v3806
      %v3836 = vrot.slane %v3544, 1
      %v3837 = vrot.slane %v3638, 1
      %v3838 = vsel %vm1022, %v3836, %v3837
      %v3839 = vrot.slane %v3547, 1
      %v3840 = vrot.slane %v3639, 1
      %v3841 = vsel %vm1022, %v3839, %v3840
      %v3842 = vrot.slane %v3550, 1
      %v3843 = vrot.slane %v3640, 1
      %v3844 = vsel %vm1022, %v3842, %v3843
      %v3845 = vrot.slane %v3553, 1
      %v3846 = vrot.slane %v3641, 1
      %v3847 = vsel %vm1022, %v3845, %v3846
      %v3848 = vrot.slane %v3556, 1
      %v3849 = vrot.slane %v3642, 1
      %v3850 = vsel %vm1022, %v3848, %v3849
      %v3851 = vrot.slane %v3559, 1
      %v3852 = vrot.slane %v3643, 1
      %v3853 = vsel %vm1022, %v3851, %v3852
      %v3854 = vrot.slane %v3562, 1
      %v3855 = vrot.slane %v3644, 1
      %v3856 = vsel %vm1022, %v3854, %v3855
      %v3857 = vrot.slane %v3565, 1
      %v3858 = vrot.slane %v3645, 1
      %v3859 = vsel %vm1022, %v3857, %v3858
      %v3860 = vrot.slane %v3568, 1
      %v3861 = vrot.slane %v3646, 1
      %v3862 = vsel %vm1022, %v3860, %v3861
      %v3863 = vrot.slane %v3571, 1
      %v3864 = vrot.slane %v3647, 1
      %v3865 = vsel %vm1022, %v3863, %v3864
      %v3866 = vrot.slane %v3574, 1
      %v3867 = vrot.slane %v3648, 1
      %v3868 = vsel %vm1022, %v3866, %v3867
      %v3869 = vrot.slane %v3577, 1
      %v3870 = vrot.slane %v3649, 1
      %v3871 = vsel %vm1022, %v3869, %v3870
      %v3872 = vrot.slane %v3580, 1
      %v3873 = vrot.slane %v3650, 1
      %v3874 = vsel %vm1022, %v3872, %v3873
      %v3875 = vrot.slane %v3583, 1
      %v3876 = vrot.slane %v3651, 1
      %v3877 = vsel %vm1022, %v3875, %v3876
      %v3878 = vrot.slane %v3654, 1
      %v3879 = vrot.slane %v3656, 2
      %v3880 = vor.u32 %v3878, %v3879
      %v3881 = vshrl.u32 %v3638, 16
      %v3883 = vrot.slane %v3881, 1
      %v3884 = vrot.slane %v3661, 2
      %v3885 = vor.u32 %v3883, %v3884
      %v3886 = vsel %vm1059, %v3880, %v3885
      %v3887 = vrot.slane %v3665, 1
      %v3888 = vrot.slane %v3667, 2
      %v3889 = vor.u32 %v3887, %v3888
      %v3890 = vshrl.u32 %v3639, 16
      %v3892 = vrot.slane %v3890, 1
      %v3893 = vrot.slane %v3672, 2
      %v3894 = vor.u32 %v3892, %v3893
      %v3895 = vsel %vm1059, %v3889, %v3894
      %v3896 = vrot.slane %v3676, 1
      %v3897 = vrot.slane %v3678, 2
      %v3898 = vor.u32 %v3896, %v3897
      %v3899 = vshrl.u32 %v3640, 16
      %v3901 = vrot.slane %v3899, 1
      %v3902 = vrot.slane %v3683, 2
      %v3903 = vor.u32 %v3901, %v3902
      %v3904 = vsel %vm1059, %v3898, %v3903
      %v3905 = vrot.slane %v3687, 1
      %v3906 = vrot.slane %v3689, 2
      %v3907 = vor.u32 %v3905, %v3906
      %v3908 = vshrl.u32 %v3641, 16
      %v3910 = vrot.slane %v3908, 1
      %v3911 = vrot.slane %v3694, 2
      %v3912 = vor.u32 %v3910, %v3911
      %v3913 = vsel %vm1059, %v3907, %v3912
      %v3914 = vrot.slane %v3698, 1
      %v3915 = vrot.slane %v3700, 2
      %v3916 = vor.u32 %v3914, %v3915
      %v3917 = vshrl.u32 %v3642, 16
      %v3919 = vrot.slane %v3917, 1
      %v3920 = vrot.slane %v3705, 2
      %v3921 = vor.u32 %v3919, %v3920
      %v3922 = vsel %vm1059, %v3916, %v3921
      %v3923 = vrot.slane %v3709, 1
      %v3924 = vrot.slane %v3711, 2
      %v3925 = vor.u32 %v3923, %v3924
      %v3926 = vshrl.u32 %v3643, 16
      %v3928 = vrot.slane %v3926, 1
      %v3929 = vrot.slane %v3716, 2
      %v3930 = vor.u32 %v3928, %v3929
      %v3931 = vsel %vm1059, %v3925, %v3930
      %v3932 = vrot.slane %v3720, 1
      %v3933 = vrot.slane %v3722, 2
      %v3934 = vor.u32 %v3932, %v3933
      %v3935 = vshrl.u32 %v3644, 16
      %v3937 = vrot.slane %v3935, 1
      %v3938 = vrot.slane %v3727, 2
      %v3939 = vor.u32 %v3937, %v3938
      %v3940 = vsel %vm1059, %v3934, %v3939
      %v3941 = vrot.slane %v3731, 1
      %v3942 = vrot.slane %v3733, 2
      %v3943 = vor.u32 %v3941, %v3942
      %v3944 = vshrl.u32 %v3645, 16
      %v3946 = vrot.slane %v3944, 1
      %v3947 = vrot.slane %v3738, 2
      %v3948 = vor.u32 %v3946, %v3947
      %v3949 = vsel %vm1059, %v3943, %v3948
      %v3950 = vrot.slane %v3742, 1
      %v3951 = vrot.slane %v3744, 2
      %v3952 = vor.u32 %v3950, %v3951
      %v3953 = vshrl.u32 %v3646, 16
      %v3955 = vrot.slane %v3953, 1
      %v3956 = vrot.slane %v3749, 2
      %v3957 = vor.u32 %v3955, %v3956
      %v3958 = vsel %vm1059, %v3952, %v3957
      %v3959 = vrot.slane %v3753, 1
      %v3960 = vrot.slane %v3755, 2
      %v3961 = vor.u32 %v3959, %v3960
      %v3962 = vshrl.u32 %v3647, 16
      %v3964 = vrot.slane %v3962, 1
      %v3965 = vrot.slane %v3760, 2
      %v3966 = vor.u32 %v3964, %v3965
      %v3967 = vsel %vm1059, %v3961, %v3966
      %v3968 = vrot.slane %v3764, 1
      %v3969 = vrot.slane %v3766, 2
      %v3970 = vor.u32 %v3968, %v3969
      %v3971 = vshrl.u32 %v3648, 16
      %v3973 = vrot.slane %v3971, 1
      %v3974 = vrot.slane %v3771, 2
      %v3975 = vor.u32 %v3973, %v3974
      %v3976 = vsel %vm1059, %v3970, %v3975
      %v3977 = vrot.slane %v3775, 1
      %v3978 = vrot.slane %v3777, 2
      %v3979 = vor.u32 %v3977, %v3978
      %v3980 = vshrl.u32 %v3649, 16
      %v3982 = vrot.slane %v3980, 1
      %v3983 = vrot.slane %v3782, 2
      %v3984 = vor.u32 %v3982, %v3983
      %v3985 = vsel %vm1059, %v3979, %v3984
      %v3986 = vrot.slane %v3786, 1
      %v3987 = vrot.slane %v3788, 2
      %v3988 = vor.u32 %v3986, %v3987
      %v3989 = vshrl.u32 %v3650, 16
      %v3991 = vrot.slane %v3989, 1
      %v3992 = vrot.slane %v3793, 2
      %v3993 = vor.u32 %v3991, %v3992
      %v3994 = vsel %vm1059, %v3988, %v3993
      %v3995 = vrot.slane %v3797, 1
      %v3996 = vrot.slane %v3799, 2
      %v3997 = vor.u32 %v3995, %v3996
      %v3998 = vshrl.u32 %v3651, 16
      %v4000 = vrot.slane %v3998, 1
      %v4001 = vrot.slane %v3804, 2
      %v4002 = vor.u32 %v4000, %v4001
      %v4003 = vsel %vm1059, %v3997, %v4002
      %v4004 = vrot.slane %v3544, 2
      %v4005 = vrot.slane %v3638, 2
      %v4006 = vsel %vm1168, %v4004, %v4005
      %v4007 = vrot.slane %v3547, 2
      %v4008 = vrot.slane %v3639, 2
      %v4009 = vsel %vm1168, %v4007, %v4008
      %v4010 = vrot.slane %v3550, 2
      %v4011 = vrot.slane %v3640, 2
      %v4012 = vsel %vm1168, %v4010, %v4011
      %v4013 = vrot.slane %v3553, 2
      %v4014 = vrot.slane %v3641, 2
      %v4015 = vsel %vm1168, %v4013, %v4014
      %v4016 = vrot.slane %v3556, 2
      %v4017 = vrot.slane %v3642, 2
      %v4018 = vsel %vm1168, %v4016, %v4017
      %v4019 = vrot.slane %v3559, 2
      %v4020 = vrot.slane %v3643, 2
      %v4021 = vsel %vm1168, %v4019, %v4020
      %v4022 = vrot.slane %v3562, 2
      %v4023 = vrot.slane %v3644, 2
      %v4024 = vsel %vm1168, %v4022, %v4023
      %v4025 = vrot.slane %v3565, 2
      %v4026 = vrot.slane %v3645, 2
      %v4027 = vsel %vm1168, %v4025, %v4026
      %v4028 = vrot.slane %v3568, 2
      %v4029 = vrot.slane %v3646, 2
      %v4030 = vsel %vm1168, %v4028, %v4029
      %v4031 = vrot.slane %v3571, 2
      %v4032 = vrot.slane %v3647, 2
      %v4033 = vsel %vm1168, %v4031, %v4032
      %v4034 = vrot.slane %v3574, 2
      %v4035 = vrot.slane %v3648, 2
      %v4036 = vsel %vm1168, %v4034, %v4035
      %v4037 = vrot.slane %v3577, 2
      %v4038 = vrot.slane %v3649, 2
      %v4039 = vsel %vm1168, %v4037, %v4038
      %v4040 = vrot.slane %v3580, 2
      %v4041 = vrot.slane %v3650, 2
      %v4042 = vsel %vm1168, %v4040, %v4041
      %v4043 = vrot.slane %v3583, 2
      %v4044 = vrot.slane %v3651, 2
      %v4045 = vsel %vm1168, %v4043, %v4044
      %4046 = vrot.lane.b32.xlu0 %v3664, 64
      %v4047 = vpop.permute.xlu0 %4046
      %4048 = vrot.lane.b32.xlu0 %v3675, 64
      %v4049 = vpop.permute.xlu0 %4048
      %4050 = vrot.lane.b32.xlu0 %v3686, 64
      %v4051 = vpop.permute.xlu0 %4050
      %4052 = vrot.lane.b32.xlu0 %v3697, 64
      %v4053 = vpop.permute.xlu0 %4052
      %4054 = vrot.lane.b32.xlu0 %v3708, 64
      %v4055 = vpop.permute.xlu0 %4054
      %4056 = vrot.lane.b32.xlu0 %v3719, 64
      %v4057 = vpop.permute.xlu0 %4056
      %4058 = vrot.lane.b32.xlu0 %v3730, 64
      %v4059 = vpop.permute.xlu0 %4058
      %4060 = vrot.lane.b32.xlu0 %v3741, 64
      %v4061 = vpop.permute.xlu0 %4060
      %4062 = vrot.lane.b32.xlu0 %v3752, 64
      %v4063 = vpop.permute.xlu0 %4062
      %4064 = vrot.lane.b32.xlu0 %v3763, 64
      %v4065 = vpop.permute.xlu0 %4064
      %4066 = vrot.lane.b32.xlu0 %v3774, 64
      %v4067 = vpop.permute.xlu0 %4066
      %4068 = vrot.lane.b32.xlu0 %v3785, 64
      %v4069 = vpop.permute.xlu0 %4068
      %4070 = vrot.lane.b32.xlu0 %v3796, 64
      %v4071 = vpop.permute.xlu0 %4070
      %4072 = vrot.lane.b32.xlu0 %v3807, 64
      %v4073 = vpop.permute.xlu0 %4072
      %4074 = vrot.lane.b32.xlu0 %v3886, 64
      %v4075 = vpop.permute.xlu0 %4074
      %4076 = vrot.lane.b32.xlu0 %v3895, 64
      %v4077 = vpop.permute.xlu0 %4076
      %4078 = vrot.lane.b32.xlu0 %v3904, 64
      %v4079 = vpop.permute.xlu0 %4078
      %4080 = vrot.lane.b32.xlu0 %v3913, 64
      %v4081 = vpop.permute.xlu0 %4080
      %4082 = vrot.lane.b32.xlu0 %v3922, 64
      %v4083 = vpop.permute.xlu0 %4082
      %4084 = vrot.lane.b32.xlu0 %v3931, 64
      %v4085 = vpop.permute.xlu0 %4084
      %4086 = vrot.lane.b32.xlu0 %v3940, 64
      %v4087 = vpop.permute.xlu0 %4086
      %4088 = vrot.lane.b32.xlu0 %v3949, 64
      %v4089 = vpop.permute.xlu0 %4088
      %4090 = vrot.lane.b32.xlu0 %v3958, 64
      %v4091 = vpop.permute.xlu0 %4090
      %4092 = vrot.lane.b32.xlu0 %v3967, 64
      %v4093 = vpop.permute.xlu0 %4092
      %4094 = vrot.lane.b32.xlu0 %v3976, 64
      %v4095 = vpop.permute.xlu0 %4094
      %4096 = vrot.lane.b32.xlu0 %v3985, 64
      %v4097 = vpop.permute.xlu0 %4096
      %4098 = vrot.lane.b32.xlu0 %v3994, 64
      %v4099 = vpop.permute.xlu0 %4098
      %4100 = vrot.lane.b32.xlu0 %v4003, 64
      %v4101 = vpop.permute.xlu0 %4100
      %vm4102 = vcmask 523264
      %v4104 = vsel %vm4102, %v3544, %v4047
      %v4107 = vsel %vm4102, %v3547, %v4049
      %v4110 = vsel %vm4102, %v3550, %v4051
      %v4113 = vsel %vm4102, %v3553, %v4053
      %v4116 = vsel %vm4102, %v3556, %v4055
      %v4119 = vsel %vm4102, %v3559, %v4057
      %v4122 = vsel %vm4102, %v3562, %v4059
      %v4125 = vsel %vm4102, %v3565, %v4061
      %v4128 = vsel %vm4102, %v3568, %v4063
      %v4131 = vsel %vm4102, %v3571, %v4065
      %v4134 = vsel %vm4102, %v3574, %v4067
      %v4137 = vsel %vm4102, %v3577, %v4069
      %v4140 = vsel %vm4102, %v3580, %v4071
      %v4143 = vsel %vm4102, %v3583, %v4073
      %v4147 = vsel %vm4102, %v3838, %v4075
      %v4151 = vsel %vm4102, %v3841, %v4077
      %v4155 = vsel %vm4102, %v3844, %v4079
      %v4159 = vsel %vm4102, %v3847, %v4081
      %v4163 = vsel %vm4102, %v3850, %v4083
      %v4167 = vsel %vm4102, %v3853, %v4085
      %v4171 = vsel %vm4102, %v3856, %v4087
      %v4175 = vsel %vm4102, %v3859, %v4089
      %v4179 = vsel %vm4102, %v3862, %v4091
      %v4183 = vsel %vm4102, %v3865, %v4093
      %v4187 = vsel %vm4102, %v3868, %v4095
      %v4191 = vsel %vm4102, %v3871, %v4097
      %v4195 = vsel %vm4102, %v3874, %v4099
      %v4199 = vsel %vm4102, %v3877, %v4101
      %v4201 = vshrl.u32 %v3586, 16
      %v4203 = vshll.u32 %v3586, 16
      %v4205 = vrot.slane %v4203, 1
      %v4206 = vor.u32 %v4201, %v4205
      %v4208 = vshll.u32 %v3652, 16
      %v4210 = vrot.slane %v4208, 1
      %v4211 = vsel %vm865, %v4206, %v4210
      %v4214 = vrot.slane %v3586, 1
      %v4215 = vrot.slane %v3652, 1
      %v4216 = vsel %vm1022, %v4214, %v4215
      %v4217 = vrot.slane %v4201, 1
      %v4218 = vrot.slane %v4203, 2
      %v4219 = vor.u32 %v4217, %v4218
      %v4220 = vshrl.u32 %v3652, 16
      %v4222 = vrot.slane %v4220, 1
      %v4223 = vrot.slane %v4208, 2
      %v4224 = vor.u32 %v4222, %v4223
      %v4225 = vsel %vm1059, %v4219, %v4224
      %v4226 = vrot.slane %v3586, 2
      %v4227 = vrot.slane %v3652, 2
      %v4228 = vsel %vm1168, %v4226, %v4227
      %4229 = vrot.lane.b32.xlu0 %v4211, 64
      %v4230 = vpop.permute.xlu0 %4229
      %4231 = vrot.lane.b32.xlu0 %v4225, 64
      %v4232 = vpop.permute.xlu0 %4231
      %v4234 = vsel %vm4102, %v3586, %v4230
      %v4237 = vsel %vm4102, %v4216, %v4232
      %v4238 = vshrl.u32 %v3589, 16
      %v4240 = vshll.u32 %v3589, 16
      %v4242 = vrot.slane %v4240, 1
      %v4243 = vor.u32 %v4238, %v4242
      %v4245 = vshll.u32 %v3653, 16
      %v4247 = vrot.slane %v4245, 1
      %v4248 = vsel %vm865, %v4243, %v4247
      %v4251 = vrot.slane %v3589, 1
      %v4252 = vrot.slane %v3653, 1
      %v4253 = vsel %vm1022, %v4251, %v4252
      %v4254 = vrot.slane %v4238, 1
      %v4255 = vrot.slane %v4240, 2
      %v4256 = vor.u32 %v4254, %v4255
      %v4257 = vshrl.u32 %v3653, 16
      %v4259 = vrot.slane %v4257, 1
      %v4260 = vrot.slane %v4245, 2
      %v4261 = vor.u32 %v4259, %v4260
      %v4262 = vsel %vm1059, %v4256, %v4261
      %v4263 = vrot.slane %v3589, 2
      %v4264 = vrot.slane %v3653, 2
      %v4265 = vsel %vm1168, %v4263, %v4264
      %4266 = vrot.lane.b32.xlu0 %v4248, 64
      %v4267 = vpop.permute.xlu0 %4266
      %4268 = vrot.lane.b32.xlu0 %v4262, 64
      %v4269 = vpop.permute.xlu0 %4268
      %v4272 = vsel %vm4102, %v3589, %v4267
      %v4277 = vsel %vm4102, %v4253, %v4269
      %4309 = vrot.lane.b32.xlu0 %v4107, 64
      %v4310 = vpop.permute.xlu0 %4309
      %4311 = vrot.lane.b32.xlu0 %v4151, 64
      %v4312 = vpop.permute.xlu0 %4311
      %4313 = vrot.lane.b32.xlu0 %v4009, 64
      %v4314 = vpop.permute.xlu0 %4313
      %4315 = vrot.lane.b32.xlu0 %v4110, 64
      %v4316 = vpop.permute.xlu0 %4315
      %4317 = vrot.lane.b32.xlu0 %v4155, 64
      %v4318 = vpop.permute.xlu0 %4317
      %4319 = vrot.lane.b32.xlu0 %v4012, 64
      %v4320 = vpop.permute.xlu0 %4319
      %4321 = vrot.lane.b32.xlu0 %v4104, 64
      %v4322 = vpop.permute.xlu0 %4321
      %4323 = vrot.lane.b32.xlu0 %v4147, 64
      %v4324 = vpop.permute.xlu0 %4323
      %4325 = vrot.lane.b32.xlu0 %v4006, 64
      %v4326 = vpop.permute.xlu0 %4325
      %4327 = vrot.lane.b32.xlu0 %v4113, 64
      %v4328 = vpop.permute.xlu0 %4327
      %4329 = vrot.lane.b32.xlu0 %v4159, 64
      %v4330 = vpop.permute.xlu0 %4329
      %4331 = vrot.lane.b32.xlu0 %v4015, 64
      %v4332 = vpop.permute.xlu0 %4331
      %4333 = vrot.lane.b32.xlu0 %v4116, 64
      %v4334 = vpop.permute.xlu0 %4333
      %4335 = vrot.lane.b32.xlu0 %v4163, 64
      %v4336 = vpop.permute.xlu0 %4335
      %4337 = vrot.lane.b32.xlu0 %v4018, 64
      %v4338 = vpop.permute.xlu0 %4337
      %4339 = vrot.lane.b32.xlu0 %v4119, 64
      %v4340 = vpop.permute.xlu0 %4339
      %4341 = vrot.lane.b32.xlu0 %v4167, 64
      %v4342 = vpop.permute.xlu0 %4341
      %4343 = vrot.lane.b32.xlu0 %v4021, 64
      %v4344 = vpop.permute.xlu0 %4343
      %4345 = vrot.lane.b32.xlu0 %v4122, 64
      %v4346 = vpop.permute.xlu0 %4345
      %4347 = vrot.lane.b32.xlu0 %v4171, 64
      %v4348 = vpop.permute.xlu0 %4347
      %4349 = vrot.lane.b32.xlu0 %v4024, 64
      %v4350 = vpop.permute.xlu0 %4349
      %4351 = vrot.lane.b32.xlu0 %v4125, 64
      %v4352 = vpop.permute.xlu0 %4351
      %4353 = vrot.lane.b32.xlu0 %v4175, 64
      %v4354 = vpop.permute.xlu0 %4353
      %4355 = vrot.lane.b32.xlu0 %v4027, 64
      %v4356 = vpop.permute.xlu0 %4355
      %4357 = vrot.lane.b32.xlu0 %v4128, 64
      %v4358 = vpop.permute.xlu0 %4357
      %4359 = vrot.lane.b32.xlu0 %v4179, 64
      %v4360 = vpop.permute.xlu0 %4359
      %4361 = vrot.lane.b32.xlu0 %v4030, 64
      %v4362 = vpop.permute.xlu0 %4361
      %4363 = vrot.lane.b32.xlu0 %v4131, 64
      %v4364 = vpop.permute.xlu0 %4363
      %4365 = vrot.lane.b32.xlu0 %v4183, 64
      %v4366 = vpop.permute.xlu0 %4365
      %4367 = vrot.lane.b32.xlu0 %v4033, 64
      %v4368 = vpop.permute.xlu0 %4367
      %4369 = vrot.lane.b32.xlu0 %v4134, 64
      %v4370 = vpop.permute.xlu0 %4369
      %4371 = vrot.lane.b32.xlu0 %v4187, 64
      %v4372 = vpop.permute.xlu0 %4371
      %4373 = vrot.lane.b32.xlu0 %v4036, 64
      %v4374 = vpop.permute.xlu0 %4373
      %4375 = vrot.lane.b32.xlu0 %v4137, 64
      %v4376 = vpop.permute.xlu0 %4375
      %4377 = vrot.lane.b32.xlu0 %v4191, 64
      %v4378 = vpop.permute.xlu0 %4377
      %4379 = vrot.lane.b32.xlu0 %v4039, 64
      %v4380 = vpop.permute.xlu0 %4379
      %4381 = vrot.lane.b32.xlu0 %v4140, 64
      %v4382 = vpop.permute.xlu0 %4381
      %4383 = vrot.lane.b32.xlu0 %v4195, 64
      %v4384 = vpop.permute.xlu0 %4383
      %4385 = vrot.lane.b32.xlu0 %v4042, 64
      %v4386 = vpop.permute.xlu0 %4385
      %4387 = vrot.lane.b32.xlu0 %v4143, 64
      %v4388 = vpop.permute.xlu0 %4387
      %4389 = vrot.lane.b32.xlu0 %v4199, 64
      %v4390 = vpop.permute.xlu0 %4389
      %4391 = vrot.lane.b32.xlu0 %v4045, 64
      %v4392 = vpop.permute.xlu0 %4391
      %4393 = vrot.lane.b32.xlu0 %v4234, 64
      %v4394 = vpop.permute.xlu0 %4393
      %4395 = vrot.lane.b32.xlu0 %v4237, 64
      %v4396 = vpop.permute.xlu0 %4395
      %4397 = vrot.lane.b32.xlu0 %v4228, 64
      %v4398 = vpop.permute.xlu0 %4397
      %vm4399 = vcmask 523264
      %v4400 = vsel %vm4399, %v4310, %v4312
      %v4401 = vsel %vm4399, %v4312, %v4314
      %v4402 = vsel %vm4399, %v4316, %v4318
      %v4403 = vsel %vm4399, %v4318, %v4320
      %v4404 = vsel %vm4399, %v4322, %v4324
      %v4405 = vsel %vm4399, %v4324, %v4326
      %v4406 = vsel %vm4399, %v4328, %v4330
      %v4407 = vsel %vm4399, %v4330, %v4332
      %v4408 = vsel %vm4399, %v4334, %v4336
      %v4409 = vsel %vm4399, %v4336, %v4338
      %v4410 = vsel %vm4399, %v4340, %v4342
      %v4411 = vsel %vm4399, %v4342, %v4344
      %v4412 = vsel %vm4399, %v4346, %v4348
      %v4413 = vsel %vm4399, %v4348, %v4350
      %v4414 = vsel %vm4399, %v4352, %v4354
      %v4415 = vsel %vm4399, %v4354, %v4356
      %v4416 = vsel %vm4399, %v4358, %v4360
      %v4417 = vsel %vm4399, %v4360, %v4362
      %v4418 = vsel %vm4399, %v4364, %v4366
      %v4419 = vsel %vm4399, %v4366, %v4368
      %v4420 = vsel %vm4399, %v4370, %v4372
      %v4421 = vsel %vm4399, %v4372, %v4374
      %v4422 = vsel %vm4399, %v4376, %v4378
      %v4423 = vsel %vm4399, %v4378, %v4380
      %v4424 = vsel %vm4399, %v4382, %v4384
      %v4425 = vsel %vm4399, %v4384, %v4386
      %v4426 = vsel %vm4399, %v4388, %v4390
      %v4427 = vsel %vm4399, %v4390, %v4392
      %v4428 = vsel %vm4399, %v4394, %v4396
      %v4429 = vsel %vm4399, %v4396, %v4398
      %4462 = vrot.lane.b32.xlu0 %v4272, 64
      %v4463 = vpop.permute.xlu0 %4462
      %4464 = vrot.lane.b32.xlu0 %v4277, 64
      %v4465 = vpop.permute.xlu0 %4464
      %4466 = vrot.lane.b32.xlu0 %v4265, 64
      %v4467 = vpop.permute.xlu0 %4466
      %v4468 = vsel %vm4399, %v4463, %v4465
      %v4469 = vsel %vm4399, %v4465, %v4467
      %v4474 = vsel %vm4102, %v4006, %v4310
      %v4478 = vsel %vm4102, %v4009, %v4316
      %v4481 = vsel %vm4102, %v4012, %v4310
      %v4484 = vsel %vm4102, %v4009, %v4322
      %v4487 = vsel %vm4102, %v4006, %v4328
      %v4491 = vsel %vm4102, %v4015, %v4334
      %v4495 = vsel %vm4102, %v4018, %v4340
      %v4499 = vsel %vm4102, %v4021, %v4346
      %v4503 = vsel %vm4102, %v4024, %v4352
      %v4507 = vsel %vm4102, %v4027, %v4358
      %v4511 = vsel %vm4102, %v4030, %v4364
      %v4515 = vsel %vm4102, %v4033, %v4370
      %v4519 = vsel %vm4102, %v4036, %v4376
      %v4523 = vsel %vm4102, %v4039, %v4382
      %v4527 = vsel %vm4102, %v4042, %v4388
      %v4531 = vsel %vm4102, %v4045, %v4394
      %v4535 = vsel %vm4102, %v4228, %v4463
      %v4538 = vsel %vm4102, %v4265, %v4394
      %v4541 = vlaneseq
      %v4542 = vshrl.u32 %v4541, 7
      %v4543 = vsub.s32 0, %v4542
      %v4544 = vrot.slane %v3397, %v4543
      %v4746 = vunpack.c.l.b16 %v3197
      %v4747 = vunpack.c.l.b16 %v3198
      %v4748 = vunpack.c.l.b16 %v3199
      %v4749 = vunpack.c.l.b16 %v3200
      %v4750 = vunpack.c.l.b16 %v3201
      %v4751 = vunpack.c.l.b16 %v3202
      %v4752 = vunpack.c.l.b16 %v3203
      %v4753 = vunpack.c.l.b16 %v3204
      %v4754 = vunpack.c.l.b16 %v3205
      %v4755 = vunpack.c.l.b16 %v3206
      %v4756 = vunpack.c.l.b16 %v3207
      %v4757 = vunpack.c.l.b16 %v3208
      %v4758 = vunpack.c.l.b16 %v3209
      %v4759 = vunpack.c.l.b16 %v3210
      %v4760 = vunpack.c.l.b16 %v3211
      %v4761 = vunpack.c.l.b16 %v3212
      %v4762 = vunpack.c.l.b16 %v3213
      %v4763 = vunpack.c.l.b16 %v3214
      %v4764 = vunpack.c.l.b16 %v3215
      %v4765 = vunpack.c.l.b16 %v3216
      %v4766 = vunpack.c.l.b16 %v3217
      %v4767 = vunpack.c.l.b16 %v3218
      %v4768 = vunpack.c.l.b16 %v3219
      %v4769 = vunpack.c.l.b16 %v3220
      %v4770 = vunpack.c.l.b16 %v3221
      %v4771 = vunpack.c.l.b16 %v3222
      %v4772 = vunpack.c.l.b16 %v3223
      %v4773 = vunpack.c.l.b16 %v3224
      %v4774 = vunpack.c.l.b16 %v3225
      %v4775 = vunpack.c.l.b16 %v3226
      %v4776 = vunpack.c.l.b16 %v3227
      %v4777 = vunpack.c.l.b16 %v3228
      %v4778 = vunpack.c.l.b16 %v3229
      %v4779 = vunpack.c.l.b16 %v3230
      %v4780 = vunpack.c.l.b16 %v3231
      %v4781 = vunpack.c.l.b16 %v3232
      %v4782 = vunpack.c.l.b16 %v3233
      %v4783 = vunpack.c.l.b16 %v3234
      %v4784 = vunpack.c.l.b16 %v3235
      %v4785 = vunpack.c.l.b16 %v3236
      %v4786 = vunpack.c.l.b16 %v3237
      %v4787 = vunpack.c.l.b16 %v3238
      %v4788 = vunpack.c.l.b16 %v3239
      %v4789 = vunpack.c.l.b16 %v3240
      %v4790 = vunpack.c.l.b16 %v3241
      %v4791 = vunpack.c.l.b16 %v3242
      %v4792 = vunpack.c.l.b16 %v3243
      %v4793 = vunpack.c.l.b16 %v3244
      %v4794 = vunpack.c.l.b16 %v3245
      %v4795 = vunpack.c.l.b16 %v3246
      %v4796 = vunpack.c.l.b16 %v3247
      %v4797 = vunpack.c.l.b16 %v3248
      %v4798 = vunpack.c.l.b16 %v3249
      %v4799 = vunpack.c.l.b16 %v3250
      %v4800 = vunpack.c.l.b16 %v3251
      %v4801 = vunpack.c.l.b16 %v3252
      %v4802 = vunpack.c.l.b16 %v3253
      %v4803 = vunpack.c.l.b16 %v3254
      %v4804 = vunpack.c.l.b16 %v3255
      %v4805 = vunpack.c.l.b16 %v3256
      %v4806 = vunpack.c.l.b16 %v3257
      %v4807 = vunpack.c.l.b16 %v3258
      %v4808 = vunpack.c.l.b16 %v3259
      %v4809 = vunpack.c.l.b16 %v3260
      %v4810 = vunpack.c.l.b16 %v3261
      %v4811 = vunpack.c.l.b16 %v3262
      %v4812 = vunpack.c.l.b16 %v3263
      %v4813 = vunpack.c.l.b16 %v3264
      %v4814 = vunpack.c.l.b16 %v3265
      %v4815 = vunpack.c.l.b16 %v3266
      %v4816 = vunpack.c.l.b16 %v3267
      %v4817 = vunpack.c.l.b16 %v3268
      %v4818 = vunpack.c.l.b16 %v3269
      %v4819 = vunpack.c.l.b16 %v3270
      %v4820 = vunpack.c.l.b16 %v3271
      %v4821 = vunpack.c.l.b16 %v3272
      %v4822 = vunpack.c.l.b16 %v3273
      %v4823 = vunpack.c.l.b16 %v3274
      %v4824 = vunpack.c.l.b16 %v3275
      %v4825 = vunpack.c.l.b16 %v3276
      %v4826 = vunpack.c.l.b16 %v3277
      %v4827 = vunpack.c.l.b16 %v3278
      %v4828 = vunpack.c.l.b16 %v3279
      %v4829 = vunpack.c.l.b16 %v3280
      %v4830 = vunpack.c.l.b16 %v3281
      %v4831 = vunpack.c.l.b16 %v3282
      %v4832 = vunpack.c.l.b16 %v3283
      %v4833 = vunpack.c.l.b16 %v3284
      %v4834 = vunpack.c.l.b16 %v3285
      %v4835 = vunpack.c.l.b16 %v3286
      %v4836 = vunpack.c.l.b16 %v3287
      %v4837 = vunpack.c.l.b16 %v3288
      %v4838 = vunpack.c.l.b16 %v3289
      %v4839 = vunpack.c.l.b16 %v3290
      %v4840 = vunpack.c.l.b16 %v3291
      %v4841 = vunpack.c.l.b16 %v3292
      %v4842 = vunpack.c.l.b16 %v3293
      %v4843 = vunpack.c.l.b16 %v3294
      %v4844 = vunpack.c.l.b16 %v3295
      %v4845 = vunpack.c.l.b16 %v3296
      %v4846 = vunpack.c.l.b16 %v3297
      %v4847 = vunpack.c.l.b16 %v3298
      %v4848 = vunpack.c.l.b16 %v3299
      %v4849 = vunpack.c.l.b16 %v3300
      %v4850 = vunpack.c.l.b16 %v3301
      %v4851 = vunpack.c.l.b16 %v3302
      %v4852 = vunpack.c.l.b16 %v3303
      %v4853 = vunpack.c.l.b16 %v3304
      %v4854 = vunpack.c.l.b16 %v3305
      %v4855 = vunpack.c.l.b16 %v3306
      %v4856 = vunpack.c.l.b16 %v3307
      %v4857 = vunpack.c.l.b16 %v3308
      %v4858 = vunpack.c.l.b16 %v3309
      %v4859 = vunpack.c.l.b16 %v3310
      %v4860 = vunpack.c.l.b16 %v3311
      %v4861 = vunpack.c.l.b16 %v3312
      %v4862 = vunpack.c.l.b16 %v3313
      %v4863 = vunpack.c.l.b16 %v3314
      %v4864 = vunpack.c.l.b16 %v3315
      %v4865 = vunpack.c.l.b16 %v3316
      %v4866 = vunpack.c.l.b16 %v3317
      %v4867 = vunpack.c.l.b16 %v3318
      %v4868 = vunpack.c.l.b16 %v3319
      %v4869 = vunpack.c.l.b16 %v3320
      %v4870 = vunpack.c.l.b16 %v3321
      %v4871 = vunpack.c.l.b16 %v3322
      %v4872 = vunpack.c.l.b16 %v3323
      %v4873 = vunpack.c.l.b16 %v3324
      %v4874 = vunpack.c.l.b16 %v3325
      %v4875 = vunpack.c.l.b16 %v3326
      %v4876 = vunpack.c.l.b16 %v3327
      %v4877 = vunpack.c.l.b16 %v3328
      %v4878 = vunpack.c.l.b16 %v3329
      %v4879 = vunpack.c.l.b16 %v3330
      %v4880 = vunpack.c.l.b16 %v3331
      %v4881 = vunpack.c.l.b16 %v3332
      %v4882 = vunpack.c.l.b16 %v3333
      %v4883 = vunpack.c.l.b16 %v3334
      %v4884 = vunpack.c.l.b16 %v3335
      %v4885 = vunpack.c.l.b16 %v3336
      %v4886 = vunpack.c.l.b16 %v3337
      %v4887 = vunpack.c.l.b16 %v3338
      %v4888 = vunpack.c.l.b16 %v3339
      %v4889 = vunpack.c.l.b16 %v3340
      %v4890 = vunpack.c.l.b16 %v3341
      %v4891 = vunpack.c.l.b16 %v3342
      %v4892 = vunpack.c.l.b16 %v3343
      %v4893 = vunpack.c.l.b16 %v3344
      %v4894 = vunpack.c.l.b16 %v3345
      %v4895 = vunpack.c.l.b16 %v3346
      %v4896 = vunpack.c.l.b16 %v3347
      %v4897 = vunpack.c.l.b16 %v3348
      %v4898 = vunpack.c.l.b16 %v3349
      %v4899 = vunpack.c.l.b16 %v3350
      %v4900 = vunpack.c.l.b16 %v3351
      %v4901 = vunpack.c.l.b16 %v3352
      %v4902 = vunpack.c.l.b16 %v3353
      %v4903 = vunpack.c.l.b16 %v3354
      %v4904 = vunpack.c.l.b16 %v3355
      %v4905 = vunpack.c.l.b16 %v3356
      %v4906 = vunpack.c.l.b16 %v3357
      %v4907 = vunpack.c.l.b16 %v3358
      %v4908 = vunpack.c.l.b16 %v3359
      %v4909 = vunpack.c.l.b16 %v3360
      %v4910 = vunpack.c.l.b16 %v3361
      %v4911 = vunpack.c.l.b16 %v3362
      %v4912 = vunpack.c.l.b16 %v3363
      %v4913 = vunpack.c.l.b16 %v3364
      %v4914 = vunpack.c.l.b16 %v3365
      %v4915 = vunpack.c.l.b16 %v3366
      %v4916 = vunpack.c.l.b16 %v3367
      %v4917 = vunpack.c.l.b16 %v3368
      %v4918 = vunpack.c.l.b16 %v3369
      %v4919 = vunpack.c.l.b16 %v3370
      %v4920 = vunpack.c.l.b16 %v3371
      %v4921 = vunpack.c.l.b16 %v3372
      %v4922 = vunpack.c.l.b16 %v3373
      %v4923 = vunpack.c.l.b16 %v3374
      %v4924 = vunpack.c.l.b16 %v3375
      %v4925 = vunpack.c.l.b16 %v3376
      %v4926 = vunpack.c.l.b16 %v3377
      %v4927 = vunpack.c.l.b16 %v3378
      %v4928 = vunpack.c.l.b16 %v3379
      %v4929 = vunpack.c.l.b16 %v3380
      %v4930 = vunpack.c.l.b16 %v3381
      %v4931 = vunpack.c.l.b16 %v3382
      %v4932 = vunpack.c.l.b16 %v3383
      %v4933 = vunpack.c.l.b16 %v3384
      %v4934 = vunpack.c.l.b16 %v3385
      %v4935 = vunpack.c.l.b16 %v3386
      %v4936 = vunpack.c.l.b16 %v3387
      %v4937 = vunpack.c.l.b16 %v3388
      %v4938 = vunpack.c.l.b16 %v3389
      %v4939 = vunpack.c.l.b16 %v3390
      %v4940 = vunpack.c.l.b16 %v3391
      %v4941 = vunpack.c.l.b16 %v3392
      %v4942 = vunpack.c.l.b16 %v3393
      %v4943 = vunpack.c.l.b16 %v3394
      %v4944 = vunpack.c.l.b16 %v3395
      %v4945 = vunpack.c.l.b16 %v3396
      %v4946 = vpack.c.b16 %v4747, %v4746
      %v4947 = vpack.c.b16 %v4749, %v4748
      %v4948 = vpack.c.b16 %v4751, %v4750
      %v4949 = vpack.c.b16 %v4753, %v4752
      %v4950 = vpack.c.b16 %v4755, %v4754
      %v4951 = vpack.c.b16 %v4757, %v4756
      %v4952 = vpack.c.b16 %v4759, %v4758
      %v4953 = vpack.c.b16 %v4761, %v4760
      %v4954 = vpack.c.b16 %v4763, %v4762
      %v4955 = vpack.c.b16 %v4765, %v4764
      %v4956 = vpack.c.b16 %v4767, %v4766
      %v4957 = vpack.c.b16 %v4769, %v4768
      %v4958 = vpack.c.b16 %v4771, %v4770
      %v4959 = vpack.c.b16 %v4773, %v4772
      %v4960 = vpack.c.b16 %v4775, %v4774
      %v4961 = vpack.c.b16 %v4777, %v4776
      %v4962 = vpack.c.b16 %v4779, %v4778
      %v4963 = vpack.c.b16 %v4781, %v4780
      %v4964 = vpack.c.b16 %v4783, %v4782
      %v4965 = vpack.c.b16 %v4785, %v4784
      %v4966 = vpack.c.b16 %v4787, %v4786
      %v4967 = vpack.c.b16 %v4789, %v4788
      %v4968 = vpack.c.b16 %v4791, %v4790
      %v4969 = vpack.c.b16 %v4793, %v4792
      %v4970 = vpack.c.b16 %v4795, %v4794
      %v4971 = vpack.c.b16 %v4797, %v4796
      %v4972 = vpack.c.b16 %v4799, %v4798
      %v4973 = vpack.c.b16 %v4801, %v4800
      %v4974 = vpack.c.b16 %v4803, %v4802
      %v4975 = vpack.c.b16 %v4805, %v4804
      %v4976 = vpack.c.b16 %v4807, %v4806
      %v4977 = vpack.c.b16 %v4809, %v4808
      %v4978 = vpack.c.b16 %v4811, %v4810
      %v4979 = vpack.c.b16 %v4813, %v4812
      %v4980 = vpack.c.b16 %v4815, %v4814
      %v4981 = vpack.c.b16 %v4817, %v4816
      %v4982 = vpack.c.b16 %v4819, %v4818
      %v4983 = vpack.c.b16 %v4821, %v4820
      %v4984 = vpack.c.b16 %v4823, %v4822
      %v4985 = vpack.c.b16 %v4825, %v4824
      %v4986 = vpack.c.b16 %v4827, %v4826
      %v4987 = vpack.c.b16 %v4829, %v4828
      %v4988 = vpack.c.b16 %v4831, %v4830
      %v4989 = vpack.c.b16 %v4833, %v4832
      %v4990 = vpack.c.b16 %v4835, %v4834
      %v4991 = vpack.c.b16 %v4837, %v4836
      %v4992 = vpack.c.b16 %v4839, %v4838
      %v4993 = vpack.c.b16 %v4841, %v4840
      %v4994 = vpack.c.b16 %v4843, %v4842
      %v4995 = vpack.c.b16 %v4845, %v4844
      %v4996 = vpack.c.b16 %v4847, %v4846
      %v4997 = vpack.c.b16 %v4849, %v4848
      %v4998 = vpack.c.b16 %v4851, %v4850
      %v4999 = vpack.c.b16 %v4853, %v4852
      %v5000 = vpack.c.b16 %v4855, %v4854
      %v5001 = vpack.c.b16 %v4857, %v4856
      %v5002 = vpack.c.b16 %v4859, %v4858
      %v5003 = vpack.c.b16 %v4861, %v4860
      %v5004 = vpack.c.b16 %v4863, %v4862
      %v5005 = vpack.c.b16 %v4865, %v4864
      %v5006 = vpack.c.b16 %v4867, %v4866
      %v5007 = vpack.c.b16 %v4869, %v4868
      %v5008 = vpack.c.b16 %v4871, %v4870
      %v5009 = vpack.c.b16 %v4873, %v4872
      %v5010 = vpack.c.b16 %v4875, %v4874
      %v5011 = vpack.c.b16 %v4877, %v4876
      %v5012 = vpack.c.b16 %v4879, %v4878
      %v5013 = vpack.c.b16 %v4881, %v4880
      %v5014 = vpack.c.b16 %v4883, %v4882
      %v5015 = vpack.c.b16 %v4885, %v4884
      %v5016 = vpack.c.b16 %v4887, %v4886
      %v5017 = vpack.c.b16 %v4889, %v4888
      %v5018 = vpack.c.b16 %v4891, %v4890
      %v5019 = vpack.c.b16 %v4893, %v4892
      %v5020 = vpack.c.b16 %v4895, %v4894
      %v5021 = vpack.c.b16 %v4897, %v4896
      %v5022 = vpack.c.b16 %v4899, %v4898
      %v5023 = vpack.c.b16 %v4901, %v4900
      %v5024 = vpack.c.b16 %v4903, %v4902
      %v5025 = vpack.c.b16 %v4905, %v4904
      %v5026 = vpack.c.b16 %v4907, %v4906
      %v5027 = vpack.c.b16 %v4909, %v4908
      %v5028 = vpack.c.b16 %v4911, %v4910
      %v5029 = vpack.c.b16 %v4913, %v4912
      %v5030 = vpack.c.b16 %v4915, %v4914
      %v5031 = vpack.c.b16 %v4917, %v4916
      %v5032 = vpack.c.b16 %v4919, %v4918
      %v5033 = vpack.c.b16 %v4921, %v4920
      %v5034 = vpack.c.b16 %v4923, %v4922
      %v5035 = vpack.c.b16 %v4925, %v4924
      %v5036 = vpack.c.b16 %v4927, %v4926
      %v5037 = vpack.c.b16 %v4929, %v4928
      %v5038 = vpack.c.b16 %v4931, %v4930
      %v5039 = vpack.c.b16 %v4933, %v4932
      %v5040 = vpack.c.b16 %v4935, %v4934
      %v5041 = vpack.c.b16 %v4937, %v4936
      %v5042 = vpack.c.b16 %v4939, %v4938
      %v5043 = vpack.c.b16 %v4941, %v4940
      %v5044 = vpack.c.b16 %v4943, %v4942
      %v5045 = vpack.c.b16 %v4945, %v4944
      %v5146 = vsel %vm4102, %v4006, 0
      %v5148 = vsel %vm4102, %v4015, 0
      %v5150 = vsel %vm4102, %v4018, 0
      %v5152 = vsel %vm4102, %v4021, 0
      %v5154 = vsel %vm4102, %v4024, 0
      %v5156 = vsel %vm4102, %v4027, 0
      %v5158 = vsel %vm4102, %v4030, 0
      %v5160 = vsel %vm4102, %v4033, 0
      %v5162 = vsel %vm4102, %v4036, 0
      %v5164 = vsel %vm4102, %v4039, 0
      %v5166 = vsel %vm4102, %v4042, 0
      %v5168 = vsel %vm4102, %v4045, 0
      %v5170 = vsel %vm4102, %v4228, 0
      %v5172 = vsel %vm4102, %v4265, 0
      %5174 = vmatprep.subr.bf16.mxu0 0
      %5175 = vmatpush1.bf16.msra.mxu0 %v4946
      %5176 = vmatprep.subr.bf16.mxu0 0
      %5177 = vmatpush1.bf16.msra.mxu0 %v4947
      %5178 = vmatprep.subr.bf16.mxu0 0
      %5179 = vmatpush1.bf16.msra.mxu0 %v4948
      %5180 = vmatprep.subr.bf16.mxu0 0
      %5181 = vmatpush1.bf16.msra.mxu0 %v4949
      %5182 = vmatprep.subr.bf16.mxu0 0
      %5183 = vmatpush1.bf16.msra.mxu0 %v4950
      %5184 = vmatprep.subr.bf16.mxu0 0
      %5185 = vmatpush1.bf16.msra.mxu0 %v4951
      %5186 = vmatprep.subr.bf16.mxu0 0
      %5187 = vmatpush1.bf16.msra.mxu0 %v4952
      %5188 = vmatprep.subr.bf16.mxu0 0
      %5189 = vmatpush1.bf16.msra.mxu0 %v4953
      %5190 = vmatprep.subr.bf16.mxu0 0
      %5191 = vmatpush1.bf16.msra.mxu0 %v4954
      %5192 = vmatprep.subr.bf16.mxu0 0
      %5193 = vmatpush1.bf16.msra.mxu0 %v4955
      %5194 = vmatprep.subr.bf16.mxu0 0
      %5195 = vmatpush1.bf16.msra.mxu0 %v4956
      %5196 = vmatprep.subr.bf16.mxu0 0
      %5197 = vmatpush1.bf16.msra.mxu0 %v4957
      %5198 = vmatprep.subr.bf16.mxu0 0
      %5199 = vmatpush1.bf16.msra.mxu0 %v4958
      %5200 = vmatprep.subr.bf16.mxu0 0
      %5201 = vmatpush1.bf16.msra.mxu0 %v4959
      %5202 = vmatprep.subr.bf16.mxu0 0
      %5203 = vmatpush1.bf16.msra.mxu0 %v4960
      %5204 = vmatprep.subr.bf16.mxu0 0
      %5205 = vmatpush1.bf16.msra.mxu0 %v4961
      %5206 = vmatprep.mubr.bf16.mxu0 %v4147
      %5207 = vmatmul.mubr.bf16.gmra.mrb[0].mxu0 %v4104
      %v5208 = vpop.f32.mrb[0].mxu0
      %v5209 = vadd.f32 %v4544, %v5208
      %v5210 = vpop.f32.mrb[0].mxu0
      %v5211 = vpop.f32.mrb[0].mxu0
      %v5212 = vadd.f32 %v4544, %v5211
      %v5213 = vpop.f32.mrb[0].mxu0
      %5214 = vmatprep.mubr.bf16.mxu0 %v4151
      %5215 = vmatmul.mubr.bf16.gmra.mrb[0].mxu0 %v4107
      %v5216 = vpop.f32.mrb[0].mxu0
      %v5217 = vadd.f32 %v4544, %v5216
      %v5218 = vpop.f32.mrb[0].mxu0
      %v5219 = vpop.f32.mrb[0].mxu0
      %v5220 = vadd.f32 %v4544, %v5219
      %v5221 = vpop.f32.mrb[0].mxu0
      %5222 = vmatprep.mubr.bf16.mxu0 %v4155
      %5223 = vmatmul.mubr.bf16.gmra.mrb[0].mxu0 %v4110
      %v5224 = vpop.f32.mrb[0].mxu0
      %v5225 = vadd.f32 %v4544, %v5224
      %v5226 = vpop.f32.mrb[0].mxu0
      %v5227 = vpop.f32.mrb[0].mxu0
      %v5228 = vadd.f32 %v4544, %v5227
      %v5229 = vpop.f32.mrb[0].mxu0
      %5230 = vmatprep.mubr.bf16.mxu0 %v4151
      %5231 = vmatmul.mubr.bf16.gmra.mrb[0].mxu0 %v4107
      %v5232 = vpop.f32.mrb[0].mxu0
      %v5233 = vadd.f32 %v4544, %v5232
      %v5234 = vpop.f32.mrb[0].mxu0
      %v5235 = vpop.f32.mrb[0].mxu0
      %v5236 = vadd.f32 %v4544, %v5235
      %v5237 = vpop.f32.mrb[0].mxu0
      %5238 = vmatprep.mubr.bf16.mxu0 %v4147
      %5239 = vmatmul.mubr.bf16.gmra.mrb[0].mxu0 %v4104
      %v5240 = vpop.f32.mrb[0].mxu0
      %v5241 = vadd.f32 %v4544, %v5240
      %v5242 = vpop.f32.mrb[0].mxu0
      %v5243 = vpop.f32.mrb[0].mxu0
      %v5244 = vadd.f32 %v4544, %v5243
      %v5245 = vpop.f32.mrb[0].mxu0
      %5246 = vmatprep.mubr.bf16.mxu0 %v4159
      %5247 = vmatmul.mubr.bf16.gmra.mrb[0].mxu0 %v4113
      %v5248 = vpop.f32.mrb[0].mxu0
      %v5249 = vadd.f32 %v4544, %v5248
      %v5250 = vpop.f32.mrb[0].mxu0
      %v5251 = vpop.f32.mrb[0].mxu0
      %v5252 = vadd.f32 %v4544, %v5251
      %v5253 = vpop.f32.mrb[0].mxu0
      %5254 = vmatprep.mubr.bf16.mxu0 %v4163
      %5255 = vmatmul.mubr.bf16.gmra.mrb[0].mxu0 %v4116
      %v5256 = vpop.f32.mrb[0].mxu0
      %v5257 = vadd.f32 %v4544, %v5256
      %v5258 = vpop.f32.mrb[0].mxu0
      %v5259 = vpop.f32.mrb[0].mxu0
      %v5260 = vadd.f32 %v4544, %v5259
      %v5261 = vpop.f32.mrb[0].mxu0
      %5262 = vmatprep.mubr.bf16.mxu0 %v4167
      %5263 = vmatmul.mubr.bf16.gmra.mrb[0].mxu0 %v4119
      %v5264 = vpop.f32.mrb[0].mxu0
      %v5265 = vadd.f32 %v4544, %v5264
      %v5266 = vpop.f32.mrb[0].mxu0
      %v5267 = vpop.f32.mrb[0].mxu0
      %v5268 = vadd.f32 %v4544, %v5267
      %v5269 = vpop.f32.mrb[0].mxu0
      %5270 = vmatprep.mubr.bf16.mxu0 %v4171
      %5271 = vmatmul.mubr.bf16.gmra.mrb[0].mxu0 %v4122
      %v5272 = vpop.f32.mrb[0].mxu0
      %v5273 = vadd.f32 %v4544, %v5272
      %v5274 = vpop.f32.mrb[0].mxu0
      %v5275 = vpop.f32.mrb[0].mxu0
      %v5276 = vadd.f32 %v4544, %v5275
      %v5277 = vpop.f32.mrb[0].mxu0
      %5278 = vmatprep.mubr.bf16.mxu0 %v4175
      %5279 = vmatmul.mubr.bf16.gmra.mrb[0].mxu0 %v4125
      %v5280 = vpop.f32.mrb[0].mxu0
      %v5281 = vadd.f32 %v4544, %v5280
      %v5282 = vpop.f32.mrb[0].mxu0
      %v5283 = vpop.f32.mrb[0].mxu0
      %v5284 = vadd.f32 %v4544, %v5283
      %v5285 = vpop.f32.mrb[0].mxu0
      %5286 = vmatprep.mubr.bf16.mxu0 %v4179
      %5287 = vmatmul.mubr.bf16.gmra.mrb[0].mxu0 %v4128
      %v5288 = vpop.f32.mrb[0].mxu0
      %v5289 = vadd.f32 %v4544, %v5288
      %v5290 = vpop.f32.mrb[0].mxu0
      %v5291 = vpop.f32.mrb[0].mxu0
      %v5292 = vadd.f32 %v4544, %v5291
      %v5293 = vpop.f32.mrb[0].mxu0
      %5294 = vmatprep.mubr.bf16.mxu0 %v4183
      %5295 = vmatmul.mubr.bf16.gmra.mrb[0].mxu0 %v4131
      %v5296 = vpop.f32.mrb[0].mxu0
      %v5297 = vadd.f32 %v4544, %v5296
      %v5298 = vpop.f32.mrb[0].mxu0
      %v5299 = vpop.f32.mrb[0].mxu0
      %v5300 = vadd.f32 %v4544, %v5299
      %v5301 = vpop.f32.mrb[0].mxu0
      %5302 = vmatprep.mubr.bf16.mxu0 %v4187
      %5303 = vmatmul.mubr.bf16.gmra.mrb[0].mxu0 %v4134
      %v5304 = vpop.f32.mrb[0].mxu0
      %v5305 = vadd.f32 %v4544, %v5304
      %v5306 = vpop.f32.mrb[0].mxu0
      %v5307 = vpop.f32.mrb[0].mxu0
      %v5308 = vadd.f32 %v4544, %v5307
      %v5309 = vpop.f32.mrb[0].mxu0
      %5310 = vmatprep.mubr.bf16.mxu0 %v4191
      %5311 = vmatmul.mubr.bf16.gmra.mrb[0].mxu0 %v4137
      %v5312 = vpop.f32.mrb[0].mxu0
      %v5313 = vadd.f32 %v4544, %v5312
      %v5314 = vpop.f32.mrb[0].mxu0
      %v5315 = vpop.f32.mrb[0].mxu0
      %v5316 = vadd.f32 %v4544, %v5315
      %v5317 = vpop.f32.mrb[0].mxu0
      %5318 = vmatprep.mubr.bf16.mxu0 %v4195
      %5319 = vmatmul.mubr.bf16.gmra.mrb[0].mxu0 %v4140
      %v5320 = vpop.f32.mrb[0].mxu0
      %v5321 = vadd.f32 %v4544, %v5320
      %v5322 = vpop.f32.mrb[0].mxu0
      %v5323 = vpop.f32.mrb[0].mxu0
      %v5324 = vadd.f32 %v4544, %v5323
      %v5325 = vpop.f32.mrb[0].mxu0
      %5326 = vmatprep.mubr.bf16.mxu0 %v4199
      %5327 = vmatmul.mubr.bf16.gmra.mrb[0].mxu0 %v4143
      %v5328 = vpop.f32.mrb[0].mxu0
      %v5329 = vadd.f32 %v4544, %v5328
      %v5330 = vpop.f32.mrb[0].mxu0
      %v5331 = vpop.f32.mrb[0].mxu0
      %v5332 = vadd.f32 %v4544, %v5331
      %v5333 = vpop.f32.mrb[0].mxu0
      %5334 = vdwg.mxu0
      %5335 = vmatprep.subr.bf16.mxu0 0
      %5336 = vmatpush1.bf16.msra.mxu0 %v4962
      %5337 = vmatprep.subr.bf16.mxu0 0
      %5338 = vmatpush1.bf16.msra.mxu0 %v4963
      %5339 = vmatprep.subr.bf16.mxu0 0
      %5340 = vmatpush1.bf16.msra.mxu0 %v4964
      %5341 = vmatprep.subr.bf16.mxu0 0
      %5342 = vmatpush1.bf16.msra.mxu0 %v4965
      %5343 = vmatprep.subr.bf16.mxu0 0
      %5344 = vmatpush1.bf16.msra.mxu0 %v4966
      %5345 = vmatprep.subr.bf16.mxu0 0
      %5346 = vmatpush1.bf16.msra.mxu0 %v4967
      %5347 = vmatprep.subr.bf16.mxu0 0
      %5348 = vmatpush1.bf16.msra.mxu0 %v4968
      %5349 = vmatprep.subr.bf16.mxu0 0
      %5350 = vmatpush1.bf16.msra.mxu0 %v4969
      %5351 = vmatprep.subr.bf16.mxu0 0
      %5352 = vmatpush1.bf16.msra.mxu0 %v4970
      %5353 = vmatprep.subr.bf16.mxu0 0
      %5354 = vmatpush1.bf16.msra.mxu0 %v4971
      %5355 = vmatprep.subr.bf16.mxu0 0
      %5356 = vmatpush1.bf16.msra.mxu0 %v4972
      %5357 = vmatprep.subr.bf16.mxu0 0
      %5358 = vmatpush1.bf16.msra.mxu0 %v4973
      %5359 = vmatprep.subr.bf16.mxu0 0
      %5360 = vmatpush1.bf16.msra.mxu0 %v4974
      %5361 = vmatprep.subr.bf16.mxu0 0
      %5362 = vmatpush1.bf16.msra.mxu0 %v4975
      %5363 = vmatprep.subr.bf16.mxu0 0
      %5364 = vmatpush1.bf16.msra.mxu0 %v4976
      %5365 = vmatprep.subr.bf16.mxu0 0
      %5366 = vmatpush1.bf16.msra.mxu0 %v4977
      %5367 = vmatprep.mubr.bf16.mxu0 %v4400
      %5368 = vmatmul.mubr.bf16.gmra.mrb[0].mxu0 %v4474
      %v5369 = vpop.f32.mrb[0].mxu0
      %v5370 = vadd.f32 %v5209, %v5369
      %v5371 = vpop.f32.mrb[0].mxu0
      %v5372 = vpop.f32.mrb[0].mxu0
      %v5373 = vadd.f32 %v5212, %v5372
      %v5374 = vpop.f32.mrb[0].mxu0
      %5375 = vmatprep.mubr.bf16.mxu0 %v4402
      %5376 = vmatmul.mubr.bf16.gmra.mrb[0].mxu0 %v4478
      %v5377 = vpop.f32.mrb[0].mxu0
      %v5378 = vadd.f32 %v5217, %v5377
      %v5379 = vpop.f32.mrb[0].mxu0
      %v5380 = vpop.f32.mrb[0].mxu0
      %v5381 = vadd.f32 %v5220, %v5380
      %v5382 = vpop.f32.mrb[0].mxu0
      %5383 = vmatprep.mubr.bf16.mxu0 %v4400
      %5384 = vmatmul.mubr.bf16.gmra.mrb[0].mxu0 %v4481
      %v5385 = vpop.f32.mrb[0].mxu0
      %v5386 = vadd.f32 %v5225, %v5385
      %v5387 = vpop.f32.mrb[0].mxu0
      %v5388 = vpop.f32.mrb[0].mxu0
      %v5389 = vadd.f32 %v5228, %v5388
      %v5390 = vpop.f32.mrb[0].mxu0
      %5391 = vmatprep.mubr.bf16.mxu0 %v4404
      %5392 = vmatmul.mubr.bf16.gmra.mrb[0].mxu0 %v4484
      %v5393 = vpop.f32.mrb[0].mxu0
      %v5394 = vadd.f32 %v5233, %v5393
      %v5395 = vpop.f32.mrb[0].mxu0
      %v5396 = vpop.f32.mrb[0].mxu0
      %v5397 = vadd.f32 %v5236, %v5396
      %v5398 = vpop.f32.mrb[0].mxu0
      %5399 = vmatprep.mubr.bf16.mxu0 %v4406
      %5400 = vmatmul.mubr.bf16.gmra.mrb[0].mxu0 %v4487
      %v5401 = vpop.f32.mrb[0].mxu0
      %v5402 = vadd.f32 %v5241, %v5401
      %v5403 = vpop.f32.mrb[0].mxu0
      %v5404 = vpop.f32.mrb[0].mxu0
      %v5405 = vadd.f32 %v5244, %v5404
      %v5406 = vpop.f32.mrb[0].mxu0
      %5407 = vmatprep.mubr.bf16.mxu0 %v4408
      %5408 = vmatmul.mubr.bf16.gmra.mrb[0].mxu0 %v4491
      %v5409 = vpop.f32.mrb[0].mxu0
      %v5410 = vadd.f32 %v5249, %v5409
      %v5411 = vpop.f32.mrb[0].mxu0
      %v5412 = vpop.f32.mrb[0].mxu0
      %v5413 = vadd.f32 %v5252, %v5412
      %v5414 = vpop.f32.mrb[0].mxu0
      %5415 = vmatprep.mubr.bf16.mxu0 %v4410
      %5416 = vmatmul.mubr.bf16.gmra.mrb[0].mxu0 %v4495
      %v5417 = vpop.f32.mrb[0].mxu0
      %v5418 = vadd.f32 %v5257, %v5417
      %v5419 = vpop.f32.mrb[0].mxu0
      %v5420 = vpop.f32.mrb[0].mxu0
      %v5421 = vadd.f32 %v5260, %v5420
      %v5422 = vpop.f32.mrb[0].mxu0
      %5423 = vmatprep.mubr.bf16.mxu0 %v4412
      %5424 = vmatmul.mubr.bf16.gmra.mrb[0].mxu0 %v4499
      %v5425 = vpop.f32.mrb[0].mxu0
      %v5426 = vadd.f32 %v5265, %v5425
      %v5427 = vpop.f32.mrb[0].mxu0
      %v5428 = vpop.f32.mrb[0].mxu0
      %v5429 = vadd.f32 %v5268, %v5428
      %v5430 = vpop.f32.mrb[0].mxu0
      %5431 = vmatprep.mubr.bf16.mxu0 %v4414
      %5432 = vmatmul.mubr.bf16.gmra.mrb[0].mxu0 %v4503
      %v5433 = vpop.f32.mrb[0].mxu0
      %v5434 = vadd.f32 %v5273, %v5433
      %v5435 = vpop.f32.mrb[0].mxu0
      %v5436 = vpop.f32.mrb[0].mxu0
      %v5437 = vadd.f32 %v5276, %v5436
      %v5438 = vpop.f32.mrb[0].mxu0
      %5439 = vmatprep.mubr.bf16.mxu0 %v4416
      %5440 = vmatmul.mubr.bf16.gmra.mrb[0].mxu0 %v4507
      %v5441 = vpop.f32.mrb[0].mxu0
      %v5442 = vadd.f32 %v5281, %v5441
      %v5443 = vpop.f32.mrb[0].mxu0
      %v5444 = vpop.f32.mrb[0].mxu0
      %v5445 = vadd.f32 %v5284, %v5444
      %v5446 = vpop.f32.mrb[0].mxu0
      %5447 = vmatprep.mubr.bf16.mxu0 %v4418
      %5448 = vmatmul.mubr.bf16.gmra.mrb[0].mxu0 %v4511
      %v5449 = vpop.f32.mrb[0].mxu0
      %v5450 = vadd.f32 %v5289, %v5449
      %v5451 = vpop.f32.mrb[0].mxu0
      %v5452 = vpop.f32.mrb[0].mxu0
      %v5453 = vadd.f32 %v5292, %v5452
      %v5454 = vpop.f32.mrb[0].mxu0
      %5455 = vmatprep.mubr.bf16.mxu0 %v4420
      %5456 = vmatmul.mubr.bf16.gmra.mrb[0].mxu0 %v4515
      %v5457 = vpop.f32.mrb[0].mxu0
      %v5458 = vadd.f32 %v5297, %v5457
      %v5459 = vpop.f32.mrb[0].mxu0
      %v5460 = vpop.f32.mrb[0].mxu0
      %v5461 = vadd.f32 %v5300, %v5460
      %v5462 = vpop.f32.mrb[0].mxu0
      %5463 = vmatprep.mubr.bf16.mxu0 %v4422
      %5464 = vmatmul.mubr.bf16.gmra.mrb[0].mxu0 %v4519
      %v5465 = vpop.f32.mrb[0].mxu0
      %v5466 = vadd.f32 %v5305, %v5465
      %v5467 = vpop.f32.mrb[0].mxu0
      %v5468 = vpop.f32.mrb[0].mxu0
      %v5469 = vadd.f32 %v5308, %v5468
      %v5470 = vpop.f32.mrb[0].mxu0
      %5471 = vmatprep.mubr.bf16.mxu0 %v4424
      %5472 = vmatmul.mubr.bf16.gmra.mrb[0].mxu0 %v4523
      %v5473 = vpop.f32.mrb[0].mxu0
      %v5474 = vadd.f32 %v5313, %v5473
      %v5475 = vpop.f32.mrb[0].mxu0
      %v5476 = vpop.f32.mrb[0].mxu0
      %v5477 = vadd.f32 %v5316, %v5476
      %v5478 = vpop.f32.mrb[0].mxu0
      %5479 = vmatprep.mubr.bf16.mxu0 %v4426
      %5480 = vmatmul.mubr.bf16.gmra.mrb[0].mxu0 %v4527
      %v5481 = vpop.f32.mrb[0].mxu0
      %v5482 = vadd.f32 %v5321, %v5481
      %v5483 = vpop.f32.mrb[0].mxu0
      %v5484 = vpop.f32.mrb[0].mxu0
      %v5485 = vadd.f32 %v5324, %v5484
      %v5486 = vpop.f32.mrb[0].mxu0
      %5487 = vmatprep.mubr.bf16.mxu0 %v4428
      %5488 = vmatmul.mubr.bf16.gmra.mrb[0].mxu0 %v4531
      %v5489 = vpop.f32.mrb[0].mxu0
      %v5490 = vadd.f32 %v5329, %v5489
      %v5491 = vpop.f32.mrb[0].mxu0
      %v5492 = vpop.f32.mrb[0].mxu0
      %v5493 = vadd.f32 %v5332, %v5492
      %v5494 = vpop.f32.mrb[0].mxu0
      %5495 = vdwg.mxu0
      %5496 = vmatprep.subr.bf16.mxu0 0
      %5497 = vmatpush1.bf16.msra.mxu0 %v4978
      %5498 = vmatprep.subr.bf16.mxu0 0
      %5499 = vmatpush1.bf16.msra.mxu0 %v4979
      %5500 = vmatprep.subr.bf16.mxu0 0
      %5501 = vmatpush1.bf16.msra.mxu0 %v4980
      %5502 = vmatprep.subr.bf16.mxu0 0
      %5503 = vmatpush1.bf16.msra.mxu0 %v4981
      %5504 = vmatprep.subr.bf16.mxu0 0
      %5505 = vmatpush1.bf16.msra.mxu0 %v4982
      %5506 = vmatprep.subr.bf16.mxu0 0
      %5507 = vmatpush1.bf16.msra.mxu0 %v4983
      %5508 = vmatprep.subr.bf16.mxu0 0
      %5509 = vmatpush1.bf16.msra.mxu0 %v4984
      %5510 = vmatprep.subr.bf16.mxu0 0
      %5511 = vmatpush1.bf16.msra.mxu0 %v4985
      %5512 = vmatprep.subr.bf16.mxu0 0
      %5513 = vmatpush1.bf16.msra.mxu0 %v4986
      %5514 = vmatprep.subr.bf16.mxu0 0
      %5515 = vmatpush1.bf16.msra.mxu0 %v4987
      %5516 = vmatprep.subr.bf16.mxu0 0
      %5517 = vmatpush1.bf16.msra.mxu0 %v4988
      %5518 = vmatprep.subr.bf16.mxu0 0
      %5519 = vmatpush1.bf16.msra.mxu0 %v4989
      %5520 = vmatprep.subr.bf16.mxu0 0
      %5521 = vmatpush1.bf16.msra.mxu0 %v4990
      %5522 = vmatprep.subr.bf16.mxu0 0
      %5523 = vmatpush1.bf16.msra.mxu0 %v4991
      %5524 = vmatprep.subr.bf16.mxu0 0
      %5525 = vmatpush1.bf16.msra.mxu0 %v4992
      %5526 = vmatprep.subr.bf16.mxu0 0
      %5527 = vmatpush1.bf16.msra.mxu0 %v4993
      %5528 = vmatprep.mubr.bf16.mxu0 %v4110
      %5529 = vmatmul.mubr.bf16.gmra.mrb[0].mxu0 %v4401
      %v5530 = vpop.f32.mrb[0].mxu0
      %v5531 = vadd.f32 %v5370, %v5530
      %v5532 = vpop.f32.mrb[0].mxu0
      %v5533 = vpop.f32.mrb[0].mxu0
      %v5534 = vadd.f32 %v5373, %v5533
      %v5535 = vpop.f32.mrb[0].mxu0
      %5536 = vmatprep.mubr.bf16.mxu0 %v4107
      %5537 = vmatmul.mubr.bf16.gmra.mrb[0].mxu0 %v4403
      %v5538 = vpop.f32.mrb[0].mxu0
      %v5539 = vadd.f32 %v5378, %v5538
      %v5540 = vpop.f32.mrb[0].mxu0
      %v5541 = vpop.f32.mrb[0].mxu0
      %v5542 = vadd.f32 %v5381, %v5541
      %v5543 = vpop.f32.mrb[0].mxu0
      %5544 = vmatprep.mubr.bf16.mxu0 %v4104
      %5545 = vmatmul.mubr.bf16.gmra.mrb[0].mxu0 %v4401
      %v5546 = vpop.f32.mrb[0].mxu0
      %v5547 = vadd.f32 %v5386, %v5546
      %v5548 = vpop.f32.mrb[0].mxu0
      %v5549 = vpop.f32.mrb[0].mxu0
      %v5550 = vadd.f32 %v5389, %v5549
      %v5551 = vpop.f32.mrb[0].mxu0
      %5552 = vmatprep.mubr.bf16.mxu0 %v4113
      %5553 = vmatmul.mubr.bf16.gmra.mrb[0].mxu0 %v4405
      %v5554 = vpop.f32.mrb[0].mxu0
      %v5555 = vadd.f32 %v5394, %v5554
      %v5556 = vpop.f32.mrb[0].mxu0
      %v5557 = vpop.f32.mrb[0].mxu0
      %v5558 = vadd.f32 %v5397, %v5557
      %v5559 = vpop.f32.mrb[0].mxu0
      %5560 = vmatprep.mubr.bf16.mxu0 %v4116
      %5561 = vmatmul.mubr.bf16.gmra.mrb[0].mxu0 %v4407
      %v5562 = vpop.f32.mrb[0].mxu0
      %v5563 = vadd.f32 %v5402, %v5562
      %v5564 = vpop.f32.mrb[0].mxu0
      %v5565 = vpop.f32.mrb[0].mxu0
      %v5566 = vadd.f32 %v5405, %v5565
      %v5567 = vpop.f32.mrb[0].mxu0
      %5568 = vmatprep.mubr.bf16.mxu0 %v4119
      %5569 = vmatmul.mubr.bf16.gmra.mrb[0].mxu0 %v4409
      %v5570 = vpop.f32.mrb[0].mxu0
      %v5571 = vadd.f32 %v5410, %v5570
      %v5572 = vpop.f32.mrb[0].mxu0
      %v5573 = vpop.f32.mrb[0].mxu0
      %v5574 = vadd.f32 %v5413, %v5573
      %v5575 = vpop.f32.mrb[0].mxu0
      %5576 = vmatprep.mubr.bf16.mxu0 %v4122
      %5577 = vmatmul.mubr.bf16.gmra.mrb[0].mxu0 %v4411
      %v5578 = vpop.f32.mrb[0].mxu0
      %v5579 = vadd.f32 %v5418, %v5578
      %v5580 = vpop.f32.mrb[0].mxu0
      %v5581 = vpop.f32.mrb[0].mxu0
      %v5582 = vadd.f32 %v5421, %v5581
      %v5583 = vpop.f32.mrb[0].mxu0
      %5584 = vmatprep.mubr.bf16.mxu0 %v4125
      %5585 = vmatmul.mubr.bf16.gmra.mrb[0].mxu0 %v4413
      %v5586 = vpop.f32.mrb[0].mxu0
      %v5587 = vadd.f32 %v5426, %v5586
      %v5588 = vpop.f32.mrb[0].mxu0
      %v5589 = vpop.f32.mrb[0].mxu0
      %v5590 = vadd.f32 %v5429, %v5589
      %v5591 = vpop.f32.mrb[0].mxu0
      %5592 = vmatprep.mubr.bf16.mxu0 %v4128
      %5593 = vmatmul.mubr.bf16.gmra.mrb[0].mxu0 %v4415
      %v5594 = vpop.f32.mrb[0].mxu0
      %v5595 = vadd.f32 %v5434, %v5594
      %v5596 = vpop.f32.mrb[0].mxu0
      %v5597 = vpop.f32.mrb[0].mxu0
      %v5598 = vadd.f32 %v5437, %v5597
      %v5599 = vpop.f32.mrb[0].mxu0
      %5600 = vmatprep.mubr.bf16.mxu0 %v4131
      %5601 = vmatmul.mubr.bf16.gmra.mrb[0].mxu0 %v4417
      %v5602 = vpop.f32.mrb[0].mxu0
      %v5603 = vadd.f32 %v5442, %v5602
      %v5604 = vpop.f32.mrb[0].mxu0
      %v5605 = vpop.f32.mrb[0].mxu0
      %v5606 = vadd.f32 %v5445, %v5605
      %v5607 = vpop.f32.mrb[0].mxu0
      %5608 = vmatprep.mubr.bf16.mxu0 %v4134
      %5609 = vmatmul.mubr.bf16.gmra.mrb[0].mxu0 %v4419
      %v5610 = vpop.f32.mrb[0].mxu0
      %v5611 = vadd.f32 %v5450, %v5610
      %v5612 = vpop.f32.mrb[0].mxu0
      %v5613 = vpop.f32.mrb[0].mxu0
      %v5614 = vadd.f32 %v5453, %v5613
      %v5615 = vpop.f32.mrb[0].mxu0
      %5616 = vmatprep.mubr.bf16.mxu0 %v4137
      %5617 = vmatmul.mubr.bf16.gmra.mrb[0].mxu0 %v4421
      %v5618 = vpop.f32.mrb[0].mxu0
      %v5619 = vadd.f32 %v5458, %v5618
      %v5620 = vpop.f32.mrb[0].mxu0
      %v5621 = vpop.f32.mrb[0].mxu0
      %v5622 = vadd.f32 %v5461, %v5621
      %v5623 = vpop.f32.mrb[0].mxu0
      %5624 = vmatprep.mubr.bf16.mxu0 %v4140
      %5625 = vmatmul.mubr.bf16.gmra.mrb[0].mxu0 %v4423
      %v5626 = vpop.f32.mrb[0].mxu0
      %v5627 = vadd.f32 %v5466, %v5626
      %v5628 = vpop.f32.mrb[0].mxu0
      %v5629 = vpop.f32.mrb[0].mxu0
      %v5630 = vadd.f32 %v5469, %v5629
      %v5631 = vpop.f32.mrb[0].mxu0
      %5632 = vmatprep.mubr.bf16.mxu0 %v4143
      %5633 = vmatmul.mubr.bf16.gmra.mrb[0].mxu0 %v4425
      %v5634 = vpop.f32.mrb[0].mxu0
      %v5635 = vadd.f32 %v5474, %v5634
      %v5636 = vpop.f32.mrb[0].mxu0
      %v5637 = vpop.f32.mrb[0].mxu0
      %v5638 = vadd.f32 %v5477, %v5637
      %v5639 = vpop.f32.mrb[0].mxu0
      %5640 = vmatprep.mubr.bf16.mxu0 %v4234
      %5641 = vmatmul.mubr.bf16.gmra.mrb[0].mxu0 %v4427
      %v5642 = vpop.f32.mrb[0].mxu0
      %v5643 = vadd.f32 %v5482, %v5642
      %v5644 = vpop.f32.mrb[0].mxu0
      %v5645 = vpop.f32.mrb[0].mxu0
      %v5646 = vadd.f32 %v5485, %v5645
      %v5647 = vpop.f32.mrb[0].mxu0
      %5648 = vmatprep.mubr.bf16.mxu0 %v4272
      %5649 = vmatmul.mubr.bf16.gmra.mrb[0].mxu0 %v4429
      %v5650 = vpop.f32.mrb[0].mxu0
      %v5651 = vadd.f32 %v5490, %v5650
      %v5652 = vpop.f32.mrb[0].mxu0
      %v5653 = vpop.f32.mrb[0].mxu0
      %v5654 = vadd.f32 %v5493, %v5653
      %v5655 = vpop.f32.mrb[0].mxu0
      %5656 = vdwg.mxu0
      %5657 = vmatprep.subr.bf16.mxu0 0
      %5658 = vmatpush1.bf16.msra.mxu0 %v4994
      %5659 = vmatprep.subr.bf16.mxu0 0
      %5660 = vmatpush1.bf16.msra.mxu0 %v4995
      %5661 = vmatprep.subr.bf16.mxu0 0
      %5662 = vmatpush1.bf16.msra.mxu0 %v4996
      %5663 = vmatprep.subr.bf16.mxu0 0
      %5664 = vmatpush1.bf16.msra.mxu0 %v4997
      %5665 = vmatprep.subr.bf16.mxu0 0
      %5666 = vmatpush1.bf16.msra.mxu0 %v4998
      %5667 = vmatprep.subr.bf16.mxu0 0
      %5668 = vmatpush1.bf16.msra.mxu0 %v4999
      %5669 = vmatprep.subr.bf16.mxu0 0
      %5670 = vmatpush1.bf16.msra.mxu0 %v5000
      %5671 = vmatprep.subr.bf16.mxu0 0
      %5672 = vmatpush1.bf16.msra.mxu0 %v5001
      %5673 = vmatprep.subr.bf16.mxu0 0
      %5674 = vmatpush1.bf16.msra.mxu0 %v5002
      %5675 = vmatprep.subr.bf16.mxu0 0
      %5676 = vmatpush1.bf16.msra.mxu0 %v5003
      %5677 = vmatprep.subr.bf16.mxu0 0
      %5678 = vmatpush1.bf16.msra.mxu0 %v5004
      %5679 = vmatprep.subr.bf16.mxu0 0
      %5680 = vmatpush1.bf16.msra.mxu0 %v5005
      %5681 = vmatprep.subr.bf16.mxu0 0
      %5682 = vmatpush1.bf16.msra.mxu0 %v5006
      %5683 = vmatprep.subr.bf16.mxu0 0
      %5684 = vmatpush1.bf16.msra.mxu0 %v5007
      %5685 = vmatprep.subr.bf16.mxu0 0
      %5686 = vmatpush1.bf16.msra.mxu0 %v5008
      %5687 = vmatprep.subr.bf16.mxu0 0
      %5688 = vmatpush1.bf16.msra.mxu0 %v5009
      %5689 = vmatprep.mubr.bf16.mxu0 %v4481
      %5690 = vmatmul.mubr.bf16.gmra.mrb[0].mxu0 %v4155
      %v5691 = vpop.f32.mrb[0].mxu0
      %v5692 = vadd.f32 %v5531, %v5691
      %v5693 = vpop.f32.mrb[0].mxu0
      %v5694 = vpop.f32.mrb[0].mxu0
      %v5695 = vadd.f32 %v5534, %v5694
      %v5696 = vpop.f32.mrb[0].mxu0
      %5697 = vmatprep.mubr.bf16.mxu0 %v4484
      %5698 = vmatmul.mubr.bf16.gmra.mrb[0].mxu0 %v4151
      %v5699 = vpop.f32.mrb[0].mxu0
      %v5700 = vadd.f32 %v5539, %v5699
      %v5701 = vpop.f32.mrb[0].mxu0
      %v5702 = vpop.f32.mrb[0].mxu0
      %v5703 = vadd.f32 %v5542, %v5702
      %v5704 = vpop.f32.mrb[0].mxu0
      %5705 = vmatprep.mubr.bf16.mxu0 %v4487
      %5706 = vmatmul.mubr.bf16.gmra.mrb[0].mxu0 %v4147
      %v5707 = vpop.f32.mrb[0].mxu0
      %v5708 = vadd.f32 %v5547, %v5707
      %v5709 = vpop.f32.mrb[0].mxu0
      %v5710 = vpop.f32.mrb[0].mxu0
      %v5711 = vadd.f32 %v5550, %v5710
      %v5712 = vpop.f32.mrb[0].mxu0
      %5713 = vmatprep.mubr.bf16.mxu0 %v4491
      %5714 = vmatmul.mubr.bf16.gmra.mrb[0].mxu0 %v4159
      %v5715 = vpop.f32.mrb[0].mxu0
      %v5716 = vadd.f32 %v5555, %v5715
      %v5717 = vpop.f32.mrb[0].mxu0
      %v5718 = vpop.f32.mrb[0].mxu0
      %v5719 = vadd.f32 %v5558, %v5718
      %v5720 = vpop.f32.mrb[0].mxu0
      %5721 = vmatprep.mubr.bf16.mxu0 %v4495
      %5722 = vmatmul.mubr.bf16.gmra.mrb[0].mxu0 %v4163
      %v5723 = vpop.f32.mrb[0].mxu0
      %v5724 = vadd.f32 %v5563, %v5723
      %v5725 = vpop.f32.mrb[0].mxu0
      %v5726 = vpop.f32.mrb[0].mxu0
      %v5727 = vadd.f32 %v5566, %v5726
      %v5728 = vpop.f32.mrb[0].mxu0
      %5729 = vmatprep.mubr.bf16.mxu0 %v4499
      %5730 = vmatmul.mubr.bf16.gmra.mrb[0].mxu0 %v4167
      %v5731 = vpop.f32.mrb[0].mxu0
      %v5732 = vadd.f32 %v5571, %v5731
      %v5733 = vpop.f32.mrb[0].mxu0
      %v5734 = vpop.f32.mrb[0].mxu0
      %v5735 = vadd.f32 %v5574, %v5734
      %v5736 = vpop.f32.mrb[0].mxu0
      %5737 = vmatprep.mubr.bf16.mxu0 %v4503
      %5738 = vmatmul.mubr.bf16.gmra.mrb[0].mxu0 %v4171
      %v5739 = vpop.f32.mrb[0].mxu0
      %v5740 = vadd.f32 %v5579, %v5739
      %v5741 = vpop.f32.mrb[0].mxu0
      %v5742 = vpop.f32.mrb[0].mxu0
      %v5743 = vadd.f32 %v5582, %v5742
      %v5744 = vpop.f32.mrb[0].mxu0
      %5745 = vmatprep.mubr.bf16.mxu0 %v4507
      %5746 = vmatmul.mubr.bf16.gmra.mrb[0].mxu0 %v4175
      %v5747 = vpop.f32.mrb[0].mxu0
      %v5748 = vadd.f32 %v5587, %v5747
      %v5749 = vpop.f32.mrb[0].mxu0
      %v5750 = vpop.f32.mrb[0].mxu0
      %v5751 = vadd.f32 %v5590, %v5750
      %v5752 = vpop.f32.mrb[0].mxu0
      %5753 = vmatprep.mubr.bf16.mxu0 %v4511
      %5754 = vmatmul.mubr.bf16.gmra.mrb[0].mxu0 %v4179
      %v5755 = vpop.f32.mrb[0].mxu0
      %v5756 = vadd.f32 %v5595, %v5755
      %v5757 = vpop.f32.mrb[0].mxu0
      %v5758 = vpop.f32.mrb[0].mxu0
      %v5759 = vadd.f32 %v5598, %v5758
      %v5760 = vpop.f32.mrb[0].mxu0
      %5761 = vmatprep.mubr.bf16.mxu0 %v4515
      %5762 = vmatmul.mubr.bf16.gmra.mrb[0].mxu0 %v4183
      %v5763 = vpop.f32.mrb[0].mxu0
      %v5764 = vadd.f32 %v5603, %v5763
      %v5765 = vpop.f32.mrb[0].mxu0
      %v5766 = vpop.f32.mrb[0].mxu0
      %v5767 = vadd.f32 %v5606, %v5766
      %v5768 = vpop.f32.mrb[0].mxu0
      %5769 = vmatprep.mubr.bf16.mxu0 %v4519
      %5770 = vmatmul.mubr.bf16.gmra.mrb[0].mxu0 %v4187
      %v5771 = vpop.f32.mrb[0].mxu0
      %v5772 = vadd.f32 %v5611, %v5771
      %v5773 = vpop.f32.mrb[0].mxu0
      %v5774 = vpop.f32.mrb[0].mxu0
      %v5775 = vadd.f32 %v5614, %v5774
      %v5776 = vpop.f32.mrb[0].mxu0
      %5777 = vmatprep.mubr.bf16.mxu0 %v4523
      %5778 = vmatmul.mubr.bf16.gmra.mrb[0].mxu0 %v4191
      %v5779 = vpop.f32.mrb[0].mxu0
      %v5780 = vadd.f32 %v5619, %v5779
      %v5781 = vpop.f32.mrb[0].mxu0
      %v5782 = vpop.f32.mrb[0].mxu0
      %v5783 = vadd.f32 %v5622, %v5782
      %v5784 = vpop.f32.mrb[0].mxu0
      %5785 = vmatprep.mubr.bf16.mxu0 %v4527
      %5786 = vmatmul.mubr.bf16.gmra.mrb[0].mxu0 %v4195
      %v5787 = vpop.f32.mrb[0].mxu0
      %v5788 = vadd.f32 %v5627, %v5787
      %v5789 = vpop.f32.mrb[0].mxu0
      %v5790 = vpop.f32.mrb[0].mxu0
      %v5791 = vadd.f32 %v5630, %v5790
      %v5792 = vpop.f32.mrb[0].mxu0
      %5793 = vmatprep.mubr.bf16.mxu0 %v4531
      %5794 = vmatmul.mubr.bf16.gmra.mrb[0].mxu0 %v4199
      %v5795 = vpop.f32.mrb[0].mxu0
      %v5796 = vadd.f32 %v5635, %v5795
      %v5797 = vpop.f32.mrb[0].mxu0
      %v5798 = vpop.f32.mrb[0].mxu0
      %v5799 = vadd.f32 %v5638, %v5798
      %v5800 = vpop.f32.mrb[0].mxu0
      %5801 = vmatprep.mubr.bf16.mxu0 %v4535
      %5802 = vmatmul.mubr.bf16.gmra.mrb[0].mxu0 %v4237
      %v5803 = vpop.f32.mrb[0].mxu0
      %v5804 = vadd.f32 %v5643, %v5803
      %v5805 = vpop.f32.mrb[0].mxu0
      %v5806 = vpop.f32.mrb[0].mxu0
      %v5807 = vadd.f32 %v5646, %v5806
      %v5808 = vpop.f32.mrb[0].mxu0
      %5809 = vmatprep.mubr.bf16.mxu0 %v4538
      %5810 = vmatmul.mubr.bf16.gmra.mrb[0].mxu0 %v4277
      %v5811 = vpop.f32.mrb[0].mxu0
      %v5812 = vadd.f32 %v5651, %v5811
      %v5813 = vpop.f32.mrb[0].mxu0
      %v5814 = vpop.f32.mrb[0].mxu0
      %v5815 = vadd.f32 %v5654, %v5814
      %v5816 = vpop.f32.mrb[0].mxu0
      %5817 = vdwg.mxu0
      %5818 = vmatprep.subr.bf16.mxu0 0
      %5819 = vmatpush1.bf16.msra.mxu0 %v5010
      %5820 = vmatprep.subr.bf16.mxu0 0
      %5821 = vmatpush1.bf16.msra.mxu0 %v5011
      %5822 = vmatprep.subr.bf16.mxu0 0
      %5823 = vmatpush1.bf16.msra.mxu0 %v5012
      %5824 = vmatprep.subr.bf16.mxu0 0
      %5825 = vmatpush1.bf16.msra.mxu0 %v5013
      %5826 = vmatprep.subr.bf16.mxu0 0
      %5827 = vmatpush1.bf16.msra.mxu0 %v5014
      %5828 = vmatprep.subr.bf16.mxu0 0
      %5829 = vmatpush1.bf16.msra.mxu0 %v5015
      %5830 = vmatprep.subr.bf16.mxu0 0
      %5831 = vmatpush1.bf16.msra.mxu0 %v5016
      %5832 = vmatprep.subr.bf16.mxu0 0
      %5833 = vmatpush1.bf16.msra.mxu0 %v5017
      %5834 = vmatprep.subr.bf16.mxu0 0
      %5835 = vmatpush1.bf16.msra.mxu0 %v5018
      %5836 = vmatprep.subr.bf16.mxu0 0
      %5837 = vmatpush1.bf16.msra.mxu0 %v5019
      %5838 = vmatprep.subr.bf16.mxu0 0
      %5839 = vmatpush1.bf16.msra.mxu0 %v5020
      %5840 = vmatprep.subr.bf16.mxu0 0
      %5841 = vmatpush1.bf16.msra.mxu0 %v5021
      %5842 = vmatprep.subr.bf16.mxu0 0
      %5843 = vmatpush1.bf16.msra.mxu0 %v5022
      %5844 = vmatprep.subr.bf16.mxu0 0
      %5845 = vmatpush1.bf16.msra.mxu0 %v5023
      %5846 = vmatprep.subr.bf16.mxu0 0
      %5847 = vmatpush1.bf16.msra.mxu0 %v5024
      %5848 = vmatprep.subr.bf16.mxu0 0
      %5849 = vmatpush1.bf16.msra.mxu0 %v5025
      %5850 = vmatprep.mubr.bf16.mxu0 %v4401
      %5851 = vmatmul.mubr.bf16.gmra.mrb[0].mxu0 %v4400
      %v5852 = vpop.f32.mrb[0].mxu0
      %v5853 = vadd.f32 %v5692, %v5852
      %v5854 = vpop.f32.mrb[0].mxu0
      %v5855 = vpop.f32.mrb[0].mxu0
      %v5856 = vadd.f32 %v5695, %v5855
      %v5857 = vpop.f32.mrb[0].mxu0
      %5858 = vmatprep.mubr.bf16.mxu0 %v4405
      %5859 = vmatmul.mubr.bf16.gmra.mrb[0].mxu0 %v4404
      %v5860 = vpop.f32.mrb[0].mxu0
      %v5861 = vadd.f32 %v5700, %v5860
      %v5862 = vpop.f32.mrb[0].mxu0
      %v5863 = vpop.f32.mrb[0].mxu0
      %v5864 = vadd.f32 %v5703, %v5863
      %v5865 = vpop.f32.mrb[0].mxu0
      %5866 = vmatprep.mubr.bf16.mxu0 %v4407
      %5867 = vmatmul.mubr.bf16.gmra.mrb[0].mxu0 %v4406
      %v5868 = vpop.f32.mrb[0].mxu0
      %v5869 = vadd.f32 %v5708, %v5868
      %v5870 = vpop.f32.mrb[0].mxu0
      %v5871 = vpop.f32.mrb[0].mxu0
      %v5872 = vadd.f32 %v5711, %v5871
      %v5873 = vpop.f32.mrb[0].mxu0
      %5874 = vmatprep.mubr.bf16.mxu0 %v4409
      %5875 = vmatmul.mubr.bf16.gmra.mrb[0].mxu0 %v4408
      %v5876 = vpop.f32.mrb[0].mxu0
      %v5877 = vadd.f32 %v5716, %v5876
      %v5878 = vpop.f32.mrb[0].mxu0
      %v5879 = vpop.f32.mrb[0].mxu0
      %v5880 = vadd.f32 %v5719, %v5879
      %v5881 = vpop.f32.mrb[0].mxu0
      %5882 = vmatprep.mubr.bf16.mxu0 %v4411
      %5883 = vmatmul.mubr.bf16.gmra.mrb[0].mxu0 %v4410
      %v5884 = vpop.f32.mrb[0].mxu0
      %v5885 = vadd.f32 %v5724, %v5884
      %v5886 = vpop.f32.mrb[0].mxu0
      %v5887 = vpop.f32.mrb[0].mxu0
      %v5888 = vadd.f32 %v5727, %v5887
      %v5889 = vpop.f32.mrb[0].mxu0
      %5890 = vmatprep.mubr.bf16.mxu0 %v4413
      %5891 = vmatmul.mubr.bf16.gmra.mrb[0].mxu0 %v4412
      %v5892 = vpop.f32.mrb[0].mxu0
      %v5893 = vadd.f32 %v5732, %v5892
      %v5894 = vpop.f32.mrb[0].mxu0
      %v5895 = vpop.f32.mrb[0].mxu0
      %v5896 = vadd.f32 %v5735, %v5895
      %v5897 = vpop.f32.mrb[0].mxu0
      %5898 = vmatprep.mubr.bf16.mxu0 %v4415
      %5899 = vmatmul.mubr.bf16.gmra.mrb[0].mxu0 %v4414
      %v5900 = vpop.f32.mrb[0].mxu0
      %v5901 = vadd.f32 %v5740, %v5900
      %v5902 = vpop.f32.mrb[0].mxu0
      %v5903 = vpop.f32.mrb[0].mxu0
      %v5904 = vadd.f32 %v5743, %v5903
      %v5905 = vpop.f32.mrb[0].mxu0
      %5906 = vmatprep.mubr.bf16.mxu0 %v4417
      %5907 = vmatmul.mubr.bf16.gmra.mrb[0].mxu0 %v4416
      %v5908 = vpop.f32.mrb[0].mxu0
      %v5909 = vadd.f32 %v5748, %v5908
      %v5910 = vpop.f32.mrb[0].mxu0
      %v5911 = vpop.f32.mrb[0].mxu0
      %v5912 = vadd.f32 %v5751, %v5911
      %v5913 = vpop.f32.mrb[0].mxu0
      %5914 = vmatprep.mubr.bf16.mxu0 %v4419
      %5915 = vmatmul.mubr.bf16.gmra.mrb[0].mxu0 %v4418
      %v5916 = vpop.f32.mrb[0].mxu0
      %v5917 = vadd.f32 %v5756, %v5916
      %v5918 = vpop.f32.mrb[0].mxu0
      %v5919 = vpop.f32.mrb[0].mxu0
      %v5920 = vadd.f32 %v5759, %v5919
      %v5921 = vpop.f32.mrb[0].mxu0
      %5922 = vmatprep.mubr.bf16.mxu0 %v4421
      %5923 = vmatmul.mubr.bf16.gmra.mrb[0].mxu0 %v4420
      %v5924 = vpop.f32.mrb[0].mxu0
      %v5925 = vadd.f32 %v5764, %v5924
      %v5926 = vpop.f32.mrb[0].mxu0
      %v5927 = vpop.f32.mrb[0].mxu0
      %v5928 = vadd.f32 %v5767, %v5927
      %v5929 = vpop.f32.mrb[0].mxu0
      %5930 = vmatprep.mubr.bf16.mxu0 %v4423
      %5931 = vmatmul.mubr.bf16.gmra.mrb[0].mxu0 %v4422
      %v5932 = vpop.f32.mrb[0].mxu0
      %v5933 = vadd.f32 %v5772, %v5932
      %v5934 = vpop.f32.mrb[0].mxu0
      %v5935 = vpop.f32.mrb[0].mxu0
      %v5936 = vadd.f32 %v5775, %v5935
      %v5937 = vpop.f32.mrb[0].mxu0
      %5938 = vmatprep.mubr.bf16.mxu0 %v4425
      %5939 = vmatmul.mubr.bf16.gmra.mrb[0].mxu0 %v4424
      %v5940 = vpop.f32.mrb[0].mxu0
      %v5941 = vadd.f32 %v5780, %v5940
      %v5942 = vpop.f32.mrb[0].mxu0
      %v5943 = vpop.f32.mrb[0].mxu0
      %v5944 = vadd.f32 %v5783, %v5943
      %v5945 = vpop.f32.mrb[0].mxu0
      %5946 = vmatprep.mubr.bf16.mxu0 %v4427
      %5947 = vmatmul.mubr.bf16.gmra.mrb[0].mxu0 %v4426
      %v5948 = vpop.f32.mrb[0].mxu0
      %v5949 = vadd.f32 %v5788, %v5948
      %v5950 = vpop.f32.mrb[0].mxu0
      %v5951 = vpop.f32.mrb[0].mxu0
      %v5952 = vadd.f32 %v5791, %v5951
      %v5953 = vpop.f32.mrb[0].mxu0
      %5954 = vmatprep.mubr.bf16.mxu0 %v4429
      %5955 = vmatmul.mubr.bf16.gmra.mrb[0].mxu0 %v4428
      %v5956 = vpop.f32.mrb[0].mxu0
      %v5957 = vadd.f32 %v5796, %v5956
      %v5958 = vpop.f32.mrb[0].mxu0
      %v5959 = vpop.f32.mrb[0].mxu0
      %v5960 = vadd.f32 %v5799, %v5959
      %v5961 = vpop.f32.mrb[0].mxu0
      %5962 = vmatprep.mubr.bf16.mxu0 %v4469
      %5963 = vmatmul.mubr.bf16.gmra.mrb[0].mxu0 %v4468
      %v5964 = vpop.f32.mrb[0].mxu0
      %v5965 = vadd.f32 %v5804, %v5964
      %v5966 = vpop.f32.mrb[0].mxu0
      %v5967 = vpop.f32.mrb[0].mxu0
      %v5968 = vadd.f32 %v5807, %v5967
      %v5969 = vpop.f32.mrb[0].mxu0
      %5970 = vmatprep.mubr.bf16.mxu0 %v4429
      %5971 = vmatmul.mubr.bf16.gmra.mrb[0].mxu0 %v4428
      %v5972 = vpop.f32.mrb[0].mxu0
      %v5973 = vadd.f32 %v5812, %v5972
      %v5974 = vpop.f32.mrb[0].mxu0
      %v5975 = vpop.f32.mrb[0].mxu0
      %v5976 = vadd.f32 %v5815, %v5975
      %v5977 = vpop.f32.mrb[0].mxu0
      %5978 = vdwg.mxu0
      %5979 = vmatprep.subr.bf16.mxu0 0
      %5980 = vmatpush1.bf16.msra.mxu0 %v5026
      %5981 = vmatprep.subr.bf16.mxu0 0
      %5982 = vmatpush1.bf16.msra.mxu0 %v5027
      %5983 = vmatprep.subr.bf16.mxu0 0
      %5984 = vmatpush1.bf16.msra.mxu0 %v5028
      %5985 = vmatprep.subr.bf16.mxu0 0
      %5986 = vmatpush1.bf16.msra.mxu0 %v5029
      %5987 = vmatprep.subr.bf16.mxu0 0
      %5988 = vmatpush1.bf16.msra.mxu0 %v5030
      %5989 = vmatprep.subr.bf16.mxu0 0
      %5990 = vmatpush1.bf16.msra.mxu0 %v5031
      %5991 = vmatprep.subr.bf16.mxu0 0
      %5992 = vmatpush1.bf16.msra.mxu0 %v5032
      %5993 = vmatprep.subr.bf16.mxu0 0
      %5994 = vmatpush1.bf16.msra.mxu0 %v5033
      %5995 = vmatprep.subr.bf16.mxu0 0
      %5996 = vmatpush1.bf16.msra.mxu0 %v5034
      %5997 = vmatprep.subr.bf16.mxu0 0
      %5998 = vmatpush1.bf16.msra.mxu0 %v5035
      %5999 = vmatprep.subr.bf16.mxu0 0
      %6000 = vmatpush1.bf16.msra.mxu0 %v5036
      %6001 = vmatprep.subr.bf16.mxu0 0
      %6002 = vmatpush1.bf16.msra.mxu0 %v5037
      %6003 = vmatprep.subr.bf16.mxu0 0
      %6004 = vmatpush1.bf16.msra.mxu0 %v5038
      %6005 = vmatprep.subr.bf16.mxu0 0
      %6006 = vmatpush1.bf16.msra.mxu0 %v5039
      %6007 = vmatprep.subr.bf16.mxu0 0
      %6008 = vmatpush1.bf16.msra.mxu0 %v5040
      %6009 = vmatprep.subr.bf16.mxu0 0
      %6010 = vmatpush1.bf16.msra.mxu0 %v5041
      %6011 = vmatprep.mubr.bf16.mxu0 %v4147
      %6012 = vmatmul.mubr.bf16.gmra.mrb[0].mxu0 %v4104
      %v6013 = vpop.f32.mrb[0].mxu0
      %v6014 = vadd.f32 %v5853, %v6013
      %v6015 = vpop.f32.mrb[0].mxu0
      %v6016 = vpop.f32.mrb[0].mxu0
      %v6017 = vadd.f32 %v5856, %v6016
      %v6018 = vpop.f32.mrb[0].mxu0
      %6019 = vmatprep.mubr.bf16.mxu0 %v4159
      %6020 = vmatmul.mubr.bf16.gmra.mrb[0].mxu0 %v4113
      %v6021 = vpop.f32.mrb[0].mxu0
      %v6022 = vadd.f32 %v5861, %v6021
      %v6023 = vpop.f32.mrb[0].mxu0
      %v6024 = vpop.f32.mrb[0].mxu0
      %v6025 = vadd.f32 %v5864, %v6024
      %v6026 = vpop.f32.mrb[0].mxu0
      %6027 = vmatprep.mubr.bf16.mxu0 %v4163
      %6028 = vmatmul.mubr.bf16.gmra.mrb[0].mxu0 %v4116
      %v6029 = vpop.f32.mrb[0].mxu0
      %v6030 = vadd.f32 %v5869, %v6029
      %v6031 = vpop.f32.mrb[0].mxu0
      %v6032 = vpop.f32.mrb[0].mxu0
      %v6033 = vadd.f32 %v5872, %v6032
      %v6034 = vpop.f32.mrb[0].mxu0
      %6035 = vmatprep.mubr.bf16.mxu0 %v4167
      %6036 = vmatmul.mubr.bf16.gmra.mrb[0].mxu0 %v4119
      %v6037 = vpop.f32.mrb[0].mxu0
      %v6038 = vadd.f32 %v5877, %v6037
      %v6039 = vpop.f32.mrb[0].mxu0
      %v6040 = vpop.f32.mrb[0].mxu0
      %v6041 = vadd.f32 %v5880, %v6040
      %v6042 = vpop.f32.mrb[0].mxu0
      %6043 = vmatprep.mubr.bf16.mxu0 %v4171
      %6044 = vmatmul.mubr.bf16.gmra.mrb[0].mxu0 %v4122
      %v6045 = vpop.f32.mrb[0].mxu0
      %v6046 = vadd.f32 %v5885, %v6045
      %v6047 = vpop.f32.mrb[0].mxu0
      %v6048 = vpop.f32.mrb[0].mxu0
      %v6049 = vadd.f32 %v5888, %v6048
      %v6050 = vpop.f32.mrb[0].mxu0
      %6051 = vmatprep.mubr.bf16.mxu0 %v4175
      %6052 = vmatmul.mubr.bf16.gmra.mrb[0].mxu0 %v4125
      %v6053 = vpop.f32.mrb[0].mxu0
      %v6054 = vadd.f32 %v5893, %v6053
      %v6055 = vpop.f32.mrb[0].mxu0
      %v6056 = vpop.f32.mrb[0].mxu0
      %v6057 = vadd.f32 %v5896, %v6056
      %v6058 = vpop.f32.mrb[0].mxu0
      %6059 = vmatprep.mubr.bf16.mxu0 %v4179
      %6060 = vmatmul.mubr.bf16.gmra.mrb[0].mxu0 %v4128
      %v6061 = vpop.f32.mrb[0].mxu0
      %v6062 = vadd.f32 %v5901, %v6061
      %v6063 = vpop.f32.mrb[0].mxu0
      %v6064 = vpop.f32.mrb[0].mxu0
      %v6065 = vadd.f32 %v5904, %v6064
      %v6066 = vpop.f32.mrb[0].mxu0
      %6067 = vmatprep.mubr.bf16.mxu0 %v4183
      %6068 = vmatmul.mubr.bf16.gmra.mrb[0].mxu0 %v4131
      %v6069 = vpop.f32.mrb[0].mxu0
      %v6070 = vadd.f32 %v5909, %v6069
      %v6071 = vpop.f32.mrb[0].mxu0
      %v6072 = vpop.f32.mrb[0].mxu0
      %v6073 = vadd.f32 %v5912, %v6072
      %v6074 = vpop.f32.mrb[0].mxu0
      %6075 = vmatprep.mubr.bf16.mxu0 %v4187
      %6076 = vmatmul.mubr.bf16.gmra.mrb[0].mxu0 %v4134
      %v6077 = vpop.f32.mrb[0].mxu0
      %v6078 = vadd.f32 %v5917, %v6077
      %v6079 = vpop.f32.mrb[0].mxu0
      %v6080 = vpop.f32.mrb[0].mxu0
      %v6081 = vadd.f32 %v5920, %v6080
      %v6082 = vpop.f32.mrb[0].mxu0
      %6083 = vmatprep.mubr.bf16.mxu0 %v4191
      %6084 = vmatmul.mubr.bf16.gmra.mrb[0].mxu0 %v4137
      %v6085 = vpop.f32.mrb[0].mxu0
      %v6086 = vadd.f32 %v5925, %v6085
      %v6087 = vpop.f32.mrb[0].mxu0
      %v6088 = vpop.f32.mrb[0].mxu0
      %v6089 = vadd.f32 %v5928, %v6088
      %v6090 = vpop.f32.mrb[0].mxu0
      %6091 = vmatprep.mubr.bf16.mxu0 %v4195
      %6092 = vmatmul.mubr.bf16.gmra.mrb[0].mxu0 %v4140
      %v6093 = vpop.f32.mrb[0].mxu0
      %v6094 = vadd.f32 %v5933, %v6093
      %v6095 = vpop.f32.mrb[0].mxu0
      %v6096 = vpop.f32.mrb[0].mxu0
      %v6097 = vadd.f32 %v5936, %v6096
      %v6098 = vpop.f32.mrb[0].mxu0
      %6099 = vmatprep.mubr.bf16.mxu0 %v4199
      %6100 = vmatmul.mubr.bf16.gmra.mrb[0].mxu0 %v4143
      %v6101 = vpop.f32.mrb[0].mxu0
      %v6102 = vadd.f32 %v5941, %v6101
      %v6103 = vpop.f32.mrb[0].mxu0
      %v6104 = vpop.f32.mrb[0].mxu0
      %v6105 = vadd.f32 %v5944, %v6104
      %v6106 = vpop.f32.mrb[0].mxu0
      %6107 = vmatprep.mubr.bf16.mxu0 %v4237
      %6108 = vmatmul.mubr.bf16.gmra.mrb[0].mxu0 %v4234
      %v6109 = vpop.f32.mrb[0].mxu0
      %v6110 = vadd.f32 %v5949, %v6109
      %v6111 = vpop.f32.mrb[0].mxu0
      %v6112 = vpop.f32.mrb[0].mxu0
      %v6113 = vadd.f32 %v5952, %v6112
      %v6114 = vpop.f32.mrb[0].mxu0
      %6115 = vmatprep.mubr.bf16.mxu0 %v4277
      %6116 = vmatmul.mubr.bf16.gmra.mrb[0].mxu0 %v4272
      %v6117 = vpop.f32.mrb[0].mxu0
      %v6118 = vadd.f32 %v5957, %v6117
      %v6119 = vpop.f32.mrb[0].mxu0
      %v6120 = vpop.f32.mrb[0].mxu0
      %v6121 = vadd.f32 %v5960, %v6120
      %v6122 = vpop.f32.mrb[0].mxu0
      %6123 = vmatprep.mubr.bf16.mxu0 %v4237
      %6124 = vmatmul.mubr.bf16.gmra.mrb[0].mxu0 %v4234
      %v6125 = vpop.f32.mrb[0].mxu0
      %v6126 = vadd.f32 %v5965, %v6125
      %v6127 = vpop.f32.mrb[0].mxu0
      %v6128 = vpop.f32.mrb[0].mxu0
      %v6129 = vadd.f32 %v5968, %v6128
      %v6130 = vpop.f32.mrb[0].mxu0
      %6131 = vmatprep.mubr.bf16.mxu0 %v4199
      %6132 = vmatmul.mubr.bf16.gmra.mrb[0].mxu0 %v4143
      %v6133 = vpop.f32.mrb[0].mxu0
      %v6134 = vadd.f32 %v5973, %v6133
      %v6135 = vpop.f32.mrb[0].mxu0
      %v6136 = vpop.f32.mrb[0].mxu0
      %v6137 = vadd.f32 %v5976, %v6136
      %v6138 = vpop.f32.mrb[0].mxu0
      %6139 = vdwg.mxu0
      %6140 = vmatprep.subr.bf16.mxu0 0
      %6141 = vmatpush1.bf16.msra.mxu0 %v5042
      %6142 = vmatprep.subr.bf16.mxu0 0
      %6143 = vmatpush1.bf16.msra.mxu0 %v5043
      %6144 = vmatprep.subr.bf16.mxu0 0
      %6145 = vmatpush1.bf16.msra.mxu0 %v5044
      %6146 = vmatprep.subr.bf16.mxu0 0
      %6147 = vmatpush1.bf16.msra.mxu0 %v5045
      %6148 = vmatprep.subr.bf16.mxu0 0
      %6149 = vmatpush1.bf16.msra.mxu0 0
      %6150 = vmatprep.subr.bf16.mxu0 0
      %6151 = vmatpush1.bf16.msra.mxu0 0
      %6152 = vmatprep.subr.bf16.mxu0 0
      %6153 = vmatpush1.bf16.msra.mxu0 0
      %6154 = vmatprep.subr.bf16.mxu0 0
      %6155 = vmatpush1.bf16.msra.mxu0 0
      %6156 = vmatprep.subr.bf16.mxu0 0
      %6157 = vmatpush1.bf16.msra.mxu0 0
      %6158 = vmatprep.subr.bf16.mxu0 0
      %6159 = vmatpush1.bf16.msra.mxu0 0
      %6160 = vmatprep.subr.bf16.mxu0 0
      %6161 = vmatpush1.bf16.msra.mxu0 0
      %6162 = vmatprep.subr.bf16.mxu0 0
      %6163 = vmatpush1.bf16.msra.mxu0 0
      %6164 = vmatprep.subr.bf16.mxu0 0
      %6165 = vmatpush1.bf16.msra.mxu0 0
      %6166 = vmatprep.subr.bf16.mxu0 0
      %6167 = vmatpush1.bf16.msra.mxu0 0
      %6168 = vmatprep.subr.bf16.mxu0 0
      %6169 = vmatpush1.bf16.msra.mxu0 0
      %6170 = vmatprep.subr.bf16.mxu0 0
      %6171 = vmatpush1.bf16.msra.mxu0 0
      %6172 = vmatprep.mubr.bf16.mxu0 0
      %6173 = vmatmul.mubr.bf16.gmra.mrb[0].mxu0 %v5146
      %v6174 = vpop.f32.mrb[0].mxu0
      %v6175 = vadd.f32 %v6014, %v6174
      %v6176 = vpop.f32.mrb[0].mxu0
      %v6177 = vpop.f32.mrb[0].mxu0
      %v6178 = vadd.f32 %v6017, %v6177
      %v6179 = vpop.f32.mrb[0].mxu0
      %6180 = vmatprep.mubr.bf16.mxu0 0
      %6181 = vmatmul.mubr.bf16.gmra.mrb[0].mxu0 %v5148
      %v6182 = vpop.f32.mrb[0].mxu0
      %v6183 = vadd.f32 %v6022, %v6182
      %v6184 = vpop.f32.mrb[0].mxu0
      %v6185 = vpop.f32.mrb[0].mxu0
      %v6186 = vadd.f32 %v6025, %v6185
      %v6187 = vpop.f32.mrb[0].mxu0
      %6188 = vmatprep.mubr.bf16.mxu0 0
      %6189 = vmatmul.mubr.bf16.gmra.mrb[0].mxu0 %v5150
      %v6190 = vpop.f32.mrb[0].mxu0
      %v6191 = vadd.f32 %v6030, %v6190
      %v6192 = vpop.f32.mrb[0].mxu0
      %v6193 = vpop.f32.mrb[0].mxu0
      %v6194 = vadd.f32 %v6033, %v6193
      %v6195 = vpop.f32.mrb[0].mxu0
      %6196 = vmatprep.mubr.bf16.mxu0 0
      %6197 = vmatmul.mubr.bf16.gmra.mrb[0].mxu0 %v5152
      %v6198 = vpop.f32.mrb[0].mxu0
      %v6199 = vadd.f32 %v6038, %v6198
      %v6200 = vpop.f32.mrb[0].mxu0
      %v6201 = vpop.f32.mrb[0].mxu0
      %v6202 = vadd.f32 %v6041, %v6201
      %v6203 = vpop.f32.mrb[0].mxu0
      %6204 = vmatprep.mubr.bf16.mxu0 0
      %6205 = vmatmul.mubr.bf16.gmra.mrb[0].mxu0 %v5154
      %v6206 = vpop.f32.mrb[0].mxu0
      %v6207 = vadd.f32 %v6046, %v6206
      %v6208 = vpop.f32.mrb[0].mxu0
      %v6209 = vpop.f32.mrb[0].mxu0
      %v6210 = vadd.f32 %v6049, %v6209
      %v6211 = vpop.f32.mrb[0].mxu0
      %6212 = vmatprep.mubr.bf16.mxu0 0
      %6213 = vmatmul.mubr.bf16.gmra.mrb[0].mxu0 %v5156
      %v6214 = vpop.f32.mrb[0].mxu0
      %v6215 = vadd.f32 %v6054, %v6214
      %v6216 = vpop.f32.mrb[0].mxu0
      %v6217 = vpop.f32.mrb[0].mxu0
      %v6218 = vadd.f32 %v6057, %v6217
      %v6219 = vpop.f32.mrb[0].mxu0
      %6220 = vmatprep.mubr.bf16.mxu0 0
      %6221 = vmatmul.mubr.bf16.gmra.mrb[0].mxu0 %v5158
      %v6222 = vpop.f32.mrb[0].mxu0
      %v6223 = vadd.f32 %v6062, %v6222
      %v6224 = vpop.f32.mrb[0].mxu0
      %v6225 = vpop.f32.mrb[0].mxu0
      %v6226 = vadd.f32 %v6065, %v6225
      %v6227 = vpop.f32.mrb[0].mxu0
      %6228 = vmatprep.mubr.bf16.mxu0 0
      %6229 = vmatmul.mubr.bf16.gmra.mrb[0].mxu0 %v5160
      %v6230 = vpop.f32.mrb[0].mxu0
      %v6231 = vadd.f32 %v6070, %v6230
      %v6232 = vpop.f32.mrb[0].mxu0
      %v6233 = vpop.f32.mrb[0].mxu0
      %v6234 = vadd.f32 %v6073, %v6233
      %v6235 = vpop.f32.mrb[0].mxu0
      %6236 = vmatprep.mubr.bf16.mxu0 0
      %6237 = vmatmul.mubr.bf16.gmra.mrb[0].mxu0 %v5162
      %v6238 = vpop.f32.mrb[0].mxu0
      %v6239 = vadd.f32 %v6078, %v6238
      %v6240 = vpop.f32.mrb[0].mxu0
      %v6241 = vpop.f32.mrb[0].mxu0
      %v6242 = vadd.f32 %v6081, %v6241
      %v6243 = vpop.f32.mrb[0].mxu0
      %6244 = vmatprep.mubr.bf16.mxu0 0
      %6245 = vmatmul.mubr.bf16.gmra.mrb[0].mxu0 %v5164
      %v6246 = vpop.f32.mrb[0].mxu0
      %v6247 = vadd.f32 %v6086, %v6246
      %v6248 = vpop.f32.mrb[0].mxu0
      %v6249 = vpop.f32.mrb[0].mxu0
      %v6250 = vadd.f32 %v6089, %v6249
      %v6251 = vpop.f32.mrb[0].mxu0
      %6252 = vmatprep.mubr.bf16.mxu0 0
      %6253 = vmatmul.mubr.bf16.gmra.mrb[0].mxu0 %v5166
      %v6254 = vpop.f32.mrb[0].mxu0
      %v6255 = vadd.f32 %v6094, %v6254
      %v6256 = vpop.f32.mrb[0].mxu0
      %v6257 = vpop.f32.mrb[0].mxu0
      %v6258 = vadd.f32 %v6097, %v6257
      %v6259 = vpop.f32.mrb[0].mxu0
      %6260 = vmatprep.mubr.bf16.mxu0 0
      %6261 = vmatmul.mubr.bf16.gmra.mrb[0].mxu0 %v5168
      %v6262 = vpop.f32.mrb[0].mxu0
      %v6263 = vadd.f32 %v6102, %v6262
      %v6264 = vpop.f32.mrb[0].mxu0
      %v6265 = vpop.f32.mrb[0].mxu0
      %v6266 = vadd.f32 %v6105, %v6265
      %v6267 = vpop.f32.mrb[0].mxu0
      %6268 = vmatprep.mubr.bf16.mxu0 0
      %6269 = vmatmul.mubr.bf16.gmra.mrb[0].mxu0 %v5170
      %v6270 = vpop.f32.mrb[0].mxu0
      %v6271 = vadd.f32 %v6110, %v6270
      %v6272 = vpop.f32.mrb[0].mxu0
      %v6273 = vpop.f32.mrb[0].mxu0
      %v6274 = vadd.f32 %v6113, %v6273
      %v6275 = vpop.f32.mrb[0].mxu0
      %6276 = vmatprep.mubr.bf16.mxu0 0
      %6277 = vmatmul.mubr.bf16.gmra.mrb[0].mxu0 %v5172
      %v6278 = vpop.f32.mrb[0].mxu0
      %v6279 = vadd.f32 %v6118, %v6278
      %v6280 = vpop.f32.mrb[0].mxu0
      %v6281 = vpop.f32.mrb[0].mxu0
      %v6282 = vadd.f32 %v6121, %v6281
      %v6283 = vpop.f32.mrb[0].mxu0
      %6284 = vmatprep.mubr.bf16.mxu0 0
      %6285 = vmatmul.mubr.bf16.gmra.mrb[0].mxu0 %v5170
      %v6286 = vpop.f32.mrb[0].mxu0
      %v6287 = vadd.f32 %v6126, %v6286
      %v6288 = vpop.f32.mrb[0].mxu0
      %v6289 = vpop.f32.mrb[0].mxu0
      %v6290 = vadd.f32 %v6129, %v6289
      %v6291 = vpop.f32.mrb[0].mxu0
      %6292 = vmatprep.mubr.bf16.mxu0 0
      %6293 = vmatmul.mubr.bf16.gmra.mrb[0].mxu0 %v5168
      %v6294 = vpop.f32.mrb[0].mxu0
      %v6295 = vadd.f32 %v6134, %v6294
      %v6296 = vpop.f32.mrb[0].mxu0
      %v6297 = vpop.f32.mrb[0].mxu0
      %v6298 = vadd.f32 %v6137, %v6297
      %v6299 = vpop.f32.mrb[0].mxu0
      %6300 = vdwg.mxu0
      %v6301 = vtanh.pop %v6175
      %v6302 = vtanh.pop %v6178
      %v6303 = vtanh.pop %v6183
      %v6304 = vtanh.pop %v6186
      %v6305 = vtanh.pop %v6191
      %v6306 = vtanh.pop %v6194
      %v6307 = vtanh.pop %v6199
      %v6308 = vtanh.pop %v6202
      %v6309 = vtanh.pop %v6207
      %v6310 = vtanh.pop %v6210
      %v6311 = vtanh.pop %v6215
      %v6312 = vtanh.pop %v6218
      %v6313 = vtanh.pop %v6223
      %v6314 = vtanh.pop %v6226
      %v6315 = vtanh.pop %v6231
      %v6316 = vtanh.pop %v6234
      %v6317 = vtanh.pop %v6239
      %v6318 = vtanh.pop %v6242
      %v6319 = vtanh.pop %v6247
      %v6320 = vtanh.pop %v6250
      %v6321 = vtanh.pop %v6255
      %v6322 = vtanh.pop %v6258
      %v6323 = vtanh.pop %v6263
      %v6324 = vtanh.pop %v6266
      %v6325 = vtanh.pop %v6271
      %v6326 = vtanh.pop %v6274
      %v6327 = vtanh.pop %v6279
      %v6328 = vtanh.pop %v6282
      %v6329 = vtanh.pop %v6287
      %v6330 = vtanh.pop %v6290
      %v6331 = vtanh.pop %v6295
      %v6332 = vtanh.pop %v6298
      %v6333 = vld [vmem:[%s5] sm:$0xf]
      %v6334 = vld [vmem:[%s5 + $0x4] sm:$0xf]
      %v6335 = vld [vmem:[%s5 + $0x8] sm:$0xf]
      %v6336 = vld [vmem:[%s5 + $0xc] sm:$0xf]
      %v6337 = vld [vmem:[%s5 + $0x10] sm:$0xf]
      %v6338 = vld [vmem:[%s5 + $0x14] sm:$0xf]
      %v6339 = vld [vmem:[%s5 + $0x18] sm:$0xf]
      %v6340 = vld [vmem:[%s5 + $0x1c] sm:$0xf]
      %v6341 = vld [vmem:[%s5 + $0x20] sm:$0xf]
      %v6342 = vld [vmem:[%s5 + $0x24] sm:$0xf]
      %v6343 = vld [vmem:[%s5 + $0x28] sm:$0xf]
      %v6344 = vld [vmem:[%s5 + $0x2c] sm:$0xf]
      %v6345 = vld [vmem:[%s5 + $0x30] sm:$0xf]
      %v6346 = vld [vmem:[%s5 + $0x34] sm:$0xf]
      %v6347 = vld [vmem:[%s5 + $0x38] sm:$0xf]
      %v6348 = vld [vmem:[%s5 + $0x3c] sm:$0xf]
      %v6349 = vld [vmem:[%s5 + $0x40] sm:$0xf]
      %v6350 = vld [vmem:[%s5 + $0x44] sm:$0xf]
      %v6351 = vld [vmem:[%s5 + $0x48] sm:$0xf]
      %v6352 = vld [vmem:[%s5 + $0x4c] sm:$0xf]
      %v6353 = vld [vmem:[%s5 + $0x50] sm:$0xf]
      %v6354 = vld [vmem:[%s5 + $0x54] sm:$0xf]
      %v6355 = vld [vmem:[%s5 + $0x58] sm:$0xf]
      %v6356 = vld [vmem:[%s5 + $0x5c] sm:$0xf]
      %v6357 = vld [vmem:[%s5 + $0x60] sm:$0xf]
      %v6358 = vld [vmem:[%s5 + $0x64] sm:$0xf]
      %v6359 = vld [vmem:[%s5 + $0x68] sm:$0xf]
      %v6360 = vld [vmem:[%s5 + $0x6c] sm:$0xf]
      %v6361 = vld [vmem:[%s5 + $0x70] sm:$0xf]
      %v6362 = vld [vmem:[%s5 + $0x74] sm:$0xf]
      %v6363 = vld [vmem:[%s5 + $0x78] sm:$0xf]
      %v6364 = vld [vmem:[%s5 + $0x7c] sm:$0xf]
      %v6365 = vld [vmem:[%s5 + $0x80] sm:$0xf]
      %v6366 = vld [vmem:[%s5 + $0x84] sm:$0xf]
      %v6367 = vld [vmem:[%s5 + $0x88] sm:$0xf]
      %v6368 = vld [vmem:[%s5 + $0x8c] sm:$0xf]
      %v6369 = vld [vmem:[%s5 + $0x90] sm:$0xf]
      %v6370 = vld [vmem:[%s5 + $0x94] sm:$0xf]
      %v6371 = vld [vmem:[%s5 + $0x98] sm:$0xf]
      %v6372 = vld [vmem:[%s5 + $0x9c] sm:$0xf]
      %v6373 = vld [vmem:[%s5 + $0xa0] sm:$0xf]
      %v6374 = vld [vmem:[%s5 + $0xa4] sm:$0xf]
      %v6375 = vld [vmem:[%s5 + $0xa8] sm:$0xf]
      %v6376 = vld [vmem:[%s5 + $0xac] sm:$0xf]
      %v6377 = vld [vmem:[%s5 + $0xb0] sm:$0xf]
      %v6378 = vld [vmem:[%s5 + $0xb4] sm:$0xf]
      %v6379 = vld [vmem:[%s5 + $0xb8] sm:$0xf]
      %v6380 = vld [vmem:[%s5 + $0xbc] sm:$0xf]
      %v6381 = vld [vmem:[%s5 + $0xc0] sm:$0xf]
      %v6382 = vld [vmem:[%s5 + $0xc4] sm:$0xf]
      %v6383 = vld [vmem:[%s5 + $0xc8] sm:$0xf]
      %v6384 = vld [vmem:[%s5 + $0xcc] sm:$0xf]
      %v6385 = vld [vmem:[%s5 + $0xd0] sm:$0xf]
      %v6386 = vld [vmem:[%s5 + $0xd4] sm:$0xf]
      %v6387 = vld [vmem:[%s5 + $0xd8] sm:$0xf]
      %v6388 = vld [vmem:[%s5 + $0xdc] sm:$0xf]
      %v6389 = vld [vmem:[%s5 + $0xe0] sm:$0xf]
      %v6390 = vld [vmem:[%s5 + $0xe4] sm:$0xf]
      %v6391 = vld [vmem:[%s5 + $0xe8] sm:$0xf]
      %v6392 = vld [vmem:[%s5 + $0xec] sm:$0xf]
      %v6393 = vld [vmem:[%s5 + $0xf0] sm:$0xf]
      %v6394 = vld [vmem:[%s5 + $0xf4] sm:$0xf]
      %v6395 = vld [vmem:[%s5 + $0xf8] sm:$0xf]
      %v6396 = vld [vmem:[%s5 + $0xfc] sm:$0xf]
      %v6397 = vld [vmem:[%s5 + $0x100] sm:$0xf]
      %v6398 = vld [vmem:[%s5 + $0x104] sm:$0xf]
      %v6399 = vld [vmem:[%s5 + $0x108] sm:$0xf]
      %v6400 = vld [vmem:[%s5 + $0x10c] sm:$0xf]
      %v6401 = vld [vmem:[%s5 + $0x110] sm:$0xf]
      %v6402 = vld [vmem:[%s5 + $0x114] sm:$0xf]
      %v6403 = vld [vmem:[%s5 + $0x118] sm:$0xf]
      %v6404 = vld [vmem:[%s5 + $0x11c] sm:$0xf]
      %v6405 = vld [vmem:[%s5 + $0x120] sm:$0xf]
      %v6406 = vld [vmem:[%s5 + $0x124] sm:$0xf]
      %v6407 = vld [vmem:[%s5 + $0x128] sm:$0xf]
      %v6408 = vld [vmem:[%s5 + $0x12c] sm:$0xf]
      %v6409 = vld [vmem:[%s5 + $0x130] sm:$0xf]
      %v6410 = vld [vmem:[%s5 + $0x134] sm:$0xf]
      %v6411 = vld [vmem:[%s5 + $0x138] sm:$0xf]
      %v6412 = vld [vmem:[%s5 + $0x13c] sm:$0xf]
      %v6413 = vld [vmem:[%s5 + $0x140] sm:$0xf]
      %v6414 = vld [vmem:[%s5 + $0x144] sm:$0xf]
      %v6415 = vld [vmem:[%s5 + $0x148] sm:$0xf]
      %v6416 = vld [vmem:[%s5 + $0x14c] sm:$0xf]
      %v6417 = vld [vmem:[%s5 + $0x150] sm:$0xf]
      %v6418 = vld [vmem:[%s5 + $0x154] sm:$0xf]
      %v6419 = vld [vmem:[%s5 + $0x158] sm:$0xf]
      %v6420 = vld [vmem:[%s5 + $0x15c] sm:$0xf]
      %v6421 = vld [vmem:[%s5 + $0x160] sm:$0xf]
      %v6422 = vld [vmem:[%s5 + $0x164] sm:$0xf]
      %v6423 = vld [vmem:[%s5 + $0x168] sm:$0xf]
      %v6424 = vld [vmem:[%s5 + $0x16c] sm:$0xf]
      %v6425 = vld [vmem:[%s5 + $0x170] sm:$0xf]
      %v6426 = vld [vmem:[%s5 + $0x174] sm:$0xf]
      %v6427 = vld [vmem:[%s5 + $0x178] sm:$0xf]
      %v6428 = vld [vmem:[%s5 + $0x17c] sm:$0xf]
      %v6429 = vld [vmem:[%s5 + $0x180] sm:$0xf]
      %v6430 = vld [vmem:[%s5 + $0x184] sm:$0xf]
      %v6431 = vld [vmem:[%s5 + $0x188] sm:$0xf]
      %v6432 = vld [vmem:[%s5 + $0x18c] sm:$0xf]
      %v6433 = vld [vmem:[%s6] sm:$0x1]
      %v6434 = vpack.c.bf16 %v6302, %v6301
      %v6435 = vpack.c.bf16 %v6304, %v6303
      %v6436 = vpack.c.bf16 %v6306, %v6305
      %v6437 = vpack.c.bf16 %v6308, %v6307
      %v6438 = vpack.c.bf16 %v6310, %v6309
      %v6439 = vpack.c.bf16 %v6312, %v6311
      %v6440 = vpack.c.bf16 %v6314, %v6313
      %v6441 = vpack.c.bf16 %v6316, %v6315
      %v6442 = vpack.c.bf16 %v6318, %v6317
      %v6443 = vpack.c.bf16 %v6320, %v6319
      %v6444 = vpack.c.bf16 %v6322, %v6321
      %v6445 = vpack.c.bf16 %v6324, %v6323
      %v6446 = vpack.c.bf16 %v6326, %v6325
      %v6447 = vpack.c.bf16 %v6328, %v6327
      %v6448 = vpack.c.bf16 %v6330, %v6329
      %v6449 = vpack.c.bf16 %v6332, %v6331
      %v6466 = vrot.slane %v6436, 1
      %v6467 = vrot.slane %v6435, 1
      %v6468 = vrot.slane %v6434, 1
      %v6469 = vrot.slane %v6437, 1
      %v6470 = vrot.slane %v6438, 1
      %v6471 = vrot.slane %v6439, 1
      %v6472 = vrot.slane %v6440, 1
      %v6473 = vrot.slane %v6441, 1
      %v6474 = vrot.slane %v6442, 1
      %v6475 = vrot.slane %v6443, 1
      %v6476 = vrot.slane %v6444, 1
      %v6477 = vrot.slane %v6445, 1
      %v6478 = vrot.slane %v6446, 1
      %v6479 = vrot.slane %v6447, 1
      %v6480 = vrot.slane %v6448, 1
      %v6481 = vrot.slane %v6449, 1
      %v6498 = vrot.slane %v6436, 7
      %v6499 = vrot.slane %v6435, 7
      %v6500 = vrot.slane %v6434, 7
      %v6501 = vrot.slane %v6437, 7
      %v6502 = vrot.slane %v6438, 7
      %v6503 = vrot.slane %v6439, 7
      %v6504 = vrot.slane %v6440, 7
      %v6505 = vrot.slane %v6441, 7
      %v6506 = vrot.slane %v6442, 7
      %v6507 = vrot.slane %v6443, 7
      %v6508 = vrot.slane %v6444, 7
      %v6509 = vrot.slane %v6445, 7
      %v6510 = vrot.slane %v6446, 7
      %v6511 = vrot.slane %v6447, 7
      %v6512 = vrot.slane %v6448, 7
      %v6513 = vrot.slane %v6449, 7
      %v6514 = vrot.slane %v6436, 6
      %v6515 = vrot.slane %v6435, 6
      %v6516 = vrot.slane %v6434, 6
      %v6517 = vrot.slane %v6437, 6
      %v6518 = vrot.slane %v6438, 6
      %v6519 = vrot.slane %v6439, 6
      %v6520 = vrot.slane %v6440, 6
      %v6521 = vrot.slane %v6441, 6
      %v6522 = vrot.slane %v6442, 6
      %v6523 = vrot.slane %v6443, 6
      %v6524 = vrot.slane %v6444, 6
      %v6525 = vrot.slane %v6445, 6
      %v6526 = vrot.slane %v6446, 6
      %v6527 = vrot.slane %v6447, 6
      %v6528 = vrot.slane %v6448, 6
      %v6529 = vrot.slane %v6449, 6
      %v6530 = vrot.slane %v6436, 5
      %v6531 = vrot.slane %v6435, 5
      %v6532 = vrot.slane %v6434, 5
      %v6533 = vrot.slane %v6437, 5
      %v6534 = vrot.slane %v6438, 5
      %v6535 = vrot.slane %v6439, 5
      %v6536 = vrot.slane %v6440, 5
      %v6537 = vrot.slane %v6441, 5
      %v6538 = vrot.slane %v6442, 5
      %v6539 = vrot.slane %v6443, 5
      %v6540 = vrot.slane %v6444, 5
      %v6541 = vrot.slane %v6445, 5
      %v6542 = vrot.slane %v6446, 5
      %v6543 = vrot.slane %v6447, 5
      %v6544 = vrot.slane %v6448, 5
      %v6545 = vrot.slane %v6449, 5
      %v6562 = vsel %vm564, %v6466, %v6436
      %v6563 = vsel %vm564, %v6467, %v6435
      %v6564 = vsel %vm564, %v6468, %v6434
      %v6565 = vsel %vm564, %v6469, %v6437
      %v6566 = vsel %vm564, %v6470, %v6438
      %v6567 = vsel %vm564, %v6471, %v6439
      %v6568 = vsel %vm564, %v6472, %v6440
      %v6569 = vsel %vm564, %v6473, %v6441
      %v6570 = vsel %vm564, %v6474, %v6442
      %v6571 = vsel %vm564, %v6475, %v6443
      %v6572 = vsel %vm564, %v6476, %v6444
      %v6573 = vsel %vm564, %v6477, %v6445
      %v6574 = vsel %vm564, %v6478, %v6446
      %v6575 = vsel %vm564, %v6479, %v6447
      %v6576 = vsel %vm564, %v6480, %v6448
      %v6577 = vsel %vm564, %v6481, %v6449
      %v6580 = vsel %vm581, %v6562, %v6498
      %v6583 = vsel %vm581, %v6563, %v6499
      %v6586 = vsel %vm581, %v6564, %v6500
      %v6589 = vsel %vm581, %v6565, %v6501
      %v6592 = vsel %vm581, %v6566, %v6502
      %v6595 = vsel %vm581, %v6567, %v6503
      %v6598 = vsel %vm581, %v6568, %v6504
      %v6601 = vsel %vm581, %v6569, %v6505
      %v6604 = vsel %vm581, %v6570, %v6506
      %v6607 = vsel %vm581, %v6571, %v6507
      %v6610 = vsel %vm581, %v6572, %v6508
      %v6613 = vsel %vm581, %v6573, %v6509
      %v6616 = vsel %vm581, %v6574, %v6510
      %v6619 = vsel %vm581, %v6575, %v6511
      %v6622 = vsel %vm581, %v6576, %v6512
      %v6625 = vsel %vm581, %v6577, %v6513
      %v6627 = vsel %vm581, %v6498, %v6514
      %v6630 = vsel %vm581, %v6499, %v6515
      %v6633 = vsel %vm581, %v6500, %v6516
      %v6636 = vsel %vm581, %v6501, %v6517
      %v6639 = vsel %vm581, %v6502, %v6518
      %v6642 = vsel %vm581, %v6503, %v6519
      %v6645 = vsel %vm581, %v6504, %v6520
      %v6648 = vsel %vm581, %v6505, %v6521
      %v6651 = vsel %vm581, %v6506, %v6522
      %v6654 = vsel %vm581, %v6507, %v6523
      %v6657 = vsel %vm581, %v6508, %v6524
      %v6660 = vsel %vm581, %v6509, %v6525
      %v6663 = vsel %vm581, %v6510, %v6526
      %v6666 = vsel %vm581, %v6511, %v6527
      %v6669 = vsel %vm581, %v6512, %v6528
      %v6672 = vsel %vm581, %v6513, %v6529
      %v6674 = vsel %vm648, %v6627, %v6530
      %v6675 = vsel %vm648, %v6630, %v6531
      %v6676 = vsel %vm648, %v6633, %v6532
      %v6677 = vsel %vm648, %v6636, %v6533
      %v6678 = vsel %vm648, %v6639, %v6534
      %v6679 = vsel %vm648, %v6642, %v6535
      %v6680 = vsel %vm648, %v6645, %v6536
      %v6681 = vsel %vm648, %v6648, %v6537
      %v6682 = vsel %vm648, %v6651, %v6538
      %v6683 = vsel %vm648, %v6654, %v6539
      %v6684 = vsel %vm648, %v6657, %v6540
      %v6685 = vsel %vm648, %v6660, %v6541
      %v6686 = vsel %vm648, %v6663, %v6542
      %v6687 = vsel %vm648, %v6666, %v6543
      %v6688 = vsel %vm648, %v6669, %v6544
      %v6689 = vsel %vm648, %v6672, %v6545
      %v6690 = vshrl.u32 %v6580, 16
      %v6692 = vshll.u32 %v6580, 16
      %v6694 = vrot.slane %v6692, 1
      %v6695 = vor.u32 %v6690, %v6694
      %v6697 = vshll.u32 %v6674, 16
      %v6699 = vrot.slane %v6697, 1
      %v6700 = vsel %vm865, %v6695, %v6699
      %v6701 = vshrl.u32 %v6583, 16
      %v6703 = vshll.u32 %v6583, 16
      %v6705 = vrot.slane %v6703, 1
      %v6706 = vor.u32 %v6701, %v6705
      %v6708 = vshll.u32 %v6675, 16
      %v6710 = vrot.slane %v6708, 1
      %v6711 = vsel %vm865, %v6706, %v6710
      %v6712 = vshrl.u32 %v6586, 16
      %v6714 = vshll.u32 %v6586, 16
      %v6716 = vrot.slane %v6714, 1
      %v6717 = vor.u32 %v6712, %v6716
      %v6719 = vshll.u32 %v6676, 16
      %v6721 = vrot.slane %v6719, 1
      %v6722 = vsel %vm865, %v6717, %v6721
      %v6723 = vshrl.u32 %v6589, 16
      %v6725 = vshll.u32 %v6589, 16
      %v6727 = vrot.slane %v6725, 1
      %v6728 = vor.u32 %v6723, %v6727
      %v6730 = vshll.u32 %v6677, 16
      %v6732 = vrot.slane %v6730, 1
      %v6733 = vsel %vm865, %v6728, %v6732
      %v6734 = vshrl.u32 %v6592, 16
      %v6736 = vshll.u32 %v6592, 16
      %v6738 = vrot.slane %v6736, 1
      %v6739 = vor.u32 %v6734, %v6738
      %v6741 = vshll.u32 %v6678, 16
      %v6743 = vrot.slane %v6741, 1
      %v6744 = vsel %vm865, %v6739, %v6743
      %v6745 = vshrl.u32 %v6595, 16
      %v6747 = vshll.u32 %v6595, 16
      %v6749 = vrot.slane %v6747, 1
      %v6750 = vor.u32 %v6745, %v6749
      %v6752 = vshll.u32 %v6679, 16
      %v6754 = vrot.slane %v6752, 1
      %v6755 = vsel %vm865, %v6750, %v6754
      %v6756 = vshrl.u32 %v6598, 16
      %v6758 = vshll.u32 %v6598, 16
      %v6760 = vrot.slane %v6758, 1
      %v6761 = vor.u32 %v6756, %v6760
      %v6763 = vshll.u32 %v6680, 16
      %v6765 = vrot.slane %v6763, 1
      %v6766 = vsel %vm865, %v6761, %v6765
      %v6767 = vshrl.u32 %v6601, 16
      %v6769 = vshll.u32 %v6601, 16
      %v6771 = vrot.slane %v6769, 1
      %v6772 = vor.u32 %v6767, %v6771
      %v6774 = vshll.u32 %v6681, 16
      %v6776 = vrot.slane %v6774, 1
      %v6777 = vsel %vm865, %v6772, %v6776
      %v6778 = vshrl.u32 %v6604, 16
      %v6780 = vshll.u32 %v6604, 16
      %v6782 = vrot.slane %v6780, 1
      %v6783 = vor.u32 %v6778, %v6782
      %v6785 = vshll.u32 %v6682, 16
      %v6787 = vrot.slane %v6785, 1
      %v6788 = vsel %vm865, %v6783, %v6787
      %v6789 = vshrl.u32 %v6607, 16
      %v6791 = vshll.u32 %v6607, 16
      %v6793 = vrot.slane %v6791, 1
      %v6794 = vor.u32 %v6789, %v6793
      %v6796 = vshll.u32 %v6683, 16
      %v6798 = vrot.slane %v6796, 1
      %v6799 = vsel %vm865, %v6794, %v6798
      %v6800 = vshrl.u32 %v6610, 16
      %v6802 = vshll.u32 %v6610, 16
      %v6804 = vrot.slane %v6802, 1
      %v6805 = vor.u32 %v6800, %v6804
      %v6807 = vshll.u32 %v6684, 16
      %v6809 = vrot.slane %v6807, 1
      %v6810 = vsel %vm865, %v6805, %v6809
      %v6811 = vshrl.u32 %v6613, 16
      %v6813 = vshll.u32 %v6613, 16
      %v6815 = vrot.slane %v6813, 1
      %v6816 = vor.u32 %v6811, %v6815
      %v6818 = vshll.u32 %v6685, 16
      %v6820 = vrot.slane %v6818, 1
      %v6821 = vsel %vm865, %v6816, %v6820
      %v6822 = vshrl.u32 %v6616, 16
      %v6824 = vshll.u32 %v6616, 16
      %v6826 = vrot.slane %v6824, 1
      %v6827 = vor.u32 %v6822, %v6826
      %v6829 = vshll.u32 %v6686, 16
      %v6831 = vrot.slane %v6829, 1
      %v6832 = vsel %vm865, %v6827, %v6831
      %v6833 = vshrl.u32 %v6619, 16
      %v6835 = vshll.u32 %v6619, 16
      %v6837 = vrot.slane %v6835, 1
      %v6838 = vor.u32 %v6833, %v6837
      %v6840 = vshll.u32 %v6687, 16
      %v6842 = vrot.slane %v6840, 1
      %v6843 = vsel %vm865, %v6838, %v6842
      %v6872 = vrot.slane %v6580, 1
      %v6873 = vrot.slane %v6674, 1
      %v6874 = vsel %vm1022, %v6872, %v6873
      %v6875 = vrot.slane %v6583, 1
      %v6876 = vrot.slane %v6675, 1
      %v6877 = vsel %vm1022, %v6875, %v6876
      %v6878 = vrot.slane %v6586, 1
      %v6879 = vrot.slane %v6676, 1
      %v6880 = vsel %vm1022, %v6878, %v6879
      %v6881 = vrot.slane %v6589, 1
      %v6882 = vrot.slane %v6677, 1
      %v6883 = vsel %vm1022, %v6881, %v6882
      %v6884 = vrot.slane %v6592, 1
      %v6885 = vrot.slane %v6678, 1
      %v6886 = vsel %vm1022, %v6884, %v6885
      %v6887 = vrot.slane %v6595, 1
      %v6888 = vrot.slane %v6679, 1
      %v6889 = vsel %vm1022, %v6887, %v6888
      %v6890 = vrot.slane %v6598, 1
      %v6891 = vrot.slane %v6680, 1
      %v6892 = vsel %vm1022, %v6890, %v6891
      %v6893 = vrot.slane %v6601, 1
      %v6894 = vrot.slane %v6681, 1
      %v6895 = vsel %vm1022, %v6893, %v6894
      %v6896 = vrot.slane %v6604, 1
      %v6897 = vrot.slane %v6682, 1
      %v6898 = vsel %vm1022, %v6896, %v6897
      %v6899 = vrot.slane %v6607, 1
      %v6900 = vrot.slane %v6683, 1
      %v6901 = vsel %vm1022, %v6899, %v6900
      %v6902 = vrot.slane %v6610, 1
      %v6903 = vrot.slane %v6684, 1
      %v6904 = vsel %vm1022, %v6902, %v6903
      %v6905 = vrot.slane %v6613, 1
      %v6906 = vrot.slane %v6685, 1
      %v6907 = vsel %vm1022, %v6905, %v6906
      %v6908 = vrot.slane %v6616, 1
      %v6909 = vrot.slane %v6686, 1
      %v6910 = vsel %vm1022, %v6908, %v6909
      %v6911 = vrot.slane %v6619, 1
      %v6912 = vrot.slane %v6687, 1
      %v6913 = vsel %vm1022, %v6911, %v6912
      %v6914 = vrot.slane %v6690, 1
      %v6915 = vrot.slane %v6692, 2
      %v6916 = vor.u32 %v6914, %v6915
      %v6917 = vshrl.u32 %v6674, 16
      %v6919 = vrot.slane %v6917, 1
      %v6920 = vrot.slane %v6697, 2
      %v6921 = vor.u32 %v6919, %v6920
      %v6922 = vsel %vm1059, %v6916, %v6921
      %v6923 = vrot.slane %v6701, 1
      %v6924 = vrot.slane %v6703, 2
      %v6925 = vor.u32 %v6923, %v6924
      %v6926 = vshrl.u32 %v6675, 16
      %v6928 = vrot.slane %v6926, 1
      %v6929 = vrot.slane %v6708, 2
      %v6930 = vor.u32 %v6928, %v6929
      %v6931 = vsel %vm1059, %v6925, %v6930
      %v6932 = vrot.slane %v6712, 1
      %v6933 = vrot.slane %v6714, 2
      %v6934 = vor.u32 %v6932, %v6933
      %v6935 = vshrl.u32 %v6676, 16
      %v6937 = vrot.slane %v6935, 1
      %v6938 = vrot.slane %v6719, 2
      %v6939 = vor.u32 %v6937, %v6938
      %v6940 = vsel %vm1059, %v6934, %v6939
      %v6941 = vrot.slane %v6723, 1
      %v6942 = vrot.slane %v6725, 2
      %v6943 = vor.u32 %v6941, %v6942
      %v6944 = vshrl.u32 %v6677, 16
      %v6946 = vrot.slane %v6944, 1
      %v6947 = vrot.slane %v6730, 2
      %v6948 = vor.u32 %v6946, %v6947
      %v6949 = vsel %vm1059, %v6943, %v6948
      %v6950 = vrot.slane %v6734, 1
      %v6951 = vrot.slane %v6736, 2
      %v6952 = vor.u32 %v6950, %v6951
      %v6953 = vshrl.u32 %v6678, 16
      %v6955 = vrot.slane %v6953, 1
      %v6956 = vrot.slane %v6741, 2
      %v6957 = vor.u32 %v6955, %v6956
      %v6958 = vsel %vm1059, %v6952, %v6957
      %v6959 = vrot.slane %v6745, 1
      %v6960 = vrot.slane %v6747, 2
      %v6961 = vor.u32 %v6959, %v6960
      %v6962 = vshrl.u32 %v6679, 16
      %v6964 = vrot.slane %v6962, 1
      %v6965 = vrot.slane %v6752, 2
      %v6966 = vor.u32 %v6964, %v6965
      %v6967 = vsel %vm1059, %v6961, %v6966
      %v6968 = vrot.slane %v6756, 1
      %v6969 = vrot.slane %v6758, 2
      %v6970 = vor.u32 %v6968, %v6969
      %v6971 = vshrl.u32 %v6680, 16
      %v6973 = vrot.slane %v6971, 1
      %v6974 = vrot.slane %v6763, 2
      %v6975 = vor.u32 %v6973, %v6974
      %v6976 = vsel %vm1059, %v6970, %v6975
      %v6977 = vrot.slane %v6767, 1
      %v6978 = vrot.slane %v6769, 2
      %v6979 = vor.u32 %v6977, %v6978
      %v6980 = vshrl.u32 %v6681, 16
      %v6982 = vrot.slane %v6980, 1
      %v6983 = vrot.slane %v6774, 2
      %v6984 = vor.u32 %v6982, %v6983
      %v6985 = vsel %vm1059, %v6979, %v6984
      %v6986 = vrot.slane %v6778, 1
      %v6987 = vrot.slane %v6780, 2
      %v6988 = vor.u32 %v6986, %v6987
      %v6989 = vshrl.u32 %v6682, 16
      %v6991 = vrot.slane %v6989, 1
      %v6992 = vrot.slane %v6785, 2
      %v6993 = vor.u32 %v6991, %v6992
      %v6994 = vsel %vm1059, %v6988, %v6993
      %v6995 = vrot.slane %v6789, 1
      %v6996 = vrot.slane %v6791, 2
      %v6997 = vor.u32 %v6995, %v6996
      %v6998 = vshrl.u32 %v6683, 16
      %v7000 = vrot.slane %v6998, 1
      %v7001 = vrot.slane %v6796, 2
      %v7002 = vor.u32 %v7000, %v7001
      %v7003 = vsel %vm1059, %v6997, %v7002
      %v7004 = vrot.slane %v6800, 1
      %v7005 = vrot.slane %v6802, 2
      %v7006 = vor.u32 %v7004, %v7005
      %v7007 = vshrl.u32 %v6684, 16
      %v7009 = vrot.slane %v7007, 1
      %v7010 = vrot.slane %v6807, 2
      %v7011 = vor.u32 %v7009, %v7010
      %v7012 = vsel %vm1059, %v7006, %v7011
      %v7013 = vrot.slane %v6811, 1
      %v7014 = vrot.slane %v6813, 2
      %v7015 = vor.u32 %v7013, %v7014
      %v7016 = vshrl.u32 %v6685, 16
      %v7018 = vrot.slane %v7016, 1
      %v7019 = vrot.slane %v6818, 2
      %v7020 = vor.u32 %v7018, %v7019
      %v7021 = vsel %vm1059, %v7015, %v7020
      %v7022 = vrot.slane %v6822, 1
      %v7023 = vrot.slane %v6824, 2
      %v7024 = vor.u32 %v7022, %v7023
      %v7025 = vshrl.u32 %v6686, 16
      %v7027 = vrot.slane %v7025, 1
      %v7028 = vrot.slane %v6829, 2
      %v7029 = vor.u32 %v7027, %v7028
      %v7030 = vsel %vm1059, %v7024, %v7029
      %v7031 = vrot.slane %v6833, 1
      %v7032 = vrot.slane %v6835, 2
      %v7033 = vor.u32 %v7031, %v7032
      %v7034 = vshrl.u32 %v6687, 16
      %v7036 = vrot.slane %v7034, 1
      %v7037 = vrot.slane %v6840, 2
      %v7038 = vor.u32 %v7036, %v7037
      %v7039 = vsel %vm1059, %v7033, %v7038
      %v7040 = vrot.slane %v6580, 2
      %v7041 = vrot.slane %v6674, 2
      %v7042 = vsel %vm1168, %v7040, %v7041
      %v7043 = vrot.slane %v6583, 2
      %v7044 = vrot.slane %v6675, 2
      %v7045 = vsel %vm1168, %v7043, %v7044
      %v7046 = vrot.slane %v6586, 2
      %v7047 = vrot.slane %v6676, 2
      %v7048 = vsel %vm1168, %v7046, %v7047
      %v7049 = vrot.slane %v6589, 2
      %v7050 = vrot.slane %v6677, 2
      %v7051 = vsel %vm1168, %v7049, %v7050
      %v7052 = vrot.slane %v6592, 2
      %v7053 = vrot.slane %v6678, 2
      %v7054 = vsel %vm1168, %v7052, %v7053
      %v7055 = vrot.slane %v6595, 2
      %v7056 = vrot.slane %v6679, 2
      %v7057 = vsel %vm1168, %v7055, %v7056
      %v7058 = vrot.slane %v6598, 2
      %v7059 = vrot.slane %v6680, 2
      %v7060 = vsel %vm1168, %v7058, %v7059
      %v7061 = vrot.slane %v6601, 2
      %v7062 = vrot.slane %v6681, 2
      %v7063 = vsel %vm1168, %v7061, %v7062
      %v7064 = vrot.slane %v6604, 2
      %v7065 = vrot.slane %v6682, 2
      %v7066 = vsel %vm1168, %v7064, %v7065
      %v7067 = vrot.slane %v6607, 2
      %v7068 = vrot.slane %v6683, 2
      %v7069 = vsel %vm1168, %v7067, %v7068
      %v7070 = vrot.slane %v6610, 2
      %v7071 = vrot.slane %v6684, 2
      %v7072 = vsel %vm1168, %v7070, %v7071
      %v7073 = vrot.slane %v6613, 2
      %v7074 = vrot.slane %v6685, 2
      %v7075 = vsel %vm1168, %v7073, %v7074
      %v7076 = vrot.slane %v6616, 2
      %v7077 = vrot.slane %v6686, 2
      %v7078 = vsel %vm1168, %v7076, %v7077
      %v7079 = vrot.slane %v6619, 2
      %v7080 = vrot.slane %v6687, 2
      %v7081 = vsel %vm1168, %v7079, %v7080
      %7082 = vrot.lane.b32.xlu0 %v6700, 32
      %v7083 = vpop.permute.xlu0 %7082
      %7084 = vrot.lane.b32.xlu0 %v6711, 32
      %v7085 = vpop.permute.xlu0 %7084
      %7086 = vrot.lane.b32.xlu0 %v6722, 32
      %v7087 = vpop.permute.xlu0 %7086
      %7088 = vrot.lane.b32.xlu0 %v6733, 32
      %v7089 = vpop.permute.xlu0 %7088
      %7090 = vrot.lane.b32.xlu0 %v6744, 32
      %v7091 = vpop.permute.xlu0 %7090
      %7092 = vrot.lane.b32.xlu0 %v6755, 32
      %v7093 = vpop.permute.xlu0 %7092
      %7094 = vrot.lane.b32.xlu0 %v6766, 32
      %v7095 = vpop.permute.xlu0 %7094
      %7096 = vrot.lane.b32.xlu0 %v6777, 32
      %v7097 = vpop.permute.xlu0 %7096
      %7098 = vrot.lane.b32.xlu0 %v6788, 32
      %v7099 = vpop.permute.xlu0 %7098
      %7100 = vrot.lane.b32.xlu0 %v6799, 32
      %v7101 = vpop.permute.xlu0 %7100
      %7102 = vrot.lane.b32.xlu0 %v6810, 32
      %v7103 = vpop.permute.xlu0 %7102
      %7104 = vrot.lane.b32.xlu0 %v6821, 32
      %v7105 = vpop.permute.xlu0 %7104
      %7106 = vrot.lane.b32.xlu0 %v6832, 32
      %v7107 = vpop.permute.xlu0 %7106
      %7108 = vrot.lane.b32.xlu0 %v6843, 32
      %v7109 = vpop.permute.xlu0 %7108
      %7110 = vrot.lane.b32.xlu0 %v6874, 64
      %v7111 = vpop.permute.xlu0 %7110
      %7112 = vrot.lane.b32.xlu0 %v6877, 64
      %v7113 = vpop.permute.xlu0 %7112
      %7114 = vrot.lane.b32.xlu0 %v6880, 64
      %v7115 = vpop.permute.xlu0 %7114
      %7116 = vrot.lane.b32.xlu0 %v6883, 64
      %v7117 = vpop.permute.xlu0 %7116
      %7118 = vrot.lane.b32.xlu0 %v6886, 64
      %v7119 = vpop.permute.xlu0 %7118
      %7120 = vrot.lane.b32.xlu0 %v6889, 64
      %v7121 = vpop.permute.xlu0 %7120
      %7122 = vrot.lane.b32.xlu0 %v6892, 64
      %v7123 = vpop.permute.xlu0 %7122
      %7124 = vrot.lane.b32.xlu0 %v6895, 64
      %v7125 = vpop.permute.xlu0 %7124
      %7126 = vrot.lane.b32.xlu0 %v6898, 64
      %v7127 = vpop.permute.xlu0 %7126
      %7128 = vrot.lane.b32.xlu0 %v6901, 64
      %v7129 = vpop.permute.xlu0 %7128
      %7130 = vrot.lane.b32.xlu0 %v6904, 64
      %v7131 = vpop.permute.xlu0 %7130
      %7132 = vrot.lane.b32.xlu0 %v6907, 64
      %v7133 = vpop.permute.xlu0 %7132
      %7134 = vrot.lane.b32.xlu0 %v6910, 64
      %v7135 = vpop.permute.xlu0 %7134
      %7136 = vrot.lane.b32.xlu0 %v6913, 64
      %v7137 = vpop.permute.xlu0 %7136
      %7138 = vrot.lane.b32.xlu0 %v6922, 96
      %v7139 = vpop.permute.xlu0 %7138
      %7140 = vrot.lane.b32.xlu0 %v6931, 96
      %v7141 = vpop.permute.xlu0 %7140
      %7142 = vrot.lane.b32.xlu0 %v6940, 96
      %v7143 = vpop.permute.xlu0 %7142
      %7144 = vrot.lane.b32.xlu0 %v6949, 96
      %v7145 = vpop.permute.xlu0 %7144
      %7146 = vrot.lane.b32.xlu0 %v6958, 96
      %v7147 = vpop.permute.xlu0 %7146
      %7148 = vrot.lane.b32.xlu0 %v6967, 96
      %v7149 = vpop.permute.xlu0 %7148
      %7150 = vrot.lane.b32.xlu0 %v6976, 96
      %v7151 = vpop.permute.xlu0 %7150
      %7152 = vrot.lane.b32.xlu0 %v6985, 96
      %v7153 = vpop.permute.xlu0 %7152
      %7154 = vrot.lane.b32.xlu0 %v6994, 96
      %v7155 = vpop.permute.xlu0 %7154
      %7156 = vrot.lane.b32.xlu0 %v7003, 96
      %v7157 = vpop.permute.xlu0 %7156
      %7158 = vrot.lane.b32.xlu0 %v7012, 96
      %v7159 = vpop.permute.xlu0 %7158
      %7160 = vrot.lane.b32.xlu0 %v7021, 96
      %v7161 = vpop.permute.xlu0 %7160
      %7162 = vrot.lane.b32.xlu0 %v7030, 96
      %v7163 = vpop.permute.xlu0 %7162
      %7164 = vrot.lane.b32.xlu0 %v7039, 96
      %v7165 = vpop.permute.xlu0 %7164
      %v7167 = vsel %vm1815, %v6580, %v7083
      %v7169 = vsel %vm1815, %v6583, %v7085
      %v7171 = vsel %vm1815, %v6586, %v7087
      %v7173 = vsel %vm1815, %v6589, %v7089
      %v7175 = vsel %vm1815, %v6592, %v7091
      %v7177 = vsel %vm1815, %v6595, %v7093
      %v7179 = vsel %vm1815, %v6598, %v7095
      %v7181 = vsel %vm1815, %v6601, %v7097
      %v7183 = vsel %vm1815, %v6604, %v7099
      %v7185 = vsel %vm1815, %v6607, %v7101
      %v7187 = vsel %vm1815, %v6610, %v7103
      %v7189 = vsel %vm1815, %v6613, %v7105
      %v7191 = vsel %vm1815, %v6616, %v7107
      %v7193 = vsel %vm1815, %v6619, %v7109
      %v7195 = vsel %vm4102, %v7167, %v7111
      %v7197 = vsel %vm4102, %v7169, %v7113
      %v7199 = vsel %vm4102, %v7171, %v7115
      %v7201 = vsel %vm4102, %v7173, %v7117
      %v7203 = vsel %vm4102, %v7175, %v7119
      %v7205 = vsel %vm4102, %v7177, %v7121
      %v7207 = vsel %vm4102, %v7179, %v7123
      %v7209 = vsel %vm4102, %v7181, %v7125
      %v7211 = vsel %vm4102, %v7183, %v7127
      %v7213 = vsel %vm4102, %v7185, %v7129
      %v7215 = vsel %vm4102, %v7187, %v7131
      %v7217 = vsel %vm4102, %v7189, %v7133
      %v7219 = vsel %vm4102, %v7191, %v7135
      %v7221 = vsel %vm4102, %v7193, %v7137
      %vm7222 = vcmask 785408
      %v7224 = vsel %vm7222, %v7195, %v7139
      %v7227 = vsel %vm7222, %v7197, %v7141
      %v7230 = vsel %vm7222, %v7199, %v7143
      %v7233 = vsel %vm7222, %v7201, %v7145
      %v7236 = vsel %vm7222, %v7203, %v7147
      %v7239 = vsel %vm7222, %v7205, %v7149
      %v7242 = vsel %vm7222, %v7207, %v7151
      %v7245 = vsel %vm7222, %v7209, %v7153
      %v7248 = vsel %vm7222, %v7211, %v7155
      %v7251 = vsel %vm7222, %v7213, %v7157
      %v7254 = vsel %vm7222, %v7215, %v7159
      %v7257 = vsel %vm7222, %v7217, %v7161
      %v7260 = vsel %vm7222, %v7219, %v7163
      %v7263 = vsel %vm7222, %v7221, %v7165
      %v7265 = vshrl.u32 %v6622, 16
      %v7267 = vshll.u32 %v6622, 16
      %v7269 = vrot.slane %v7267, 1
      %v7270 = vor.u32 %v7265, %v7269
      %v7272 = vshll.u32 %v6688, 16
      %v7274 = vrot.slane %v7272, 1
      %v7275 = vsel %vm865, %v7270, %v7274
      %v7278 = vrot.slane %v6622, 1
      %v7279 = vrot.slane %v6688, 1
      %v7280 = vsel %vm1022, %v7278, %v7279
      %v7281 = vrot.slane %v7265, 1
      %v7282 = vrot.slane %v7267, 2
      %v7283 = vor.u32 %v7281, %v7282
      %v7284 = vshrl.u32 %v6688, 16
      %v7286 = vrot.slane %v7284, 1
      %v7287 = vrot.slane %v7272, 2
      %v7288 = vor.u32 %v7286, %v7287
      %v7289 = vsel %vm1059, %v7283, %v7288
      %v7290 = vrot.slane %v6622, 2
      %v7291 = vrot.slane %v6688, 2
      %v7292 = vsel %vm1168, %v7290, %v7291
      %7293 = vrot.lane.b32.xlu0 %v7275, 32
      %v7294 = vpop.permute.xlu0 %7293
      %7295 = vrot.lane.b32.xlu0 %v7280, 64
      %v7296 = vpop.permute.xlu0 %7295
      %7297 = vrot.lane.b32.xlu0 %v7289, 96
      %v7298 = vpop.permute.xlu0 %7297
      %v7300 = vsel %vm1815, %v6622, %v7294
      %v7302 = vsel %vm4102, %v7300, %v7296
      %v7304 = vsel %vm7222, %v7302, %v7298
      %v7305 = vshrl.u32 %v6625, 16
      %v7307 = vshll.u32 %v6625, 16
      %v7309 = vrot.slane %v7307, 1
      %v7310 = vor.u32 %v7305, %v7309
      %v7312 = vshll.u32 %v6689, 16
      %v7314 = vrot.slane %v7312, 1
      %v7315 = vsel %vm865, %v7310, %v7314
      %v7318 = vrot.slane %v6625, 1
      %v7319 = vrot.slane %v6689, 1
      %v7320 = vsel %vm1022, %v7318, %v7319
      %v7321 = vrot.slane %v7305, 1
      %v7322 = vrot.slane %v7307, 2
      %v7323 = vor.u32 %v7321, %v7322
      %v7324 = vshrl.u32 %v6689, 16
      %v7326 = vrot.slane %v7324, 1
      %v7327 = vrot.slane %v7312, 2
      %v7328 = vor.u32 %v7326, %v7327
      %v7329 = vsel %vm1059, %v7323, %v7328
      %v7330 = vrot.slane %v6625, 2
      %v7331 = vrot.slane %v6689, 2
      %v7332 = vsel %vm1168, %v7330, %v7331
      %7333 = vrot.lane.b32.xlu0 %v7315, 32
      %v7334 = vpop.permute.xlu0 %7333
      %7335 = vrot.lane.b32.xlu0 %v7320, 64
      %v7336 = vpop.permute.xlu0 %7335
      %7337 = vrot.lane.b32.xlu0 %v7329, 96
      %v7338 = vpop.permute.xlu0 %7337
      %v7340 = vsel %vm1815, %v6625, %v7334
      %v7342 = vsel %vm4102, %v7340, %v7336
      %v7344 = vsel %vm7222, %v7342, %v7338
      %7362 = vrot.lane.b32.xlu0 %v7227, 32
      %v7363 = vpop.permute.xlu0 %7362
      %7364 = vrot.lane.b32.xlu0 %v7045, 32
      %v7365 = vpop.permute.xlu0 %7364
      %7366 = vrot.lane.b32.xlu0 %v7230, 32
      %v7367 = vpop.permute.xlu0 %7366
      %7368 = vrot.lane.b32.xlu0 %v7048, 32
      %v7369 = vpop.permute.xlu0 %7368
      %7370 = vrot.lane.b32.xlu0 %v7224, 32
      %v7371 = vpop.permute.xlu0 %7370
      %7372 = vrot.lane.b32.xlu0 %v7042, 32
      %v7373 = vpop.permute.xlu0 %7372
      %7374 = vrot.lane.b32.xlu0 %v7233, 32
      %v7375 = vpop.permute.xlu0 %7374
      %7376 = vrot.lane.b32.xlu0 %v7051, 32
      %v7377 = vpop.permute.xlu0 %7376
      %7378 = vrot.lane.b32.xlu0 %v7236, 32
      %v7379 = vpop.permute.xlu0 %7378
      %7380 = vrot.lane.b32.xlu0 %v7054, 32
      %v7381 = vpop.permute.xlu0 %7380
      %7382 = vrot.lane.b32.xlu0 %v7239, 32
      %v7383 = vpop.permute.xlu0 %7382
      %7384 = vrot.lane.b32.xlu0 %v7057, 32
      %v7385 = vpop.permute.xlu0 %7384
      %7386 = vrot.lane.b32.xlu0 %v7242, 32
      %v7387 = vpop.permute.xlu0 %7386
      %7388 = vrot.lane.b32.xlu0 %v7060, 32
      %v7389 = vpop.permute.xlu0 %7388
      %7390 = vrot.lane.b32.xlu0 %v7245, 32
      %v7391 = vpop.permute.xlu0 %7390
      %7392 = vrot.lane.b32.xlu0 %v7063, 32
      %v7393 = vpop.permute.xlu0 %7392
      %7394 = vrot.lane.b32.xlu0 %v7248, 32
      %v7395 = vpop.permute.xlu0 %7394
      %7396 = vrot.lane.b32.xlu0 %v7066, 32
      %v7397 = vpop.permute.xlu0 %7396
      %7398 = vrot.lane.b32.xlu0 %v7251, 32
      %v7399 = vpop.permute.xlu0 %7398
      %7400 = vrot.lane.b32.xlu0 %v7069, 32
      %v7401 = vpop.permute.xlu0 %7400
      %7402 = vrot.lane.b32.xlu0 %v7254, 32
      %v7403 = vpop.permute.xlu0 %7402
      %7404 = vrot.lane.b32.xlu0 %v7072, 32
      %v7405 = vpop.permute.xlu0 %7404
      %7406 = vrot.lane.b32.xlu0 %v7257, 32
      %v7407 = vpop.permute.xlu0 %7406
      %7408 = vrot.lane.b32.xlu0 %v7075, 32
      %v7409 = vpop.permute.xlu0 %7408
      %7410 = vrot.lane.b32.xlu0 %v7260, 32
      %v7411 = vpop.permute.xlu0 %7410
      %7412 = vrot.lane.b32.xlu0 %v7078, 32
      %v7413 = vpop.permute.xlu0 %7412
      %7414 = vrot.lane.b32.xlu0 %v7263, 32
      %v7415 = vpop.permute.xlu0 %7414
      %7416 = vrot.lane.b32.xlu0 %v7081, 32
      %v7417 = vpop.permute.xlu0 %7416
      %7418 = vrot.lane.b32.xlu0 %v7304, 32
      %v7419 = vpop.permute.xlu0 %7418
      %7420 = vrot.lane.b32.xlu0 %v7292, 32
      %v7421 = vpop.permute.xlu0 %7420
      %vm7422 = vcmask 261120
      %v7423 = vsel %vm7422, %v7363, %v7365
      %v7424 = vsel %vm7422, %v7367, %v7369
      %v7425 = vsel %vm7422, %v7371, %v7373
      %v7426 = vsel %vm7422, %v7375, %v7377
      %v7427 = vsel %vm7422, %v7379, %v7381
      %v7428 = vsel %vm7422, %v7383, %v7385
      %v7429 = vsel %vm7422, %v7387, %v7389
      %v7430 = vsel %vm7422, %v7391, %v7393
      %v7431 = vsel %vm7422, %v7395, %v7397
      %v7432 = vsel %vm7422, %v7399, %v7401
      %v7433 = vsel %vm7422, %v7403, %v7405
      %v7434 = vsel %vm7422, %v7407, %v7409
      %v7435 = vsel %vm7422, %v7411, %v7413
      %v7436 = vsel %vm7422, %v7415, %v7417
      %v7437 = vsel %vm7422, %v7419, %v7421
      %7439 = vrot.lane.b32.xlu0 %v7230, 64
      %v7440 = vpop.permute.xlu0 %7439
      %7441 = vrot.lane.b32.xlu0 %v7048, 64
      %v7442 = vpop.permute.xlu0 %7441
      %7443 = vrot.lane.b32.xlu0 %v7227, 64
      %v7444 = vpop.permute.xlu0 %7443
      %7445 = vrot.lane.b32.xlu0 %v7045, 64
      %v7446 = vpop.permute.xlu0 %7445
      %7447 = vrot.lane.b32.xlu0 %v7224, 64
      %v7448 = vpop.permute.xlu0 %7447
      %7449 = vrot.lane.b32.xlu0 %v7042, 64
      %v7450 = vpop.permute.xlu0 %7449
      %7451 = vrot.lane.b32.xlu0 %v7233, 64
      %v7452 = vpop.permute.xlu0 %7451
      %7453 = vrot.lane.b32.xlu0 %v7051, 64
      %v7454 = vpop.permute.xlu0 %7453
      %7455 = vrot.lane.b32.xlu0 %v7236, 64
      %v7456 = vpop.permute.xlu0 %7455
      %7457 = vrot.lane.b32.xlu0 %v7054, 64
      %v7458 = vpop.permute.xlu0 %7457
      %7459 = vrot.lane.b32.xlu0 %v7239, 64
      %v7460 = vpop.permute.xlu0 %7459
      %7461 = vrot.lane.b32.xlu0 %v7057, 64
      %v7462 = vpop.permute.xlu0 %7461
      %7463 = vrot.lane.b32.xlu0 %v7242, 64
      %v7464 = vpop.permute.xlu0 %7463
      %7465 = vrot.lane.b32.xlu0 %v7060, 64
      %v7466 = vpop.permute.xlu0 %7465
      %7467 = vrot.lane.b32.xlu0 %v7245, 64
      %v7468 = vpop.permute.xlu0 %7467
      %7469 = vrot.lane.b32.xlu0 %v7063, 64
      %v7470 = vpop.permute.xlu0 %7469
      %7471 = vrot.lane.b32.xlu0 %v7248, 64
      %v7472 = vpop.permute.xlu0 %7471
      %7473 = vrot.lane.b32.xlu0 %v7066, 64
      %v7474 = vpop.permute.xlu0 %7473
      %7475 = vrot.lane.b32.xlu0 %v7251, 64
      %v7476 = vpop.permute.xlu0 %7475
      %7477 = vrot.lane.b32.xlu0 %v7069, 64
      %v7478 = vpop.permute.xlu0 %7477
      %7479 = vrot.lane.b32.xlu0 %v7254, 64
      %v7480 = vpop.permute.xlu0 %7479
      %7481 = vrot.lane.b32.xlu0 %v7072, 64
      %v7482 = vpop.permute.xlu0 %7481
      %7483 = vrot.lane.b32.xlu0 %v7257, 64
      %v7484 = vpop.permute.xlu0 %7483
      %7485 = vrot.lane.b32.xlu0 %v7075, 64
      %v7486 = vpop.permute.xlu0 %7485
      %7487 = vrot.lane.b32.xlu0 %v7260, 64
      %v7488 = vpop.permute.xlu0 %7487
      %7489 = vrot.lane.b32.xlu0 %v7078, 64
      %v7490 = vpop.permute.xlu0 %7489
      %7491 = vrot.lane.b32.xlu0 %v7263, 64
      %v7492 = vpop.permute.xlu0 %7491
      %7493 = vrot.lane.b32.xlu0 %v7081, 64
      %v7494 = vpop.permute.xlu0 %7493
      %7495 = vrot.lane.b32.xlu0 %v7304, 64
      %v7496 = vpop.permute.xlu0 %7495
      %7497 = vrot.lane.b32.xlu0 %v7292, 64
      %v7498 = vpop.permute.xlu0 %7497
      %7499 = vrot.lane.b32.xlu0 %v7344, 64
      %v7500 = vpop.permute.xlu0 %7499
      %7501 = vrot.lane.b32.xlu0 %v7332, 64
      %v7502 = vpop.permute.xlu0 %7501
      %v7503 = vsel %vm4399, %v7440, %v7442
      %v7504 = vsel %vm4399, %v7444, %v7446
      %v7505 = vsel %vm4399, %v7448, %v7450
      %v7506 = vsel %vm4399, %v7452, %v7454
      %v7507 = vsel %vm4399, %v7456, %v7458
      %v7508 = vsel %vm4399, %v7460, %v7462
      %v7509 = vsel %vm4399, %v7464, %v7466
      %v7510 = vsel %vm4399, %v7468, %v7470
      %v7511 = vsel %vm4399, %v7472, %v7474
      %v7512 = vsel %vm4399, %v7476, %v7478
      %v7513 = vsel %vm4399, %v7480, %v7482
      %v7514 = vsel %vm4399, %v7484, %v7486
      %v7515 = vsel %vm4399, %v7488, %v7490
      %v7516 = vsel %vm4399, %v7492, %v7494
      %v7517 = vsel %vm4399, %v7496, %v7498
      %v7518 = vsel %vm4399, %v7500, %v7502
      %7519 = vrot.lane.b32.xlu0 %v7227, 96
      %v7520 = vpop.permute.xlu0 %7519
      %7521 = vrot.lane.b32.xlu0 %v7045, 96
      %v7522 = vpop.permute.xlu0 %7521
      %7523 = vrot.lane.b32.xlu0 %v7224, 96
      %v7524 = vpop.permute.xlu0 %7523
      %7525 = vrot.lane.b32.xlu0 %v7042, 96
      %v7526 = vpop.permute.xlu0 %7525
      %7527 = vrot.lane.b32.xlu0 %v7233, 96
      %v7528 = vpop.permute.xlu0 %7527
      %7529 = vrot.lane.b32.xlu0 %v7051, 96
      %v7530 = vpop.permute.xlu0 %7529
      %7531 = vrot.lane.b32.xlu0 %v7236, 96
      %v7532 = vpop.permute.xlu0 %7531
      %7533 = vrot.lane.b32.xlu0 %v7054, 96
      %v7534 = vpop.permute.xlu0 %7533
      %7535 = vrot.lane.b32.xlu0 %v7239, 96
      %v7536 = vpop.permute.xlu0 %7535
      %7537 = vrot.lane.b32.xlu0 %v7057, 96
      %v7538 = vpop.permute.xlu0 %7537
      %7539 = vrot.lane.b32.xlu0 %v7242, 96
      %v7540 = vpop.permute.xlu0 %7539
      %7541 = vrot.lane.b32.xlu0 %v7060, 96
      %v7542 = vpop.permute.xlu0 %7541
      %7543 = vrot.lane.b32.xlu0 %v7245, 96
      %v7544 = vpop.permute.xlu0 %7543
      %7545 = vrot.lane.b32.xlu0 %v7063, 96
      %v7546 = vpop.permute.xlu0 %7545
      %7547 = vrot.lane.b32.xlu0 %v7248, 96
      %v7548 = vpop.permute.xlu0 %7547
      %7549 = vrot.lane.b32.xlu0 %v7066, 96
      %v7550 = vpop.permute.xlu0 %7549
      %7551 = vrot.lane.b32.xlu0 %v7251, 96
      %v7552 = vpop.permute.xlu0 %7551
      %7553 = vrot.lane.b32.xlu0 %v7069, 96
      %v7554 = vpop.permute.xlu0 %7553
      %7555 = vrot.lane.b32.xlu0 %v7254, 96
      %v7556 = vpop.permute.xlu0 %7555
      %7557 = vrot.lane.b32.xlu0 %v7072, 96
      %v7558 = vpop.permute.xlu0 %7557
      %7559 = vrot.lane.b32.xlu0 %v7257, 96
      %v7560 = vpop.permute.xlu0 %7559
      %7561 = vrot.lane.b32.xlu0 %v7075, 96
      %v7562 = vpop.permute.xlu0 %7561
      %7563 = vrot.lane.b32.xlu0 %v7260, 96
      %v7564 = vpop.permute.xlu0 %7563
      %7565 = vrot.lane.b32.xlu0 %v7078, 96
      %v7566 = vpop.permute.xlu0 %7565
      %7567 = vrot.lane.b32.xlu0 %v7263, 96
      %v7568 = vpop.permute.xlu0 %7567
      %7569 = vrot.lane.b32.xlu0 %v7081, 96
      %v7570 = vpop.permute.xlu0 %7569
      %7571 = vrot.lane.b32.xlu0 %v7304, 96
      %v7572 = vpop.permute.xlu0 %7571
      %7573 = vrot.lane.b32.xlu0 %v7292, 96
      %v7574 = vpop.permute.xlu0 %7573
      %7575 = vrot.lane.b32.xlu0 %v7344, 96
      %v7576 = vpop.permute.xlu0 %7575
      %7577 = vrot.lane.b32.xlu0 %v7332, 96
      %v7578 = vpop.permute.xlu0 %7577
      %vm7579 = vcmask 785408
      %v7580 = vsel %vm7579, %v7520, %v7522
      %v7581 = vsel %vm7579, %v7524, %v7526
      %v7582 = vsel %vm7579, %v7528, %v7530
      %v7583 = vsel %vm7579, %v7532, %v7534
      %v7584 = vsel %vm7579, %v7536, %v7538
      %v7585 = vsel %vm7579, %v7540, %v7542
      %v7586 = vsel %vm7579, %v7544, %v7546
      %v7587 = vsel %vm7579, %v7548, %v7550
      %v7588 = vsel %vm7579, %v7552, %v7554
      %v7589 = vsel %vm7579, %v7556, %v7558
      %v7590 = vsel %vm7579, %v7560, %v7562
      %v7591 = vsel %vm7579, %v7564, %v7566
      %v7592 = vsel %vm7579, %v7568, %v7570
      %v7593 = vsel %vm7579, %v7572, %v7574
      %v7594 = vsel %vm7579, %v7576, %v7578
      %v7612 = vsel %vm1815, %v7042, %v7363
      %v7616 = vsel %vm1815, %v7045, %v7367
      %v7619 = vsel %vm1815, %v7048, %v7363
      %v7622 = vsel %vm1815, %v7045, %v7371
      %v7625 = vsel %vm1815, %v7042, %v7375
      %v7629 = vsel %vm1815, %v7051, %v7379
      %v7633 = vsel %vm1815, %v7054, %v7383
      %v7637 = vsel %vm1815, %v7057, %v7387
      %v7641 = vsel %vm1815, %v7060, %v7391
      %v7645 = vsel %vm1815, %v7063, %v7395
      %v7649 = vsel %vm1815, %v7066, %v7399
      %v7653 = vsel %vm1815, %v7069, %v7403
      %v7657 = vsel %vm1815, %v7072, %v7407
      %v7661 = vsel %vm1815, %v7075, %v7411
      %v7665 = vsel %vm1815, %v7078, %v7415
      %v7669 = vsel %vm1815, %v7081, %v7419
      %v7673 = vsel %vm4102, %v7423, %v7440
      %v7677 = vsel %vm4102, %v7424, %v7444
      %v7680 = vsel %vm4102, %v7423, %v7448
      %v7684 = vsel %vm4102, %v7425, %v7452
      %v7688 = vsel %vm4102, %v7426, %v7456
      %v7692 = vsel %vm4102, %v7427, %v7460
      %v7696 = vsel %vm4102, %v7428, %v7464
      %v7700 = vsel %vm4102, %v7429, %v7468
      %v7704 = vsel %vm4102, %v7430, %v7472
      %v7708 = vsel %vm4102, %v7431, %v7476
      %v7712 = vsel %vm4102, %v7432, %v7480
      %v7716 = vsel %vm4102, %v7433, %v7484
      %v7720 = vsel %vm4102, %v7434, %v7488
      %v7724 = vsel %vm4102, %v7435, %v7492
      %v7728 = vsel %vm4102, %v7436, %v7496
      %v7732 = vsel %vm4102, %v7437, %v7500
      %v7736 = vsel %vm7222, %v7503, %v7520
      %v7740 = vsel %vm7222, %v7504, %v7524
      %v7744 = vsel %vm7222, %v7505, %v7528
      %v7748 = vsel %vm7222, %v7506, %v7532
      %v7752 = vsel %vm7222, %v7507, %v7536
      %v7756 = vsel %vm7222, %v7508, %v7540
      %v7760 = vsel %vm7222, %v7509, %v7544
      %v7764 = vsel %vm7222, %v7510, %v7548
      %v7768 = vsel %vm7222, %v7511, %v7552
      %v7772 = vsel %vm7222, %v7512, %v7556
      %v7776 = vsel %vm7222, %v7513, %v7560
      %v7780 = vsel %vm7222, %v7514, %v7564
      %v7784 = vsel %vm7222, %v7515, %v7568
      %v7788 = vsel %vm7222, %v7516, %v7572
      %v7792 = vsel %vm7222, %v7517, %v7576
      %v7795 = vsel %vm7222, %v7518, %v7572
      %v7798 = vlaneseq
      %v7799 = vshrl.u32 %v7798, 7
      %v7800 = vsub.s32 0, %v7799
      %v7801 = vrot.slane %v6433, %v7800
      %v7903 = vunpack.c.l.b16 %v6333
      %v7904 = vunpack.c.l.b16 %v6334
      %v7905 = vunpack.c.l.b16 %v6335
      %v7906 = vunpack.c.l.b16 %v6336
      %v7907 = vunpack.c.l.b16 %v6337
      %v7908 = vunpack.c.l.b16 %v6338
      %v7909 = vunpack.c.l.b16 %v6339
      %v7910 = vunpack.c.l.b16 %v6340
      %v7911 = vunpack.c.l.b16 %v6341
      %v7912 = vunpack.c.l.b16 %v6342
      %v7913 = vunpack.c.l.b16 %v6343
      %v7914 = vunpack.c.l.b16 %v6344
      %v7915 = vunpack.c.l.b16 %v6345
      %v7916 = vunpack.c.l.b16 %v6346
      %v7917 = vunpack.c.l.b16 %v6347
      %v7918 = vunpack.c.l.b16 %v6348
      %v7919 = vunpack.c.l.b16 %v6349
      %v7920 = vunpack.c.l.b16 %v6350
      %v7921 = vunpack.c.l.b16 %v6351
      %v7922 = vunpack.c.l.b16 %v6352
      %v7923 = vunpack.c.l.b16 %v6353
      %v7924 = vunpack.c.l.b16 %v6354
      %v7925 = vunpack.c.l.b16 %v6355
      %v7926 = vunpack.c.l.b16 %v6356
      %v7927 = vunpack.c.l.b16 %v6357
      %v7928 = vunpack.c.l.b16 %v6358
      %v7929 = vunpack.c.l.b16 %v6359
      %v7930 = vunpack.c.l.b16 %v6360
      %v7931 = vunpack.c.l.b16 %v6361
      %v7932 = vunpack.c.l.b16 %v6362
      %v7933 = vunpack.c.l.b16 %v6363
      %v7934 = vunpack.c.l.b16 %v6364
      %v7935 = vunpack.c.l.b16 %v6365
      %v7936 = vunpack.c.l.b16 %v6366
      %v7937 = vunpack.c.l.b16 %v6367
      %v7938 = vunpack.c.l.b16 %v6368
      %v7939 = vunpack.c.l.b16 %v6369
      %v7940 = vunpack.c.l.b16 %v6370
      %v7941 = vunpack.c.l.b16 %v6371
      %v7942 = vunpack.c.l.b16 %v6372
      %v7943 = vunpack.c.l.b16 %v6373
      %v7944 = vunpack.c.l.b16 %v6374
      %v7945 = vunpack.c.l.b16 %v6375
      %v7946 = vunpack.c.l.b16 %v6376
      %v7947 = vunpack.c.l.b16 %v6377
      %v7948 = vunpack.c.l.b16 %v6378
      %v7949 = vunpack.c.l.b16 %v6379
      %v7950 = vunpack.c.l.b16 %v6380
      %v7951 = vunpack.c.l.b16 %v6381
      %v7952 = vunpack.c.l.b16 %v6382
      %v7953 = vunpack.c.l.b16 %v6383
      %v7954 = vunpack.c.l.b16 %v6384
      %v7955 = vunpack.c.l.b16 %v6385
      %v7956 = vunpack.c.l.b16 %v6386
      %v7957 = vunpack.c.l.b16 %v6387
      %v7958 = vunpack.c.l.b16 %v6388
      %v7959 = vunpack.c.l.b16 %v6389
      %v7960 = vunpack.c.l.b16 %v6390
      %v7961 = vunpack.c.l.b16 %v6391
      %v7962 = vunpack.c.l.b16 %v6392
      %v7963 = vunpack.c.l.b16 %v6393
      %v7964 = vunpack.c.l.b16 %v6394
      %v7965 = vunpack.c.l.b16 %v6395
      %v7966 = vunpack.c.l.b16 %v6396
      %v7967 = vunpack.c.l.b16 %v6397
      %v7968 = vunpack.c.l.b16 %v6398
      %v7969 = vunpack.c.l.b16 %v6399
      %v7970 = vunpack.c.l.b16 %v6400
      %v7971 = vunpack.c.l.b16 %v6401
      %v7972 = vunpack.c.l.b16 %v6402
      %v7973 = vunpack.c.l.b16 %v6403
      %v7974 = vunpack.c.l.b16 %v6404
      %v7975 = vunpack.c.l.b16 %v6405
      %v7976 = vunpack.c.l.b16 %v6406
      %v7977 = vunpack.c.l.b16 %v6407
      %v7978 = vunpack.c.l.b16 %v6408
      %v7979 = vunpack.c.l.b16 %v6409
      %v7980 = vunpack.c.l.b16 %v6410
      %v7981 = vunpack.c.l.b16 %v6411
      %v7982 = vunpack.c.l.b16 %v6412
      %v7983 = vunpack.c.l.b16 %v6413
      %v7984 = vunpack.c.l.b16 %v6414
      %v7985 = vunpack.c.l.b16 %v6415
      %v7986 = vunpack.c.l.b16 %v6416
      %v7987 = vunpack.c.l.b16 %v6417
      %v7988 = vunpack.c.l.b16 %v6418
      %v7989 = vunpack.c.l.b16 %v6419
      %v7990 = vunpack.c.l.b16 %v6420
      %v7991 = vunpack.c.l.b16 %v6421
      %v7992 = vunpack.c.l.b16 %v6422
      %v7993 = vunpack.c.l.b16 %v6423
      %v7994 = vunpack.c.l.b16 %v6424
      %v7995 = vunpack.c.l.b16 %v6425
      %v7996 = vunpack.c.l.b16 %v6426
      %v7997 = vunpack.c.l.b16 %v6427
      %v7998 = vunpack.c.l.b16 %v6428
      %v7999 = vunpack.c.l.b16 %v6429
      %v8000 = vunpack.c.l.b16 %v6430
      %v8001 = vunpack.c.l.b16 %v6431
      %v8002 = vunpack.c.l.b16 %v6432
      %v8003 = vpack.c.b16 %v7904, %v7903
      %v8004 = vpack.c.b16 %v7906, %v7905
      %v8005 = vpack.c.b16 %v7908, %v7907
      %v8006 = vpack.c.b16 %v7910, %v7909
      %v8007 = vpack.c.b16 %v7912, %v7911
      %v8008 = vpack.c.b16 %v7914, %v7913
      %v8009 = vpack.c.b16 %v7916, %v7915
      %v8010 = vpack.c.b16 %v7918, %v7917
      %v8011 = vpack.c.b16 %v7920, %v7919
      %v8012 = vpack.c.b16 %v7922, %v7921
      %v8013 = vpack.c.b16 %v7924, %v7923
      %v8014 = vpack.c.b16 %v7926, %v7925
      %v8015 = vpack.c.b16 %v7928, %v7927
      %v8016 = vpack.c.b16 %v7930, %v7929
      %v8017 = vpack.c.b16 %v7932, %v7931
      %v8018 = vpack.c.b16 %v7934, %v7933
      %v8019 = vpack.c.b16 %v7936, %v7935
      %v8020 = vpack.c.b16 %v7938, %v7937
      %v8021 = vpack.c.b16 %v7940, %v7939
      %v8022 = vpack.c.b16 %v7942, %v7941
      %v8023 = vpack.c.b16 %v7944, %v7943
      %v8024 = vpack.c.b16 %v7946, %v7945
      %v8025 = vpack.c.b16 %v7948, %v7947
      %v8026 = vpack.c.b16 %v7950, %v7949
      %v8027 = vpack.c.b16 %v7952, %v7951
      %v8028 = vpack.c.b16 %v7954, %v7953
      %v8029 = vpack.c.b16 %v7956, %v7955
      %v8030 = vpack.c.b16 %v7958, %v7957
      %v8031 = vpack.c.b16 %v7960, %v7959
      %v8032 = vpack.c.b16 %v7962, %v7961
      %v8033 = vpack.c.b16 %v7964, %v7963
      %v8034 = vpack.c.b16 %v7966, %v7965
      %v8035 = vpack.c.b16 %v7968, %v7967
      %v8036 = vpack.c.b16 %v7970, %v7969
      %v8037 = vpack.c.b16 %v7972, %v7971
      %v8038 = vpack.c.b16 %v7974, %v7973
      %v8039 = vpack.c.b16 %v7976, %v7975
      %v8040 = vpack.c.b16 %v7978, %v7977
      %v8041 = vpack.c.b16 %v7980, %v7979
      %v8042 = vpack.c.b16 %v7982, %v7981
      %v8043 = vpack.c.b16 %v7984, %v7983
      %v8044 = vpack.c.b16 %v7986, %v7985
      %v8045 = vpack.c.b16 %v7988, %v7987
      %v8046 = vpack.c.b16 %v7990, %v7989
      %v8047 = vpack.c.b16 %v7992, %v7991
      %v8048 = vpack.c.b16 %v7994, %v7993
      %v8049 = vpack.c.b16 %v7996, %v7995
      %v8050 = vpack.c.b16 %v7998, %v7997
      %v8051 = vpack.c.b16 %v8000, %v7999
      %v8052 = vpack.c.b16 %v8002, %v8001
      %v8103 = vsel %vm1815, %v7042, 0
      %v8105 = vsel %vm1815, %v7051, 0
      %v8107 = vsel %vm1815, %v7054, 0
      %v8109 = vsel %vm1815, %v7057, 0
      %v8111 = vsel %vm1815, %v7060, 0
      %v8113 = vsel %vm1815, %v7063, 0
      %v8115 = vsel %vm1815, %v7066, 0
      %v8117 = vsel %vm1815, %v7069, 0
      %v8119 = vsel %vm1815, %v7072, 0
      %v8121 = vsel %vm1815, %v7075, 0
      %v8123 = vsel %vm1815, %v7078, 0
      %v8125 = vsel %vm1815, %v7081, 0
      %v8128 = vsel %vm1815, %v7292, 0
      %v8131 = vsel %vm1815, %v7332, 0
      %8133 = vmatprep.subr.bf16.mxu0 0
      %8134 = vmatpush1.bf16.msra.mxu0 %v8003
      %8135 = vmatprep.subr.bf16.mxu0 0
      %8136 = vmatpush1.bf16.msra.mxu0 %v8004
      %8137 = vmatprep.subr.bf16.mxu0 0
      %8138 = vmatpush1.bf16.msra.mxu0 %v8005
      %8139 = vmatprep.subr.bf16.mxu0 0
      %8140 = vmatpush1.bf16.msra.mxu0 %v8006
      %8141 = vmatprep.subr.bf16.mxu0 0
      %8142 = vmatpush1.bf16.msra.mxu0 %v8007
      %8143 = vmatprep.subr.bf16.mxu0 0
      %8144 = vmatpush1.bf16.msra.mxu0 %v8008
      %8145 = vmatprep.subr.bf16.mxu0 0
      %8146 = vmatpush1.bf16.msra.mxu0 %v8009
      %8147 = vmatprep.subr.bf16.mxu0 0
      %8148 = vmatpush1.bf16.msra.mxu0 %v8010
      %8149 = vmatprep.subr.bf16.mxu0 0
      %8150 = vmatpush1.bf16.msra.mxu0 %v8011
      %8151 = vmatprep.subr.bf16.mxu0 0
      %8152 = vmatpush1.bf16.msra.mxu0 %v8012
      %8153 = vmatprep.subr.bf16.mxu0 0
      %8154 = vmatpush1.bf16.msra.mxu0 %v8013
      %8155 = vmatprep.subr.bf16.mxu0 0
      %8156 = vmatpush1.bf16.msra.mxu0 %v8014
      %8157 = vmatprep.subr.bf16.mxu0 0
      %8158 = vmatpush1.bf16.msra.mxu0 %v8015
      %8159 = vmatprep.subr.bf16.mxu0 0
      %8160 = vmatpush1.bf16.msra.mxu0 %v8016
      %8161 = vmatprep.subr.bf16.mxu0 0
      %8162 = vmatpush1.bf16.msra.mxu0 %v8017
      %8163 = vmatprep.subr.bf16.mxu0 0
      %8164 = vmatpush1.bf16.msra.mxu0 %v8018
      %8165 = vmatprep.mubr.bf16.mxu0 %v7612
      %8166 = vmatmul.mubr.bf16.gmra.mrb[0].mxu0 %v7224
      %v8167 = vpop.f32.mrb[0].mxu0
      %v8168 = vadd.f32 %v7801, %v8167
      %v8169 = vpop.f32.mrb[0].mxu0
      %v8170 = vpop.f32.mrb[0].mxu0
      %v8171 = vadd.f32 %v7801, %v8170
      %v8172 = vpop.f32.mrb[0].mxu0
      %8173 = vmatprep.mubr.bf16.mxu0 %v7616
      %8174 = vmatmul.mubr.bf16.gmra.mrb[0].mxu0 %v7227
      %v8175 = vpop.f32.mrb[0].mxu0
      %v8176 = vadd.f32 %v7801, %v8175
      %v8177 = vpop.f32.mrb[0].mxu0
      %v8178 = vpop.f32.mrb[0].mxu0
      %v8179 = vadd.f32 %v7801, %v8178
      %v8180 = vpop.f32.mrb[0].mxu0
      %8181 = vmatprep.mubr.bf16.mxu0 %v7619
      %8182 = vmatmul.mubr.bf16.gmra.mrb[0].mxu0 %v7230
      %v8183 = vpop.f32.mrb[0].mxu0
      %v8184 = vadd.f32 %v7801, %v8183
      %v8185 = vpop.f32.mrb[0].mxu0
      %v8186 = vpop.f32.mrb[0].mxu0
      %v8187 = vadd.f32 %v7801, %v8186
      %v8188 = vpop.f32.mrb[0].mxu0
      %8189 = vmatprep.mubr.bf16.mxu0 %v7622
      %8190 = vmatmul.mubr.bf16.gmra.mrb[0].mxu0 %v7227
      %v8191 = vpop.f32.mrb[0].mxu0
      %v8192 = vadd.f32 %v7801, %v8191
      %v8193 = vpop.f32.mrb[0].mxu0
      %v8194 = vpop.f32.mrb[0].mxu0
      %v8195 = vadd.f32 %v7801, %v8194
      %v8196 = vpop.f32.mrb[0].mxu0
      %8197 = vmatprep.mubr.bf16.mxu0 %v7625
      %8198 = vmatmul.mubr.bf16.gmra.mrb[0].mxu0 %v7224
      %v8199 = vpop.f32.mrb[0].mxu0
      %v8200 = vadd.f32 %v7801, %v8199
      %v8201 = vpop.f32.mrb[0].mxu0
      %v8202 = vpop.f32.mrb[0].mxu0
      %v8203 = vadd.f32 %v7801, %v8202
      %v8204 = vpop.f32.mrb[0].mxu0
      %8205 = vmatprep.mubr.bf16.mxu0 %v7629
      %8206 = vmatmul.mubr.bf16.gmra.mrb[0].mxu0 %v7233
      %v8207 = vpop.f32.mrb[0].mxu0
      %v8208 = vadd.f32 %v7801, %v8207
      %v8209 = vpop.f32.mrb[0].mxu0
      %v8210 = vpop.f32.mrb[0].mxu0
      %v8211 = vadd.f32 %v7801, %v8210
      %v8212 = vpop.f32.mrb[0].mxu0
      %8213 = vmatprep.mubr.bf16.mxu0 %v7633
      %8214 = vmatmul.mubr.bf16.gmra.mrb[0].mxu0 %v7236
      %v8215 = vpop.f32.mrb[0].mxu0
      %v8216 = vadd.f32 %v7801, %v8215
      %v8217 = vpop.f32.mrb[0].mxu0
      %v8218 = vpop.f32.mrb[0].mxu0
      %v8219 = vadd.f32 %v7801, %v8218
      %v8220 = vpop.f32.mrb[0].mxu0
      %8221 = vmatprep.mubr.bf16.mxu0 %v7637
      %8222 = vmatmul.mubr.bf16.gmra.mrb[0].mxu0 %v7239
      %v8223 = vpop.f32.mrb[0].mxu0
      %v8224 = vadd.f32 %v7801, %v8223
      %v8225 = vpop.f32.mrb[0].mxu0
      %v8226 = vpop.f32.mrb[0].mxu0
      %v8227 = vadd.f32 %v7801, %v8226
      %v8228 = vpop.f32.mrb[0].mxu0
      %8229 = vmatprep.mubr.bf16.mxu0 %v7641
      %8230 = vmatmul.mubr.bf16.gmra.mrb[0].mxu0 %v7242
      %v8231 = vpop.f32.mrb[0].mxu0
      %v8232 = vadd.f32 %v7801, %v8231
      %v8233 = vpop.f32.mrb[0].mxu0
      %v8234 = vpop.f32.mrb[0].mxu0
      %v8235 = vadd.f32 %v7801, %v8234
      %v8236 = vpop.f32.mrb[0].mxu0
      %8237 = vmatprep.mubr.bf16.mxu0 %v7645
      %8238 = vmatmul.mubr.bf16.gmra.mrb[0].mxu0 %v7245
      %v8239 = vpop.f32.mrb[0].mxu0
      %v8240 = vadd.f32 %v7801, %v8239
      %v8241 = vpop.f32.mrb[0].mxu0
      %v8242 = vpop.f32.mrb[0].mxu0
      %v8243 = vadd.f32 %v7801, %v8242
      %v8244 = vpop.f32.mrb[0].mxu0
      %8245 = vmatprep.mubr.bf16.mxu0 %v7649
      %8246 = vmatmul.mubr.bf16.gmra.mrb[0].mxu0 %v7248
      %v8247 = vpop.f32.mrb[0].mxu0
      %v8248 = vadd.f32 %v7801, %v8247
      %v8249 = vpop.f32.mrb[0].mxu0
      %v8250 = vpop.f32.mrb[0].mxu0
      %v8251 = vadd.f32 %v7801, %v8250
      %v8252 = vpop.f32.mrb[0].mxu0
      %8253 = vmatprep.mubr.bf16.mxu0 %v7653
      %8254 = vmatmul.mubr.bf16.gmra.mrb[0].mxu0 %v7251
      %v8255 = vpop.f32.mrb[0].mxu0
      %v8256 = vadd.f32 %v7801, %v8255
      %v8257 = vpop.f32.mrb[0].mxu0
      %v8258 = vpop.f32.mrb[0].mxu0
      %v8259 = vadd.f32 %v7801, %v8258
      %v8260 = vpop.f32.mrb[0].mxu0
      %8261 = vmatprep.mubr.bf16.mxu0 %v7657
      %8262 = vmatmul.mubr.bf16.gmra.mrb[0].mxu0 %v7254
      %v8263 = vpop.f32.mrb[0].mxu0
      %v8264 = vadd.f32 %v7801, %v8263
      %v8265 = vpop.f32.mrb[0].mxu0
      %v8266 = vpop.f32.mrb[0].mxu0
      %v8267 = vadd.f32 %v7801, %v8266
      %v8268 = vpop.f32.mrb[0].mxu0
      %8269 = vmatprep.mubr.bf16.mxu0 %v7661
      %8270 = vmatmul.mubr.bf16.gmra.mrb[0].mxu0 %v7257
      %v8271 = vpop.f32.mrb[0].mxu0
      %v8272 = vadd.f32 %v7801, %v8271
      %v8273 = vpop.f32.mrb[0].mxu0
      %v8274 = vpop.f32.mrb[0].mxu0
      %v8275 = vadd.f32 %v7801, %v8274
      %v8276 = vpop.f32.mrb[0].mxu0
      %8277 = vmatprep.mubr.bf16.mxu0 %v7665
      %8278 = vmatmul.mubr.bf16.gmra.mrb[0].mxu0 %v7260
      %v8279 = vpop.f32.mrb[0].mxu0
      %v8280 = vadd.f32 %v7801, %v8279
      %v8281 = vpop.f32.mrb[0].mxu0
      %v8282 = vpop.f32.mrb[0].mxu0
      %v8283 = vadd.f32 %v7801, %v8282
      %v8284 = vpop.f32.mrb[0].mxu0
      %8285 = vmatprep.mubr.bf16.mxu0 %v7669
      %8286 = vmatmul.mubr.bf16.gmra.mrb[0].mxu0 %v7263
      %v8287 = vpop.f32.mrb[0].mxu0
      %v8288 = vadd.f32 %v7801, %v8287
      %v8289 = vpop.f32.mrb[0].mxu0
      %v8290 = vpop.f32.mrb[0].mxu0
      %v8291 = vadd.f32 %v7801, %v8290
      %v8292 = vpop.f32.mrb[0].mxu0
      %8293 = vdwg.mxu0
      %8294 = vmatprep.subr.bf16.mxu0 0
      %8295 = vmatpush1.bf16.msra.mxu0 %v8019
      %8296 = vmatprep.subr.bf16.mxu0 0
      %8297 = vmatpush1.bf16.msra.mxu0 %v8020
      %8298 = vmatprep.subr.bf16.mxu0 0
      %8299 = vmatpush1.bf16.msra.mxu0 %v8021
      %8300 = vmatprep.subr.bf16.mxu0 0
      %8301 = vmatpush1.bf16.msra.mxu0 %v8022
      %8302 = vmatprep.subr.bf16.mxu0 0
      %8303 = vmatpush1.bf16.msra.mxu0 %v8023
      %8304 = vmatprep.subr.bf16.mxu0 0
      %8305 = vmatpush1.bf16.msra.mxu0 %v8024
      %8306 = vmatprep.subr.bf16.mxu0 0
      %8307 = vmatpush1.bf16.msra.mxu0 %v8025
      %8308 = vmatprep.subr.bf16.mxu0 0
      %8309 = vmatpush1.bf16.msra.mxu0 %v8026
      %8310 = vmatprep.subr.bf16.mxu0 0
      %8311 = vmatpush1.bf16.msra.mxu0 %v8027
      %8312 = vmatprep.subr.bf16.mxu0 0
      %8313 = vmatpush1.bf16.msra.mxu0 %v8028
      %8314 = vmatprep.subr.bf16.mxu0 0
      %8315 = vmatpush1.bf16.msra.mxu0 %v8029
      %8316 = vmatprep.subr.bf16.mxu0 0
      %8317 = vmatpush1.bf16.msra.mxu0 %v8030
      %8318 = vmatprep.subr.bf16.mxu0 0
      %8319 = vmatpush1.bf16.msra.mxu0 %v8031
      %8320 = vmatprep.subr.bf16.mxu0 0
      %8321 = vmatpush1.bf16.msra.mxu0 %v8032
      %8322 = vmatprep.subr.bf16.mxu0 0
      %8323 = vmatpush1.bf16.msra.mxu0 %v8033
      %8324 = vmatprep.subr.bf16.mxu0 0
      %8325 = vmatpush1.bf16.msra.mxu0 %v8034
      %8326 = vmatprep.mubr.bf16.mxu0 %v7736
      %8327 = vmatmul.mubr.bf16.gmra.mrb[0].mxu0 %v7673
      %v8328 = vpop.f32.mrb[0].mxu0
      %v8329 = vadd.f32 %v8168, %v8328
      %v8330 = vpop.f32.mrb[0].mxu0
      %v8331 = vpop.f32.mrb[0].mxu0
      %v8332 = vadd.f32 %v8171, %v8331
      %v8333 = vpop.f32.mrb[0].mxu0
      %8334 = vmatprep.mubr.bf16.mxu0 %v7740
      %8335 = vmatmul.mubr.bf16.gmra.mrb[0].mxu0 %v7677
      %v8336 = vpop.f32.mrb[0].mxu0
      %v8337 = vadd.f32 %v8176, %v8336
      %v8338 = vpop.f32.mrb[0].mxu0
      %v8339 = vpop.f32.mrb[0].mxu0
      %v8340 = vadd.f32 %v8179, %v8339
      %v8341 = vpop.f32.mrb[0].mxu0
      %8342 = vmatprep.mubr.bf16.mxu0 %v7744
      %8343 = vmatmul.mubr.bf16.gmra.mrb[0].mxu0 %v7680
      %v8344 = vpop.f32.mrb[0].mxu0
      %v8345 = vadd.f32 %v8184, %v8344
      %v8346 = vpop.f32.mrb[0].mxu0
      %v8347 = vpop.f32.mrb[0].mxu0
      %v8348 = vadd.f32 %v8187, %v8347
      %v8349 = vpop.f32.mrb[0].mxu0
      %8350 = vmatprep.mubr.bf16.mxu0 %v7748
      %8351 = vmatmul.mubr.bf16.gmra.mrb[0].mxu0 %v7684
      %v8352 = vpop.f32.mrb[0].mxu0
      %v8353 = vadd.f32 %v8192, %v8352
      %v8354 = vpop.f32.mrb[0].mxu0
      %v8355 = vpop.f32.mrb[0].mxu0
      %v8356 = vadd.f32 %v8195, %v8355
      %v8357 = vpop.f32.mrb[0].mxu0
      %8358 = vmatprep.mubr.bf16.mxu0 %v7752
      %8359 = vmatmul.mubr.bf16.gmra.mrb[0].mxu0 %v7688
      %v8360 = vpop.f32.mrb[0].mxu0
      %v8361 = vadd.f32 %v8200, %v8360
      %v8362 = vpop.f32.mrb[0].mxu0
      %v8363 = vpop.f32.mrb[0].mxu0
      %v8364 = vadd.f32 %v8203, %v8363
      %v8365 = vpop.f32.mrb[0].mxu0
      %8366 = vmatprep.mubr.bf16.mxu0 %v7756
      %8367 = vmatmul.mubr.bf16.gmra.mrb[0].mxu0 %v7692
      %v8368 = vpop.f32.mrb[0].mxu0
      %v8369 = vadd.f32 %v8208, %v8368
      %v8370 = vpop.f32.mrb[0].mxu0
      %v8371 = vpop.f32.mrb[0].mxu0
      %v8372 = vadd.f32 %v8211, %v8371
      %v8373 = vpop.f32.mrb[0].mxu0
      %8374 = vmatprep.mubr.bf16.mxu0 %v7760
      %8375 = vmatmul.mubr.bf16.gmra.mrb[0].mxu0 %v7696
      %v8376 = vpop.f32.mrb[0].mxu0
      %v8377 = vadd.f32 %v8216, %v8376
      %v8378 = vpop.f32.mrb[0].mxu0
      %v8379 = vpop.f32.mrb[0].mxu0
      %v8380 = vadd.f32 %v8219, %v8379
      %v8381 = vpop.f32.mrb[0].mxu0
      %8382 = vmatprep.mubr.bf16.mxu0 %v7764
      %8383 = vmatmul.mubr.bf16.gmra.mrb[0].mxu0 %v7700
      %v8384 = vpop.f32.mrb[0].mxu0
      %v8385 = vadd.f32 %v8224, %v8384
      %v8386 = vpop.f32.mrb[0].mxu0
      %v8387 = vpop.f32.mrb[0].mxu0
      %v8388 = vadd.f32 %v8227, %v8387
      %v8389 = vpop.f32.mrb[0].mxu0
      %8390 = vmatprep.mubr.bf16.mxu0 %v7768
      %8391 = vmatmul.mubr.bf16.gmra.mrb[0].mxu0 %v7704
      %v8392 = vpop.f32.mrb[0].mxu0
      %v8393 = vadd.f32 %v8232, %v8392
      %v8394 = vpop.f32.mrb[0].mxu0
      %v8395 = vpop.f32.mrb[0].mxu0
      %v8396 = vadd.f32 %v8235, %v8395
      %v8397 = vpop.f32.mrb[0].mxu0
      %8398 = vmatprep.mubr.bf16.mxu0 %v7772
      %8399 = vmatmul.mubr.bf16.gmra.mrb[0].mxu0 %v7708
      %v8400 = vpop.f32.mrb[0].mxu0
      %v8401 = vadd.f32 %v8240, %v8400
      %v8402 = vpop.f32.mrb[0].mxu0
      %v8403 = vpop.f32.mrb[0].mxu0
      %v8404 = vadd.f32 %v8243, %v8403
      %v8405 = vpop.f32.mrb[0].mxu0
      %8406 = vmatprep.mubr.bf16.mxu0 %v7776
      %8407 = vmatmul.mubr.bf16.gmra.mrb[0].mxu0 %v7712
      %v8408 = vpop.f32.mrb[0].mxu0
      %v8409 = vadd.f32 %v8248, %v8408
      %v8410 = vpop.f32.mrb[0].mxu0
      %v8411 = vpop.f32.mrb[0].mxu0
      %v8412 = vadd.f32 %v8251, %v8411
      %v8413 = vpop.f32.mrb[0].mxu0
      %8414 = vmatprep.mubr.bf16.mxu0 %v7780
      %8415 = vmatmul.mubr.bf16.gmra.mrb[0].mxu0 %v7716
      %v8416 = vpop.f32.mrb[0].mxu0
      %v8417 = vadd.f32 %v8256, %v8416
      %v8418 = vpop.f32.mrb[0].mxu0
      %v8419 = vpop.f32.mrb[0].mxu0
      %v8420 = vadd.f32 %v8259, %v8419
      %v8421 = vpop.f32.mrb[0].mxu0
      %8422 = vmatprep.mubr.bf16.mxu0 %v7784
      %8423 = vmatmul.mubr.bf16.gmra.mrb[0].mxu0 %v7720
      %v8424 = vpop.f32.mrb[0].mxu0
      %v8425 = vadd.f32 %v8264, %v8424
      %v8426 = vpop.f32.mrb[0].mxu0
      %v8427 = vpop.f32.mrb[0].mxu0
      %v8428 = vadd.f32 %v8267, %v8427
      %v8429 = vpop.f32.mrb[0].mxu0
      %8430 = vmatprep.mubr.bf16.mxu0 %v7788
      %8431 = vmatmul.mubr.bf16.gmra.mrb[0].mxu0 %v7724
      %v8432 = vpop.f32.mrb[0].mxu0
      %v8433 = vadd.f32 %v8272, %v8432
      %v8434 = vpop.f32.mrb[0].mxu0
      %v8435 = vpop.f32.mrb[0].mxu0
      %v8436 = vadd.f32 %v8275, %v8435
      %v8437 = vpop.f32.mrb[0].mxu0
      %8438 = vmatprep.mubr.bf16.mxu0 %v7792
      %8439 = vmatmul.mubr.bf16.gmra.mrb[0].mxu0 %v7728
      %v8440 = vpop.f32.mrb[0].mxu0
      %v8441 = vadd.f32 %v8280, %v8440
      %v8442 = vpop.f32.mrb[0].mxu0
      %v8443 = vpop.f32.mrb[0].mxu0
      %v8444 = vadd.f32 %v8283, %v8443
      %v8445 = vpop.f32.mrb[0].mxu0
      %8446 = vmatprep.mubr.bf16.mxu0 %v7795
      %8447 = vmatmul.mubr.bf16.gmra.mrb[0].mxu0 %v7732
      %v8448 = vpop.f32.mrb[0].mxu0
      %v8449 = vadd.f32 %v8288, %v8448
      %v8450 = vpop.f32.mrb[0].mxu0
      %v8451 = vpop.f32.mrb[0].mxu0
      %v8452 = vadd.f32 %v8291, %v8451
      %v8453 = vpop.f32.mrb[0].mxu0
      %8454 = vdwg.mxu0
      %8455 = vmatprep.subr.bf16.mxu0 0
      %8456 = vmatpush1.bf16.msra.mxu0 %v8035
      %8457 = vmatprep.subr.bf16.mxu0 0
      %8458 = vmatpush1.bf16.msra.mxu0 %v8036
      %8459 = vmatprep.subr.bf16.mxu0 0
      %8460 = vmatpush1.bf16.msra.mxu0 %v8037
      %8461 = vmatprep.subr.bf16.mxu0 0
      %8462 = vmatpush1.bf16.msra.mxu0 %v8038
      %8463 = vmatprep.subr.bf16.mxu0 0
      %8464 = vmatpush1.bf16.msra.mxu0 %v8039
      %8465 = vmatprep.subr.bf16.mxu0 0
      %8466 = vmatpush1.bf16.msra.mxu0 %v8040
      %8467 = vmatprep.subr.bf16.mxu0 0
      %8468 = vmatpush1.bf16.msra.mxu0 %v8041
      %8469 = vmatprep.subr.bf16.mxu0 0
      %8470 = vmatpush1.bf16.msra.mxu0 %v8042
      %8471 = vmatprep.subr.bf16.mxu0 0
      %8472 = vmatpush1.bf16.msra.mxu0 %v8043
      %8473 = vmatprep.subr.bf16.mxu0 0
      %8474 = vmatpush1.bf16.msra.mxu0 %v8044
      %8475 = vmatprep.subr.bf16.mxu0 0
      %8476 = vmatpush1.bf16.msra.mxu0 %v8045
      %8477 = vmatprep.subr.bf16.mxu0 0
      %8478 = vmatpush1.bf16.msra.mxu0 %v8046
      %8479 = vmatprep.subr.bf16.mxu0 0
      %8480 = vmatpush1.bf16.msra.mxu0 %v8047
      %8481 = vmatprep.subr.bf16.mxu0 0
      %8482 = vmatpush1.bf16.msra.mxu0 %v8048
      %8483 = vmatprep.subr.bf16.mxu0 0
      %8484 = vmatpush1.bf16.msra.mxu0 %v8049
      %8485 = vmatprep.subr.bf16.mxu0 0
      %8486 = vmatpush1.bf16.msra.mxu0 %v8050
      %8487 = vmatprep.mubr.bf16.mxu0 %v7224
      %8488 = vmatmul.mubr.bf16.gmra.mrb[0].mxu0 %v7580
      %v8489 = vpop.f32.mrb[0].mxu0
      %v8490 = vadd.f32 %v8329, %v8489
      %v8491 = vpop.f32.mrb[0].mxu0
      %v8492 = vpop.f32.mrb[0].mxu0
      %v8493 = vadd.f32 %v8332, %v8492
      %v8494 = vpop.f32.mrb[0].mxu0
      %8495 = vmatprep.mubr.bf16.mxu0 %v7233
      %8496 = vmatmul.mubr.bf16.gmra.mrb[0].mxu0 %v7581
      %v8497 = vpop.f32.mrb[0].mxu0
      %v8498 = vadd.f32 %v8337, %v8497
      %v8499 = vpop.f32.mrb[0].mxu0
      %v8500 = vpop.f32.mrb[0].mxu0
      %v8501 = vadd.f32 %v8340, %v8500
      %v8502 = vpop.f32.mrb[0].mxu0
      %8503 = vmatprep.mubr.bf16.mxu0 %v7236
      %8504 = vmatmul.mubr.bf16.gmra.mrb[0].mxu0 %v7582
      %v8505 = vpop.f32.mrb[0].mxu0
      %v8506 = vadd.f32 %v8345, %v8505
      %v8507 = vpop.f32.mrb[0].mxu0
      %v8508 = vpop.f32.mrb[0].mxu0
      %v8509 = vadd.f32 %v8348, %v8508
      %v8510 = vpop.f32.mrb[0].mxu0
      %8511 = vmatprep.mubr.bf16.mxu0 %v7239
      %8512 = vmatmul.mubr.bf16.gmra.mrb[0].mxu0 %v7583
      %v8513 = vpop.f32.mrb[0].mxu0
      %v8514 = vadd.f32 %v8353, %v8513
      %v8515 = vpop.f32.mrb[0].mxu0
      %v8516 = vpop.f32.mrb[0].mxu0
      %v8517 = vadd.f32 %v8356, %v8516
      %v8518 = vpop.f32.mrb[0].mxu0
      %8519 = vmatprep.mubr.bf16.mxu0 %v7242
      %8520 = vmatmul.mubr.bf16.gmra.mrb[0].mxu0 %v7584
      %v8521 = vpop.f32.mrb[0].mxu0
      %v8522 = vadd.f32 %v8361, %v8521
      %v8523 = vpop.f32.mrb[0].mxu0
      %v8524 = vpop.f32.mrb[0].mxu0
      %v8525 = vadd.f32 %v8364, %v8524
      %v8526 = vpop.f32.mrb[0].mxu0
      %8527 = vmatprep.mubr.bf16.mxu0 %v7245
      %8528 = vmatmul.mubr.bf16.gmra.mrb[0].mxu0 %v7585
      %v8529 = vpop.f32.mrb[0].mxu0
      %v8530 = vadd.f32 %v8369, %v8529
      %v8531 = vpop.f32.mrb[0].mxu0
      %v8532 = vpop.f32.mrb[0].mxu0
      %v8533 = vadd.f32 %v8372, %v8532
      %v8534 = vpop.f32.mrb[0].mxu0
      %8535 = vmatprep.mubr.bf16.mxu0 %v7248
      %8536 = vmatmul.mubr.bf16.gmra.mrb[0].mxu0 %v7586
      %v8537 = vpop.f32.mrb[0].mxu0
      %v8538 = vadd.f32 %v8377, %v8537
      %v8539 = vpop.f32.mrb[0].mxu0
      %v8540 = vpop.f32.mrb[0].mxu0
      %v8541 = vadd.f32 %v8380, %v8540
      %v8542 = vpop.f32.mrb[0].mxu0
      %8543 = vmatprep.mubr.bf16.mxu0 %v7251
      %8544 = vmatmul.mubr.bf16.gmra.mrb[0].mxu0 %v7587
      %v8545 = vpop.f32.mrb[0].mxu0
      %v8546 = vadd.f32 %v8385, %v8545
      %v8547 = vpop.f32.mrb[0].mxu0
      %v8548 = vpop.f32.mrb[0].mxu0
      %v8549 = vadd.f32 %v8388, %v8548
      %v8550 = vpop.f32.mrb[0].mxu0
      %8551 = vmatprep.mubr.bf16.mxu0 %v7254
      %8552 = vmatmul.mubr.bf16.gmra.mrb[0].mxu0 %v7588
      %v8553 = vpop.f32.mrb[0].mxu0
      %v8554 = vadd.f32 %v8393, %v8553
      %v8555 = vpop.f32.mrb[0].mxu0
      %v8556 = vpop.f32.mrb[0].mxu0
      %v8557 = vadd.f32 %v8396, %v8556
      %v8558 = vpop.f32.mrb[0].mxu0
      %8559 = vmatprep.mubr.bf16.mxu0 %v7257
      %8560 = vmatmul.mubr.bf16.gmra.mrb[0].mxu0 %v7589
      %v8561 = vpop.f32.mrb[0].mxu0
      %v8562 = vadd.f32 %v8401, %v8561
      %v8563 = vpop.f32.mrb[0].mxu0
      %v8564 = vpop.f32.mrb[0].mxu0
      %v8565 = vadd.f32 %v8404, %v8564
      %v8566 = vpop.f32.mrb[0].mxu0
      %8567 = vmatprep.mubr.bf16.mxu0 %v7260
      %8568 = vmatmul.mubr.bf16.gmra.mrb[0].mxu0 %v7590
      %v8569 = vpop.f32.mrb[0].mxu0
      %v8570 = vadd.f32 %v8409, %v8569
      %v8571 = vpop.f32.mrb[0].mxu0
      %v8572 = vpop.f32.mrb[0].mxu0
      %v8573 = vadd.f32 %v8412, %v8572
      %v8574 = vpop.f32.mrb[0].mxu0
      %8575 = vmatprep.mubr.bf16.mxu0 %v7263
      %8576 = vmatmul.mubr.bf16.gmra.mrb[0].mxu0 %v7591
      %v8577 = vpop.f32.mrb[0].mxu0
      %v8578 = vadd.f32 %v8417, %v8577
      %v8579 = vpop.f32.mrb[0].mxu0
      %v8580 = vpop.f32.mrb[0].mxu0
      %v8581 = vadd.f32 %v8420, %v8580
      %v8582 = vpop.f32.mrb[0].mxu0
      %8583 = vmatprep.mubr.bf16.mxu0 %v7304
      %8584 = vmatmul.mubr.bf16.gmra.mrb[0].mxu0 %v7592
      %v8585 = vpop.f32.mrb[0].mxu0
      %v8586 = vadd.f32 %v8425, %v8585
      %v8587 = vpop.f32.mrb[0].mxu0
      %v8588 = vpop.f32.mrb[0].mxu0
      %v8589 = vadd.f32 %v8428, %v8588
      %v8590 = vpop.f32.mrb[0].mxu0
      %8591 = vmatprep.mubr.bf16.mxu0 %v7344
      %8592 = vmatmul.mubr.bf16.gmra.mrb[0].mxu0 %v7593
      %v8593 = vpop.f32.mrb[0].mxu0
      %v8594 = vadd.f32 %v8433, %v8593
      %v8595 = vpop.f32.mrb[0].mxu0
      %v8596 = vpop.f32.mrb[0].mxu0
      %v8597 = vadd.f32 %v8436, %v8596
      %v8598 = vpop.f32.mrb[0].mxu0
      %8599 = vmatprep.mubr.bf16.mxu0 %v7304
      %8600 = vmatmul.mubr.bf16.gmra.mrb[0].mxu0 %v7594
      %v8601 = vpop.f32.mrb[0].mxu0
      %v8602 = vadd.f32 %v8441, %v8601
      %v8603 = vpop.f32.mrb[0].mxu0
      %v8604 = vpop.f32.mrb[0].mxu0
      %v8605 = vadd.f32 %v8444, %v8604
      %v8606 = vpop.f32.mrb[0].mxu0
      %8607 = vmatprep.mubr.bf16.mxu0 %v7263
      %8608 = vmatmul.mubr.bf16.gmra.mrb[0].mxu0 %v7593
      %v8609 = vpop.f32.mrb[0].mxu0
      %v8610 = vadd.f32 %v8449, %v8609
      %v8611 = vpop.f32.mrb[0].mxu0
      %v8612 = vpop.f32.mrb[0].mxu0
      %v8613 = vadd.f32 %v8452, %v8612
      %v8614 = vpop.f32.mrb[0].mxu0
      %8615 = vdwg.mxu0
      %8616 = vmatprep.subr.bf16.mxu0 0
      %8617 = vmatpush1.bf16.msra.mxu0 %v8051
      %8618 = vmatprep.subr.bf16.mxu0 0
      %8619 = vmatpush1.bf16.msra.mxu0 %v8052
      %8620 = vmatprep.subr.bf16.mxu0 0
      %8621 = vmatpush1.bf16.msra.mxu0 0
      %8622 = vmatprep.subr.bf16.mxu0 0
      %8623 = vmatpush1.bf16.msra.mxu0 0
      %8624 = vmatprep.subr.bf16.mxu0 0
      %8625 = vmatpush1.bf16.msra.mxu0 0
      %8626 = vmatprep.subr.bf16.mxu0 0
      %8627 = vmatpush1.bf16.msra.mxu0 0
      %8628 = vmatprep.subr.bf16.mxu0 0
      %8629 = vmatpush1.bf16.msra.mxu0 0
      %8630 = vmatprep.subr.bf16.mxu0 0
      %8631 = vmatpush1.bf16.msra.mxu0 0
      %8632 = vmatprep.subr.bf16.mxu0 0
      %8633 = vmatpush1.bf16.msra.mxu0 0
      %8634 = vmatprep.subr.bf16.mxu0 0
      %8635 = vmatpush1.bf16.msra.mxu0 0
      %8636 = vmatprep.subr.bf16.mxu0 0
      %8637 = vmatpush1.bf16.msra.mxu0 0
      %8638 = vmatprep.subr.bf16.mxu0 0
      %8639 = vmatpush1.bf16.msra.mxu0 0
      %8640 = vmatprep.subr.bf16.mxu0 0
      %8641 = vmatpush1.bf16.msra.mxu0 0
      %8642 = vmatprep.subr.bf16.mxu0 0
      %8643 = vmatpush1.bf16.msra.mxu0 0
      %8644 = vmatprep.subr.bf16.mxu0 0
      %8645 = vmatpush1.bf16.msra.mxu0 0
      %8646 = vmatprep.subr.bf16.mxu0 0
      %8647 = vmatpush1.bf16.msra.mxu0 0
      %8648 = vmatprep.mubr.bf16.mxu0 0
      %8649 = vmatmul.mubr.bf16.gmra.mrb[0].mxu0 %v8103
      %v8650 = vpop.f32.mrb[0].mxu0
      %v8651 = vadd.f32 %v8490, %v8650
      %v8652 = vpop.f32.mrb[0].mxu0
      %v8653 = vpop.f32.mrb[0].mxu0
      %v8654 = vadd.f32 %v8493, %v8653
      %v8655 = vpop.f32.mrb[0].mxu0
      %8656 = vmatprep.mubr.bf16.mxu0 0
      %8657 = vmatmul.mubr.bf16.gmra.mrb[0].mxu0 %v8105
      %v8658 = vpop.f32.mrb[0].mxu0
      %v8659 = vadd.f32 %v8498, %v8658
      %v8660 = vpop.f32.mrb[0].mxu0
      %v8661 = vpop.f32.mrb[0].mxu0
      %v8662 = vadd.f32 %v8501, %v8661
      %v8663 = vpop.f32.mrb[0].mxu0
      %8664 = vmatprep.mubr.bf16.mxu0 0
      %8665 = vmatmul.mubr.bf16.gmra.mrb[0].mxu0 %v8107
      %v8666 = vpop.f32.mrb[0].mxu0
      %v8667 = vadd.f32 %v8506, %v8666
      %v8668 = vpop.f32.mrb[0].mxu0
      %v8669 = vpop.f32.mrb[0].mxu0
      %v8670 = vadd.f32 %v8509, %v8669
      %v8671 = vpop.f32.mrb[0].mxu0
      %8672 = vmatprep.mubr.bf16.mxu0 0
      %8673 = vmatmul.mubr.bf16.gmra.mrb[0].mxu0 %v8109
      %v8674 = vpop.f32.mrb[0].mxu0
      %v8675 = vadd.f32 %v8514, %v8674
      %v8676 = vpop.f32.mrb[0].mxu0
      %v8677 = vpop.f32.mrb[0].mxu0
      %v8678 = vadd.f32 %v8517, %v8677
      %v8679 = vpop.f32.mrb[0].mxu0
      %8680 = vmatprep.mubr.bf16.mxu0 0
      %8681 = vmatmul.mubr.bf16.gmra.mrb[0].mxu0 %v8111
      %v8682 = vpop.f32.mrb[0].mxu0
      %v8683 = vadd.f32 %v8522, %v8682
      %v8684 = vpop.f32.mrb[0].mxu0
      %v8685 = vpop.f32.mrb[0].mxu0
      %v8686 = vadd.f32 %v8525, %v8685
      %v8687 = vpop.f32.mrb[0].mxu0
      %8688 = vmatprep.mubr.bf16.mxu0 0
      %8689 = vmatmul.mubr.bf16.gmra.mrb[0].mxu0 %v8113
      %v8690 = vpop.f32.mrb[0].mxu0
      %v8691 = vadd.f32 %v8530, %v8690
      %v8692 = vpop.f32.mrb[0].mxu0
      %v8693 = vpop.f32.mrb[0].mxu0
      %v8694 = vadd.f32 %v8533, %v8693
      %v8695 = vpop.f32.mrb[0].mxu0
      %8696 = vmatprep.mubr.bf16.mxu0 0
      %8697 = vmatmul.mubr.bf16.gmra.mrb[0].mxu0 %v8115
      %v8698 = vpop.f32.mrb[0].mxu0
      %v8699 = vadd.f32 %v8538, %v8698
      %v8700 = vpop.f32.mrb[0].mxu0
      %v8701 = vpop.f32.mrb[0].mxu0
      %v8702 = vadd.f32 %v8541, %v8701
      %v8703 = vpop.f32.mrb[0].mxu0
      %8704 = vmatprep.mubr.bf16.mxu0 0
      %8705 = vmatmul.mubr.bf16.gmra.mrb[0].mxu0 %v8117
      %v8706 = vpop.f32.mrb[0].mxu0
      %v8707 = vadd.f32 %v8546, %v8706
      %v8708 = vpop.f32.mrb[0].mxu0
      %v8709 = vpop.f32.mrb[0].mxu0
      %v8710 = vadd.f32 %v8549, %v8709
      %v8711 = vpop.f32.mrb[0].mxu0
      %8712 = vmatprep.mubr.bf16.mxu0 0
      %8713 = vmatmul.mubr.bf16.gmra.mrb[0].mxu0 %v8119
      %v8714 = vpop.f32.mrb[0].mxu0
      %v8715 = vadd.f32 %v8554, %v8714
      %v8716 = vpop.f32.mrb[0].mxu0
      %v8717 = vpop.f32.mrb[0].mxu0
      %v8718 = vadd.f32 %v8557, %v8717
      %v8719 = vpop.f32.mrb[0].mxu0
      %8720 = vmatprep.mubr.bf16.mxu0 0
      %8721 = vmatmul.mubr.bf16.gmra.mrb[0].mxu0 %v8121
      %v8722 = vpop.f32.mrb[0].mxu0
      %v8723 = vadd.f32 %v8562, %v8722
      %v8724 = vpop.f32.mrb[0].mxu0
      %v8725 = vpop.f32.mrb[0].mxu0
      %v8726 = vadd.f32 %v8565, %v8725
      %v8727 = vpop.f32.mrb[0].mxu0
      %8728 = vmatprep.mubr.bf16.mxu0 0
      %8729 = vmatmul.mubr.bf16.gmra.mrb[0].mxu0 %v8123
      %v8730 = vpop.f32.mrb[0].mxu0
      %v8731 = vadd.f32 %v8570, %v8730
      %v8732 = vpop.f32.mrb[0].mxu0
      %v8733 = vpop.f32.mrb[0].mxu0
      %v8734 = vadd.f32 %v8573, %v8733
      %v8735 = vpop.f32.mrb[0].mxu0
      %8736 = vmatprep.mubr.bf16.mxu0 0
      %8737 = vmatmul.mubr.bf16.gmra.mrb[0].mxu0 %v8125
      %v8738 = vpop.f32.mrb[0].mxu0
      %v8739 = vadd.f32 %v8578, %v8738
      %v8740 = vpop.f32.mrb[0].mxu0
      %v8741 = vpop.f32.mrb[0].mxu0
      %v8742 = vadd.f32 %v8581, %v8741
      %v8743 = vpop.f32.mrb[0].mxu0
      %8744 = vmatprep.mubr.bf16.mxu0 0
      %8745 = vmatmul.mubr.bf16.gmra.mrb[0].mxu0 %v8128
      %v8746 = vpop.f32.mrb[0].mxu0
      %v8747 = vadd.f32 %v8586, %v8746
      %v8748 = vpop.f32.mrb[0].mxu0
      %v8749 = vpop.f32.mrb[0].mxu0
      %v8750 = vadd.f32 %v8589, %v8749
      %v8751 = vpop.f32.mrb[0].mxu0
      %8752 = vmatprep.mubr.bf16.mxu0 0
      %8753 = vmatmul.mubr.bf16.gmra.mrb[0].mxu0 %v8131
      %v8754 = vpop.f32.mrb[0].mxu0
      %v8755 = vadd.f32 %v8594, %v8754
      %v8756 = vpop.f32.mrb[0].mxu0
      %v8757 = vpop.f32.mrb[0].mxu0
      %v8758 = vadd.f32 %v8597, %v8757
      %v8759 = vpop.f32.mrb[0].mxu0
      %8760 = vmatprep.mubr.bf16.mxu0 0
      %8761 = vmatmul.mubr.bf16.gmra.mrb[0].mxu0 %v8128
      %v8762 = vpop.f32.mrb[0].mxu0
      %v8763 = vadd.f32 %v8602, %v8762
      %v8764 = vpop.f32.mrb[0].mxu0
      %v8765 = vpop.f32.mrb[0].mxu0
      %v8766 = vadd.f32 %v8605, %v8765
      %v8767 = vpop.f32.mrb[0].mxu0
      %8768 = vmatprep.mubr.bf16.mxu0 0
      %8769 = vmatmul.mubr.bf16.gmra.mrb[0].mxu0 %v8125
      %v8770 = vpop.f32.mrb[0].mxu0
      %v8771 = vadd.f32 %v8610, %v8770
      %v8772 = vpop.f32.mrb[0].mxu0
      %v8773 = vpop.f32.mrb[0].mxu0
      %v8774 = vadd.f32 %v8613, %v8773
      %v8775 = vpop.f32.mrb[0].mxu0
      %8776 = vdwg.mxu0
      %v8777 = vtanh.pop %v8651
      %v8778 = vtanh.pop %v8654
      %v8779 = vtanh.pop %v8659
      %v8780 = vtanh.pop %v8662
      %v8781 = vtanh.pop %v8667
      %v8782 = vtanh.pop %v8670
      %v8783 = vtanh.pop %v8675
      %v8784 = vtanh.pop %v8678
      %v8785 = vtanh.pop %v8683
      %v8786 = vtanh.pop %v8686
      %v8787 = vtanh.pop %v8691
      %v8788 = vtanh.pop %v8694
      %v8789 = vtanh.pop %v8699
      %v8790 = vtanh.pop %v8702
      %v8791 = vtanh.pop %v8707
      %v8792 = vtanh.pop %v8710
      %v8793 = vtanh.pop %v8715
      %v8794 = vtanh.pop %v8718
      %v8795 = vtanh.pop %v8723
      %v8796 = vtanh.pop %v8726
      %v8797 = vtanh.pop %v8731
      %v8798 = vtanh.pop %v8734
      %v8799 = vtanh.pop %v8739
      %v8800 = vtanh.pop %v8742
      %v8801 = vtanh.pop %v8747
      %v8802 = vtanh.pop %v8750
      %v8803 = vtanh.pop %v8755
      %v8804 = vtanh.pop %v8758
      %v8805 = vtanh.pop %v8763
      %v8806 = vtanh.pop %v8766
      %v8807 = vtanh.pop %v8771
      %v8808 = vtanh.pop %v8774
      %8809 = vxpose.xlu0.b32.start [1/16] %v8777, 128
      %8810 = vxpose.xlu0.b32.cont [2/16] %v8778, 128
      %8811 = vxpose.xlu0.b32.cont [3/16] %v8779, 128
      %8812 = vxpose.xlu0.b32.cont [4/16] %v8780, 128
      %8813 = vxpose.xlu0.b32.cont [5/16] %v8781, 128
      %8814 = vxpose.xlu0.b32.cont [6/16] %v8782, 128
      %8815 = vxpose.xlu0.b32.cont [7/16] %v8783, 128
      %8816 = vxpose.xlu0.b32.cont [8/16] %v8784, 128
      %8817 = vxpose.xlu0.b32.cont [9/16] %v8785, 128
      %8818 = vxpose.xlu0.b32.cont [10/16] %v8786, 128
      %8819 = vxpose.xlu0.b32.cont [11/16] %v8787, 128
      %8820 = vxpose.xlu0.b32.cont [12/16] %v8788, 128
      %8821 = vxpose.xlu0.b32.cont [13/16] %v8789, 128
      %8822 = vxpose.xlu0.b32.cont [14/16] %v8790, 128
      %8823 = vxpose.xlu0.b32.cont [15/16] %v8791, 128
      %8824 = vxpose.xlu0.b32.end [16/16] %v8792, 128
      %v8825 = vpop.trf.xlu0
      %v8826 = vpop.trf.xlu0
      %v8827 = vpop.trf.xlu0
      %v8828 = vpop.trf.xlu0
      %v8829 = vpop.trf.xlu0
      %v8830 = vpop.trf.xlu0
      %v8831 = vpop.trf.xlu0
      %v8832 = vpop.trf.xlu0
      %v8833 = vpop.trf.xlu0
      %v8834 = vpop.trf.xlu0
      %v8835 = vpop.trf.xlu0
      %v8836 = vpop.trf.xlu0
      %v8837 = vpop.trf.xlu0
      %v8838 = vpop.trf.xlu0
      %v8839 = vpop.trf.xlu0
      %v8840 = vpop.trf.xlu0
      %8841 = vxpose.xlu0.b32.start [1/16] %v8793, 128
      %8842 = vxpose.xlu0.b32.cont [2/16] %v8794, 128
      %8843 = vxpose.xlu0.b32.cont [3/16] %v8795, 128
      %8844 = vxpose.xlu0.b32.cont [4/16] %v8796, 128
      %8845 = vxpose.xlu0.b32.cont [5/16] %v8797, 128
      %8846 = vxpose.xlu0.b32.cont [6/16] %v8798, 128
      %8847 = vxpose.xlu0.b32.cont [7/16] %v8799, 128
      %8848 = vxpose.xlu0.b32.cont [8/16] %v8800, 128
      %8849 = vxpose.xlu0.b32.cont [9/16] %v8801, 128
      %8850 = vxpose.xlu0.b32.cont [10/16] %v8802, 128
      %8851 = vxpose.xlu0.b32.cont [11/16] %v8803, 128
      %8852 = vxpose.xlu0.b32.cont [12/16] %v8804, 128
      %8853 = vxpose.xlu0.b32.cont [13/16] %v8805, 128
      %8854 = vxpose.xlu0.b32.cont [14/16] %v8806, 128
      %8855 = vxpose.xlu0.b32.cont [15/16] %v8807, 128
      %8856 = vxpose.xlu0.b32.end [16/16] %v8808, 128
      %v8857 = vpop.trf.xlu0
      %v8858 = vpop.trf.xlu0
      %v8859 = vpop.trf.xlu0
      %v8860 = vpop.trf.xlu0
      %v8861 = vpop.trf.xlu0
      %v8862 = vpop.trf.xlu0
      %v8863 = vpop.trf.xlu0
      %v8864 = vpop.trf.xlu0
      %v8865 = vpop.trf.xlu0
      %v8866 = vpop.trf.xlu0
      %v8867 = vpop.trf.xlu0
      %v8868 = vpop.trf.xlu0
      %v8869 = vpop.trf.xlu0
      %v8870 = vpop.trf.xlu0
      %v8871 = vpop.trf.xlu0
      %v8872 = vpop.trf.xlu0
      %8873 = vst [vmem:[%s278] sm:$0xff] %v8825
      %8874 = vst [vmem:[%s278 + $0x8] sm:$0xff] %v8857
      %8875 = vst [vmem:[%s278 + $0x10] sm:$0xff] %v8826
      %8876 = vst [vmem:[%s278 + $0x18] sm:$0xff] %v8858
      %p8877 = scmp.lt.s32.totalorder %s18, 1
      %s8878 = scalar_select %p8877, %s18, 1
      %s8879 = smul.addr %s8878, 4
      %s8880 = smul.addr %s8879, 8
      %s8881 = scalar_lea.vmem %s7, %s8880
      // Predicated region
      $region49: #{espcn_forward.1} parent=47 // pred_check
        %p8882 = pneg %p188
      $region50: #{espcn_forward.1} parent=47 // pred_check_branch
        %8884 = sbr.rel (%p8882) target = $region52
      $region51: #{espcn_forward.1} parent=47 // pred_region
        _
      $region52: #{espcn_forward.1} parent=47 // pred_fallthru
        _
    $region48: #{espcn_forward.1} parent=5 // pred_fallthru
      _
    %p8885 = scmp.le.s32.totalorder 2, %s13
    // Predicated region
    $region53: #{espcn_forward.1} parent=5 // pred_check
      %p8886 = pneg %p8885
    $region54: #{espcn_forward.1} parent=5 // pred_check_branch
      %8888 = sbr.rel (%p8886) target = $region56
    $region55: #{espcn_forward.1} parent=5 // pred_region
      %s8889 = ssub.s32 %s13, 2
      // Predicated region
      $region57: #{espcn_forward.1} parent=55 // pred_check
        %p8890 = pneg %p194
      $region58: #{espcn_forward.1} parent=55 // pred_check_branch
        %8892 = sbr.rel (%p8890) target = $region60
      $region59: #{espcn_forward.1} parent=55 // pred_region
        %p8893 = scmp.lt.s32.totalorder %s19, 1
        %s8894 = scalar_select %p8893, %s19, 1
        %s8895 = smul.addr %s8894, 4
        %s8896 = smul.addr %s8895, 8
        %s8897 = scalar_lea.vmem %s7, %s8896
      $region60: #{espcn_forward.1} parent=55 // pred_fallthru
        _
    $region56: #{espcn_forward.1} parent=5 // pred_fallthru
      _
  $region6: #{espcn_forward.1} parent=0 // loop_footer
    %s17 = sadd.s32 1, %s13
  $region7: #{espcn_forward.1} parent=0 // loop_footer_branch
    %12 = sbr.rel target = $region3
  $region8: #{espcn_forward.1} parent=0 // loop_exit
    _

</llo_original>
